<compile_context>
chip_gen: v7x
topology: tpu7x:2x2x1
jax: 0.10.0
libtpu: 0.0.40
codegen_flags: <defaults>
</compile_context>

<pallas_src>
import math

import jax
import jax.numpy as jnp
from jax.experimental import pallas as pl
from jax.experimental.pallas import tpu as pltpu

LEAKY_SLOPE = 0.2   # tartangan uses LeakyReLU(0.2) as its activation factory
BN_EPS = 1e-5


def _vmem():
    return pl.BlockSpec(memory_space=pltpu.MemorySpace.VMEM)


def _leaky_relu(y):
    # slope in (0, 1)  =>  LeakyReLU(y) == max(y, slope*y)   (vmul + vmax, no select)
    return jnp.maximum(y, LEAKY_SLOPE * y)


# ----------------------------- Pallas kernels ------------------------------

def mlp_input_kernel(z_ref, w_ref, b_ref, o_ref):
    """GeneratorInputMLP: Linear(latent -> latent*S*S) + LeakyReLU.

    Weight columns are pre-permuted (in init_params) to (h, w, c) order so the wrapper
    reshape to NHWC is a pure-metadata XLA reshape.
    TODO(synk): folding this into the fused kernel would need an in-kernel
    lane-splitting reshape ((N, S*S*C) -> (N, S, S, C)); kept separate for robustness.
    """
    y = jnp.dot(z_ref[...], w_ref[...], preferred_element_type=jnp.float32)
    y = y + b_ref[...]
    o_ref[...] = _leaky_relu(y)


def _conv_block(x, pw, gamma, beta):
    """SharedConvBlock, entirely in VMEM, with the 2x upsample folded into the conv.

    x     : (N, H, W, Cin) f32 feature map (NHWC, channels on lanes)
    pw    : (16*Cin, Cout) bf16 -- 4 subpixel phase matrices of shape (4*Cin, Cout)
            stacked along rows in (py, px) order; within a phase rows are (dy, dx, cin).
    gamma : (1, Cout) f32 BatchNorm weight
    beta  : (1, Cout) f32 BatchNorm bias
    Implements: nearest 2x upsample -> 3x3 same conv -> BatchNorm2d(batch stats)
                -> LeakyReLU(0.2), returning (N, 2H, 2W, Cout) f32.
    """
    N, H, W, Cin = x.shape
    Cout = pw.shape[-1]
    K = 4 * Cin
    m = N * H * W

    # bf16 for all data movement / MXU operands (arithmetic below stays f32).
    xb = x.astype(jnp.bfloat16)

    # Zero pad by 1 on H and W at ORIGINAL resolution (only padding needed).
    zr = jnp.zeros((N, 1, W, Cin), jnp.bfloat16)
    xp = jnp.concatenate([zr, xb, zr], axis=1)               # (N, H+2, W, Cin)
    zc = jnp.zeros((N, H + 2, 1, Cin), jnp.bfloat16)
    xp = jnp.concatenate([zc, xp, zc], axis=2)               # (N, H+2, W+2, Cin)

    # 4 phase matmuls with K = 4*Cin on the original-resolution map.
    accs = []
    for p, (py, px) in enumerate(((0, 0), (0, 1), (1, 0), (1, 1))):
        cols = jnp.concatenate(
            [xp[:, py + dy:py + dy + H, px + dx:px + dx + W, :]
             for dy in (0, 1) for dx in (0, 1)], axis=-1)    # (N, H, W, 4*Cin)
        acc = jnp.dot(cols.reshape(m, K), pw[p * K:(p + 1) * K],
                      preferred_element_type=jnp.float32)    # (m, Cout) f32
        accs.append(acc)

    # BatchNorm2d batch statistics over the full output map (all 4 phases), folded
    # into a single per-channel scale/shift.
    # TODO(synk): switch to two-pass/Welford stats in the tiled variant for large
    # N*H*W (single-pass sum/sumsq cancellation); fine at these sizes.
    mt = 4.0 * m
    s1 = accs[0].sum(0, keepdims=True)
    s2 = (accs[0] * accs[0]).sum(0, keepdims=True)
    for a in accs[1:]:
        s1 = s1 + a.sum(0, keepdims=True)
        s2 = s2 + (a * a).sum(0, keepdims=True)
    mean = s1 / mt
    var = jnp.maximum(s2 / mt - mean * mean, 0.0)            # biased variance
    scale = gamma * jax.lax.rsqrt(var + BN_EPS)
    shift = beta - mean * scale

    ys = [_leaky_relu(a * scale + shift).reshape(N, H, W, Cout) for a in accs]

    # Interleave the 4 phases: out[n, 2i+py, 2j+px] = ys[2*py+px][n, i, j].
    row0 = jnp.stack([ys[0], ys[1]], axis=3).reshape(N, H, 2 * W, Cout)
    row1 = jnp.stack([ys[2], ys[3]], axis=3).reshape(N, H, 2 * W, Cout)
    return jnp.stack([row0, row1], axis=2).reshape(N, 2 * H, 2 * W, Cout)


def make_fused_blocks_kernel(num_blocks):
    """Fuses every SharedConvBlock + GeneratorOutput into one kernel body."""

    def kernel(x0_ref, *refs):
        o_ref = refs[-1]                    # (8, N*Hf*Wf) f32 channel-plane output
        ow_ref = refs[-3]                   # (8, C_last) bf16, rows >= data_dims are 0
        ob_ref = refs[-2]                   # (8, 1) f32

        x = x0_ref[...]                     # (N, S, S, latent) f32
        for i in range(num_blocks):
            pw = refs[3 * i][...]           # (16*Cin, Cout) bf16 phase matrices
            gamma = refs[3 * i + 1][...]    # (1, Cout) f32
            beta = refs[3 * i + 2][...]     # (1, Cout) f32
            x = _conv_block(x, pw, gamma, beta)

        # GeneratorOutput: 1x1 conv to channel planes + Tanh.  Output is (8, m) with
        # m a multiple of 128 -> unmasked lane-dense stores; unused rows are zero.
        # TODO(synk): tartangan's output activation may be Sigmoid instead of Tanh.
        N, H, W, C = x.shape
        xt = x.reshape(N * H * W, C).astype(jnp.bfloat16)
        y = jnp.einsum("oc,mc->om", ow_ref[...], xt,
                       preferred_element_type=jnp.float32)   # (8, m) f32
        o_ref[...] = jnp.tanh(y + ob_ref[...])

    return kernel


# -------------------------- VMEM sizing (host side) --------------------------

def _padded_bytes(shape, itemsize):
    """Rough vreg-padded VMEM footprint of one buffer (lane pad 128, sublane pad 8)."""
    lanes = 128 * pl.cdiv(shape[-1], 128)
    sub = 8 * pl.cdiv(shape[-2], 8)
    lead = 1
    for d in shape[:-2]:
        lead *= d
    return lead * sub * lanes * itemsize


def _fused_vmem_bytes(N, size, latent, blocks):
    """Peak live bytes inside the fused kernel (weights are negligible)."""
    H = W = size
    cin = latent
    peak = 0
    x_b = _padded_bytes((N, H, W, cin), 4)                     # block input (f32)
    for cout in blocks:
        xp_b = _padded_bytes((N, H + 2, W + 2, cin), 2)        # padded input (bf16)
        cols_b = _padded_bytes((N, H, W, 4 * cin), 2)          # one phase of cols
        acc_b = 4 * _padded_bytes((N * H * W, cout), 4)        # 4 phase accumulators
        y_b = _padded_bytes((N, 2 * H, 2 * W, cout), 4)        # interleaved output
        peak = max(peak, x_b + xp_b + cols_b + acc_b + y_b)
        H, W, cin = 2 * H, 2 * W, cout
        x_b = _padded_bytes((N, H, W, cin), 4)
    m = N * H * W
    peak = max(peak, x_b + _padded_bytes((m, cin), 2) + 2 * _padded_bytes((8, m), 4))
    return peak


# ------------------------------- Wrappers -----------------------------------

def shared_model_forward(z, params, config):
    latent = config["latent_dims"]
    size = config["base_size"]
    blocks = config["blocks"]
    data_dims = config["data_dims"]
    N = z.shape[0]

    Hf = Wf = size * (2 ** len(blocks))
    m = N * Hf * Wf
    assert m % 128 == 0, "final N*H*W must be a multiple of 128 for lane-dense stores"
    assert data_dims <= 8, "output channel planes are padded to 8 sublane rows"

    # --- GeneratorInputMLP (tiny separate call; its output is only a few KiB) ---
    h0 = pl.pallas_call(
        mlp_input_kernel,
        out_shape=jax.ShapeDtypeStruct((N, size * size * latent), jnp.float32),
        in_specs=[_vmem(), _vmem(), _vmem()],
        out_specs=_vmem(),
    )(z, params["mlp_w"], params["mlp_b"])
    # columns are pre-ordered (h, w, c) -> metadata-only reshape to NHWC
    x0 = h0.reshape(N, size, size, latent)

    # --- fused conv stack + output head (weights already pre-laid-out in init) ---
    block_args = []
    for i in range(len(blocks)):
        gamma, beta = params["bn"][i]
        block_args += [params["phase_w"][i], gamma, beta]

    n_in = 1 + len(block_args) + 2
    # Computed from actual buffer sizes; 32 MiB floor (scoped default), 56 MiB cap
    # keeps headroom under v7x's 64 MiB physical VMEM.  Larger configs need the
    # tiled two-pass variant (see TODO at the top).
    vmem_limit = int(min(max(2 * _fused_vmem_bytes(N, size, latent, blocks),
                             32 * 1024 * 1024), 56 * 1024 * 1024))

    slab = pl.pallas_call(
        make_fused_blocks_kernel(len(blocks)),
        out_shape=jax.ShapeDtypeStruct((8, m), jnp.float32),
        in_specs=[_vmem()] * n_in,
        out_specs=_vmem(),
        compiler_params=pltpu.CompilerParams(vmem_limit_bytes=vmem_limit),
    )(x0, *block_args, params["ow"], params["ob"])

    # (8, m) channel planes -> NCHW image (tiny XLA ops on 3*m elements).
    img = slab[:data_dims].reshape(data_dims, N, Hf, Wf)
    return jnp.transpose(img, (1, 0, 2, 3))


# ---------------------------- Parameter init ---------------------------------

_PHASE_TAPS = {0: ((0,), (1, 2)), 1: ((0, 1), (2,))}   # phase -> (taps for d=0, d=1)


def _phase_weight_mats(w_oihw):
    """3x3 OIHW conv weights -> (16*Cin, Cout) stacked subpixel phase matrices.

    Exact identity: for nearest-2x-upsample + pad-1 + 3x3 conv, output pixel
    (2i+py, 2j+px) only sees input pixels {i-1|i, i|i+1} x {j-1|j, j|j+1}, with weights
    equal to sums of the corresponding 3x3 taps.
    """
    w = jnp.transpose(w_oihw, (2, 3, 1, 0))              # (ky, kx, cin, cout)
    mats = []
    for py in (0, 1):
        for px in (0, 1):
            taps = []
            for dy in (0, 1):
                for dx in (0, 1):
                    t = 0.0
                    for ky in _PHASE_TAPS[py][dy]:
                        for kx in _PHASE_TAPS[px][dx]:
                            t = t + w[ky, kx]
                    taps.append(t)                       # (cin, cout)
            mats.append(jnp.concatenate(taps, axis=0))   # (4*cin, cout)
    return jnp.concatenate(mats, axis=0)                 # (16*cin, cout)


def init_params(key, config):
    latent = config["latent_dims"]
    blocks = config["blocks"]
    size = config["base_size"]
    data_dims = config["data_dims"]

    max_in = max([latent] + blocks)
    max_out = max(blocks)
    k0, k1, k2 = jax.random.split(key, 3)

    # shared_filters: xavier_uniform with gain = calculate_gain('relu') = sqrt(2)
    fan_in, fan_out = max_in * 9, max_out * 9
    bound = math.sqrt(2.0) * math.sqrt(6.0 / (fan_in + fan_out))
    shared = jax.random.uniform(k0, (max_out, max_in, 3, 3), jnp.float32, -bound, bound)

    # Weight sharing: each block slices the single shared bank; the slice is turned
    # into its 4 subpixel phase matrices ONCE here (hoisted out of the forward pass).
    phase_w = []
    cin = latent
    for cout in blocks:
        phase_w.append(_phase_weight_mats(shared[:cout, :cin]).astype(jnp.bfloat16))
        cin = cout

    # GeneratorInputMLP weight; permute columns from PyTorch's (c, h, w) order to
    # (h, w, c) so the kernel output is already NHWC-flattened (no runtime cost).
    w_chw = jax.random.normal(k1, (latent, latent * size * size), jnp.float32) * 0.05
    mlp_w = (w_chw.reshape(latent, latent, size, size)
             .transpose(0, 2, 3, 1)
             .reshape(latent, size * size * latent))
    mlp_b = jnp.zeros((1, size * size * latent), jnp.float32)

    # GeneratorOutput 1x1 conv, padded to 8 channel-plane rows (sublane aligned),
    # bf16 storage for the MXU path; bias stays f32.
    out_w = jax.random.normal(k2, (blocks[-1], data_dims), jnp.float32) * 0.05
    ow = jnp.zeros((8, blocks[-1]), jnp.bfloat16).at[:data_dims].set(
        out_w.T.astype(jnp.bfloat16))
    ob = jnp.zeros((8, 1), jnp.float32)

    bn = [(jnp.ones((1, c), jnp.float32), jnp.zeros((1, c), jnp.float32))
          for c in blocks]

    return dict(phase_w=phase_w, mlp_w=mlp_w, mlp_b=mlp_b, ow=ow, ob=ob, bn=bn)


# ---------------------------------- Main --------------------------------------

if __name__ == "__main__":
    config = dict(latent_dims=16, blocks=[16, 8], base_size=4, data_dims=3)

    key = jax.random.PRNGKey(0)
    pkey, zkey = jax.random.split(key)
    params = init_params(pkey, config)

    z = jax.random.normal(zkey, (2, config["latent_dims"]), jnp.float32)

    fwd = jax.jit(lambda zz, pp: shared_model_forward(zz, pp, config))
    img = jax.block_until_ready(fwd(z, params))

    # max_size = 2**len(blocks) * base_size = 16
    expected = (2, config["data_dims"], 16, 16)
    assert img.shape == expected, (img.shape, expected)
    assert bool(jnp.all(jnp.isfinite(img)))
    print("KERNEL_OK")
</pallas_src>

<mosaic_0001>
module attributes {stable_mosaic.version = 11 : i64} {
  func.func @mlp_input_kernel(%arg0: memref<2x16xf32, #tpu.memory_space<vmem>>, %arg1: memref<16x256xf32, #tpu.memory_space<vmem>>, %arg2: memref<1x256xf32, #tpu.memory_space<vmem>>, %arg3: memref<2x256xf32, #tpu.memory_space<vmem>>) attributes {dimension_semantics = [], scalar_prefetch = 0 : i64, scratch_operands = 0 : i64, tpu.core_type = #tpu.core_type<tc>} {
    %c0 = arith.constant 0 : index
    %c0_0 = arith.constant 0 : index
    %0 = vector.load %arg0[%c0, %c0_0] : memref<2x16xf32, #tpu.memory_space<vmem>>, vector<2x16xf32>
    %c0_1 = arith.constant 0 : index
    %c0_2 = arith.constant 0 : index
    %1 = vector.load %arg1[%c0_1, %c0_2] : memref<16x256xf32, #tpu.memory_space<vmem>>, vector<16x256xf32>
    %cst = arith.constant dense<0.000000e+00> : vector<2x256xf32>
    %2 = tpu.matmul %0, %1, %cst {dimension_numbers = #tpu.dot_dimension_numbers<[1], [0], [0], [1], [0, 0, 1, 1], [], []>} : vector<2x16xf32>, vector<16x256xf32>, vector<2x256xf32> -> vector<2x256xf32>
    %c0_3 = arith.constant 0 : index
    %c0_4 = arith.constant 0 : index
    %3 = vector.load %arg2[%c0_3, %c0_4] : memref<1x256xf32, #tpu.memory_space<vmem>>, vector<1x256xf32>
    %4 = vector.broadcast %3 : vector<1x256xf32> to vector<2x256xf32>
    %5 = arith.addf %2, %4 : vector<2x256xf32>
    %cst_5 = arith.constant 2.000000e-01 : f32
    %6 = vector.broadcast %cst_5 : f32 to vector<2x256xf32>
    %7 = arith.mulf %6, %5 : vector<2x256xf32>
    %8 = arith.maximumf %5, %7 : vector<2x256xf32>
    %c0_6 = arith.constant 0 : index
    %c0_7 = arith.constant 0 : index
    %9 = vector.load %arg3[%c0_6, %c0_7] : memref<2x256xf32, #tpu.memory_space<vmem>>, vector<2x256xf32>
    tpu.vector_store %arg3[%c0_6, %c0_7], %8 {strides = array<i32>} : memref<2x256xf32, #tpu.memory_space<vmem>>, vector<2x256xf32>,
    return
  }
}

module attributes {stable_mosaic.version = 11 : i64} {
  func.func @kernel(%arg0: memref<2x4x4x16xf32, #tpu.memory_space<vmem>>, %arg1: memref<256x16xbf16, #tpu.memory_space<vmem>>, %arg2: memref<1x16xf32, #tpu.memory_space<vmem>>, %arg3: memref<1x16xf32, #tpu.memory_space<vmem>>, %arg4: memref<256x8xbf16, #tpu.memory_space<vmem>>, %arg5: memref<1x8xf32, #tpu.memory_space<vmem>>, %arg6: memref<1x8xf32, #tpu.memory_space<vmem>>, %arg7: memref<8x8xbf16, #tpu.memory_space<vmem>>, %arg8: memref<8x1xf32, #tpu.memory_space<vmem>>, %arg9: memref<8x512xf32, #tpu.memory_space<vmem>>) attributes {dimension_semantics = [], scalar_prefetch = 0 : i64, scratch_operands = 0 : i64, tpu.core_type = #tpu.core_type<tc>} {
    %c0 = arith.constant 0 : index
    %c0_0 = arith.constant 0 : index
    %c0_1 = arith.constant 0 : index
    %c0_2 = arith.constant 0 : index
    %0 = vector.load %arg0[%c0, %c0_0, %c0_1, %c0_2] : memref<2x4x4x16xf32, #tpu.memory_space<vmem>>, vector<2x4x4x16xf32>
    %c0_3 = arith.constant 0 : index
    %c0_4 = arith.constant 0 : index
    %1 = vector.load %arg1[%c0_3, %c0_4] : memref<256x16xbf16, #tpu.memory_space<vmem>>, vector<256x16xbf16>
    %c0_5 = arith.constant 0 : index
    %c0_6 = arith.constant 0 : index
    %2 = vector.load %arg2[%c0_5, %c0_6] : memref<1x16xf32, #tpu.memory_space<vmem>>, vector<1x16xf32>
    %c0_7 = arith.constant 0 : index
    %c0_8 = arith.constant 0 : index
    %3 = vector.load %arg3[%c0_7, %c0_8] : memref<1x16xf32, #tpu.memory_space<vmem>>, vector<1x16xf32>
    %4 = arith.truncf %0 : vector<2x4x4x16xf32> to vector<2x4x4x16xbf16>
    %cst = arith.constant 0.000000e+00 : bf16
    %5 = vector.broadcast %cst : bf16 to vector<2x1x4x16xbf16>
    %6 = tpu.concatenate %5, %4, %5 in 1 : vector<2x1x4x16xbf16>, vector<2x4x4x16xbf16>, vector<2x1x4x16xbf16> -> vector<2x6x4x16xbf16>
    %cst_9 = arith.constant 0.000000e+00 : bf16
    %7 = vector.broadcast %cst_9 : bf16 to vector<2x6x1x16xbf16>
    %8 = tpu.concatenate %7, %6, %7 in 2 : vector<2x6x1x16xbf16>, vector<2x6x4x16xbf16>, vector<2x6x1x16xbf16> -> vector<2x6x6x16xbf16>
    %9 = vector.extract_strided_slice %8 {offsets = [0, 0, 0, 0], sizes = [2, 4, 4, 16], strides = [1, 1, 1, 1]} : vector<2x6x6x16xbf16> to vector<2x4x4x16xbf16>
    %10 = vector.extract_strided_slice %8 {offsets = [0, 0, 1, 0], sizes = [2, 4, 4, 16], strides = [1, 1, 1, 1]} : vector<2x6x6x16xbf16> to vector<2x4x4x16xbf16>
    %11 = vector.extract_strided_slice %8 {offsets = [0, 1, 0, 0], sizes = [2, 4, 4, 16], strides = [1, 1, 1, 1]} : vector<2x6x6x16xbf16> to vector<2x4x4x16xbf16>
    %12 = vector.extract_strided_slice %8 {offsets = [0, 1, 1, 0], sizes = [2, 4, 4, 16], strides = [1, 1, 1, 1]} : vector<2x6x6x16xbf16> to vector<2x4x4x16xbf16>
    %13 = tpu.concatenate %9, %10, %11, %12 in 3 : vector<2x4x4x16xbf16>, vector<2x4x4x16xbf16>, vector<2x4x4x16xbf16>, vector<2x4x4x16xbf16> -> vector<2x4x4x64xbf16>
    %14 = vector.shape_cast %13 : vector<2x4x4x64xbf16> to vector<32x64xbf16>
    %15 = vector.extract_strided_slice %1 {offsets = [0, 0], sizes = [64, 16], strides = [1, 1]} : vector<256x16xbf16> to vector<64x16xbf16>
    %cst_10 = arith.constant dense<0.000000e+00> : vector<32x16xf32>
    %16 = tpu.matmul %14, %15, %cst_10 {dimension_numbers = #tpu.dot_dimension_numbers<[1], [0], [0], [1], [0, 0, 1, 1], [], []>} : vector<32x64xbf16>, vector<64x16xbf16>, vector<32x16xf32> -> vector<32x16xf32>
    %17 = vector.extract_strided_slice %8 {offsets = [0, 0, 1, 0], sizes = [2, 4, 4, 16], strides = [1, 1, 1, 1]} : vector<2x6x6x16xbf16> to vector<2x4x4x16xbf16>
    %18 = vector.extract_strided_slice %8 {offsets = [0, 0, 2, 0], sizes = [2, 4, 4, 16], strides = [1, 1, 1, 1]} : vector<2x6x6x16xbf16> to vector<2x4x4x16xbf16>
    %19 = vector.extract_strided_slice %8 {offsets = [0, 1, 1, 0], sizes = [2, 4, 4, 16], strides = [1, 1, 1, 1]} : vector<2x6x6x16xbf16> to vector<2x4x4x16xbf16>
    %20 = vector.extract_strided_slice %8 {offsets = [0, 1, 2, 0], sizes = [2, 4, 4, 16], strides = [1, 1, 1, 1]} : vector<2x6x6x16xbf16> to vector<2x4x4x16xbf16>
    %21 = tpu.concatenate %17, %18, %19, %20 in 3 : vector<2x4x4x16xbf16>, vector<2x4x4x16xbf16>, vector<2x4x4x16xbf16>, vector<2x4x4x16xbf16> -> vector<2x4x4x64xbf16>
    %22 = vector.shape_cast %21 : vector<2x4x4x64xbf16> to vector<32x64xbf16>
    %23 = vector.extract_strided_slice %1 {offsets = [64, 0], sizes = [64, 16], strides = [1, 1]} : vector<256x16xbf16> to vector<64x16xbf16>
    %cst_11 = arith.constant dense<0.000000e+00> : vector<32x16xf32>
    %24 = tpu.matmul %22, %23, %cst_11 {dimension_numbers = #tpu.dot_dimension_numbers<[1], [0], [0], [1], [0, 0, 1, 1], [], []>} : vector<32x64xbf16>, vector<64x16xbf16>, vector<32x16xf32> -> vector<32x16xf32>
    %25 = vector.extract_strided_slice %8 {offsets = [0, 1, 0, 0], sizes = [2, 4, 4, 16], strides = [1, 1, 1, 1]} : vector<2x6x6x16xbf16> to vector<2x4x4x16xbf16>
    %26 = vector.extract_strided_slice %8 {offsets = [0, 1, 1, 0], sizes = [2, 4, 4, 16], strides = [1, 1, 1, 1]} : vector<2x6x6x16xbf16> to vector<2x4x4x16xbf16>
    %27 = vector.extract_strided_slice %8 {offsets = [0, 2, 0, 0], sizes = [2, 4, 4, 16], strides = [1, 1, 1, 1]} : vector<2x6x6x16xbf16> to vector<2x4x4x16xbf16>
    %28 = vector.extract_strided_slice %8 {offsets = [0, 2, 1, 0], sizes = [2, 4, 4, 16], strides = [1, 1, 1, 1]} : vector<2x6x6x16xbf16> to vector<2x4x4x16xbf16>
    %29 = tpu.concatenate %25, %26, %27, %28 in 3 : vector<2x4x4x16xbf16>, vector<2x4x4x16xbf16>, vector<2x4x4x16xbf16>, vector<2x4x4x16xbf16> -> vector<2x4x4x64xbf16>
    %30 = vector.shape_cast %29 : vector<2x4x4x64xbf16> to vector<32x64xbf16>
    %31 = vector.extract_strided_slice %1 {offsets = [128, 0], sizes = [64, 16], strides = [1, 1]} : vector<256x16xbf16> to vector<64x16xbf16>
    %cst_12 = arith.constant dense<0.000000e+00> : vector<32x16xf32>
    %32 = tpu.matmul %30, %31, %cst_12 {dimension_numbers = #tpu.dot_dimension_numbers<[1], [0], [0], [1], [0, 0, 1, 1], [], []>} : vector<32x64xbf16>, vector<64x16xbf16>, vector<32x16xf32> -> vector<32x16xf32>
    %33 = vector.extract_strided_slice %8 {offsets = [0, 1, 1, 0], sizes = [2, 4, 4, 16], strides = [1, 1, 1, 1]} : vector<2x6x6x16xbf16> to vector<2x4x4x16xbf16>
    %34 = vector.extract_strided_slice %8 {offsets = [0, 1, 2, 0], sizes = [2, 4, 4, 16], strides = [1, 1, 1, 1]} : vector<2x6x6x16xbf16> to vector<2x4x4x16xbf16>
    %35 = vector.extract_strided_slice %8 {offsets = [0, 2, 1, 0], sizes = [2, 4, 4, 16], strides = [1, 1, 1, 1]} : vector<2x6x6x16xbf16> to vector<2x4x4x16xbf16>
    %36 = vector.extract_strided_slice %8 {offsets = [0, 2, 2, 0], sizes = [2, 4, 4, 16], strides = [1, 1, 1, 1]} : vector<2x6x6x16xbf16> to vector<2x4x4x16xbf16>
    %37 = tpu.concatenate %33, %34, %35, %36 in 3 : vector<2x4x4x16xbf16>, vector<2x4x4x16xbf16>, vector<2x4x4x16xbf16>, vector<2x4x4x16xbf16> -> vector<2x4x4x64xbf16>
    %38 = vector.shape_cast %37 : vector<2x4x4x64xbf16> to vector<32x64xbf16>
    %39 = vector.extract_strided_slice %1 {offsets = [192, 0], sizes = [64, 16], strides = [1, 1]} : vector<256x16xbf16> to vector<64x16xbf16>
    %cst_13 = arith.constant dense<0.000000e+00> : vector<32x16xf32>
    %40 = tpu.matmul %38, %39, %cst_13 {dimension_numbers = #tpu.dot_dimension_numbers<[1], [0], [0], [1], [0, 0, 1, 1], [], []>} : vector<32x64xbf16>, vector<64x16xbf16>, vector<32x16xf32> -> vector<32x16xf32>
    %cst_14 = arith.constant dense<0.000000e+00> : vector<16xf32>
    %41 = vector.multi_reduction <add>, %16, %cst_14 [0] : vector<32x16xf32> to vector<16xf32>
    %42 = vector.shape_cast %41 : vector<16xf32> to vector<1x16xf32>
    %43 = arith.mulf %16, %16 : vector<32x16xf32>
    %cst_15 = arith.constant dense<0.000000e+00> : vector<16xf32>
    %44 = vector.multi_reduction <add>, %43, %cst_15 [0] : vector<32x16xf32> to vector<16xf32>
    %45 = vector.shape_cast %44 : vector<16xf32> to vector<1x16xf32>
    %cst_16 = arith.constant dense<0.000000e+00> : vector<16xf32>
    %46 = vector.multi_reduction <add>, %24, %cst_16 [0] : vector<32x16xf32> to vector<16xf32>
    %47 = vector.shape_cast %46 : vector<16xf32> to vector<1x16xf32>
    %48 = arith.addf %42, %47 : vector<1x16xf32>
    %49 = arith.mulf %24, %24 : vector<32x16xf32>
    %cst_17 = arith.constant dense<0.000000e+00> : vector<16xf32>
    %50 = vector.multi_reduction <add>, %49, %cst_17 [0] : vector<32x16xf32> to vector<16xf32>
    %51 = vector.shape_cast %50 : vector<16xf32> to vector<1x16xf32>
    %52 = arith.addf %45, %51 : vector<1x16xf32>
    %cst_18 = arith.constant dense<0.000000e+00> : vector<16xf32>
    %53 = vector.multi_reduction <add>, %32, %cst_18 [0] : vector<32x16xf32> to vector<16xf32>
    %54 = vector.shape_cast %53 : vector<16xf32> to vector<1x16xf32>
    %55 = arith.addf %48, %54 : vector<1x16xf32>
    %56 = arith.mulf %32, %32 : vector<32x16xf32>
    %cst_19 = arith.constant dense<0.000000e+00> : vector<16xf32>
    %57 = vector.multi_reduction <add>, %56, %cst_19 [0] : vector<32x16xf32> to vector<16xf32>
    %58 = vector.shape_cast %57 : vector<16xf32> to vector<1x16xf32>
    %59 = arith.addf %52, %58 : vector<1x16xf32>
    %cst_20 = arith.constant dense<0.000000e+00> : vector<16xf32>
    %60 = vector.multi_reduction <add>, %40, %cst_20 [0] : vector<32x16xf32> to vector<16xf32>
    %61 = vector.shape_cast %60 : vector<16xf32> to vector<1x16xf32>
    %62 = arith.addf %55, %61 : vector<1x16xf32>
    %63 = arith.mulf %40, %40 : vector<32x16xf32>
    %cst_21 = arith.constant dense<0.000000e+00> : vector<16xf32>
    %64 = vector.multi_reduction <add>, %63, %cst_21 [0] : vector<32x16xf32> to vector<16xf32>
    %65 = vector.shape_cast %64 : vector<16xf32> to vector<1x16xf32>
    %66 = arith.addf %59, %65 : vector<1x16xf32>
    %cst_22 = arith.constant 1.280000e+02 : f32
    %67 = vector.broadcast %cst_22 : f32 to vector<1x16xf32>
    %68 = arith.divf %62, %67 : vector<1x16xf32>
    %cst_23 = arith.constant 1.280000e+02 : f32
    %69 = vector.broadcast %cst_23 : f32 to vector<1x16xf32>
    %70 = arith.divf %66, %69 : vector<1x16xf32>
    %71 = arith.mulf %68, %68 : vector<1x16xf32>
    %72 = arith.subf %70, %71 : vector<1x16xf32>
    %cst_24 = arith.constant 0.000000e+00 : f32
    %73 = vector.broadcast %cst_24 : f32 to vector<1x16xf32>
    %74 = arith.maximumf %72, %73 : vector<1x16xf32>
    %cst_25 = arith.constant 9.99999974E-6 : f32
    %75 = vector.broadcast %cst_25 : f32 to vector<1x16xf32>
    %76 = arith.addf %74, %75 : vector<1x16xf32>
    %77 = math.rsqrt %76 : vector<1x16xf32>
    %78 = arith.mulf %2, %77 : vector<1x16xf32>
    %79 = arith.mulf %68, %78 : vector<1x16xf32>
    %80 = arith.subf %3, %79 : vector<1x16xf32>
    %81 = vector.broadcast %78 : vector<1x16xf32> to vector<32x16xf32>
    %82 = arith.mulf %16, %81 : vector<32x16xf32>
    %83 = vector.broadcast %80 : vector<1x16xf32> to vector<32x16xf32>
    %84 = arith.addf %82, %83 : vector<32x16xf32>
    %cst_26 = arith.constant 2.000000e-01 : f32
    %85 = vector.broadcast %cst_26 : f32 to vector<32x16xf32>
    %86 = arith.mulf %85, %84 : vector<32x16xf32>
    %87 = arith.maximumf %84, %86 : vector<32x16xf32>
    %88 = vector.shape_cast %87 : vector<32x16xf32> to vector<2x4x4x16xf32>
    %89 = vector.broadcast %78 : vector<1x16xf32> to vector<32x16xf32>
    %90 = arith.mulf %24, %89 : vector<32x16xf32>
    %91 = vector.broadcast %80 : vector<1x16xf32> to vector<32x16xf32>
    %92 = arith.addf %90, %91 : vector<32x16xf32>
    %cst_27 = arith.constant 2.000000e-01 : f32
    %93 = vector.broadcast %cst_27 : f32 to vector<32x16xf32>
    %94 = arith.mulf %93, %92 : vector<32x16xf32>
    %95 = arith.maximumf %92, %94 : vector<32x16xf32>
    %96 = vector.shape_cast %95 : vector<32x16xf32> to vector<2x4x4x16xf32>
    %97 = vector.broadcast %78 : vector<1x16xf32> to vector<32x16xf32>
    %98 = arith.mulf %32, %97 : vector<32x16xf32>
    %99 = vector.broadcast %80 : vector<1x16xf32> to vector<32x16xf32>
    %100 = arith.addf %98, %99 : vector<32x16xf32>
    %cst_28 = arith.constant 2.000000e-01 : f32
    %101 = vector.broadcast %cst_28 : f32 to vector<32x16xf32>
    %102 = arith.mulf %101, %100 : vector<32x16xf32>
    %103 = arith.maximumf %100, %102 : vector<32x16xf32>
    %104 = vector.shape_cast %103 : vector<32x16xf32> to vector<2x4x4x16xf32>
    %105 = vector.broadcast %78 : vector<1x16xf32> to vector<32x16xf32>
    %106 = arith.mulf %40, %105 : vector<32x16xf32>
    %107 = vector.broadcast %80 : vector<1x16xf32> to vector<32x16xf32>
    %108 = arith.addf %106, %107 : vector<32x16xf32>
    %cst_29 = arith.constant 2.000000e-01 : f32
    %109 = vector.broadcast %cst_29 : f32 to vector<32x16xf32>
    %110 = arith.mulf %109, %108 : vector<32x16xf32>
    %111 = arith.maximumf %108, %110 : vector<32x16xf32>
    %112 = vector.shape_cast %111 : vector<32x16xf32> to vector<2x4x4x16xf32>
    %113 = vector.shape_cast %88 : vector<2x4x4x16xf32> to vector<2x4x4x1x16xf32>
    %114 = vector.shape_cast %96 : vector<2x4x4x16xf32> to vector<2x4x4x1x16xf32>
    %115 = tpu.concatenate %113, %114 in 3 : vector<2x4x4x1x16xf32>, vector<2x4x4x1x16xf32> -> vector<2x4x4x2x16xf32>
    %116 = vector.shape_cast %115 : vector<2x4x4x2x16xf32> to vector<2x4x8x16xf32>
    %117 = vector.shape_cast %104 : vector<2x4x4x16xf32> to vector<2x4x4x1x16xf32>
    %118 = vector.shape_cast %112 : vector<2x4x4x16xf32> to vector<2x4x4x1x16xf32>
    %119 = tpu.concatenate %117, %118 in 3 : vector<2x4x4x1x16xf32>, vector<2x4x4x1x16xf32> -> vector<2x4x4x2x16xf32>
    %120 = vector.shape_cast %119 : vector<2x4x4x2x16xf32> to vector<2x4x8x16xf32>
    %121 = vector.shape_cast %116 : vector<2x4x8x16xf32> to vector<2x4x1x8x16xf32>
    %122 = vector.shape_cast %120 : vector<2x4x8x16xf32> to vector<2x4x1x8x16xf32>
    %123 = tpu.concatenate %121, %122 in 2 : vector<2x4x1x8x16xf32>, vector<2x4x1x8x16xf32> -> vector<2x4x2x8x16xf32>
    %124 = vector.shape_cast %123 : vector<2x4x2x8x16xf32> to vector<2x8x8x16xf32>
    %c0_30 = arith.constant 0 : index
    %c0_31 = arith.constant 0 : index
    %125 = vector.load %arg4[%c0_30, %c0_31] : memref<256x8xbf16, #tpu.memory_space<vmem>>, vector<256x8xbf16>
    %c0_32 = arith.constant 0 : index
    %c0_33 = arith.constant 0 : index
    %126 = vector.load %arg5[%c0_32, %c0_33] : memref<1x8xf32, #tpu.memory_space<vmem>>, vector<1x8xf32>
    %c0_34 = arith.constant 0 : index
    %c0_35 = arith.constant 0 : index
    %127 = vector.load %arg6[%c0_34, %c0_35] : memref<1x8xf32, #tpu.memory_space<vmem>>, vector<1x8xf32>
    %128 = arith.truncf %124 : vector<2x8x8x16xf32> to vector<2x8x8x16xbf16>
    %cst_36 = arith.constant 0.000000e+00 : bf16
    %129 = vector.broadcast %cst_36 : bf16 to vector<2x1x8x16xbf16>
    %130 = tpu.concatenate %129, %128, %129 in 1 : vector<2x1x8x16xbf16>, vector<2x8x8x16xbf16>, vector<2x1x8x16xbf16> -> vector<2x10x8x16xbf16>
    %cst_37 = arith.constant 0.000000e+00 : bf16
    %131 = vector.broadcast %cst_37 : bf16 to vector<2x10x1x16xbf16>
    %132 = tpu.concatenate %131, %130, %131 in 2 : vector<2x10x1x16xbf16>, vector<2x10x8x16xbf16>, vector<2x10x1x16xbf16> -> vector<2x10x10x16xbf16>
    %133 = vector.extract_strided_slice %132 {offsets = [0, 0, 0, 0], sizes = [2, 8, 8, 16], strides = [1, 1, 1, 1]} : vector<2x10x10x16xbf16> to vector<2x8x8x16xbf16>
    %134 = vector.extract_strided_slice %132 {offsets = [0, 0, 1, 0], sizes = [2, 8, 8, 16], strides = [1, 1, 1, 1]} : vector<2x10x10x16xbf16> to vector<2x8x8x16xbf16>
    %135 = vector.extract_strided_slice %132 {offsets = [0, 1, 0, 0], sizes = [2, 8, 8, 16], strides = [1, 1, 1, 1]} : vector<2x10x10x16xbf16> to vector<2x8x8x16xbf16>
    %136 = vector.extract_strided_slice %132 {offsets = [0, 1, 1, 0], sizes = [2, 8, 8, 16], strides = [1, 1, 1, 1]} : vector<2x10x10x16xbf16> to vector<2x8x8x16xbf16>
    %137 = tpu.concatenate %133, %134, %135, %136 in 3 : vector<2x8x8x16xbf16>, vector<2x8x8x16xbf16>, vector<2x8x8x16xbf16>, vector<2x8x8x16xbf16> -> vector<2x8x8x64xbf16>
    %138 = vector.shape_cast %137 : vector<2x8x8x64xbf16> to vector<128x64xbf16>
    %139 = vector.extract_strided_slice %125 {offsets = [0, 0], sizes = [64, 8], strides = [1, 1]} : vector<256x8xbf16> to vector<64x8xbf16>
    %cst_38 = arith.constant dense<0.000000e+00> : vector<128x8xf32>
    %140 = tpu.matmul %138, %139, %cst_38 {dimension_numbers = #tpu.dot_dimension_numbers<[1], [0], [0], [1], [0, 0, 1, 1], [], []>} : vector<128x64xbf16>, vector<64x8xbf16>, vector<128x8xf32> -> vector<128x8xf32>
    %141 = vector.extract_strided_slice %132 {offsets = [0, 0, 1, 0], sizes = [2, 8, 8, 16], strides = [1, 1, 1, 1]} : vector<2x10x10x16xbf16> to vector<2x8x8x16xbf16>
    %142 = vector.extract_strided_slice %132 {offsets = [0, 0, 2, 0], sizes = [2, 8, 8, 16], strides = [1, 1, 1, 1]} : vector<2x10x10x16xbf16> to vector<2x8x8x16xbf16>
    %143 = vector.extract_strided_slice %132 {offsets = [0, 1, 1, 0], sizes = [2, 8, 8, 16], strides = [1, 1, 1, 1]} : vector<2x10x10x16xbf16> to vector<2x8x8x16xbf16>
    %144 = vector.extract_strided_slice %132 {offsets = [0, 1, 2, 0], sizes = [2, 8, 8, 16], strides = [1, 1, 1, 1]} : vector<2x10x10x16xbf16> to vector<2x8x8x16xbf16>
    %145 = tpu.concatenate %141, %142, %143, %144 in 3 : vector<2x8x8x16xbf16>, vector<2x8x8x16xbf16>, vector<2x8x8x16xbf16>, vector<2x8x8x16xbf16> -> vector<2x8x8x64xbf16>
    %146 = vector.shape_cast %145 : vector<2x8x8x64xbf16> to vector<128x64xbf16>
    %147 = vector.extract_strided_slice %125 {offsets = [64, 0], sizes = [64, 8], strides = [1, 1]} : vector<256x8xbf16> to vector<64x8xbf16>
    %cst_39 = arith.constant dense<0.000000e+00> : vector<128x8xf32>
    %148 = tpu.matmul %146, %147, %cst_39 {dimension_numbers = #tpu.dot_dimension_numbers<[1], [0], [0], [1], [0, 0, 1, 1], [], []>} : vector<128x64xbf16>, vector<64x8xbf16>, vector<128x8xf32> -> vector<128x8xf32>
    %149 = vector.extract_strided_slice %132 {offsets = [0, 1, 0, 0], sizes = [2, 8, 8, 16], strides = [1, 1, 1, 1]} : vector<2x10x10x16xbf16> to vector<2x8x8x16xbf16>
    %150 = vector.extract_strided_slice %132 {offsets = [0, 1, 1, 0], sizes = [2, 8, 8, 16], strides = [1, 1, 1, 1]} : vector<2x10x10x16xbf16> to vector<2x8x8x16xbf16>
    %151 = vector.extract_strided_slice %132 {offsets = [0, 2, 0, 0], sizes = [2, 8, 8, 16], strides = [1, 1, 1, 1]} : vector<2x10x10x16xbf16> to vector<2x8x8x16xbf16>
    %152 = vector.extract_strided_slice %132 {offsets = [0, 2, 1, 0], sizes = [2, 8, 8, 16], strides = [1, 1, 1, 1]} : vector<2x10x10x16xbf16> to vector<2x8x8x16xbf16>
    %153 = tpu.concatenate %149, %150, %151, %152 in 3 : vector<2x8x8x16xbf16>, vector<2x8x8x16xbf16>, vector<2x8x8x16xbf16>, vector<2x8x8x16xbf16> -> vector<2x8x8x64xbf16>
    %154 = vector.shape_cast %153 : vector<2x8x8x64xbf16> to vector<128x64xbf16>
    %155 = vector.extract_strided_slice %125 {offsets = [128, 0], sizes = [64, 8], strides = [1, 1]} : vector<256x8xbf16> to vector<64x8xbf16>
    %cst_40 = arith.constant dense<0.000000e+00> : vector<128x8xf32>
    %156 = tpu.matmul %154, %155, %cst_40 {dimension_numbers = #tpu.dot_dimension_numbers<[1], [0], [0], [1], [0, 0, 1, 1], [], []>} : vector<128x64xbf16>, vector<64x8xbf16>, vector<128x8xf32> -> vector<128x8xf32>
    %157 = vector.extract_strided_slice %132 {offsets = [0, 1, 1, 0], sizes = [2, 8, 8, 16], strides = [1, 1, 1, 1]} : vector<2x10x10x16xbf16> to vector<2x8x8x16xbf16>
    %158 = vector.extract_strided_slice %132 {offsets = [0, 1, 2, 0], sizes = [2, 8, 8, 16], strides = [1, 1, 1, 1]} : vector<2x10x10x16xbf16> to vector<2x8x8x16xbf16>
    %159 = vector.extract_strided_slice %132 {offsets = [0, 2, 1, 0], sizes = [2, 8, 8, 16], strides = [1, 1, 1, 1]} : vector<2x10x10x16xbf16> to vector<2x8x8x16xbf16>
    %160 = vector.extract_strided_slice %132 {offsets = [0, 2, 2, 0], sizes = [2, 8, 8, 16], strides = [1, 1, 1, 1]} : vector<2x10x10x16xbf16> to vector<2x8x8x16xbf16>
    %161 = tpu.concatenate %157, %158, %159, %160 in 3 : vector<2x8x8x16xbf16>, vector<2x8x8x16xbf16>, vector<2x8x8x16xbf16>, vector<2x8x8x16xbf16> -> vector<2x8x8x64xbf16>
    %162 = vector.shape_cast %161 : vector<2x8x8x64xbf16> to vector<128x64xbf16>
    %163 = vector.extract_strided_slice %125 {offsets = [192, 0], sizes = [64, 8], strides = [1, 1]} : vector<256x8xbf16> to vector<64x8xbf16>
    %cst_41 = arith.constant dense<0.000000e+00> : vector<128x8xf32>
    %164 = tpu.matmul %162, %163, %cst_41 {dimension_numbers = #tpu.dot_dimension_numbers<[1], [0], [0], [1], [0, 0, 1, 1], [], []>} : vector<128x64xbf16>, vector<64x8xbf16>, vector<128x8xf32> -> vector<128x8xf32>
    %cst_42 = arith.constant dense<0.000000e+00> : vector<8xf32>
    %165 = vector.multi_reduction <add>, %140, %cst_42 [0] : vector<128x8xf32> to vector<8xf32>
    %166 = vector.shape_cast %165 : vector<8xf32> to vector<1x8xf32>
    %167 = arith.mulf %140, %140 : vector<128x8xf32>
    %cst_43 = arith.constant dense<0.000000e+00> : vector<8xf32>
    %168 = vector.multi_reduction <add>, %167, %cst_43 [0] : vector<128x8xf32> to vector<8xf32>
    %169 = vector.shape_cast %168 : vector<8xf32> to vector<1x8xf32>
    %cst_44 = arith.constant dense<0.000000e+00> : vector<8xf32>
    %170 = vector.multi_reduction <add>, %148, %cst_44 [0] : vector<128x8xf32> to vector<8xf32>
    %171 = vector.shape_cast %170 : vector<8xf32> to vector<1x8xf32>
    %172 = arith.addf %166, %171 : vector<1x8xf32>
    %173 = arith.mulf %148, %148 : vector<128x8xf32>
    %cst_45 = arith.constant dense<0.000000e+00> : vector<8xf32>
    %174 = vector.multi_reduction <add>, %173, %cst_45 [0] : vector<128x8xf32> to vector<8xf32>
    %175 = vector.shape_cast %174 : vector<8xf32> to vector<1x8xf32>
    %176 = arith.addf %169, %175 : vector<1x8xf32>
    %cst_46 = arith.constant dense<0.000000e+00> : vector<8xf32>
    %177 = vector.multi_reduction <add>, %156, %cst_46 [0] : vector<128x8xf32> to vector<8xf32>
    %178 = vector.shape_cast %177 : vector<8xf32> to vector<1x8xf32>
    %179 = arith.addf %172, %178 : vector<1x8xf32>
    %180 = arith.mulf %156, %156 : vector<128x8xf32>
    %cst_47 = arith.constant dense<0.000000e+00> : vector<8xf32>
    %181 = vector.multi_reduction <add>, %180, %cst_47 [0] : vector<128x8xf32> to vector<8xf32>
    %182 = vector.shape_cast %181 : vector<8xf32> to vector<1x8xf32>
    %183 = arith.addf %176, %182 : vector<1x8xf32>
    %cst_48 = arith.constant dense<0.000000e+00> : vector<8xf32>
    %184 = vector.multi_reduction <add>, %164, %cst_48 [0] : vector<128x8xf32> to vector<8xf32>
    %185 = vector.shape_cast %184 : vector<8xf32> to vector<1x8xf32>
    %186 = arith.addf %179, %185 : vector<1x8xf32>
    %187 = arith.mulf %164, %164 : vector<128x8xf32>
    %cst_49 = arith.constant dense<0.000000e+00> : vector<8xf32>
    %188 = vector.multi_reduction <add>, %187, %cst_49 [0] : vector<128x8xf32> to vector<8xf32>
    %189 = vector.shape_cast %188 : vector<8xf32> to vector<1x8xf32>
    %190 = arith.addf %183, %189 : vector<1x8xf32>
    %cst_50 = arith.constant 5.120000e+02 : f32
    %191 = vector.broadcast %cst_50 : f32 to vector<1x8xf32>
    %192 = arith.divf %186, %191 : vector<1x8xf32>
    %cst_51 = arith.constant 5.120000e+02 : f32
    %193 = vector.broadcast %cst_51 : f32 to vector<1x8xf32>
    %194 = arith.divf %190, %193 : vector<1x8xf32>
    %195 = arith.mulf %192, %192 : vector<1x8xf32>
    %196 = arith.subf %194, %195 : vector<1x8xf32>
    %cst_52 = arith.constant 0.000000e+00 : f32
    %197 = vector.broadcast %cst_52 : f32 to vector<1x8xf32>
    %198 = arith.maximumf %196, %197 : vector<1x8xf32>
    %cst_53 = arith.constant 9.99999974E-6 : f32
    %199 = vector.broadcast %cst_53 : f32 to vector<1x8xf32>
    %200 = arith.addf %198, %199 : vector<1x8xf32>
    %201 = math.rsqrt %200 : vector<1x8xf32>
    %202 = arith.mulf %126, %201 : vector<1x8xf32>
    %203 = arith.mulf %192, %202 : vector<1x8xf32>
    %204 = arith.subf %127, %203 : vector<1x8xf32>
    %205 = vector.broadcast %202 : vector<1x8xf32> to vector<128x8xf32>
    %206 = arith.mulf %140, %205 : vector<128x8xf32>
    %207 = vector.broadcast %204 : vector<1x8xf32> to vector<128x8xf32>
    %208 = arith.addf %206, %207 : vector<128x8xf32>
    %cst_54 = arith.constant 2.000000e-01 : f32
    %209 = vector.broadcast %cst_54 : f32 to vector<128x8xf32>
    %210 = arith.mulf %209, %208 : vector<128x8xf32>
    %211 = arith.maximumf %208, %210 : vector<128x8xf32>
    %212 = vector.shape_cast %211 : vector<128x8xf32> to vector<2x8x8x8xf32>
    %213 = vector.broadcast %202 : vector<1x8xf32> to vector<128x8xf32>
    %214 = arith.mulf %148, %213 : vector<128x8xf32>
    %215 = vector.broadcast %204 : vector<1x8xf32> to vector<128x8xf32>
    %216 = arith.addf %214, %215 : vector<128x8xf32>
    %cst_55 = arith.constant 2.000000e-01 : f32
    %217 = vector.broadcast %cst_55 : f32 to vector<128x8xf32>
    %218 = arith.mulf %217, %216 : vector<128x8xf32>
    %219 = arith.maximumf %216, %218 : vector<128x8xf32>
    %220 = vector.shape_cast %219 : vector<128x8xf32> to vector<2x8x8x8xf32>
    %221 = vector.broadcast %202 : vector<1x8xf32> to vector<128x8xf32>
    %222 = arith.mulf %156, %221 : vector<128x8xf32>
    %223 = vector.broadcast %204 : vector<1x8xf32> to vector<128x8xf32>
    %224 = arith.addf %222, %223 : vector<128x8xf32>
    %cst_56 = arith.constant 2.000000e-01 : f32
    %225 = vector.broadcast %cst_56 : f32 to vector<128x8xf32>
    %226 = arith.mulf %225, %224 : vector<128x8xf32>
    %227 = arith.maximumf %224, %226 : vector<128x8xf32>
    %228 = vector.shape_cast %227 : vector<128x8xf32> to vector<2x8x8x8xf32>
    %229 = vector.broadcast %202 : vector<1x8xf32> to vector<128x8xf32>
    %230 = arith.mulf %164, %229 : vector<128x8xf32>
    %231 = vector.broadcast %204 : vector<1x8xf32> to vector<128x8xf32>
    %232 = arith.addf %230, %231 : vector<128x8xf32>
    %cst_57 = arith.constant 2.000000e-01 : f32
    %233 = vector.broadcast %cst_57 : f32 to vector<128x8xf32>
    %234 = arith.mulf %233, %232 : vector<128x8xf32>
    %235 = arith.maximumf %232, %234 : vector<128x8xf32>
    %236 = vector.shape_cast %235 : vector<128x8xf32> to vector<2x8x8x8xf32>
    %237 = vector.shape_cast %212 : vector<2x8x8x8xf32> to vector<2x8x8x1x8xf32>
    %238 = vector.shape_cast %220 : vector<2x8x8x8xf32> to vector<2x8x8x1x8xf32>
    %239 = tpu.concatenate %237, %238 in 3 : vector<2x8x8x1x8xf32>, vector<2x8x8x1x8xf32> -> vector<2x8x8x2x8xf32>
    %240 = vector.shape_cast %239 : vector<2x8x8x2x8xf32> to vector<2x8x16x8xf32>
    %241 = vector.shape_cast %228 : vector<2x8x8x8xf32> to vector<2x8x8x1x8xf32>
    %242 = vector.shape_cast %236 : vector<2x8x8x8xf32> to vector<2x8x8x1x8xf32>
    %243 = tpu.concatenate %241, %242 in 3 : vector<2x8x8x1x8xf32>, vector<2x8x8x1x8xf32> -> vector<2x8x8x2x8xf32>
    %244 = vector.shape_cast %243 : vector<2x8x8x2x8xf32> to vector<2x8x16x8xf32>
    %245 = vector.shape_cast %240 : vector<2x8x16x8xf32> to vector<2x8x1x16x8xf32>
    %246 = vector.shape_cast %244 : vector<2x8x16x8xf32> to vector<2x8x1x16x8xf32>
    %247 = tpu.concatenate %245, %246 in 2 : vector<2x8x1x16x8xf32>, vector<2x8x1x16x8xf32> -> vector<2x8x2x16x8xf32>
    %248 = vector.shape_cast %247 : vector<2x8x2x16x8xf32> to vector<2x16x16x8xf32>
    %249 = vector.shape_cast %248 : vector<2x16x16x8xf32> to vector<512x8xf32>
    %250 = arith.truncf %249 : vector<512x8xf32> to vector<512x8xbf16>
    %c0_58 = arith.constant 0 : index
    %c0_59 = arith.constant 0 : index
    %251 = vector.load %arg7[%c0_58, %c0_59] : memref<8x8xbf16, #tpu.memory_space<vmem>>, vector<8x8xbf16>
    "tpu.trace_start"() <{level = 10 : i32, message = "oc,mc->om"}> : () -> ()
    %cst_60 = arith.constant dense<0.000000e+00> : vector<8x512xf32>
    %252 = tpu.matmul %251, %250, %cst_60 {dimension_numbers = #tpu.dot_dimension_numbers<[1], [1], [0], [0], [0, 0, 1, 0], [], []>} : vector<8x8xbf16>, vector<512x8xbf16>, vector<8x512xf32> -> vector<8x512xf32>
    "tpu.trace_stop"() : () -> ()
    %c0_61 = arith.constant 0 : index
    %c0_62 = arith.constant 0 : index
    %253 = vector.load %arg8[%c0_61, %c0_62] : memref<8x1xf32, #tpu.memory_space<vmem>>, vector<8x1xf32>
    %254 = vector.broadcast %253 : vector<8x1xf32> to vector<8x512xf32>
    %255 = arith.addf %252, %254 : vector<8x512xf32>
    %256 = math.tanh %255 : vector<8x512xf32>
    %c0_63 = arith.constant 0 : index
    %c0_64 = arith.constant 0 : index
    %257 = vector.load %arg9[%c0_63, %c0_64] : memref<8x512xf32, #tpu.memory_space<vmem>>, vector<8x512xf32>
    tpu.vector_store %arg9[%c0_63, %c0_64], %256 {strides = array<i32>} : memref<8x512xf32, #tpu.memory_space<vmem>>, vector<8x512xf32>,
    return
  }
}

</mosaic_0001>

<llo_original>
// kernel: _lambda_.2
$region0: #{_lambda_.2}
  #allocation0 [shape = 'u32[]', space=smem, size = 0x4, offset = 0x4, fixed_abs, tag = 'smem constant byte address 0x4 - core index']
  #allocation1 [shape = 'u32[144,128]{1,0:T(1,128)}', space=vmem, size = 0x12000, scoped, tag = 'internal scratch']
  %s0 = inlined_call_operand.hbm [shape: f32[2,16], index: 0, kind: input, shape index: {}]
  %s1 = inlined_call_operand.hbm [shape: f32[16,256], index: 1, kind: input, shape index: {}]
  %s2 = inlined_call_operand.vmem [shape: f32[1,256], index: 2, kind: input, shape index: {}]
  %s3 = inlined_call_operand.vmem [shape: f32[2,256], index: 3, kind: output, shape index: {}]
  %s4 = sld [smem:[#allocation0]]
  $region30: #{_lambda_.2} parent=0
    _
  %s6 = ssub.s32 1, %s4
  %s7 = scalar_select 0, %s6, %s4
  $region1: #{_lambda_.2} parent=0
    #allocation2 [shape = 'u8[1024]{0}', space=vmem, size = 0x400, scoped, tag = 'input window, operand 0, single buffered']
    #allocation3 [shape = 's32[1]{0}', space=sflag, size = 0x4, scoped, tag = 'scoped memory for _lambda_.2']
    #allocation4 [shape = 'u8[16384]{0}', space=vmem, size = 0x4000, scoped, tag = 'input window, operand 1, single buffered']
    #allocation5 [shape = 's32[1]{0}', space=sflag, size = 0x4, scoped, tag = 'scoped memory for _lambda_.2']
    %8 = vsyncpa [#allocation3], 0
    %9 = vsyncpa [#allocation5], 0
    // Predicated region
    $region2: #{_lambda_.2} parent=1 // pred_check
      _
    $region3: #{_lambda_.2} parent=1 // pred_check_branch
      %11 = sbr.rel (0) target = $region5
    $region4: #{_lambda_.2} parent=1 // pred_region
      %s13 = ssub.s32 32, 32
      %14 = vsyncadd [#allocation3], %s13
      %s16 = sshll.u32 [#allocation2], 4
      %s17 = int_to_ptr.vmem [resolvable:$true] %s16
      %19 = dma.hbm_to_vmem [thread:$0]  %s0, 32, %s17, [#allocation3]
    $region5: #{_lambda_.2} parent=1 // pred_fallthru
      _
    // Predicated region
    $region6: #{_lambda_.2} parent=1 // pred_check
      _
    $region7: #{_lambda_.2} parent=1 // pred_check_branch
      %21 = sbr.rel (0) target = $region9
    $region8: #{_lambda_.2} parent=1 // pred_region
      %s23 = ssub.s32 512, 512
      %24 = vsyncadd [#allocation5], %s23
      %s25 = sshll.u32 [#allocation4], 4
      %s26 = int_to_ptr.vmem [resolvable:$true] %s25
      %31 = dma.hbm_to_vmem [thread:$0]  %s1, 512, %s26, [#allocation5], 256, 256, 16
    $region9: #{_lambda_.2} parent=1 // pred_fallthru
      _
    // Predicated region
    $region10: #{_lambda_.2} parent=1 // pred_check
      _
    $region11: #{_lambda_.2} parent=1 // pred_check_branch
      %33 = sbr.rel (0) target = $region13
    $region12: #{_lambda_.2} parent=1 // pred_region
      _
    $region13: #{_lambda_.2} parent=1 // pred_fallthru
      _
    // Predicated region
    $region14: #{_lambda_.2} parent=1 // pred_check
      _
    $region15: #{_lambda_.2} parent=1 // pred_check_branch
      %35 = sbr.rel (0) target = $region17
    $region16: #{_lambda_.2} parent=1 // pred_region
      %36 = dma.done [#allocation3], 32
    $region17: #{_lambda_.2} parent=1 // pred_fallthru
      _
    // Predicated region
    $region18: #{_lambda_.2} parent=1 // pred_check
      _
    $region19: #{_lambda_.2} parent=1 // pred_check_branch
      %38 = sbr.rel (0) target = $region21
    $region20: #{_lambda_.2} parent=1 // pred_region
      %39 = dma.done [#allocation5], 512
    $region21: #{_lambda_.2} parent=1 // pred_fallthru
      _
    %v40 = vld [vmem:[#allocation2] sm:$0x3]
    %v41 = vld [vmem:[#allocation4] sm:$0xff]
    %v42 = vld [vmem:[#allocation4 + $0x8] sm:$0xff]
    %v43 = vld [vmem:[#allocation4 + $0x10] sm:$0xff]
    %v44 = vld [vmem:[#allocation4 + $0x18] sm:$0xff]
    %v45 = vld [vmem:[%s2] sm:$0x3]
    %v47 = vlaneseq
    %v48 = vshrl.u32 %v47, 7
    %v49 = vsub.s32 0, %v48
    %v50 = vrot.slane %v45, %v49
    %v51 = vlaneseq
    %v52 = vshrl.u32 %v51, 7
    %v53 = vsub.s32 1, %v52
    %v54 = vrot.slane %v45, %v53
    %vm57 = vcmask 130048
    %v59 = vsel %vm57, %v40, 0
    %61 = vmatprep.subr.mxu0 %v42
    %62 = vmatpush1.msra.mxu0 %v41
    %63 = vmatprep.subr.mxu0 %v44
    %64 = vmatpush1.msra.mxu0 %v43
    %65 = vmatprep.subr.mxu0 0.0
    %66 = vmatpush1.msra.mxu0 0.0
    %67 = vmatprep.subr.mxu0 0.0
    %68 = vmatpush1.msra.mxu0 0.0
    %69 = vmatprep.subr.mxu0 0.0
    %70 = vmatpush1.msra.mxu0 0.0
    %71 = vmatprep.subr.mxu0 0.0
    %72 = vmatpush1.msra.mxu0 0.0
    %73 = vmatprep.subr.mxu0 0.0
    %74 = vmatpush1.msra.mxu0 0.0
    %75 = vmatprep.subr.mxu0 0.0
    %76 = vmatpush1.msra.mxu0 0.0
    %77 = vmatprep.subr.mxu0 0.0
    %78 = vmatpush1.msra.mxu0 0.0
    %79 = vmatprep.subr.mxu0 0.0
    %80 = vmatpush1.msra.mxu0 0.0
    %81 = vmatprep.subr.mxu0 0.0
    %82 = vmatpush1.msra.mxu0 0.0
    %83 = vmatprep.subr.mxu0 0.0
    %84 = vmatpush1.msra.mxu0 0.0
    %85 = vmatprep.subr.mxu0 0.0
    %86 = vmatpush1.msra.mxu0 0.0
    %87 = vmatprep.subr.mxu0 0.0
    %88 = vmatpush1.msra.mxu0 0.0
    %89 = vmatprep.subr.mxu0 0.0
    %90 = vmatpush1.msra.mxu0 0.0
    %91 = vmatprep.subr.mxu0 0.0
    %92 = vmatpush1.msra.mxu0 0.0
    %93 = vmatprep.subr.mxu0 0.0
    %94 = vmatpush1.msra.mxu0 0.0
    %95 = vmatprep.subr.mxu0 0.0
    %96 = vmatpush1.msra.mxu0 0.0
    %97 = vmatprep.subr.mxu0 0.0
    %98 = vmatpush1.msra.mxu0 0.0
    %99 = vmatprep.subr.mxu0 0.0
    %100 = vmatpush1.msra.mxu0 0.0
    %101 = vmatprep.subr.mxu0 0.0
    %102 = vmatpush1.msra.mxu0 0.0
    %103 = vmatprep.subr.mxu0 0.0
    %104 = vmatpush1.msra.mxu0 0.0
    %105 = vmatprep.subr.mxu0 0.0
    %106 = vmatpush1.msra.mxu0 0.0
    %107 = vmatprep.subr.mxu0 0.0
    %108 = vmatpush1.msra.mxu0 0.0
    %109 = vmatprep.subr.mxu0 0.0
    %110 = vmatpush1.msra.mxu0 0.0
    %111 = vmatprep.subr.mxu0 0.0
    %112 = vmatpush1.msra.mxu0 0.0
    %113 = vmatprep.subr.mxu0 0.0
    %114 = vmatpush1.msra.mxu0 0.0
    %115 = vmatprep.subr.mxu0 0.0
    %116 = vmatpush1.msra.mxu0 0.0
    %117 = vmatprep.subr.mxu0 0.0
    %118 = vmatpush1.msra.mxu0 0.0
    %119 = vmatprep.subr.mxu0 0.0
    %120 = vmatpush1.msra.mxu0 0.0
    %121 = vmatprep.subr.mxu0 0.0
    %122 = vmatpush1.msra.mxu0 0.0
    %123 = vmatprep.subr.mxu0 0.0
    %124 = vmatpush1.msra.mxu0 0.0
    %125 = vmatprep.mubr.f32.mxu0 0.0
    %126 = vmatmul.mubr.f32.gmra.mrb[0].mxu0 %v59
    %v127 = vpop.f32.mrb[0].mxu0
    %v128 = vadd.f32 %v50, %v127
    %v129 = vpop.f32.mrb[0].mxu0
    %v130 = vadd.f32 %v54, %v129
    %131 = vdwg.mxu0
    %v132 = vmul.f32 %v128, 0.2
    %v133 = vmul.f32 %v130, 0.2
    %v134 = vmax.f32 %v128, %v132
    %v135 = vmax.f32 %v130, %v133
    %v138 = vcombine.low %v134, %v135
    %v140 = vunpack.c.l.s4 1983009808
    %v141 = vunpack.c.0.s8 %v140
    %v142 = vlaneseq
    %v143 = vshrl.u32 %v142, 7
    %v144 = vsub.s32 %v141, %v143
    %v145 = vrot.slane %v138, %v144
    %147 = vst [vmem:[%s3] sm:$0xf] %v145
    // Predicated region
    $region22: #{_lambda_.2} parent=1 // pred_check
      _
    $region23: #{_lambda_.2} parent=1 // pred_check_branch
      %149 = sbr.rel (0) target = $region25
    $region24: #{_lambda_.2} parent=1 // pred_region
      _
    $region25: #{_lambda_.2} parent=1 // pred_fallthru
      _
    // Predicated region
    $region26: #{_lambda_.2} parent=1 // pred_check
      _
    $region27: #{_lambda_.2} parent=1 // pred_check_branch
      %151 = sbr.rel (0) target = $region29
    $region28: #{_lambda_.2} parent=1 // pred_region
      _
    $region29: #{_lambda_.2} parent=1 // pred_fallthru
      _
    %152 = vsyncpa [#allocation3], 1
    %153 = vsyncpa [#allocation5], 1

// kernel: _lambda_.3
$region0: #{_lambda_.3}
  #allocation0 [shape = 'u32[]', space=smem, size = 0x4, offset = 0x4, fixed_abs, tag = 'smem constant byte address 0x4 - core index']
  #allocation1 [shape = 'u32[144,128]{1,0:T(1,128)}', space=vmem, size = 0x12000, scoped, tag = 'internal scratch']
  %s0 = inlined_call_operand.vmem [shape: f32[2,4,4,16], index: 0, kind: input, shape index: {}]
  %s1 = inlined_call_operand.vmem [shape: bf16[256,16], index: 1, kind: input, shape index: {}]
  %s2 = inlined_call_operand.vmem [shape: f32[1,16], index: 2, kind: input, shape index: {}]
  %s3 = inlined_call_operand.vmem [shape: f32[1,16], index: 3, kind: input, shape index: {}]
  %s4 = inlined_call_operand.vmem [shape: bf16[256,8], index: 4, kind: input, shape index: {}]
  %s5 = inlined_call_operand.vmem [shape: f32[1,8], index: 5, kind: input, shape index: {}]
  %s6 = inlined_call_operand.vmem [shape: f32[1,8], index: 6, kind: input, shape index: {}]
  %s7 = inlined_call_operand.vmem [shape: bf16[8,8], index: 7, kind: input, shape index: {}]
  %s8 = inlined_call_operand.vmem [shape: f32[8,1], index: 8, kind: input, shape index: {}]
  %s9 = inlined_call_operand.vmem [shape: f32[8,512], index: 9, kind: output, shape index: {}]
  %s10 = sld [smem:[#allocation0]]
  $region46: #{_lambda_.3} parent=0
    _
  %s12 = ssub.s32 1, %s10
  %s13 = scalar_select 0, %s12, %s10
  // Predicated region
  $region2: #{_lambda_.3} parent=0 // pred_check
    _
  $region3: #{_lambda_.3} parent=0 // pred_check_branch
    %15 = sbr.rel (0) target = $region5
  $region4: #{_lambda_.3} parent=0 // pred_region
    _
  $region5: #{_lambda_.3} parent=0 // pred_fallthru
    _
  // Predicated region
  $region6: #{_lambda_.3} parent=0 // pred_check
    _
  $region7: #{_lambda_.3} parent=0 // pred_check_branch
    %17 = sbr.rel (0) target = $region9
  $region8: #{_lambda_.3} parent=0 // pred_region
    _
  $region9: #{_lambda_.3} parent=0 // pred_fallthru
    _
  // Predicated region
  $region10: #{_lambda_.3} parent=0 // pred_check
    _
  $region11: #{_lambda_.3} parent=0 // pred_check_branch
    %19 = sbr.rel (0) target = $region13
  $region12: #{_lambda_.3} parent=0 // pred_region
    _
  $region13: #{_lambda_.3} parent=0 // pred_fallthru
    _
  // Predicated region
  $region14: #{_lambda_.3} parent=0 // pred_check
    _
  $region15: #{_lambda_.3} parent=0 // pred_check_branch
    %21 = sbr.rel (0) target = $region17
  $region16: #{_lambda_.3} parent=0 // pred_region
    _
  $region17: #{_lambda_.3} parent=0 // pred_fallthru
    _
  // Predicated region
  $region18: #{_lambda_.3} parent=0 // pred_check
    _
  $region19: #{_lambda_.3} parent=0 // pred_check_branch
    %23 = sbr.rel (0) target = $region21
  $region20: #{_lambda_.3} parent=0 // pred_region
    _
  $region21: #{_lambda_.3} parent=0 // pred_fallthru
    _
  // Predicated region
  $region22: #{_lambda_.3} parent=0 // pred_check
    _
  $region23: #{_lambda_.3} parent=0 // pred_check_branch
    %25 = sbr.rel (0) target = $region25
  $region24: #{_lambda_.3} parent=0 // pred_region
    _
  $region25: #{_lambda_.3} parent=0 // pred_fallthru
    _
  // Predicated region
  $region26: #{_lambda_.3} parent=0 // pred_check
    _
  $region27: #{_lambda_.3} parent=0 // pred_check_branch
    %27 = sbr.rel (0) target = $region29
  $region28: #{_lambda_.3} parent=0 // pred_region
    _
  $region29: #{_lambda_.3} parent=0 // pred_fallthru
    _
  // Predicated region
  $region30: #{_lambda_.3} parent=0 // pred_check
    _
  $region31: #{_lambda_.3} parent=0 // pred_check_branch
    %29 = sbr.rel (0) target = $region33
  $region32: #{_lambda_.3} parent=0 // pred_region
    _
  $region33: #{_lambda_.3} parent=0 // pred_fallthru
    _
  // Predicated region
  $region34: #{_lambda_.3} parent=0 // pred_check
    _
  $region35: #{_lambda_.3} parent=0 // pred_check_branch
    %31 = sbr.rel (0) target = $region37
  $region36: #{_lambda_.3} parent=0 // pred_region
    _
  $region37: #{_lambda_.3} parent=0 // pred_fallthru
    _
  %v33 = vld [vmem:[%s0] sm:$0xf]
  %v34 = vld [vmem:[%s0 + $0x4] sm:$0xf]
  %v35 = vld [vmem:[%s0 + $0x8] sm:$0xf]
  %v36 = vld [vmem:[%s0 + $0xc] sm:$0xf]
  %v37 = vld [vmem:[%s0 + $0x10] sm:$0xf]
  %v38 = vld [vmem:[%s0 + $0x14] sm:$0xf]
  %v39 = vld [vmem:[%s0 + $0x18] sm:$0xf]
  %v40 = vld [vmem:[%s0 + $0x1c] sm:$0xf]
  %v41 = vld [vmem:[%s1] sm:$0xf]
  %v42 = vld [vmem:[%s1 + $0x4] sm:$0xf]
  %v43 = vld [vmem:[%s1 + $0x8] sm:$0xf]
  %v44 = vld [vmem:[%s1 + $0xc] sm:$0xf]
  %v45 = vld [vmem:[%s1 + $0x10] sm:$0xf]
  %v46 = vld [vmem:[%s1 + $0x14] sm:$0xf]
  %v47 = vld [vmem:[%s1 + $0x18] sm:$0xf]
  %v48 = vld [vmem:[%s1 + $0x1c] sm:$0xf]
  %v49 = vld [vmem:[%s1 + $0x20] sm:$0xf]
  %v50 = vld [vmem:[%s1 + $0x24] sm:$0xf]
  %v51 = vld [vmem:[%s1 + $0x28] sm:$0xf]
  %v52 = vld [vmem:[%s1 + $0x2c] sm:$0xf]
  %v53 = vld [vmem:[%s1 + $0x30] sm:$0xf]
  %v54 = vld [vmem:[%s1 + $0x34] sm:$0xf]
  %v55 = vld [vmem:[%s1 + $0x38] sm:$0xf]
  %v56 = vld [vmem:[%s1 + $0x3c] sm:$0xf]
  %v57 = vld [vmem:[%s1 + $0x40] sm:$0xf]
  %v58 = vld [vmem:[%s1 + $0x44] sm:$0xf]
  %v59 = vld [vmem:[%s1 + $0x48] sm:$0xf]
  %v60 = vld [vmem:[%s1 + $0x4c] sm:$0xf]
  %v61 = vld [vmem:[%s1 + $0x50] sm:$0xf]
  %v62 = vld [vmem:[%s1 + $0x54] sm:$0xf]
  %v63 = vld [vmem:[%s1 + $0x58] sm:$0xf]
  %v64 = vld [vmem:[%s1 + $0x5c] sm:$0xf]
  %v65 = vld [vmem:[%s1 + $0x60] sm:$0xf]
  %v66 = vld [vmem:[%s1 + $0x64] sm:$0xf]
  %v67 = vld [vmem:[%s1 + $0x68] sm:$0xf]
  %v68 = vld [vmem:[%s1 + $0x6c] sm:$0xf]
  %v69 = vld [vmem:[%s1 + $0x70] sm:$0xf]
  %v70 = vld [vmem:[%s1 + $0x74] sm:$0xf]
  %v71 = vld [vmem:[%s1 + $0x78] sm:$0xf]
  %v72 = vld [vmem:[%s1 + $0x7c] sm:$0xf]
  %v73 = vld [vmem:[%s2] sm:$0x1]
  %v74 = vld [vmem:[%s3] sm:$0x1]
  %v75 = vpack.c.bf16 %v33, %v33
  %v76 = vpack.c.bf16 %v34, %v34
  %v77 = vpack.c.bf16 %v35, %v35
  %v78 = vpack.c.bf16 %v36, %v36
  %v79 = vpack.c.bf16 %v37, %v37
  %v80 = vpack.c.bf16 %v38, %v38
  %v81 = vpack.c.bf16 %v39, %v39
  %v82 = vpack.c.bf16 %v40, %v40
  %v84 = vshrl.u32 0, 16
  %v86 = vrot.slane %v84, 7
  %v87 = vshll.u32 0, 16
  %v89 = vor.u32 %v86, %v87
  %v91 = vshrl.u32 %v75, 16
  %v93 = vrot.slane %v91, 7
  %v94 = vshll.u32 %v75, 16
  %v96 = vor.u32 %v93, %v94
  %v98 = vshrl.u32 %v76, 16
  %v100 = vrot.slane %v98, 7
  %v101 = vshll.u32 %v76, 16
  %v103 = vor.u32 %v100, %v101
  %v105 = vshrl.u32 %v77, 16
  %v107 = vrot.slane %v105, 7
  %v108 = vshll.u32 %v77, 16
  %v110 = vor.u32 %v107, %v108
  %v112 = vshrl.u32 %v78, 16
  %v114 = vrot.slane %v112, 7
  %v115 = vshll.u32 %v78, 16
  %v117 = vor.u32 %v114, %v115
  %v119 = vshrl.u32 %v79, 16
  %v121 = vrot.slane %v119, 7
  %v122 = vshll.u32 %v79, 16
  %v124 = vor.u32 %v121, %v122
  %v126 = vshrl.u32 %v80, 16
  %v128 = vrot.slane %v126, 7
  %v129 = vshll.u32 %v80, 16
  %v131 = vor.u32 %v128, %v129
  %v133 = vshrl.u32 %v81, 16
  %v135 = vrot.slane %v133, 7
  %v136 = vshll.u32 %v81, 16
  %v138 = vor.u32 %v135, %v136
  %v140 = vshrl.u32 %v82, 16
  %v142 = vrot.slane %v140, 7
  %v143 = vshll.u32 %v82, 16
  %v145 = vor.u32 %v142, %v143
  %vm155 = vcmask 1040384
  %vm156 = vsmask.f32 256
  %vm157 = vmand %vm155, %vm156
  %v158 = vsel %vm157, 0, %v89
  %v159 = vsel %vm157, 0, %v96
  %v160 = vsel %vm157, 0, %v103
  %v161 = vsel %vm157, 0, %v110
  %v162 = vsel %vm157, 0, %v117
  %v163 = vsel %vm157, 0, %v124
  %v164 = vsel %vm157, 0, %v131
  %v165 = vsel %vm157, 0, %v138
  %v166 = vsel %vm157, 0, %v145
  %vm167 = vcmask 1042432
  %vm168 = vsmask.f32 2304
  %vm169 = vmand %vm167, %vm168
  %v170 = vsel %vm169, %v158, 0
  %v171 = vsel %vm169, %v159, 0
  %v172 = vsel %vm169, %v160, 0
  %v173 = vsel %vm169, %v161, 0
  %v174 = vsel %vm169, %v162, 0
  %v175 = vsel %vm169, %v163, 0
  %v176 = vsel %vm169, %v164, 0
  %v177 = vsel %vm169, %v165, 0
  %v178 = vsel %vm169, %v166, 0
  %v180 = vshrl.u32 %v170, 16
  %v182 = vshll.u32 %v170, 16
  %v184 = vrot.slane %v182, 1
  %v185 = vor.u32 %v180, %v184
  %v187 = vshrl.u32 %v171, 16
  %v189 = vshll.u32 %v171, 16
  %v191 = vrot.slane %v189, 1
  %v192 = vor.u32 %v187, %v191
  %v194 = vshrl.u32 %v172, 16
  %v196 = vshll.u32 %v172, 16
  %v198 = vrot.slane %v196, 1
  %v199 = vor.u32 %v194, %v198
  %v201 = vshrl.u32 %v173, 16
  %v203 = vshll.u32 %v173, 16
  %v205 = vrot.slane %v203, 1
  %v206 = vor.u32 %v201, %v205
  %v208 = vshrl.u32 %v175, 16
  %v210 = vshll.u32 %v175, 16
  %v212 = vrot.slane %v210, 1
  %v213 = vor.u32 %v208, %v212
  %v215 = vshrl.u32 %v176, 16
  %v217 = vshll.u32 %v176, 16
  %v219 = vrot.slane %v217, 1
  %v220 = vor.u32 %v215, %v219
  %v222 = vshrl.u32 %v177, 16
  %v224 = vshll.u32 %v177, 16
  %v226 = vrot.slane %v224, 1
  %v227 = vor.u32 %v222, %v226
  %228 = vrot.lane.b32.xlu0 %v185, 16
  %v229 = vpop.permute.xlu0 %228
  %230 = vrot.lane.b32.xlu0 %v192, 16
  %v231 = vpop.permute.xlu0 %230
  %232 = vrot.lane.b32.xlu0 %v199, 16
  %v233 = vpop.permute.xlu0 %232
  %234 = vrot.lane.b32.xlu0 %v206, 16
  %v235 = vpop.permute.xlu0 %234
  %236 = vrot.lane.b32.xlu0 %v213, 16
  %v237 = vpop.permute.xlu0 %236
  %238 = vrot.lane.b32.xlu0 %v220, 16
  %v239 = vpop.permute.xlu0 %238
  %240 = vrot.lane.b32.xlu0 %v227, 16
  %v241 = vpop.permute.xlu0 %240
  %250 = vrot.lane.b32.xlu0 %v171, 32
  %v251 = vpop.permute.xlu0 %250
  %252 = vrot.lane.b32.xlu0 %v172, 32
  %v253 = vpop.permute.xlu0 %252
  %254 = vrot.lane.b32.xlu0 %v173, 32
  %v255 = vpop.permute.xlu0 %254
  %256 = vrot.lane.b32.xlu0 %v174, 32
  %v257 = vpop.permute.xlu0 %256
  %258 = vrot.lane.b32.xlu0 %v175, 32
  %v259 = vpop.permute.xlu0 %258
  %260 = vrot.lane.b32.xlu0 %v176, 32
  %v261 = vpop.permute.xlu0 %260
  %262 = vrot.lane.b32.xlu0 %v177, 32
  %v263 = vpop.permute.xlu0 %262
  %264 = vrot.lane.b32.xlu0 %v178, 32
  %v265 = vpop.permute.xlu0 %264
  %v267 = vshrl.u32 %v174, 16
  %v269 = vshll.u32 %v174, 16
  %v271 = vrot.slane %v269, 1
  %v272 = vor.u32 %v267, %v271
  %v274 = vshrl.u32 %v178, 16
  %v276 = vshll.u32 %v178, 16
  %v278 = vrot.slane %v276, 1
  %v279 = vor.u32 %v274, %v278
  %280 = vrot.lane.b32.xlu0 %v192, 48
  %v281 = vpop.permute.xlu0 %280
  %282 = vrot.lane.b32.xlu0 %v199, 48
  %v283 = vpop.permute.xlu0 %282
  %284 = vrot.lane.b32.xlu0 %v206, 48
  %v285 = vpop.permute.xlu0 %284
  %286 = vrot.lane.b32.xlu0 %v272, 48
  %v287 = vpop.permute.xlu0 %286
  %288 = vrot.lane.b32.xlu0 %v213, 48
  %v289 = vpop.permute.xlu0 %288
  %290 = vrot.lane.b32.xlu0 %v220, 48
  %v291 = vpop.permute.xlu0 %290
  %292 = vrot.lane.b32.xlu0 %v227, 48
  %v293 = vpop.permute.xlu0 %292
  %294 = vrot.lane.b32.xlu0 %v279, 48
  %v295 = vpop.permute.xlu0 %294
  %vm296 = vcmask 130048
  %v298 = vsel %vm296, %v170, %v229
  %v300 = vsel %vm296, %v171, %v231
  %v302 = vsel %vm296, %v172, %v233
  %v304 = vsel %vm296, %v173, %v235
  %v306 = vsel %vm296, %v175, %v237
  %v308 = vsel %vm296, %v176, %v239
  %v310 = vsel %vm296, %v177, %v241
  %vm311 = vcmask 261120
  %v313 = vsel %vm311, %v298, %v251
  %v315 = vsel %vm311, %v300, %v253
  %v317 = vsel %vm311, %v302, %v255
  %v319 = vsel %vm311, %v304, %v257
  %v321 = vsel %vm311, %v298, %v259
  %v323 = vsel %vm311, %v306, %v261
  %v325 = vsel %vm311, %v308, %v263
  %v327 = vsel %vm311, %v310, %v265
  %vm328 = vcmask 392192
  %v330 = vsel %vm328, %v313, %v281
  %v332 = vsel %vm328, %v315, %v283
  %v334 = vsel %vm328, %v317, %v285
  %v336 = vsel %vm328, %v319, %v287
  %v338 = vsel %vm328, %v321, %v289
  %v340 = vsel %vm328, %v323, %v291
  %v342 = vsel %vm328, %v325, %v293
  %v344 = vsel %vm328, %v327, %v295
  %v353 = vcombine.low %v330, %v332
  %v354 = vcombine.low %v334, %v336
  %v356 = vunpack.c.l.s4 1983009808
  %v357 = vunpack.c.0.s8 %v356
  %v358 = vlaneseq
  %v359 = vshrl.u32 %v358, 7
  %v360 = vsub.s32 %v357, %v359
  %v361 = vrot.slane %v353, %v360
  %v363 = vunpack.c.l.s4 1983009808
  %v364 = vunpack.c.0.s8 %v363
  %v365 = vlaneseq
  %v366 = vshrl.u32 %v365, 7
  %v367 = vsub.s32 %v364, %v366
  %v368 = vrot.slane %v354, %v367
  %v369 = vcombine.low %v361, %v368
  %v370 = vcombine.low %v338, %v340
  %v371 = vcombine.low %v342, %v344
  %v373 = vunpack.c.l.s4 1983009808
  %v374 = vunpack.c.0.s8 %v373
  %v375 = vlaneseq
  %v376 = vshrl.u32 %v375, 7
  %v377 = vsub.s32 %v374, %v376
  %v378 = vrot.slane %v370, %v377
  %v380 = vunpack.c.l.s4 1983009808
  %v381 = vunpack.c.0.s8 %v380
  %v382 = vlaneseq
  %v383 = vshrl.u32 %v382, 7
  %v384 = vsub.s32 %v381, %v383
  %v385 = vrot.slane %v371, %v384
  %v386 = vcombine.low %v378, %v385
  %v395 = vunpack.c.l.b16 %v41
  %v396 = vunpack.c.l.b16 %v42
  %v397 = vunpack.c.l.b16 %v43
  %v398 = vunpack.c.l.b16 %v44
  %v399 = vunpack.c.l.b16 %v45
  %v400 = vunpack.c.l.b16 %v46
  %v401 = vunpack.c.l.b16 %v47
  %v402 = vunpack.c.l.b16 %v48
  %v403 = vpack.c.b16 %v396, %v395
  %v404 = vpack.c.b16 %v398, %v397
  %v405 = vpack.c.b16 %v400, %v399
  %v406 = vpack.c.b16 %v402, %v401
  %vm411 = vcmask 523264
  %v413 = vsel %vm411, %v369, 0
  %v416 = vsel %vm411, %v386, 0
  %418 = vmatprep.subr.bf16.mxu0 0
  %419 = vmatpush1.bf16.msra.mxu0 %v403
  %420 = vmatprep.subr.bf16.mxu0 0
  %421 = vmatpush1.bf16.msra.mxu0 %v404
  %422 = vmatprep.subr.bf16.mxu0 0
  %423 = vmatpush1.bf16.msra.mxu0 %v405
  %424 = vmatprep.subr.bf16.mxu0 0
  %425 = vmatpush1.bf16.msra.mxu0 %v406
  %426 = vmatprep.subr.bf16.mxu0 0
  %427 = vmatpush1.bf16.msra.mxu0 0
  %428 = vmatprep.subr.bf16.mxu0 0
  %429 = vmatpush1.bf16.msra.mxu0 0
  %430 = vmatprep.subr.bf16.mxu0 0
  %431 = vmatpush1.bf16.msra.mxu0 0
  %432 = vmatprep.subr.bf16.mxu0 0
  %433 = vmatpush1.bf16.msra.mxu0 0
  %434 = vmatprep.subr.bf16.mxu0 0
  %435 = vmatpush1.bf16.msra.mxu0 0
  %436 = vmatprep.subr.bf16.mxu0 0
  %437 = vmatpush1.bf16.msra.mxu0 0
  %438 = vmatprep.subr.bf16.mxu0 0
  %439 = vmatpush1.bf16.msra.mxu0 0
  %440 = vmatprep.subr.bf16.mxu0 0
  %441 = vmatpush1.bf16.msra.mxu0 0
  %442 = vmatprep.subr.bf16.mxu0 0
  %443 = vmatpush1.bf16.msra.mxu0 0
  %444 = vmatprep.subr.bf16.mxu0 0
  %445 = vmatpush1.bf16.msra.mxu0 0
  %446 = vmatprep.subr.bf16.mxu0 0
  %447 = vmatpush1.bf16.msra.mxu0 0
  %448 = vmatprep.subr.bf16.mxu0 0
  %449 = vmatpush1.bf16.msra.mxu0 0
  %450 = vmatprep.mubr.bf16.mxu0 0
  %451 = vmatmul.mubr.bf16.gmra.mrb[0].mxu0 %v413
  %v452 = vpop.f32.mrb[0].mxu0
  %v453 = vadd.f32 0.0, %v452
  %v454 = vpop.f32.mrb[0].mxu0
  %v455 = vpop.f32.mrb[0].mxu0
  %v456 = vadd.f32 0.0, %v455
  %v457 = vpop.f32.mrb[0].mxu0
  %458 = vmatprep.mubr.bf16.mxu0 0
  %459 = vmatmul.mubr.bf16.gmra.mrb[0].mxu0 %v416
  %v460 = vpop.f32.mrb[0].mxu0
  %v461 = vadd.f32 0.0, %v460
  %v462 = vpop.f32.mrb[0].mxu0
  %v463 = vpop.f32.mrb[0].mxu0
  %v464 = vadd.f32 0.0, %v463
  %v465 = vpop.f32.mrb[0].mxu0
  %466 = vdwg.mxu0
  %v468 = vunpack.c.l.s4 1983009808
  %v469 = vunpack.c.0.s8 %v468
  %v470 = vlaneseq
  %v471 = vshrl.u32 %v470, 7
  %v472 = vsub.s32 %v469, %v471
  %v473 = vrot.slane %v330, %v472
  %v474 = vcombine.high %v473, %v473
  %v476 = vunpack.c.l.s4 1983009808
  %v477 = vunpack.c.0.s8 %v476
  %v478 = vlaneseq
  %v479 = vshrl.u32 %v478, 7
  %v480 = vsub.s32 %v477, %v479
  %v481 = vrot.slane %v332, %v480
  %v482 = vcombine.high %v481, %v481
  %v484 = vunpack.c.l.s4 1983009808
  %v485 = vunpack.c.0.s8 %v484
  %v486 = vlaneseq
  %v487 = vshrl.u32 %v486, 7
  %v488 = vsub.s32 %v485, %v487
  %v489 = vrot.slane %v334, %v488
  %v490 = vcombine.high %v489, %v489
  %v492 = vunpack.c.l.s4 1983009808
  %v493 = vunpack.c.0.s8 %v492
  %v494 = vlaneseq
  %v495 = vshrl.u32 %v494, 7
  %v496 = vsub.s32 %v493, %v495
  %v497 = vrot.slane %v336, %v496
  %v498 = vcombine.high %v497, %v497
  %v500 = vunpack.c.l.s4 1983009808
  %v501 = vunpack.c.0.s8 %v500
  %v502 = vlaneseq
  %v503 = vshrl.u32 %v502, 7
  %v504 = vsub.s32 %v501, %v503
  %v505 = vrot.slane %v338, %v504
  %v506 = vcombine.high %v505, %v505
  %v508 = vunpack.c.l.s4 1983009808
  %v509 = vunpack.c.0.s8 %v508
  %v510 = vlaneseq
  %v511 = vshrl.u32 %v510, 7
  %v512 = vsub.s32 %v509, %v511
  %v513 = vrot.slane %v340, %v512
  %v514 = vcombine.high %v513, %v513
  %v516 = vunpack.c.l.s4 1983009808
  %v517 = vunpack.c.0.s8 %v516
  %v518 = vlaneseq
  %v519 = vshrl.u32 %v518, 7
  %v520 = vsub.s32 %v517, %v519
  %v521 = vrot.slane %v342, %v520
  %v522 = vcombine.high %v521, %v521
  %v524 = vunpack.c.l.s4 1983009808
  %v525 = vunpack.c.0.s8 %v524
  %v526 = vlaneseq
  %v527 = vshrl.u32 %v526, 7
  %v528 = vsub.s32 %v525, %v527
  %v529 = vrot.slane %v344, %v528
  %v530 = vcombine.high %v529, %v529
  %vm531 = vsmask.f32 1280
  %vm532 = vsmask.f32 3336
  %vm533 = vmor %vm531, %vm532
  %vm534 = vsmask.f32 5392
  %vm535 = vmor %vm533, %vm534
  %vm536 = vsmask.f32 7448
  %vm537 = vmor %vm535, %vm536
  %v539 = vshrl.u32 %v473, 16
  %v541 = vrot.slane %v539, 6
  %v542 = vshll.u32 %v473, 16
  %v544 = vrot.slane %v542, 7
  %v545 = vor.u32 %v541, %v544
  %v546 = vrot.slane %v545, 2
  %v548 = vshll.u32 %v474, 16
  %v550 = vrot.slane %v548, 7
  %v551 = vsel %vm537, %v546, %v550
  %v553 = vshrl.u32 %v481, 16
  %v555 = vrot.slane %v553, 6
  %v556 = vshll.u32 %v481, 16
  %v558 = vrot.slane %v556, 7
  %v559 = vor.u32 %v555, %v558
  %v560 = vrot.slane %v559, 2
  %v562 = vshll.u32 %v482, 16
  %v564 = vrot.slane %v562, 7
  %v565 = vsel %vm537, %v560, %v564
  %v567 = vshrl.u32 %v489, 16
  %v569 = vrot.slane %v567, 6
  %v570 = vshll.u32 %v489, 16
  %v572 = vrot.slane %v570, 7
  %v573 = vor.u32 %v569, %v572
  %v574 = vrot.slane %v573, 2
  %v576 = vshll.u32 %v490, 16
  %v578 = vrot.slane %v576, 7
  %v579 = vsel %vm537, %v574, %v578
  %v581 = vshrl.u32 %v497, 16
  %v583 = vrot.slane %v581, 6
  %v584 = vshll.u32 %v497, 16
  %v586 = vrot.slane %v584, 7
  %v587 = vor.u32 %v583, %v586
  %v588 = vrot.slane %v587, 2
  %v590 = vshll.u32 %v498, 16
  %v592 = vrot.slane %v590, 7
  %v593 = vsel %vm537, %v588, %v592
  %v595 = vshrl.u32 %v505, 16
  %v597 = vrot.slane %v595, 6
  %v598 = vshll.u32 %v505, 16
  %v600 = vrot.slane %v598, 7
  %v601 = vor.u32 %v597, %v600
  %v602 = vrot.slane %v601, 2
  %v604 = vshll.u32 %v506, 16
  %v606 = vrot.slane %v604, 7
  %v607 = vsel %vm537, %v602, %v606
  %v609 = vshrl.u32 %v513, 16
  %v611 = vrot.slane %v609, 6
  %v612 = vshll.u32 %v513, 16
  %v614 = vrot.slane %v612, 7
  %v615 = vor.u32 %v611, %v614
  %v616 = vrot.slane %v615, 2
  %v618 = vshll.u32 %v514, 16
  %v620 = vrot.slane %v618, 7
  %v621 = vsel %vm537, %v616, %v620
  %v623 = vshrl.u32 %v521, 16
  %v625 = vrot.slane %v623, 6
  %v626 = vshll.u32 %v521, 16
  %v628 = vrot.slane %v626, 7
  %v629 = vor.u32 %v625, %v628
  %v630 = vrot.slane %v629, 2
  %v632 = vshll.u32 %v522, 16
  %v634 = vrot.slane %v632, 7
  %v635 = vsel %vm537, %v630, %v634
  %v637 = vshrl.u32 %v529, 16
  %v639 = vrot.slane %v637, 6
  %v640 = vshll.u32 %v529, 16
  %v642 = vrot.slane %v640, 7
  %v643 = vor.u32 %v639, %v642
  %v644 = vrot.slane %v643, 2
  %v646 = vshll.u32 %v530, 16
  %v648 = vrot.slane %v646, 7
  %v649 = vsel %vm537, %v644, %v648
  %v650 = vcombine.low %v551, %v565
  %v651 = vcombine.low %v579, %v593
  %v653 = vunpack.c.l.s4 1983009808
  %v654 = vunpack.c.0.s8 %v653
  %v655 = vlaneseq
  %v656 = vshrl.u32 %v655, 7
  %v657 = vsub.s32 %v654, %v656
  %v658 = vrot.slane %v650, %v657
  %v660 = vunpack.c.l.s4 1983009808
  %v661 = vunpack.c.0.s8 %v660
  %v662 = vlaneseq
  %v663 = vshrl.u32 %v662, 7
  %v664 = vsub.s32 %v661, %v663
  %v665 = vrot.slane %v651, %v664
  %v666 = vcombine.low %v658, %v665
  %v667 = vcombine.low %v607, %v621
  %v668 = vcombine.low %v635, %v649
  %v670 = vunpack.c.l.s4 1983009808
  %v671 = vunpack.c.0.s8 %v670
  %v672 = vlaneseq
  %v673 = vshrl.u32 %v672, 7
  %v674 = vsub.s32 %v671, %v673
  %v675 = vrot.slane %v667, %v674
  %v677 = vunpack.c.l.s4 1983009808
  %v678 = vunpack.c.0.s8 %v677
  %v679 = vlaneseq
  %v680 = vshrl.u32 %v679, 7
  %v681 = vsub.s32 %v678, %v680
  %v682 = vrot.slane %v668, %v681
  %v683 = vcombine.low %v675, %v682
  %v692 = vunpack.c.l.b16 %v49
  %v693 = vunpack.c.l.b16 %v50
  %v694 = vunpack.c.l.b16 %v51
  %v695 = vunpack.c.l.b16 %v52
  %v696 = vunpack.c.l.b16 %v53
  %v697 = vunpack.c.l.b16 %v54
  %v698 = vunpack.c.l.b16 %v55
  %v699 = vunpack.c.l.b16 %v56
  %v700 = vpack.c.b16 %v693, %v692
  %v701 = vpack.c.b16 %v695, %v694
  %v702 = vpack.c.b16 %v697, %v696
  %v703 = vpack.c.b16 %v699, %v698
  %v709 = vsel %vm411, %v666, 0
  %v712 = vsel %vm411, %v683, 0
  %714 = vmatprep.subr.bf16.mxu0 0
  %715 = vmatpush1.bf16.msra.mxu0 %v700
  %716 = vmatprep.subr.bf16.mxu0 0
  %717 = vmatpush1.bf16.msra.mxu0 %v701
  %718 = vmatprep.subr.bf16.mxu0 0
  %719 = vmatpush1.bf16.msra.mxu0 %v702
  %720 = vmatprep.subr.bf16.mxu0 0
  %721 = vmatpush1.bf16.msra.mxu0 %v703
  %722 = vmatprep.subr.bf16.mxu0 0
  %723 = vmatpush1.bf16.msra.mxu0 0
  %724 = vmatprep.subr.bf16.mxu0 0
  %725 = vmatpush1.bf16.msra.mxu0 0
  %726 = vmatprep.subr.bf16.mxu0 0
  %727 = vmatpush1.bf16.msra.mxu0 0
  %728 = vmatprep.subr.bf16.mxu0 0
  %729 = vmatpush1.bf16.msra.mxu0 0
  %730 = vmatprep.subr.bf16.mxu0 0
  %731 = vmatpush1.bf16.msra.mxu0 0
  %732 = vmatprep.subr.bf16.mxu0 0
  %733 = vmatpush1.bf16.msra.mxu0 0
  %734 = vmatprep.subr.bf16.mxu0 0
  %735 = vmatpush1.bf16.msra.mxu0 0
  %736 = vmatprep.subr.bf16.mxu0 0
  %737 = vmatpush1.bf16.msra.mxu0 0
  %738 = vmatprep.subr.bf16.mxu0 0
  %739 = vmatpush1.bf16.msra.mxu0 0
  %740 = vmatprep.subr.bf16.mxu0 0
  %741 = vmatpush1.bf16.msra.mxu0 0
  %742 = vmatprep.subr.bf16.mxu0 0
  %743 = vmatpush1.bf16.msra.mxu0 0
  %744 = vmatprep.subr.bf16.mxu0 0
  %745 = vmatpush1.bf16.msra.mxu0 0
  %746 = vmatprep.mubr.bf16.mxu0 0
  %747 = vmatmul.mubr.bf16.gmra.mrb[0].mxu0 %v709
  %v748 = vpop.f32.mrb[0].mxu0
  %v749 = vadd.f32 0.0, %v748
  %v750 = vpop.f32.mrb[0].mxu0
  %v751 = vpop.f32.mrb[0].mxu0
  %v752 = vadd.f32 0.0, %v751
  %v753 = vpop.f32.mrb[0].mxu0
  %754 = vmatprep.mubr.bf16.mxu0 0
  %755 = vmatmul.mubr.bf16.gmra.mrb[0].mxu0 %v712
  %v756 = vpop.f32.mrb[0].mxu0
  %v757 = vadd.f32 0.0, %v756
  %v758 = vpop.f32.mrb[0].mxu0
  %v759 = vpop.f32.mrb[0].mxu0
  %v760 = vadd.f32 0.0, %v759
  %v761 = vpop.f32.mrb[0].mxu0
  %762 = vdwg.mxu0
  %763 = vrot.lane.b32.xlu0 %v272, 16
  %v764 = vpop.permute.xlu0 %763
  %765 = vrot.lane.b32.xlu0 %v279, 16
  %v766 = vpop.permute.xlu0 %765
  %768 = vrot.lane.b32.xlu0 %v170, 32
  %v769 = vpop.permute.xlu0 %768
  %770 = vrot.lane.b32.xlu0 %v185, 48
  %v771 = vpop.permute.xlu0 %770
  %v773 = vsel %vm296, %v174, %v764
  %v775 = vsel %vm296, %v178, %v766
  %v777 = vsel %vm311, %v773, %v769
  %v778 = vsel %vm311, %v775, %v769
  %v780 = vsel %vm328, %v777, %v771
  %v781 = vsel %vm328, %v778, %v771
  %v784 = vcombine.low %v332, %v334
  %v785 = vcombine.low %v336, %v780
  %v787 = vunpack.c.l.s4 1983009808
  %v788 = vunpack.c.0.s8 %v787
  %v789 = vlaneseq
  %v790 = vshrl.u32 %v789, 7
  %v791 = vsub.s32 %v788, %v790
  %v792 = vrot.slane %v784, %v791
  %v794 = vunpack.c.l.s4 1983009808
  %v795 = vunpack.c.0.s8 %v794
  %v796 = vlaneseq
  %v797 = vshrl.u32 %v796, 7
  %v798 = vsub.s32 %v795, %v797
  %v799 = vrot.slane %v785, %v798
  %v800 = vcombine.low %v792, %v799
  %v801 = vcombine.low %v340, %v342
  %v802 = vcombine.low %v344, %v781
  %v804 = vunpack.c.l.s4 1983009808
  %v805 = vunpack.c.0.s8 %v804
  %v806 = vlaneseq
  %v807 = vshrl.u32 %v806, 7
  %v808 = vsub.s32 %v805, %v807
  %v809 = vrot.slane %v801, %v808
  %v811 = vunpack.c.l.s4 1983009808
  %v812 = vunpack.c.0.s8 %v811
  %v813 = vlaneseq
  %v814 = vshrl.u32 %v813, 7
  %v815 = vsub.s32 %v812, %v814
  %v816 = vrot.slane %v802, %v815
  %v817 = vcombine.low %v809, %v816
  %v826 = vunpack.c.l.b16 %v57
  %v827 = vunpack.c.l.b16 %v58
  %v828 = vunpack.c.l.b16 %v59
  %v829 = vunpack.c.l.b16 %v60
  %v830 = vunpack.c.l.b16 %v61
  %v831 = vunpack.c.l.b16 %v62
  %v832 = vunpack.c.l.b16 %v63
  %v833 = vunpack.c.l.b16 %v64
  %v834 = vpack.c.b16 %v827, %v826
  %v835 = vpack.c.b16 %v829, %v828
  %v836 = vpack.c.b16 %v831, %v830
  %v837 = vpack.c.b16 %v833, %v832
  %v843 = vsel %vm411, %v800, 0
  %v846 = vsel %vm411, %v817, 0
  %848 = vmatprep.subr.bf16.mxu0 0
  %849 = vmatpush1.bf16.msra.mxu0 %v834
  %850 = vmatprep.subr.bf16.mxu0 0
  %851 = vmatpush1.bf16.msra.mxu0 %v835
  %852 = vmatprep.subr.bf16.mxu0 0
  %853 = vmatpush1.bf16.msra.mxu0 %v836
  %854 = vmatprep.subr.bf16.mxu0 0
  %855 = vmatpush1.bf16.msra.mxu0 %v837
  %856 = vmatprep.subr.bf16.mxu0 0
  %857 = vmatpush1.bf16.msra.mxu0 0
  %858 = vmatprep.subr.bf16.mxu0 0
  %859 = vmatpush1.bf16.msra.mxu0 0
  %860 = vmatprep.subr.bf16.mxu0 0
  %861 = vmatpush1.bf16.msra.mxu0 0
  %862 = vmatprep.subr.bf16.mxu0 0
  %863 = vmatpush1.bf16.msra.mxu0 0
  %864 = vmatprep.subr.bf16.mxu0 0
  %865 = vmatpush1.bf16.msra.mxu0 0
  %866 = vmatprep.subr.bf16.mxu0 0
  %867 = vmatpush1.bf16.msra.mxu0 0
  %868 = vmatprep.subr.bf16.mxu0 0
  %869 = vmatpush1.bf16.msra.mxu0 0
  %870 = vmatprep.subr.bf16.mxu0 0
  %871 = vmatpush1.bf16.msra.mxu0 0
  %872 = vmatprep.subr.bf16.mxu0 0
  %873 = vmatpush1.bf16.msra.mxu0 0
  %874 = vmatprep.subr.bf16.mxu0 0
  %875 = vmatpush1.bf16.msra.mxu0 0
  %876 = vmatprep.subr.bf16.mxu0 0
  %877 = vmatpush1.bf16.msra.mxu0 0
  %878 = vmatprep.subr.bf16.mxu0 0
  %879 = vmatpush1.bf16.msra.mxu0 0
  %880 = vmatprep.mubr.bf16.mxu0 0
  %881 = vmatmul.mubr.bf16.gmra.mrb[0].mxu0 %v843
  %v882 = vpop.f32.mrb[0].mxu0
  %v883 = vadd.f32 0.0, %v882
  %v884 = vpop.f32.mrb[0].mxu0
  %v885 = vpop.f32.mrb[0].mxu0
  %v886 = vadd.f32 0.0, %v885
  %v887 = vpop.f32.mrb[0].mxu0
  %888 = vmatprep.mubr.bf16.mxu0 0
  %889 = vmatmul.mubr.bf16.gmra.mrb[0].mxu0 %v846
  %v890 = vpop.f32.mrb[0].mxu0
  %v891 = vadd.f32 0.0, %v890
  %v892 = vpop.f32.mrb[0].mxu0
  %v893 = vpop.f32.mrb[0].mxu0
  %v894 = vadd.f32 0.0, %v893
  %v895 = vpop.f32.mrb[0].mxu0
  %896 = vdwg.mxu0
  %v898 = vunpack.c.l.s4 1983009808
  %v899 = vunpack.c.0.s8 %v898
  %v900 = vlaneseq
  %v901 = vshrl.u32 %v900, 7
  %v902 = vsub.s32 %v899, %v901
  %v903 = vrot.slane %v780, %v902
  %v904 = vcombine.high %v903, %v903
  %v906 = vunpack.c.l.s4 1983009808
  %v907 = vunpack.c.0.s8 %v906
  %v908 = vlaneseq
  %v909 = vshrl.u32 %v908, 7
  %v910 = vsub.s32 %v907, %v909
  %v911 = vrot.slane %v781, %v910
  %v912 = vcombine.high %v911, %v911
  %v914 = vshrl.u32 %v903, 16
  %v916 = vrot.slane %v914, 6
  %v917 = vshll.u32 %v903, 16
  %v919 = vrot.slane %v917, 7
  %v920 = vor.u32 %v916, %v919
  %v921 = vrot.slane %v920, 2
  %v923 = vshll.u32 %v904, 16
  %v925 = vrot.slane %v923, 7
  %v926 = vsel %vm537, %v921, %v925
  %v928 = vshrl.u32 %v911, 16
  %v930 = vrot.slane %v928, 6
  %v931 = vshll.u32 %v911, 16
  %v933 = vrot.slane %v931, 7
  %v934 = vor.u32 %v930, %v933
  %v935 = vrot.slane %v934, 2
  %v937 = vshll.u32 %v912, 16
  %v939 = vrot.slane %v937, 7
  %v940 = vsel %vm537, %v935, %v939
  %v941 = vcombine.low %v565, %v579
  %v942 = vcombine.low %v593, %v926
  %v944 = vunpack.c.l.s4 1983009808
  %v945 = vunpack.c.0.s8 %v944
  %v946 = vlaneseq
  %v947 = vshrl.u32 %v946, 7
  %v948 = vsub.s32 %v945, %v947
  %v949 = vrot.slane %v941, %v948
  %v951 = vunpack.c.l.s4 1983009808
  %v952 = vunpack.c.0.s8 %v951
  %v953 = vlaneseq
  %v954 = vshrl.u32 %v953, 7
  %v955 = vsub.s32 %v952, %v954
  %v956 = vrot.slane %v942, %v955
  %v957 = vcombine.low %v949, %v956
  %v958 = vcombine.low %v621, %v635
  %v959 = vcombine.low %v649, %v940
  %v961 = vunpack.c.l.s4 1983009808
  %v962 = vunpack.c.0.s8 %v961
  %v963 = vlaneseq
  %v964 = vshrl.u32 %v963, 7
  %v965 = vsub.s32 %v962, %v964
  %v966 = vrot.slane %v958, %v965
  %v968 = vunpack.c.l.s4 1983009808
  %v969 = vunpack.c.0.s8 %v968
  %v970 = vlaneseq
  %v971 = vshrl.u32 %v970, 7
  %v972 = vsub.s32 %v969, %v971
  %v973 = vrot.slane %v959, %v972
  %v974 = vcombine.low %v966, %v973
  %v983 = vunpack.c.l.b16 %v65
  %v984 = vunpack.c.l.b16 %v66
  %v985 = vunpack.c.l.b16 %v67
  %v986 = vunpack.c.l.b16 %v68
  %v987 = vunpack.c.l.b16 %v69
  %v988 = vunpack.c.l.b16 %v70
  %v989 = vunpack.c.l.b16 %v71
  %v990 = vunpack.c.l.b16 %v72
  %v991 = vpack.c.b16 %v984, %v983
  %v992 = vpack.c.b16 %v986, %v985
  %v993 = vpack.c.b16 %v988, %v987
  %v994 = vpack.c.b16 %v990, %v989
  %v1000 = vsel %vm411, %v957, 0
  %v1003 = vsel %vm411, %v974, 0
  %1005 = vmatprep.subr.bf16.mxu0 0
  %1006 = vmatpush1.bf16.msra.mxu0 %v991
  %1007 = vmatprep.subr.bf16.mxu0 0
  %1008 = vmatpush1.bf16.msra.mxu0 %v992
  %1009 = vmatprep.subr.bf16.mxu0 0
  %1010 = vmatpush1.bf16.msra.mxu0 %v993
  %1011 = vmatprep.subr.bf16.mxu0 0
  %1012 = vmatpush1.bf16.msra.mxu0 %v994
  %1013 = vmatprep.subr.bf16.mxu0 0
  %1014 = vmatpush1.bf16.msra.mxu0 0
  %1015 = vmatprep.subr.bf16.mxu0 0
  %1016 = vmatpush1.bf16.msra.mxu0 0
  %1017 = vmatprep.subr.bf16.mxu0 0
  %1018 = vmatpush1.bf16.msra.mxu0 0
  %1019 = vmatprep.subr.bf16.mxu0 0
  %1020 = vmatpush1.bf16.msra.mxu0 0
  %1021 = vmatprep.subr.bf16.mxu0 0
  %1022 = vmatpush1.bf16.msra.mxu0 0
  %1023 = vmatprep.subr.bf16.mxu0 0
  %1024 = vmatpush1.bf16.msra.mxu0 0
  %1025 = vmatprep.subr.bf16.mxu0 0
  %1026 = vmatpush1.bf16.msra.mxu0 0
  %1027 = vmatprep.subr.bf16.mxu0 0
  %1028 = vmatpush1.bf16.msra.mxu0 0
  %1029 = vmatprep.subr.bf16.mxu0 0
  %1030 = vmatpush1.bf16.msra.mxu0 0
  %1031 = vmatprep.subr.bf16.mxu0 0
  %1032 = vmatpush1.bf16.msra.mxu0 0
  %1033 = vmatprep.subr.bf16.mxu0 0
  %1034 = vmatpush1.bf16.msra.mxu0 0
  %1035 = vmatprep.subr.bf16.mxu0 0
  %1036 = vmatpush1.bf16.msra.mxu0 0
  %1037 = vmatprep.mubr.bf16.mxu0 0
  %1038 = vmatmul.mubr.bf16.gmra.mrb[0].mxu0 %v1000
  %v1039 = vpop.f32.mrb[0].mxu0
  %v1040 = vadd.f32 0.0, %v1039
  %v1041 = vpop.f32.mrb[0].mxu0
  %v1042 = vpop.f32.mrb[0].mxu0
  %v1043 = vadd.f32 0.0, %v1042
  %v1044 = vpop.f32.mrb[0].mxu0
  %1045 = vmatprep.mubr.bf16.mxu0 0
  %1046 = vmatmul.mubr.bf16.gmra.mrb[0].mxu0 %v1003
  %v1047 = vpop.f32.mrb[0].mxu0
  %v1048 = vadd.f32 0.0, %v1047
  %v1049 = vpop.f32.mrb[0].mxu0
  %v1050 = vpop.f32.mrb[0].mxu0
  %v1051 = vadd.f32 0.0, %v1050
  %v1052 = vpop.f32.mrb[0].mxu0
  %1053 = vdwg.mxu0
  %v1054 = vsel %vm296, %v453, 0.0
  %v1055 = vsel %vm296, %v456, 0.0
  %v1056 = vadd.f32 %v1054, %v1055
  %v1057 = vsel %vm296, %v461, 0.0
  %v1058 = vadd.f32 %v1056, %v1057
  %v1059 = vsel %vm296, %v464, 0.0
  %v1060 = vadd.f32 %v1058, %v1059
  %v1061 = vrot.slane %v1060, 4
  %v1062 = vadd.f32 %v1060, %v1061
  %v1063 = vrot.slane %v1062, 2
  %v1064 = vadd.f32 %v1062, %v1063
  %v1065 = vrot.slane %v1064, 1
  %v1066 = vadd.f32 %v1064, %v1065
  %v1067 = vmul.f32 %v453, %v453
  %v1068 = vmul.f32 %v456, %v456
  %v1069 = vmul.f32 %v461, %v461
  %v1070 = vmul.f32 %v464, %v464
  %v1071 = vsel %vm296, %v1067, 0.0
  %v1072 = vsel %vm296, %v1068, 0.0
  %v1073 = vadd.f32 %v1071, %v1072
  %v1074 = vsel %vm296, %v1069, 0.0
  %v1075 = vadd.f32 %v1073, %v1074
  %v1076 = vsel %vm296, %v1070, 0.0
  %v1077 = vadd.f32 %v1075, %v1076
  %v1078 = vrot.slane %v1077, 4
  %v1079 = vadd.f32 %v1077, %v1078
  %v1080 = vrot.slane %v1079, 2
  %v1081 = vadd.f32 %v1079, %v1080
  %v1082 = vrot.slane %v1081, 1
  %v1083 = vadd.f32 %v1081, %v1082
  %v1084 = vsel %vm296, %v749, 0.0
  %v1085 = vsel %vm296, %v752, 0.0
  %v1086 = vadd.f32 %v1084, %v1085
  %v1087 = vsel %vm296, %v757, 0.0
  %v1088 = vadd.f32 %v1086, %v1087
  %v1089 = vsel %vm296, %v760, 0.0
  %v1090 = vadd.f32 %v1088, %v1089
  %v1091 = vrot.slane %v1090, 4
  %v1092 = vadd.f32 %v1090, %v1091
  %v1093 = vrot.slane %v1092, 2
  %v1094 = vadd.f32 %v1092, %v1093
  %v1095 = vrot.slane %v1094, 1
  %v1096 = vadd.f32 %v1094, %v1095
  %v1097 = vadd.f32 %v1066, %v1096
  %v1098 = vmul.f32 %v749, %v749
  %v1099 = vmul.f32 %v752, %v752
  %v1100 = vmul.f32 %v757, %v757
  %v1101 = vmul.f32 %v760, %v760
  %v1102 = vsel %vm296, %v1098, 0.0
  %v1103 = vsel %vm296, %v1099, 0.0
  %v1104 = vadd.f32 %v1102, %v1103
  %v1105 = vsel %vm296, %v1100, 0.0
  %v1106 = vadd.f32 %v1104, %v1105
  %v1107 = vsel %vm296, %v1101, 0.0
  %v1108 = vadd.f32 %v1106, %v1107
  %v1109 = vrot.slane %v1108, 4
  %v1110 = vadd.f32 %v1108, %v1109
  %v1111 = vrot.slane %v1110, 2
  %v1112 = vadd.f32 %v1110, %v1111
  %v1113 = vrot.slane %v1112, 1
  %v1114 = vadd.f32 %v1112, %v1113
  %v1115 = vadd.f32 %v1083, %v1114
  %v1116 = vsel %vm296, %v883, 0.0
  %v1117 = vsel %vm296, %v886, 0.0
  %v1118 = vadd.f32 %v1116, %v1117
  %v1119 = vsel %vm296, %v891, 0.0
  %v1120 = vadd.f32 %v1118, %v1119
  %v1121 = vsel %vm296, %v894, 0.0
  %v1122 = vadd.f32 %v1120, %v1121
  %v1123 = vrot.slane %v1122, 4
  %v1124 = vadd.f32 %v1122, %v1123
  %v1125 = vrot.slane %v1124, 2
  %v1126 = vadd.f32 %v1124, %v1125
  %v1127 = vrot.slane %v1126, 1
  %v1128 = vadd.f32 %v1126, %v1127
  %v1129 = vadd.f32 %v1097, %v1128
  %v1130 = vmul.f32 %v883, %v883
  %v1131 = vmul.f32 %v886, %v886
  %v1132 = vmul.f32 %v891, %v891
  %v1133 = vmul.f32 %v894, %v894
  %v1134 = vsel %vm296, %v1130, 0.0
  %v1135 = vsel %vm296, %v1131, 0.0
  %v1136 = vadd.f32 %v1134, %v1135
  %v1137 = vsel %vm296, %v1132, 0.0
  %v1138 = vadd.f32 %v1136, %v1137
  %v1139 = vsel %vm296, %v1133, 0.0
  %v1140 = vadd.f32 %v1138, %v1139
  %v1141 = vrot.slane %v1140, 4
  %v1142 = vadd.f32 %v1140, %v1141
  %v1143 = vrot.slane %v1142, 2
  %v1144 = vadd.f32 %v1142, %v1143
  %v1145 = vrot.slane %v1144, 1
  %v1146 = vadd.f32 %v1144, %v1145
  %v1147 = vadd.f32 %v1115, %v1146
  %v1148 = vsel %vm296, %v1040, 0.0
  %v1149 = vsel %vm296, %v1043, 0.0
  %v1150 = vadd.f32 %v1148, %v1149
  %v1151 = vsel %vm296, %v1048, 0.0
  %v1152 = vadd.f32 %v1150, %v1151
  %v1153 = vsel %vm296, %v1051, 0.0
  %v1154 = vadd.f32 %v1152, %v1153
  %v1155 = vrot.slane %v1154, 4
  %v1156 = vadd.f32 %v1154, %v1155
  %v1157 = vrot.slane %v1156, 2
  %v1158 = vadd.f32 %v1156, %v1157
  %v1159 = vrot.slane %v1158, 1
  %v1160 = vadd.f32 %v1158, %v1159
  %v1161 = vadd.f32 %v1129, %v1160
  %v1162 = vmul.f32 %v1040, %v1040
  %v1163 = vmul.f32 %v1043, %v1043
  %v1164 = vmul.f32 %v1048, %v1048
  %v1165 = vmul.f32 %v1051, %v1051
  %v1166 = vsel %vm296, %v1162, 0.0
  %v1167 = vsel %vm296, %v1163, 0.0
  %v1168 = vadd.f32 %v1166, %v1167
  %v1169 = vsel %vm296, %v1164, 0.0
  %v1170 = vadd.f32 %v1168, %v1169
  %v1171 = vsel %vm296, %v1165, 0.0
  %v1172 = vadd.f32 %v1170, %v1171
  %v1173 = vrot.slane %v1172, 4
  %v1174 = vadd.f32 %v1172, %v1173
  %v1175 = vrot.slane %v1174, 2
  %v1176 = vadd.f32 %v1174, %v1175
  %v1177 = vrot.slane %v1176, 1
  %v1178 = vadd.f32 %v1176, %v1177
  %v1179 = vadd.f32 %v1147, %v1178
  %v1180 = vrcp.pop 128.0
  %v1181 = vmul.f32 %v1161, %v1180
  %v1182 = vmul.f32 %v1179, %v1180
  %v1183 = vmul.f32 %v1181, %v1181
  %v1184 = vsub.f32 %v1182, %v1183
  %v1185 = vmax.f32 %v1184, 0.0
  %v1186 = vadd.f32 %v1185, 1e-05
  %v1187 = vrsqrt.pop %v1186
  %v1188 = vmul.f32 %v73, %v1187
  %v1189 = vmul.f32 %v1181, %v1188
  %v1190 = vsub.f32 %v74, %v1189
  %v1192 = vlaneseq
  %v1193 = vshrl.u32 %v1192, 7
  %v1194 = vsub.s32 0, %v1193
  %v1195 = vrot.slane %v1188, %v1194
  %v1197 = vmul.f32 %v453, %v1195
  %v1198 = vmul.f32 %v456, %v1195
  %v1199 = vmul.f32 %v461, %v1195
  %v1200 = vmul.f32 %v464, %v1195
  %v1202 = vlaneseq
  %v1203 = vshrl.u32 %v1202, 7
  %v1204 = vsub.s32 0, %v1203
  %v1205 = vrot.slane %v1190, %v1204
  %v1207 = vadd.f32 %v1197, %v1205
  %v1208 = vadd.f32 %v1198, %v1205
  %v1209 = vadd.f32 %v1199, %v1205
  %v1210 = vadd.f32 %v1200, %v1205
  %v1211 = vmul.f32 %v1207, 0.2
  %v1212 = vmul.f32 %v1208, 0.2
  %v1213 = vmul.f32 %v1209, 0.2
  %v1214 = vmul.f32 %v1210, 0.2
  %v1215 = vmax.f32 %v1207, %v1211
  %v1216 = vmax.f32 %v1208, %v1212
  %v1217 = vmax.f32 %v1209, %v1213
  %v1218 = vmax.f32 %v1210, %v1214
  %v1219 = vmul.f32 %v749, %v1195
  %v1220 = vmul.f32 %v752, %v1195
  %v1221 = vmul.f32 %v757, %v1195
  %v1222 = vmul.f32 %v760, %v1195
  %v1223 = vadd.f32 %v1219, %v1205
  %v1224 = vadd.f32 %v1220, %v1205
  %v1225 = vadd.f32 %v1221, %v1205
  %v1226 = vadd.f32 %v1222, %v1205
  %v1227 = vmul.f32 %v1223, 0.2
  %v1228 = vmul.f32 %v1224, 0.2
  %v1229 = vmul.f32 %v1225, 0.2
  %v1230 = vmul.f32 %v1226, 0.2
  %v1231 = vmax.f32 %v1223, %v1227
  %v1232 = vmax.f32 %v1224, %v1228
  %v1233 = vmax.f32 %v1225, %v1229
  %v1234 = vmax.f32 %v1226, %v1230
  %v1235 = vmul.f32 %v883, %v1195
  %v1236 = vmul.f32 %v886, %v1195
  %v1237 = vmul.f32 %v891, %v1195
  %v1238 = vmul.f32 %v894, %v1195
  %v1239 = vadd.f32 %v1235, %v1205
  %v1240 = vadd.f32 %v1236, %v1205
  %v1241 = vadd.f32 %v1237, %v1205
  %v1242 = vadd.f32 %v1238, %v1205
  %v1243 = vmul.f32 %v1239, 0.2
  %v1244 = vmul.f32 %v1240, 0.2
  %v1245 = vmul.f32 %v1241, 0.2
  %v1246 = vmul.f32 %v1242, 0.2
  %v1247 = vmax.f32 %v1239, %v1243
  %v1248 = vmax.f32 %v1240, %v1244
  %v1249 = vmax.f32 %v1241, %v1245
  %v1250 = vmax.f32 %v1242, %v1246
  %v1251 = vmul.f32 %v1040, %v1195
  %v1252 = vmul.f32 %v1043, %v1195
  %v1253 = vmul.f32 %v1048, %v1195
  %v1254 = vmul.f32 %v1051, %v1195
  %v1255 = vadd.f32 %v1251, %v1205
  %v1256 = vadd.f32 %v1252, %v1205
  %v1257 = vadd.f32 %v1253, %v1205
  %v1258 = vadd.f32 %v1254, %v1205
  %v1259 = vmul.f32 %v1255, 0.2
  %v1260 = vmul.f32 %v1256, 0.2
  %v1261 = vmul.f32 %v1257, 0.2
  %v1262 = vmul.f32 %v1258, 0.2
  %v1263 = vmax.f32 %v1255, %v1259
  %v1264 = vmax.f32 %v1256, %v1260
  %v1265 = vmax.f32 %v1257, %v1261
  %v1266 = vmax.f32 %v1258, %v1262
  %v1271 = vcombine.high %v1215, %v1215
  %v1273 = vunpack.c.l.s4 1966171168
  %v1274 = vunpack.c.0.s8 %v1273
  %v1275 = vlaneseq
  %v1276 = vshrl.u32 %v1275, 7
  %v1277 = vsub.s32 %v1274, %v1276
  %v1278 = vrot.slane %v1215, %v1277
  %v1280 = vunpack.c.l.s4 1966171168
  %v1281 = vunpack.c.0.s8 %v1280
  %v1282 = vlaneseq
  %v1283 = vshrl.u32 %v1282, 7
  %v1284 = vsub.s32 %v1281, %v1283
  %v1285 = vrot.slane %v1271, %v1284
  %v1286 = vcombine.high %v1278, %v1278
  %v1287 = vcombine.high %v1285, %v1285
  %v1289 = vunpack.c.l.s4 1966171168
  %v1290 = vunpack.c.0.s8 %v1289
  %v1291 = vlaneseq
  %v1292 = vshrl.u32 %v1291, 7
  %v1293 = vsub.s32 %v1290, %v1292
  %v1294 = vrot.slane %v1278, %v1293
  %v1296 = vunpack.c.l.s4 1966171168
  %v1297 = vunpack.c.0.s8 %v1296
  %v1298 = vlaneseq
  %v1299 = vshrl.u32 %v1298, 7
  %v1300 = vsub.s32 %v1297, %v1299
  %v1301 = vrot.slane %v1285, %v1300
  %v1303 = vunpack.c.l.s4 1966171168
  %v1304 = vunpack.c.0.s8 %v1303
  %v1305 = vlaneseq
  %v1306 = vshrl.u32 %v1305, 7
  %v1307 = vsub.s32 %v1304, %v1306
  %v1308 = vrot.slane %v1286, %v1307
  %v1310 = vunpack.c.l.s4 1966171168
  %v1311 = vunpack.c.0.s8 %v1310
  %v1312 = vlaneseq
  %v1313 = vshrl.u32 %v1312, 7
  %v1314 = vsub.s32 %v1311, %v1313
  %v1315 = vrot.slane %v1287, %v1314
  %v1316 = vcombine.high %v1294, %v1294
  %v1317 = vcombine.high %v1301, %v1301
  %v1318 = vcombine.high %v1308, %v1308
  %v1319 = vcombine.high %v1315, %v1315
  %v1320 = vcombine.high %v1216, %v1216
  %v1322 = vunpack.c.l.s4 1966171168
  %v1323 = vunpack.c.0.s8 %v1322
  %v1324 = vlaneseq
  %v1325 = vshrl.u32 %v1324, 7
  %v1326 = vsub.s32 %v1323, %v1325
  %v1327 = vrot.slane %v1216, %v1326
  %v1329 = vunpack.c.l.s4 1966171168
  %v1330 = vunpack.c.0.s8 %v1329
  %v1331 = vlaneseq
  %v1332 = vshrl.u32 %v1331, 7
  %v1333 = vsub.s32 %v1330, %v1332
  %v1334 = vrot.slane %v1320, %v1333
  %v1335 = vcombine.high %v1327, %v1327
  %v1336 = vcombine.high %v1334, %v1334
  %v1338 = vunpack.c.l.s4 1966171168
  %v1339 = vunpack.c.0.s8 %v1338
  %v1340 = vlaneseq
  %v1341 = vshrl.u32 %v1340, 7
  %v1342 = vsub.s32 %v1339, %v1341
  %v1343 = vrot.slane %v1327, %v1342
  %v1345 = vunpack.c.l.s4 1966171168
  %v1346 = vunpack.c.0.s8 %v1345
  %v1347 = vlaneseq
  %v1348 = vshrl.u32 %v1347, 7
  %v1349 = vsub.s32 %v1346, %v1348
  %v1350 = vrot.slane %v1334, %v1349
  %v1352 = vunpack.c.l.s4 1966171168
  %v1353 = vunpack.c.0.s8 %v1352
  %v1354 = vlaneseq
  %v1355 = vshrl.u32 %v1354, 7
  %v1356 = vsub.s32 %v1353, %v1355
  %v1357 = vrot.slane %v1335, %v1356
  %v1359 = vunpack.c.l.s4 1966171168
  %v1360 = vunpack.c.0.s8 %v1359
  %v1361 = vlaneseq
  %v1362 = vshrl.u32 %v1361, 7
  %v1363 = vsub.s32 %v1360, %v1362
  %v1364 = vrot.slane %v1336, %v1363
  %v1365 = vcombine.high %v1343, %v1343
  %v1366 = vcombine.high %v1350, %v1350
  %v1367 = vcombine.high %v1357, %v1357
  %v1368 = vcombine.high %v1364, %v1364
  %v1369 = vcombine.high %v1217, %v1217
  %v1371 = vunpack.c.l.s4 1966171168
  %v1372 = vunpack.c.0.s8 %v1371
  %v1373 = vlaneseq
  %v1374 = vshrl.u32 %v1373, 7
  %v1375 = vsub.s32 %v1372, %v1374
  %v1376 = vrot.slane %v1217, %v1375
  %v1378 = vunpack.c.l.s4 1966171168
  %v1379 = vunpack.c.0.s8 %v1378
  %v1380 = vlaneseq
  %v1381 = vshrl.u32 %v1380, 7
  %v1382 = vsub.s32 %v1379, %v1381
  %v1383 = vrot.slane %v1369, %v1382
  %v1384 = vcombine.high %v1376, %v1376
  %v1385 = vcombine.high %v1383, %v1383
  %v1387 = vunpack.c.l.s4 1966171168
  %v1388 = vunpack.c.0.s8 %v1387
  %v1389 = vlaneseq
  %v1390 = vshrl.u32 %v1389, 7
  %v1391 = vsub.s32 %v1388, %v1390
  %v1392 = vrot.slane %v1376, %v1391
  %v1394 = vunpack.c.l.s4 1966171168
  %v1395 = vunpack.c.0.s8 %v1394
  %v1396 = vlaneseq
  %v1397 = vshrl.u32 %v1396, 7
  %v1398 = vsub.s32 %v1395, %v1397
  %v1399 = vrot.slane %v1383, %v1398
  %v1401 = vunpack.c.l.s4 1966171168
  %v1402 = vunpack.c.0.s8 %v1401
  %v1403 = vlaneseq
  %v1404 = vshrl.u32 %v1403, 7
  %v1405 = vsub.s32 %v1402, %v1404
  %v1406 = vrot.slane %v1384, %v1405
  %v1408 = vunpack.c.l.s4 1966171168
  %v1409 = vunpack.c.0.s8 %v1408
  %v1410 = vlaneseq
  %v1411 = vshrl.u32 %v1410, 7
  %v1412 = vsub.s32 %v1409, %v1411
  %v1413 = vrot.slane %v1385, %v1412
  %v1414 = vcombine.high %v1392, %v1392
  %v1415 = vcombine.high %v1399, %v1399
  %v1416 = vcombine.high %v1406, %v1406
  %v1417 = vcombine.high %v1413, %v1413
  %v1418 = vcombine.high %v1218, %v1218
  %v1420 = vunpack.c.l.s4 1966171168
  %v1421 = vunpack.c.0.s8 %v1420
  %v1422 = vlaneseq
  %v1423 = vshrl.u32 %v1422, 7
  %v1424 = vsub.s32 %v1421, %v1423
  %v1425 = vrot.slane %v1218, %v1424
  %v1427 = vunpack.c.l.s4 1966171168
  %v1428 = vunpack.c.0.s8 %v1427
  %v1429 = vlaneseq
  %v1430 = vshrl.u32 %v1429, 7
  %v1431 = vsub.s32 %v1428, %v1430
  %v1432 = vrot.slane %v1418, %v1431
  %v1433 = vcombine.high %v1425, %v1425
  %v1434 = vcombine.high %v1432, %v1432
  %v1436 = vunpack.c.l.s4 1966171168
  %v1437 = vunpack.c.0.s8 %v1436
  %v1438 = vlaneseq
  %v1439 = vshrl.u32 %v1438, 7
  %v1440 = vsub.s32 %v1437, %v1439
  %v1441 = vrot.slane %v1425, %v1440
  %v1443 = vunpack.c.l.s4 1966171168
  %v1444 = vunpack.c.0.s8 %v1443
  %v1445 = vlaneseq
  %v1446 = vshrl.u32 %v1445, 7
  %v1447 = vsub.s32 %v1444, %v1446
  %v1448 = vrot.slane %v1432, %v1447
  %v1450 = vunpack.c.l.s4 1966171168
  %v1451 = vunpack.c.0.s8 %v1450
  %v1452 = vlaneseq
  %v1453 = vshrl.u32 %v1452, 7
  %v1454 = vsub.s32 %v1451, %v1453
  %v1455 = vrot.slane %v1433, %v1454
  %v1457 = vunpack.c.l.s4 1966171168
  %v1458 = vunpack.c.0.s8 %v1457
  %v1459 = vlaneseq
  %v1460 = vshrl.u32 %v1459, 7
  %v1461 = vsub.s32 %v1458, %v1460
  %v1462 = vrot.slane %v1434, %v1461
  %v1463 = vcombine.high %v1441, %v1441
  %v1464 = vcombine.high %v1448, %v1448
  %v1465 = vcombine.high %v1455, %v1455
  %v1466 = vcombine.high %v1462, %v1462
  %v1503 = vcombine.high %v1231, %v1231
  %v1505 = vunpack.c.l.s4 1966171168
  %v1506 = vunpack.c.0.s8 %v1505
  %v1507 = vlaneseq
  %v1508 = vshrl.u32 %v1507, 7
  %v1509 = vsub.s32 %v1506, %v1508
  %v1510 = vrot.slane %v1231, %v1509
  %v1512 = vunpack.c.l.s4 1966171168
  %v1513 = vunpack.c.0.s8 %v1512
  %v1514 = vlaneseq
  %v1515 = vshrl.u32 %v1514, 7
  %v1516 = vsub.s32 %v1513, %v1515
  %v1517 = vrot.slane %v1503, %v1516
  %v1518 = vcombine.high %v1510, %v1510
  %v1519 = vcombine.high %v1517, %v1517
  %v1521 = vunpack.c.l.s4 1966171168
  %v1522 = vunpack.c.0.s8 %v1521
  %v1523 = vlaneseq
  %v1524 = vshrl.u32 %v1523, 7
  %v1525 = vsub.s32 %v1522, %v1524
  %v1526 = vrot.slane %v1510, %v1525
  %v1528 = vunpack.c.l.s4 1966171168
  %v1529 = vunpack.c.0.s8 %v1528
  %v1530 = vlaneseq
  %v1531 = vshrl.u32 %v1530, 7
  %v1532 = vsub.s32 %v1529, %v1531
  %v1533 = vrot.slane %v1517, %v1532
  %v1535 = vunpack.c.l.s4 1966171168
  %v1536 = vunpack.c.0.s8 %v1535
  %v1537 = vlaneseq
  %v1538 = vshrl.u32 %v1537, 7
  %v1539 = vsub.s32 %v1536, %v1538
  %v1540 = vrot.slane %v1518, %v1539
  %v1542 = vunpack.c.l.s4 1966171168
  %v1543 = vunpack.c.0.s8 %v1542
  %v1544 = vlaneseq
  %v1545 = vshrl.u32 %v1544, 7
  %v1546 = vsub.s32 %v1543, %v1545
  %v1547 = vrot.slane %v1519, %v1546
  %v1548 = vcombine.high %v1526, %v1526
  %v1549 = vcombine.high %v1533, %v1533
  %v1550 = vcombine.high %v1540, %v1540
  %v1551 = vcombine.high %v1547, %v1547
  %v1552 = vcombine.high %v1232, %v1232
  %v1554 = vunpack.c.l.s4 1966171168
  %v1555 = vunpack.c.0.s8 %v1554
  %v1556 = vlaneseq
  %v1557 = vshrl.u32 %v1556, 7
  %v1558 = vsub.s32 %v1555, %v1557
  %v1559 = vrot.slane %v1232, %v1558
  %v1561 = vunpack.c.l.s4 1966171168
  %v1562 = vunpack.c.0.s8 %v1561
  %v1563 = vlaneseq
  %v1564 = vshrl.u32 %v1563, 7
  %v1565 = vsub.s32 %v1562, %v1564
  %v1566 = vrot.slane %v1552, %v1565
  %v1567 = vcombine.high %v1559, %v1559
  %v1568 = vcombine.high %v1566, %v1566
  %v1570 = vunpack.c.l.s4 1966171168
  %v1571 = vunpack.c.0.s8 %v1570
  %v1572 = vlaneseq
  %v1573 = vshrl.u32 %v1572, 7
  %v1574 = vsub.s32 %v1571, %v1573
  %v1575 = vrot.slane %v1559, %v1574
  %v1577 = vunpack.c.l.s4 1966171168
  %v1578 = vunpack.c.0.s8 %v1577
  %v1579 = vlaneseq
  %v1580 = vshrl.u32 %v1579, 7
  %v1581 = vsub.s32 %v1578, %v1580
  %v1582 = vrot.slane %v1566, %v1581
  %v1584 = vunpack.c.l.s4 1966171168
  %v1585 = vunpack.c.0.s8 %v1584
  %v1586 = vlaneseq
  %v1587 = vshrl.u32 %v1586, 7
  %v1588 = vsub.s32 %v1585, %v1587
  %v1589 = vrot.slane %v1567, %v1588
  %v1591 = vunpack.c.l.s4 1966171168
  %v1592 = vunpack.c.0.s8 %v1591
  %v1593 = vlaneseq
  %v1594 = vshrl.u32 %v1593, 7
  %v1595 = vsub.s32 %v1592, %v1594
  %v1596 = vrot.slane %v1568, %v1595
  %v1597 = vcombine.high %v1575, %v1575
  %v1598 = vcombine.high %v1582, %v1582
  %v1599 = vcombine.high %v1589, %v1589
  %v1600 = vcombine.high %v1596, %v1596
  %v1601 = vcombine.high %v1233, %v1233
  %v1603 = vunpack.c.l.s4 1966171168
  %v1604 = vunpack.c.0.s8 %v1603
  %v1605 = vlaneseq
  %v1606 = vshrl.u32 %v1605, 7
  %v1607 = vsub.s32 %v1604, %v1606
  %v1608 = vrot.slane %v1233, %v1607
  %v1610 = vunpack.c.l.s4 1966171168
  %v1611 = vunpack.c.0.s8 %v1610
  %v1612 = vlaneseq
  %v1613 = vshrl.u32 %v1612, 7
  %v1614 = vsub.s32 %v1611, %v1613
  %v1615 = vrot.slane %v1601, %v1614
  %v1616 = vcombine.high %v1608, %v1608
  %v1617 = vcombine.high %v1615, %v1615
  %v1619 = vunpack.c.l.s4 1966171168
  %v1620 = vunpack.c.0.s8 %v1619
  %v1621 = vlaneseq
  %v1622 = vshrl.u32 %v1621, 7
  %v1623 = vsub.s32 %v1620, %v1622
  %v1624 = vrot.slane %v1608, %v1623
  %v1626 = vunpack.c.l.s4 1966171168
  %v1627 = vunpack.c.0.s8 %v1626
  %v1628 = vlaneseq
  %v1629 = vshrl.u32 %v1628, 7
  %v1630 = vsub.s32 %v1627, %v1629
  %v1631 = vrot.slane %v1615, %v1630
  %v1633 = vunpack.c.l.s4 1966171168
  %v1634 = vunpack.c.0.s8 %v1633
  %v1635 = vlaneseq
  %v1636 = vshrl.u32 %v1635, 7
  %v1637 = vsub.s32 %v1634, %v1636
  %v1638 = vrot.slane %v1616, %v1637
  %v1640 = vunpack.c.l.s4 1966171168
  %v1641 = vunpack.c.0.s8 %v1640
  %v1642 = vlaneseq
  %v1643 = vshrl.u32 %v1642, 7
  %v1644 = vsub.s32 %v1641, %v1643
  %v1645 = vrot.slane %v1617, %v1644
  %v1646 = vcombine.high %v1624, %v1624
  %v1647 = vcombine.high %v1631, %v1631
  %v1648 = vcombine.high %v1638, %v1638
  %v1649 = vcombine.high %v1645, %v1645
  %v1650 = vcombine.high %v1234, %v1234
  %v1652 = vunpack.c.l.s4 1966171168
  %v1653 = vunpack.c.0.s8 %v1652
  %v1654 = vlaneseq
  %v1655 = vshrl.u32 %v1654, 7
  %v1656 = vsub.s32 %v1653, %v1655
  %v1657 = vrot.slane %v1234, %v1656
  %v1659 = vunpack.c.l.s4 1966171168
  %v1660 = vunpack.c.0.s8 %v1659
  %v1661 = vlaneseq
  %v1662 = vshrl.u32 %v1661, 7
  %v1663 = vsub.s32 %v1660, %v1662
  %v1664 = vrot.slane %v1650, %v1663
  %v1665 = vcombine.high %v1657, %v1657
  %v1666 = vcombine.high %v1664, %v1664
  %v1668 = vunpack.c.l.s4 1966171168
  %v1669 = vunpack.c.0.s8 %v1668
  %v1670 = vlaneseq
  %v1671 = vshrl.u32 %v1670, 7
  %v1672 = vsub.s32 %v1669, %v1671
  %v1673 = vrot.slane %v1657, %v1672
  %v1675 = vunpack.c.l.s4 1966171168
  %v1676 = vunpack.c.0.s8 %v1675
  %v1677 = vlaneseq
  %v1678 = vshrl.u32 %v1677, 7
  %v1679 = vsub.s32 %v1676, %v1678
  %v1680 = vrot.slane %v1664, %v1679
  %v1682 = vunpack.c.l.s4 1966171168
  %v1683 = vunpack.c.0.s8 %v1682
  %v1684 = vlaneseq
  %v1685 = vshrl.u32 %v1684, 7
  %v1686 = vsub.s32 %v1683, %v1685
  %v1687 = vrot.slane %v1665, %v1686
  %v1689 = vunpack.c.l.s4 1966171168
  %v1690 = vunpack.c.0.s8 %v1689
  %v1691 = vlaneseq
  %v1692 = vshrl.u32 %v1691, 7
  %v1693 = vsub.s32 %v1690, %v1692
  %v1694 = vrot.slane %v1666, %v1693
  %v1695 = vcombine.high %v1673, %v1673
  %v1696 = vcombine.high %v1680, %v1680
  %v1697 = vcombine.high %v1687, %v1687
  %v1698 = vcombine.high %v1694, %v1694
  %v1699 = vlaneseq
  %v1700 = vshrl.u32 %v1699, 7
  %v1701 = vsub.s32 0, %v1700
  %v1702 = vrot.slane %v1526, %v1701
  %v1703 = vlaneseq
  %v1704 = vshrl.u32 %v1703, 7
  %v1705 = vsub.s32 0, %v1704
  %v1706 = vrot.slane %v1540, %v1705
  %v1707 = vlaneseq
  %v1708 = vshrl.u32 %v1707, 7
  %v1709 = vsub.s32 0, %v1708
  %v1710 = vrot.slane %v1548, %v1709
  %v1711 = vlaneseq
  %v1712 = vshrl.u32 %v1711, 7
  %v1713 = vsub.s32 0, %v1712
  %v1714 = vrot.slane %v1550, %v1713
  %v1715 = vlaneseq
  %v1716 = vshrl.u32 %v1715, 7
  %v1717 = vsub.s32 0, %v1716
  %v1718 = vrot.slane %v1533, %v1717
  %v1719 = vlaneseq
  %v1720 = vshrl.u32 %v1719, 7
  %v1721 = vsub.s32 0, %v1720
  %v1722 = vrot.slane %v1547, %v1721
  %v1723 = vlaneseq
  %v1724 = vshrl.u32 %v1723, 7
  %v1725 = vsub.s32 0, %v1724
  %v1726 = vrot.slane %v1549, %v1725
  %v1727 = vlaneseq
  %v1728 = vshrl.u32 %v1727, 7
  %v1729 = vsub.s32 0, %v1728
  %v1730 = vrot.slane %v1551, %v1729
  %v1731 = vlaneseq
  %v1732 = vshrl.u32 %v1731, 7
  %v1733 = vsub.s32 0, %v1732
  %v1734 = vrot.slane %v1575, %v1733
  %v1735 = vlaneseq
  %v1736 = vshrl.u32 %v1735, 7
  %v1737 = vsub.s32 0, %v1736
  %v1738 = vrot.slane %v1589, %v1737
  %v1739 = vlaneseq
  %v1740 = vshrl.u32 %v1739, 7
  %v1741 = vsub.s32 0, %v1740
  %v1742 = vrot.slane %v1597, %v1741
  %v1743 = vlaneseq
  %v1744 = vshrl.u32 %v1743, 7
  %v1745 = vsub.s32 0, %v1744
  %v1746 = vrot.slane %v1599, %v1745
  %v1747 = vlaneseq
  %v1748 = vshrl.u32 %v1747, 7
  %v1749 = vsub.s32 0, %v1748
  %v1750 = vrot.slane %v1582, %v1749
  %v1751 = vlaneseq
  %v1752 = vshrl.u32 %v1751, 7
  %v1753 = vsub.s32 0, %v1752
  %v1754 = vrot.slane %v1596, %v1753
  %v1755 = vlaneseq
  %v1756 = vshrl.u32 %v1755, 7
  %v1757 = vsub.s32 0, %v1756
  %v1758 = vrot.slane %v1598, %v1757
  %v1759 = vlaneseq
  %v1760 = vshrl.u32 %v1759, 7
  %v1761 = vsub.s32 0, %v1760
  %v1762 = vrot.slane %v1600, %v1761
  %v1763 = vlaneseq
  %v1764 = vshrl.u32 %v1763, 7
  %v1765 = vsub.s32 0, %v1764
  %v1766 = vrot.slane %v1624, %v1765
  %v1767 = vlaneseq
  %v1768 = vshrl.u32 %v1767, 7
  %v1769 = vsub.s32 0, %v1768
  %v1770 = vrot.slane %v1638, %v1769
  %v1771 = vlaneseq
  %v1772 = vshrl.u32 %v1771, 7
  %v1773 = vsub.s32 0, %v1772
  %v1774 = vrot.slane %v1646, %v1773
  %v1775 = vlaneseq
  %v1776 = vshrl.u32 %v1775, 7
  %v1777 = vsub.s32 0, %v1776
  %v1778 = vrot.slane %v1648, %v1777
  %v1779 = vlaneseq
  %v1780 = vshrl.u32 %v1779, 7
  %v1781 = vsub.s32 0, %v1780
  %v1782 = vrot.slane %v1631, %v1781
  %v1783 = vlaneseq
  %v1784 = vshrl.u32 %v1783, 7
  %v1785 = vsub.s32 0, %v1784
  %v1786 = vrot.slane %v1645, %v1785
  %v1787 = vlaneseq
  %v1788 = vshrl.u32 %v1787, 7
  %v1789 = vsub.s32 0, %v1788
  %v1790 = vrot.slane %v1647, %v1789
  %v1791 = vlaneseq
  %v1792 = vshrl.u32 %v1791, 7
  %v1793 = vsub.s32 0, %v1792
  %v1794 = vrot.slane %v1649, %v1793
  %v1795 = vlaneseq
  %v1796 = vshrl.u32 %v1795, 7
  %v1797 = vsub.s32 0, %v1796
  %v1798 = vrot.slane %v1673, %v1797
  %v1799 = vlaneseq
  %v1800 = vshrl.u32 %v1799, 7
  %v1801 = vsub.s32 0, %v1800
  %v1802 = vrot.slane %v1687, %v1801
  %v1803 = vlaneseq
  %v1804 = vshrl.u32 %v1803, 7
  %v1805 = vsub.s32 0, %v1804
  %v1806 = vrot.slane %v1695, %v1805
  %v1807 = vlaneseq
  %v1808 = vshrl.u32 %v1807, 7
  %v1809 = vsub.s32 0, %v1808
  %v1810 = vrot.slane %v1697, %v1809
  %v1811 = vlaneseq
  %v1812 = vshrl.u32 %v1811, 7
  %v1813 = vsub.s32 0, %v1812
  %v1814 = vrot.slane %v1680, %v1813
  %v1815 = vlaneseq
  %v1816 = vshrl.u32 %v1815, 7
  %v1817 = vsub.s32 0, %v1816
  %v1818 = vrot.slane %v1694, %v1817
  %v1819 = vlaneseq
  %v1820 = vshrl.u32 %v1819, 7
  %v1821 = vsub.s32 0, %v1820
  %v1822 = vrot.slane %v1696, %v1821
  %v1823 = vlaneseq
  %v1824 = vshrl.u32 %v1823, 7
  %v1825 = vsub.s32 0, %v1824
  %v1826 = vrot.slane %v1698, %v1825
  %vm1859 = vcmask 1040384
  %v1860 = vsel %vm1859, %v1294, %v1702
  %v1861 = vsel %vm1859, %v1308, %v1706
  %v1862 = vsel %vm1859, %v1316, %v1710
  %v1863 = vsel %vm1859, %v1318, %v1714
  %v1864 = vsel %vm1859, %v1301, %v1718
  %v1865 = vsel %vm1859, %v1315, %v1722
  %v1866 = vsel %vm1859, %v1317, %v1726
  %v1867 = vsel %vm1859, %v1319, %v1730
  %v1868 = vsel %vm1859, %v1343, %v1734
  %v1869 = vsel %vm1859, %v1357, %v1738
  %v1870 = vsel %vm1859, %v1365, %v1742
  %v1871 = vsel %vm1859, %v1367, %v1746
  %v1872 = vsel %vm1859, %v1350, %v1750
  %v1873 = vsel %vm1859, %v1364, %v1754
  %v1874 = vsel %vm1859, %v1366, %v1758
  %v1875 = vsel %vm1859, %v1368, %v1762
  %v1876 = vsel %vm1859, %v1392, %v1766
  %v1877 = vsel %vm1859, %v1406, %v1770
  %v1878 = vsel %vm1859, %v1414, %v1774
  %v1879 = vsel %vm1859, %v1416, %v1778
  %v1880 = vsel %vm1859, %v1399, %v1782
  %v1881 = vsel %vm1859, %v1413, %v1786
  %v1882 = vsel %vm1859, %v1415, %v1790
  %v1883 = vsel %vm1859, %v1417, %v1794
  %v1884 = vsel %vm1859, %v1441, %v1798
  %v1885 = vsel %vm1859, %v1455, %v1802
  %v1886 = vsel %vm1859, %v1463, %v1806
  %v1887 = vsel %vm1859, %v1465, %v1810
  %v1888 = vsel %vm1859, %v1448, %v1814
  %v1889 = vsel %vm1859, %v1462, %v1818
  %v1890 = vsel %vm1859, %v1464, %v1822
  %v1891 = vsel %vm1859, %v1466, %v1826
  %v1896 = vcombine.high %v1247, %v1247
  %v1898 = vunpack.c.l.s4 1966171168
  %v1899 = vunpack.c.0.s8 %v1898
  %v1900 = vlaneseq
  %v1901 = vshrl.u32 %v1900, 7
  %v1902 = vsub.s32 %v1899, %v1901
  %v1903 = vrot.slane %v1247, %v1902
  %v1905 = vunpack.c.l.s4 1966171168
  %v1906 = vunpack.c.0.s8 %v1905
  %v1907 = vlaneseq
  %v1908 = vshrl.u32 %v1907, 7
  %v1909 = vsub.s32 %v1906, %v1908
  %v1910 = vrot.slane %v1896, %v1909
  %v1911 = vcombine.high %v1903, %v1903
  %v1912 = vcombine.high %v1910, %v1910
  %v1914 = vunpack.c.l.s4 1966171168
  %v1915 = vunpack.c.0.s8 %v1914
  %v1916 = vlaneseq
  %v1917 = vshrl.u32 %v1916, 7
  %v1918 = vsub.s32 %v1915, %v1917
  %v1919 = vrot.slane %v1903, %v1918
  %v1921 = vunpack.c.l.s4 1966171168
  %v1922 = vunpack.c.0.s8 %v1921
  %v1923 = vlaneseq
  %v1924 = vshrl.u32 %v1923, 7
  %v1925 = vsub.s32 %v1922, %v1924
  %v1926 = vrot.slane %v1910, %v1925
  %v1928 = vunpack.c.l.s4 1966171168
  %v1929 = vunpack.c.0.s8 %v1928
  %v1930 = vlaneseq
  %v1931 = vshrl.u32 %v1930, 7
  %v1932 = vsub.s32 %v1929, %v1931
  %v1933 = vrot.slane %v1911, %v1932
  %v1935 = vunpack.c.l.s4 1966171168
  %v1936 = vunpack.c.0.s8 %v1935
  %v1937 = vlaneseq
  %v1938 = vshrl.u32 %v1937, 7
  %v1939 = vsub.s32 %v1936, %v1938
  %v1940 = vrot.slane %v1912, %v1939
  %v1941 = vcombine.high %v1919, %v1919
  %v1942 = vcombine.high %v1926, %v1926
  %v1943 = vcombine.high %v1933, %v1933
  %v1944 = vcombine.high %v1940, %v1940
  %v1945 = vcombine.high %v1248, %v1248
  %v1947 = vunpack.c.l.s4 1966171168
  %v1948 = vunpack.c.0.s8 %v1947
  %v1949 = vlaneseq
  %v1950 = vshrl.u32 %v1949, 7
  %v1951 = vsub.s32 %v1948, %v1950
  %v1952 = vrot.slane %v1248, %v1951
  %v1954 = vunpack.c.l.s4 1966171168
  %v1955 = vunpack.c.0.s8 %v1954
  %v1956 = vlaneseq
  %v1957 = vshrl.u32 %v1956, 7
  %v1958 = vsub.s32 %v1955, %v1957
  %v1959 = vrot.slane %v1945, %v1958
  %v1960 = vcombine.high %v1952, %v1952
  %v1961 = vcombine.high %v1959, %v1959
  %v1963 = vunpack.c.l.s4 1966171168
  %v1964 = vunpack.c.0.s8 %v1963
  %v1965 = vlaneseq
  %v1966 = vshrl.u32 %v1965, 7
  %v1967 = vsub.s32 %v1964, %v1966
  %v1968 = vrot.slane %v1952, %v1967
  %v1970 = vunpack.c.l.s4 1966171168
  %v1971 = vunpack.c.0.s8 %v1970
  %v1972 = vlaneseq
  %v1973 = vshrl.u32 %v1972, 7
  %v1974 = vsub.s32 %v1971, %v1973
  %v1975 = vrot.slane %v1959, %v1974
  %v1977 = vunpack.c.l.s4 1966171168
  %v1978 = vunpack.c.0.s8 %v1977
  %v1979 = vlaneseq
  %v1980 = vshrl.u32 %v1979, 7
  %v1981 = vsub.s32 %v1978, %v1980
  %v1982 = vrot.slane %v1960, %v1981
  %v1984 = vunpack.c.l.s4 1966171168
  %v1985 = vunpack.c.0.s8 %v1984
  %v1986 = vlaneseq
  %v1987 = vshrl.u32 %v1986, 7
  %v1988 = vsub.s32 %v1985, %v1987
  %v1989 = vrot.slane %v1961, %v1988
  %v1990 = vcombine.high %v1968, %v1968
  %v1991 = vcombine.high %v1975, %v1975
  %v1992 = vcombine.high %v1982, %v1982
  %v1993 = vcombine.high %v1989, %v1989
  %v1994 = vcombine.high %v1249, %v1249
  %v1996 = vunpack.c.l.s4 1966171168
  %v1997 = vunpack.c.0.s8 %v1996
  %v1998 = vlaneseq
  %v1999 = vshrl.u32 %v1998, 7
  %v2000 = vsub.s32 %v1997, %v1999
  %v2001 = vrot.slane %v1249, %v2000
  %v2003 = vunpack.c.l.s4 1966171168
  %v2004 = vunpack.c.0.s8 %v2003
  %v2005 = vlaneseq
  %v2006 = vshrl.u32 %v2005, 7
  %v2007 = vsub.s32 %v2004, %v2006
  %v2008 = vrot.slane %v1994, %v2007
  %v2009 = vcombine.high %v2001, %v2001
  %v2010 = vcombine.high %v2008, %v2008
  %v2012 = vunpack.c.l.s4 1966171168
  %v2013 = vunpack.c.0.s8 %v2012
  %v2014 = vlaneseq
  %v2015 = vshrl.u32 %v2014, 7
  %v2016 = vsub.s32 %v2013, %v2015
  %v2017 = vrot.slane %v2001, %v2016
  %v2019 = vunpack.c.l.s4 1966171168
  %v2020 = vunpack.c.0.s8 %v2019
  %v2021 = vlaneseq
  %v2022 = vshrl.u32 %v2021, 7
  %v2023 = vsub.s32 %v2020, %v2022
  %v2024 = vrot.slane %v2008, %v2023
  %v2026 = vunpack.c.l.s4 1966171168
  %v2027 = vunpack.c.0.s8 %v2026
  %v2028 = vlaneseq
  %v2029 = vshrl.u32 %v2028, 7
  %v2030 = vsub.s32 %v2027, %v2029
  %v2031 = vrot.slane %v2009, %v2030
  %v2033 = vunpack.c.l.s4 1966171168
  %v2034 = vunpack.c.0.s8 %v2033
  %v2035 = vlaneseq
  %v2036 = vshrl.u32 %v2035, 7
  %v2037 = vsub.s32 %v2034, %v2036
  %v2038 = vrot.slane %v2010, %v2037
  %v2039 = vcombine.high %v2017, %v2017
  %v2040 = vcombine.high %v2024, %v2024
  %v2041 = vcombine.high %v2031, %v2031
  %v2042 = vcombine.high %v2038, %v2038
  %v2043 = vcombine.high %v1250, %v1250
  %v2045 = vunpack.c.l.s4 1966171168
  %v2046 = vunpack.c.0.s8 %v2045
  %v2047 = vlaneseq
  %v2048 = vshrl.u32 %v2047, 7
  %v2049 = vsub.s32 %v2046, %v2048
  %v2050 = vrot.slane %v1250, %v2049
  %v2052 = vunpack.c.l.s4 1966171168
  %v2053 = vunpack.c.0.s8 %v2052
  %v2054 = vlaneseq
  %v2055 = vshrl.u32 %v2054, 7
  %v2056 = vsub.s32 %v2053, %v2055
  %v2057 = vrot.slane %v2043, %v2056
  %v2058 = vcombine.high %v2050, %v2050
  %v2059 = vcombine.high %v2057, %v2057
  %v2061 = vunpack.c.l.s4 1966171168
  %v2062 = vunpack.c.0.s8 %v2061
  %v2063 = vlaneseq
  %v2064 = vshrl.u32 %v2063, 7
  %v2065 = vsub.s32 %v2062, %v2064
  %v2066 = vrot.slane %v2050, %v2065
  %v2068 = vunpack.c.l.s4 1966171168
  %v2069 = vunpack.c.0.s8 %v2068
  %v2070 = vlaneseq
  %v2071 = vshrl.u32 %v2070, 7
  %v2072 = vsub.s32 %v2069, %v2071
  %v2073 = vrot.slane %v2057, %v2072
  %v2075 = vunpack.c.l.s4 1966171168
  %v2076 = vunpack.c.0.s8 %v2075
  %v2077 = vlaneseq
  %v2078 = vshrl.u32 %v2077, 7
  %v2079 = vsub.s32 %v2076, %v2078
  %v2080 = vrot.slane %v2058, %v2079
  %v2082 = vunpack.c.l.s4 1966171168
  %v2083 = vunpack.c.0.s8 %v2082
  %v2084 = vlaneseq
  %v2085 = vshrl.u32 %v2084, 7
  %v2086 = vsub.s32 %v2083, %v2085
  %v2087 = vrot.slane %v2059, %v2086
  %v2088 = vcombine.high %v2066, %v2066
  %v2089 = vcombine.high %v2073, %v2073
  %v2090 = vcombine.high %v2080, %v2080
  %v2091 = vcombine.high %v2087, %v2087
  %v2128 = vcombine.high %v1263, %v1263
  %v2130 = vunpack.c.l.s4 1966171168
  %v2131 = vunpack.c.0.s8 %v2130
  %v2132 = vlaneseq
  %v2133 = vshrl.u32 %v2132, 7
  %v2134 = vsub.s32 %v2131, %v2133
  %v2135 = vrot.slane %v1263, %v2134
  %v2137 = vunpack.c.l.s4 1966171168
  %v2138 = vunpack.c.0.s8 %v2137
  %v2139 = vlaneseq
  %v2140 = vshrl.u32 %v2139, 7
  %v2141 = vsub.s32 %v2138, %v2140
  %v2142 = vrot.slane %v2128, %v2141
  %v2143 = vcombine.high %v2135, %v2135
  %v2144 = vcombine.high %v2142, %v2142
  %v2146 = vunpack.c.l.s4 1966171168
  %v2147 = vunpack.c.0.s8 %v2146
  %v2148 = vlaneseq
  %v2149 = vshrl.u32 %v2148, 7
  %v2150 = vsub.s32 %v2147, %v2149
  %v2151 = vrot.slane %v2135, %v2150
  %v2153 = vunpack.c.l.s4 1966171168
  %v2154 = vunpack.c.0.s8 %v2153
  %v2155 = vlaneseq
  %v2156 = vshrl.u32 %v2155, 7
  %v2157 = vsub.s32 %v2154, %v2156
  %v2158 = vrot.slane %v2142, %v2157
  %v2160 = vunpack.c.l.s4 1966171168
  %v2161 = vunpack.c.0.s8 %v2160
  %v2162 = vlaneseq
  %v2163 = vshrl.u32 %v2162, 7
  %v2164 = vsub.s32 %v2161, %v2163
  %v2165 = vrot.slane %v2143, %v2164
  %v2167 = vunpack.c.l.s4 1966171168
  %v2168 = vunpack.c.0.s8 %v2167
  %v2169 = vlaneseq
  %v2170 = vshrl.u32 %v2169, 7
  %v2171 = vsub.s32 %v2168, %v2170
  %v2172 = vrot.slane %v2144, %v2171
  %v2173 = vcombine.high %v2151, %v2151
  %v2174 = vcombine.high %v2158, %v2158
  %v2175 = vcombine.high %v2165, %v2165
  %v2176 = vcombine.high %v2172, %v2172
  %v2177 = vcombine.high %v1264, %v1264
  %v2179 = vunpack.c.l.s4 1966171168
  %v2180 = vunpack.c.0.s8 %v2179
  %v2181 = vlaneseq
  %v2182 = vshrl.u32 %v2181, 7
  %v2183 = vsub.s32 %v2180, %v2182
  %v2184 = vrot.slane %v1264, %v2183
  %v2186 = vunpack.c.l.s4 1966171168
  %v2187 = vunpack.c.0.s8 %v2186
  %v2188 = vlaneseq
  %v2189 = vshrl.u32 %v2188, 7
  %v2190 = vsub.s32 %v2187, %v2189
  %v2191 = vrot.slane %v2177, %v2190
  %v2192 = vcombine.high %v2184, %v2184
  %v2193 = vcombine.high %v2191, %v2191
  %v2195 = vunpack.c.l.s4 1966171168
  %v2196 = vunpack.c.0.s8 %v2195
  %v2197 = vlaneseq
  %v2198 = vshrl.u32 %v2197, 7
  %v2199 = vsub.s32 %v2196, %v2198
  %v2200 = vrot.slane %v2184, %v2199
  %v2202 = vunpack.c.l.s4 1966171168
  %v2203 = vunpack.c.0.s8 %v2202
  %v2204 = vlaneseq
  %v2205 = vshrl.u32 %v2204, 7
  %v2206 = vsub.s32 %v2203, %v2205
  %v2207 = vrot.slane %v2191, %v2206
  %v2209 = vunpack.c.l.s4 1966171168
  %v2210 = vunpack.c.0.s8 %v2209
  %v2211 = vlaneseq
  %v2212 = vshrl.u32 %v2211, 7
  %v2213 = vsub.s32 %v2210, %v2212
  %v2214 = vrot.slane %v2192, %v2213
  %v2216 = vunpack.c.l.s4 1966171168
  %v2217 = vunpack.c.0.s8 %v2216
  %v2218 = vlaneseq
  %v2219 = vshrl.u32 %v2218, 7
  %v2220 = vsub.s32 %v2217, %v2219
  %v2221 = vrot.slane %v2193, %v2220
  %v2222 = vcombine.high %v2200, %v2200
  %v2223 = vcombine.high %v2207, %v2207
  %v2224 = vcombine.high %v2214, %v2214
  %v2225 = vcombine.high %v2221, %v2221
  %v2226 = vcombine.high %v1265, %v1265
  %v2228 = vunpack.c.l.s4 1966171168
  %v2229 = vunpack.c.0.s8 %v2228
  %v2230 = vlaneseq
  %v2231 = vshrl.u32 %v2230, 7
  %v2232 = vsub.s32 %v2229, %v2231
  %v2233 = vrot.slane %v1265, %v2232
  %v2235 = vunpack.c.l.s4 1966171168
  %v2236 = vunpack.c.0.s8 %v2235
  %v2237 = vlaneseq
  %v2238 = vshrl.u32 %v2237, 7
  %v2239 = vsub.s32 %v2236, %v2238
  %v2240 = vrot.slane %v2226, %v2239
  %v2241 = vcombine.high %v2233, %v2233
  %v2242 = vcombine.high %v2240, %v2240
  %v2244 = vunpack.c.l.s4 1966171168
  %v2245 = vunpack.c.0.s8 %v2244
  %v2246 = vlaneseq
  %v2247 = vshrl.u32 %v2246, 7
  %v2248 = vsub.s32 %v2245, %v2247
  %v2249 = vrot.slane %v2233, %v2248
  %v2251 = vunpack.c.l.s4 1966171168
  %v2252 = vunpack.c.0.s8 %v2251
  %v2253 = vlaneseq
  %v2254 = vshrl.u32 %v2253, 7
  %v2255 = vsub.s32 %v2252, %v2254
  %v2256 = vrot.slane %v2240, %v2255
  %v2258 = vunpack.c.l.s4 1966171168
  %v2259 = vunpack.c.0.s8 %v2258
  %v2260 = vlaneseq
  %v2261 = vshrl.u32 %v2260, 7
  %v2262 = vsub.s32 %v2259, %v2261
  %v2263 = vrot.slane %v2241, %v2262
  %v2265 = vunpack.c.l.s4 1966171168
  %v2266 = vunpack.c.0.s8 %v2265
  %v2267 = vlaneseq
  %v2268 = vshrl.u32 %v2267, 7
  %v2269 = vsub.s32 %v2266, %v2268
  %v2270 = vrot.slane %v2242, %v2269
  %v2271 = vcombine.high %v2249, %v2249
  %v2272 = vcombine.high %v2256, %v2256
  %v2273 = vcombine.high %v2263, %v2263
  %v2274 = vcombine.high %v2270, %v2270
  %v2275 = vcombine.high %v1266, %v1266
  %v2277 = vunpack.c.l.s4 1966171168
  %v2278 = vunpack.c.0.s8 %v2277
  %v2279 = vlaneseq
  %v2280 = vshrl.u32 %v2279, 7
  %v2281 = vsub.s32 %v2278, %v2280
  %v2282 = vrot.slane %v1266, %v2281
  %v2284 = vunpack.c.l.s4 1966171168
  %v2285 = vunpack.c.0.s8 %v2284
  %v2286 = vlaneseq
  %v2287 = vshrl.u32 %v2286, 7
  %v2288 = vsub.s32 %v2285, %v2287
  %v2289 = vrot.slane %v2275, %v2288
  %v2290 = vcombine.high %v2282, %v2282
  %v2291 = vcombine.high %v2289, %v2289
  %v2293 = vunpack.c.l.s4 1966171168
  %v2294 = vunpack.c.0.s8 %v2293
  %v2295 = vlaneseq
  %v2296 = vshrl.u32 %v2295, 7
  %v2297 = vsub.s32 %v2294, %v2296
  %v2298 = vrot.slane %v2282, %v2297
  %v2300 = vunpack.c.l.s4 1966171168
  %v2301 = vunpack.c.0.s8 %v2300
  %v2302 = vlaneseq
  %v2303 = vshrl.u32 %v2302, 7
  %v2304 = vsub.s32 %v2301, %v2303
  %v2305 = vrot.slane %v2289, %v2304
  %v2307 = vunpack.c.l.s4 1966171168
  %v2308 = vunpack.c.0.s8 %v2307
  %v2309 = vlaneseq
  %v2310 = vshrl.u32 %v2309, 7
  %v2311 = vsub.s32 %v2308, %v2310
  %v2312 = vrot.slane %v2290, %v2311
  %v2314 = vunpack.c.l.s4 1966171168
  %v2315 = vunpack.c.0.s8 %v2314
  %v2316 = vlaneseq
  %v2317 = vshrl.u32 %v2316, 7
  %v2318 = vsub.s32 %v2315, %v2317
  %v2319 = vrot.slane %v2291, %v2318
  %v2320 = vcombine.high %v2298, %v2298
  %v2321 = vcombine.high %v2305, %v2305
  %v2322 = vcombine.high %v2312, %v2312
  %v2323 = vcombine.high %v2319, %v2319
  %v2324 = vlaneseq
  %v2325 = vshrl.u32 %v2324, 7
  %v2326 = vsub.s32 0, %v2325
  %v2327 = vrot.slane %v2151, %v2326
  %v2328 = vlaneseq
  %v2329 = vshrl.u32 %v2328, 7
  %v2330 = vsub.s32 0, %v2329
  %v2331 = vrot.slane %v2165, %v2330
  %v2332 = vlaneseq
  %v2333 = vshrl.u32 %v2332, 7
  %v2334 = vsub.s32 0, %v2333
  %v2335 = vrot.slane %v2173, %v2334
  %v2336 = vlaneseq
  %v2337 = vshrl.u32 %v2336, 7
  %v2338 = vsub.s32 0, %v2337
  %v2339 = vrot.slane %v2175, %v2338
  %v2340 = vlaneseq
  %v2341 = vshrl.u32 %v2340, 7
  %v2342 = vsub.s32 0, %v2341
  %v2343 = vrot.slane %v2158, %v2342
  %v2344 = vlaneseq
  %v2345 = vshrl.u32 %v2344, 7
  %v2346 = vsub.s32 0, %v2345
  %v2347 = vrot.slane %v2172, %v2346
  %v2348 = vlaneseq
  %v2349 = vshrl.u32 %v2348, 7
  %v2350 = vsub.s32 0, %v2349
  %v2351 = vrot.slane %v2174, %v2350
  %v2352 = vlaneseq
  %v2353 = vshrl.u32 %v2352, 7
  %v2354 = vsub.s32 0, %v2353
  %v2355 = vrot.slane %v2176, %v2354
  %v2356 = vlaneseq
  %v2357 = vshrl.u32 %v2356, 7
  %v2358 = vsub.s32 0, %v2357
  %v2359 = vrot.slane %v2200, %v2358
  %v2360 = vlaneseq
  %v2361 = vshrl.u32 %v2360, 7
  %v2362 = vsub.s32 0, %v2361
  %v2363 = vrot.slane %v2214, %v2362
  %v2364 = vlaneseq
  %v2365 = vshrl.u32 %v2364, 7
  %v2366 = vsub.s32 0, %v2365
  %v2367 = vrot.slane %v2222, %v2366
  %v2368 = vlaneseq
  %v2369 = vshrl.u32 %v2368, 7
  %v2370 = vsub.s32 0, %v2369
  %v2371 = vrot.slane %v2224, %v2370
  %v2372 = vlaneseq
  %v2373 = vshrl.u32 %v2372, 7
  %v2374 = vsub.s32 0, %v2373
  %v2375 = vrot.slane %v2207, %v2374
  %v2376 = vlaneseq
  %v2377 = vshrl.u32 %v2376, 7
  %v2378 = vsub.s32 0, %v2377
  %v2379 = vrot.slane %v2221, %v2378
  %v2380 = vlaneseq
  %v2381 = vshrl.u32 %v2380, 7
  %v2382 = vsub.s32 0, %v2381
  %v2383 = vrot.slane %v2223, %v2382
  %v2384 = vlaneseq
  %v2385 = vshrl.u32 %v2384, 7
  %v2386 = vsub.s32 0, %v2385
  %v2387 = vrot.slane %v2225, %v2386
  %v2388 = vlaneseq
  %v2389 = vshrl.u32 %v2388, 7
  %v2390 = vsub.s32 0, %v2389
  %v2391 = vrot.slane %v2249, %v2390
  %v2392 = vlaneseq
  %v2393 = vshrl.u32 %v2392, 7
  %v2394 = vsub.s32 0, %v2393
  %v2395 = vrot.slane %v2263, %v2394
  %v2396 = vlaneseq
  %v2397 = vshrl.u32 %v2396, 7
  %v2398 = vsub.s32 0, %v2397
  %v2399 = vrot.slane %v2271, %v2398
  %v2400 = vlaneseq
  %v2401 = vshrl.u32 %v2400, 7
  %v2402 = vsub.s32 0, %v2401
  %v2403 = vrot.slane %v2273, %v2402
  %v2404 = vlaneseq
  %v2405 = vshrl.u32 %v2404, 7
  %v2406 = vsub.s32 0, %v2405
  %v2407 = vrot.slane %v2256, %v2406
  %v2408 = vlaneseq
  %v2409 = vshrl.u32 %v2408, 7
  %v2410 = vsub.s32 0, %v2409
  %v2411 = vrot.slane %v2270, %v2410
  %v2412 = vlaneseq
  %v2413 = vshrl.u32 %v2412, 7
  %v2414 = vsub.s32 0, %v2413
  %v2415 = vrot.slane %v2272, %v2414
  %v2416 = vlaneseq
  %v2417 = vshrl.u32 %v2416, 7
  %v2418 = vsub.s32 0, %v2417
  %v2419 = vrot.slane %v2274, %v2418
  %v2420 = vlaneseq
  %v2421 = vshrl.u32 %v2420, 7
  %v2422 = vsub.s32 0, %v2421
  %v2423 = vrot.slane %v2298, %v2422
  %v2424 = vlaneseq
  %v2425 = vshrl.u32 %v2424, 7
  %v2426 = vsub.s32 0, %v2425
  %v2427 = vrot.slane %v2312, %v2426
  %v2428 = vlaneseq
  %v2429 = vshrl.u32 %v2428, 7
  %v2430 = vsub.s32 0, %v2429
  %v2431 = vrot.slane %v2320, %v2430
  %v2432 = vlaneseq
  %v2433 = vshrl.u32 %v2432, 7
  %v2434 = vsub.s32 0, %v2433
  %v2435 = vrot.slane %v2322, %v2434
  %v2436 = vlaneseq
  %v2437 = vshrl.u32 %v2436, 7
  %v2438 = vsub.s32 0, %v2437
  %v2439 = vrot.slane %v2305, %v2438
  %v2440 = vlaneseq
  %v2441 = vshrl.u32 %v2440, 7
  %v2442 = vsub.s32 0, %v2441
  %v2443 = vrot.slane %v2319, %v2442
  %v2444 = vlaneseq
  %v2445 = vshrl.u32 %v2444, 7
  %v2446 = vsub.s32 0, %v2445
  %v2447 = vrot.slane %v2321, %v2446
  %v2448 = vlaneseq
  %v2449 = vshrl.u32 %v2448, 7
  %v2450 = vsub.s32 0, %v2449
  %v2451 = vrot.slane %v2323, %v2450
  %v2484 = vsel %vm1859, %v1919, %v2327
  %v2485 = vsel %vm1859, %v1933, %v2331
  %v2486 = vsel %vm1859, %v1941, %v2335
  %v2487 = vsel %vm1859, %v1943, %v2339
  %v2488 = vsel %vm1859, %v1926, %v2343
  %v2489 = vsel %vm1859, %v1940, %v2347
  %v2490 = vsel %vm1859, %v1942, %v2351
  %v2491 = vsel %vm1859, %v1944, %v2355
  %v2492 = vsel %vm1859, %v1968, %v2359
  %v2493 = vsel %vm1859, %v1982, %v2363
  %v2494 = vsel %vm1859, %v1990, %v2367
  %v2495 = vsel %vm1859, %v1992, %v2371
  %v2496 = vsel %vm1859, %v1975, %v2375
  %v2497 = vsel %vm1859, %v1989, %v2379
  %v2498 = vsel %vm1859, %v1991, %v2383
  %v2499 = vsel %vm1859, %v1993, %v2387
  %v2500 = vsel %vm1859, %v2017, %v2391
  %v2501 = vsel %vm1859, %v2031, %v2395
  %v2502 = vsel %vm1859, %v2039, %v2399
  %v2503 = vsel %vm1859, %v2041, %v2403
  %v2504 = vsel %vm1859, %v2024, %v2407
  %v2505 = vsel %vm1859, %v2038, %v2411
  %v2506 = vsel %vm1859, %v2040, %v2415
  %v2507 = vsel %vm1859, %v2042, %v2419
  %v2508 = vsel %vm1859, %v2066, %v2423
  %v2509 = vsel %vm1859, %v2080, %v2427
  %v2510 = vsel %vm1859, %v2088, %v2431
  %v2511 = vsel %vm1859, %v2090, %v2435
  %v2512 = vsel %vm1859, %v2073, %v2439
  %v2513 = vsel %vm1859, %v2087, %v2443
  %v2514 = vsel %vm1859, %v2089, %v2447
  %v2515 = vsel %vm1859, %v2091, %v2451
  %v2516 = vld [vmem:[%s4] sm:$0xf]
  %v2517 = vld [vmem:[%s4 + $0x4] sm:$0xf]
  %v2518 = vld [vmem:[%s4 + $0x8] sm:$0xf]
  %v2519 = vld [vmem:[%s4 + $0xc] sm:$0xf]
  %v2520 = vld [vmem:[%s4 + $0x10] sm:$0xf]
  %v2521 = vld [vmem:[%s4 + $0x14] sm:$0xf]
  %v2522 = vld [vmem:[%s4 + $0x18] sm:$0xf]
  %v2523 = vld [vmem:[%s4 + $0x1c] sm:$0xf]
  %v2524 = vld [vmem:[%s4 + $0x20] sm:$0xf]
  %v2525 = vld [vmem:[%s4 + $0x24] sm:$0xf]
  %v2526 = vld [vmem:[%s4 + $0x28] sm:$0xf]
  %v2527 = vld [vmem:[%s4 + $0x2c] sm:$0xf]
  %v2528 = vld [vmem:[%s4 + $0x30] sm:$0xf]
  %v2529 = vld [vmem:[%s4 + $0x34] sm:$0xf]
  %v2530 = vld [vmem:[%s4 + $0x38] sm:$0xf]
  %v2531 = vld [vmem:[%s4 + $0x3c] sm:$0xf]
  %v2532 = vld [vmem:[%s4 + $0x40] sm:$0xf]
  %v2533 = vld [vmem:[%s4 + $0x44] sm:$0xf]
  %v2534 = vld [vmem:[%s4 + $0x48] sm:$0xf]
  %v2535 = vld [vmem:[%s4 + $0x4c] sm:$0xf]
  %v2536 = vld [vmem:[%s4 + $0x50] sm:$0xf]
  %v2537 = vld [vmem:[%s4 + $0x54] sm:$0xf]
  %v2538 = vld [vmem:[%s4 + $0x58] sm:$0xf]
  %v2539 = vld [vmem:[%s4 + $0x5c] sm:$0xf]
  %v2540 = vld [vmem:[%s4 + $0x60] sm:$0xf]
  %v2541 = vld [vmem:[%s4 + $0x64] sm:$0xf]
  %v2542 = vld [vmem:[%s4 + $0x68] sm:$0xf]
  %v2543 = vld [vmem:[%s4 + $0x6c] sm:$0xf]
  %v2544 = vld [vmem:[%s4 + $0x70] sm:$0xf]
  %v2545 = vld [vmem:[%s4 + $0x74] sm:$0xf]
  %v2546 = vld [vmem:[%s4 + $0x78] sm:$0xf]
  %v2547 = vld [vmem:[%s4 + $0x7c] sm:$0xf]
  %v2548 = vld [vmem:[%s5] sm:$0x1]
  %v2549 = vld [vmem:[%s6] sm:$0x1]
  %v2614 = vcombine.low %v1860, %v1861
  %v2615 = vcombine.low %v1862, %v1863
  %v2617 = vunpack.c.l.s4 1983009808
  %v2618 = vunpack.c.0.s8 %v2617
  %v2619 = vlaneseq
  %v2620 = vshrl.u32 %v2619, 7
  %v2621 = vsub.s32 %v2618, %v2620
  %v2622 = vrot.slane %v2614, %v2621
  %v2624 = vunpack.c.l.s4 1983009808
  %v2625 = vunpack.c.0.s8 %v2624
  %v2626 = vlaneseq
  %v2627 = vshrl.u32 %v2626, 7
  %v2628 = vsub.s32 %v2625, %v2627
  %v2629 = vrot.slane %v2615, %v2628
  %v2630 = vcombine.low %v2622, %v2629
  %v2631 = vcombine.low %v2484, %v2485
  %v2632 = vcombine.low %v2486, %v2487
  %v2634 = vunpack.c.l.s4 1983009808
  %v2635 = vunpack.c.0.s8 %v2634
  %v2636 = vlaneseq
  %v2637 = vshrl.u32 %v2636, 7
  %v2638 = vsub.s32 %v2635, %v2637
  %v2639 = vrot.slane %v2631, %v2638
  %v2641 = vunpack.c.l.s4 1983009808
  %v2642 = vunpack.c.0.s8 %v2641
  %v2643 = vlaneseq
  %v2644 = vshrl.u32 %v2643, 7
  %v2645 = vsub.s32 %v2642, %v2644
  %v2646 = vrot.slane %v2632, %v2645
  %v2647 = vcombine.low %v2639, %v2646
  %v2648 = vcombine.low %v1864, %v1865
  %v2649 = vcombine.low %v1866, %v1867
  %v2651 = vunpack.c.l.s4 1983009808
  %v2652 = vunpack.c.0.s8 %v2651
  %v2653 = vlaneseq
  %v2654 = vshrl.u32 %v2653, 7
  %v2655 = vsub.s32 %v2652, %v2654
  %v2656 = vrot.slane %v2648, %v2655
  %v2658 = vunpack.c.l.s4 1983009808
  %v2659 = vunpack.c.0.s8 %v2658
  %v2660 = vlaneseq
  %v2661 = vshrl.u32 %v2660, 7
  %v2662 = vsub.s32 %v2659, %v2661
  %v2663 = vrot.slane %v2649, %v2662
  %v2664 = vcombine.low %v2656, %v2663
  %v2665 = vcombine.low %v2488, %v2489
  %v2666 = vcombine.low %v2490, %v2491
  %v2668 = vunpack.c.l.s4 1983009808
  %v2669 = vunpack.c.0.s8 %v2668
  %v2670 = vlaneseq
  %v2671 = vshrl.u32 %v2670, 7
  %v2672 = vsub.s32 %v2669, %v2671
  %v2673 = vrot.slane %v2665, %v2672
  %v2675 = vunpack.c.l.s4 1983009808
  %v2676 = vunpack.c.0.s8 %v2675
  %v2677 = vlaneseq
  %v2678 = vshrl.u32 %v2677, 7
  %v2679 = vsub.s32 %v2676, %v2678
  %v2680 = vrot.slane %v2666, %v2679
  %v2681 = vcombine.low %v2673, %v2680
  %v2682 = vcombine.low %v1868, %v1869
  %v2683 = vcombine.low %v1870, %v1871
  %v2685 = vunpack.c.l.s4 1983009808
  %v2686 = vunpack.c.0.s8 %v2685
  %v2687 = vlaneseq
  %v2688 = vshrl.u32 %v2687, 7
  %v2689 = vsub.s32 %v2686, %v2688
  %v2690 = vrot.slane %v2682, %v2689
  %v2692 = vunpack.c.l.s4 1983009808
  %v2693 = vunpack.c.0.s8 %v2692
  %v2694 = vlaneseq
  %v2695 = vshrl.u32 %v2694, 7
  %v2696 = vsub.s32 %v2693, %v2695
  %v2697 = vrot.slane %v2683, %v2696
  %v2698 = vcombine.low %v2690, %v2697
  %v2699 = vcombine.low %v2492, %v2493
  %v2700 = vcombine.low %v2494, %v2495
  %v2702 = vunpack.c.l.s4 1983009808
  %v2703 = vunpack.c.0.s8 %v2702
  %v2704 = vlaneseq
  %v2705 = vshrl.u32 %v2704, 7
  %v2706 = vsub.s32 %v2703, %v2705
  %v2707 = vrot.slane %v2699, %v2706
  %v2709 = vunpack.c.l.s4 1983009808
  %v2710 = vunpack.c.0.s8 %v2709
  %v2711 = vlaneseq
  %v2712 = vshrl.u32 %v2711, 7
  %v2713 = vsub.s32 %v2710, %v2712
  %v2714 = vrot.slane %v2700, %v2713
  %v2715 = vcombine.low %v2707, %v2714
  %v2716 = vcombine.low %v1872, %v1873
  %v2717 = vcombine.low %v1874, %v1875
  %v2719 = vunpack.c.l.s4 1983009808
  %v2720 = vunpack.c.0.s8 %v2719
  %v2721 = vlaneseq
  %v2722 = vshrl.u32 %v2721, 7
  %v2723 = vsub.s32 %v2720, %v2722
  %v2724 = vrot.slane %v2716, %v2723
  %v2726 = vunpack.c.l.s4 1983009808
  %v2727 = vunpack.c.0.s8 %v2726
  %v2728 = vlaneseq
  %v2729 = vshrl.u32 %v2728, 7
  %v2730 = vsub.s32 %v2727, %v2729
  %v2731 = vrot.slane %v2717, %v2730
  %v2732 = vcombine.low %v2724, %v2731
  %v2733 = vcombine.low %v2496, %v2497
  %v2734 = vcombine.low %v2498, %v2499
  %v2736 = vunpack.c.l.s4 1983009808
  %v2737 = vunpack.c.0.s8 %v2736
  %v2738 = vlaneseq
  %v2739 = vshrl.u32 %v2738, 7
  %v2740 = vsub.s32 %v2737, %v2739
  %v2741 = vrot.slane %v2733, %v2740
  %v2743 = vunpack.c.l.s4 1983009808
  %v2744 = vunpack.c.0.s8 %v2743
  %v2745 = vlaneseq
  %v2746 = vshrl.u32 %v2745, 7
  %v2747 = vsub.s32 %v2744, %v2746
  %v2748 = vrot.slane %v2734, %v2747
  %v2749 = vcombine.low %v2741, %v2748
  %v2750 = vcombine.low %v1876, %v1877
  %v2751 = vcombine.low %v1878, %v1879
  %v2753 = vunpack.c.l.s4 1983009808
  %v2754 = vunpack.c.0.s8 %v2753
  %v2755 = vlaneseq
  %v2756 = vshrl.u32 %v2755, 7
  %v2757 = vsub.s32 %v2754, %v2756
  %v2758 = vrot.slane %v2750, %v2757
  %v2760 = vunpack.c.l.s4 1983009808
  %v2761 = vunpack.c.0.s8 %v2760
  %v2762 = vlaneseq
  %v2763 = vshrl.u32 %v2762, 7
  %v2764 = vsub.s32 %v2761, %v2763
  %v2765 = vrot.slane %v2751, %v2764
  %v2766 = vcombine.low %v2758, %v2765
  %v2767 = vcombine.low %v2500, %v2501
  %v2768 = vcombine.low %v2502, %v2503
  %v2770 = vunpack.c.l.s4 1983009808
  %v2771 = vunpack.c.0.s8 %v2770
  %v2772 = vlaneseq
  %v2773 = vshrl.u32 %v2772, 7
  %v2774 = vsub.s32 %v2771, %v2773
  %v2775 = vrot.slane %v2767, %v2774
  %v2777 = vunpack.c.l.s4 1983009808
  %v2778 = vunpack.c.0.s8 %v2777
  %v2779 = vlaneseq
  %v2780 = vshrl.u32 %v2779, 7
  %v2781 = vsub.s32 %v2778, %v2780
  %v2782 = vrot.slane %v2768, %v2781
  %v2783 = vcombine.low %v2775, %v2782
  %v2784 = vcombine.low %v1880, %v1881
  %v2785 = vcombine.low %v1882, %v1883
  %v2787 = vunpack.c.l.s4 1983009808
  %v2788 = vunpack.c.0.s8 %v2787
  %v2789 = vlaneseq
  %v2790 = vshrl.u32 %v2789, 7
  %v2791 = vsub.s32 %v2788, %v2790
  %v2792 = vrot.slane %v2784, %v2791
  %v2794 = vunpack.c.l.s4 1983009808
  %v2795 = vunpack.c.0.s8 %v2794
  %v2796 = vlaneseq
  %v2797 = vshrl.u32 %v2796, 7
  %v2798 = vsub.s32 %v2795, %v2797
  %v2799 = vrot.slane %v2785, %v2798
  %v2800 = vcombine.low %v2792, %v2799
  %v2801 = vcombine.low %v2504, %v2505
  %v2802 = vcombine.low %v2506, %v2507
  %v2804 = vunpack.c.l.s4 1983009808
  %v2805 = vunpack.c.0.s8 %v2804
  %v2806 = vlaneseq
  %v2807 = vshrl.u32 %v2806, 7
  %v2808 = vsub.s32 %v2805, %v2807
  %v2809 = vrot.slane %v2801, %v2808
  %v2811 = vunpack.c.l.s4 1983009808
  %v2812 = vunpack.c.0.s8 %v2811
  %v2813 = vlaneseq
  %v2814 = vshrl.u32 %v2813, 7
  %v2815 = vsub.s32 %v2812, %v2814
  %v2816 = vrot.slane %v2802, %v2815
  %v2817 = vcombine.low %v2809, %v2816
  %v2818 = vcombine.low %v1884, %v1885
  %v2819 = vcombine.low %v1886, %v1887
  %v2821 = vunpack.c.l.s4 1983009808
  %v2822 = vunpack.c.0.s8 %v2821
  %v2823 = vlaneseq
  %v2824 = vshrl.u32 %v2823, 7
  %v2825 = vsub.s32 %v2822, %v2824
  %v2826 = vrot.slane %v2818, %v2825
  %v2828 = vunpack.c.l.s4 1983009808
  %v2829 = vunpack.c.0.s8 %v2828
  %v2830 = vlaneseq
  %v2831 = vshrl.u32 %v2830, 7
  %v2832 = vsub.s32 %v2829, %v2831
  %v2833 = vrot.slane %v2819, %v2832
  %v2834 = vcombine.low %v2826, %v2833
  %v2835 = vcombine.low %v2508, %v2509
  %v2836 = vcombine.low %v2510, %v2511
  %v2838 = vunpack.c.l.s4 1983009808
  %v2839 = vunpack.c.0.s8 %v2838
  %v2840 = vlaneseq
  %v2841 = vshrl.u32 %v2840, 7
  %v2842 = vsub.s32 %v2839, %v2841
  %v2843 = vrot.slane %v2835, %v2842
  %v2845 = vunpack.c.l.s4 1983009808
  %v2846 = vunpack.c.0.s8 %v2845
  %v2847 = vlaneseq
  %v2848 = vshrl.u32 %v2847, 7
  %v2849 = vsub.s32 %v2846, %v2848
  %v2850 = vrot.slane %v2836, %v2849
  %v2851 = vcombine.low %v2843, %v2850
  %v2852 = vcombine.low %v1888, %v1889
  %v2853 = vcombine.low %v1890, %v1891
  %v2855 = vunpack.c.l.s4 1983009808
  %v2856 = vunpack.c.0.s8 %v2855
  %v2857 = vlaneseq
  %v2858 = vshrl.u32 %v2857, 7
  %v2859 = vsub.s32 %v2856, %v2858
  %v2860 = vrot.slane %v2852, %v2859
  %v2862 = vunpack.c.l.s4 1983009808
  %v2863 = vunpack.c.0.s8 %v2862
  %v2864 = vlaneseq
  %v2865 = vshrl.u32 %v2864, 7
  %v2866 = vsub.s32 %v2863, %v2865
  %v2867 = vrot.slane %v2853, %v2866
  %v2868 = vcombine.low %v2860, %v2867
  %v2869 = vcombine.low %v2512, %v2513
  %v2870 = vcombine.low %v2514, %v2515
  %v2872 = vunpack.c.l.s4 1983009808
  %v2873 = vunpack.c.0.s8 %v2872
  %v2874 = vlaneseq
  %v2875 = vshrl.u32 %v2874, 7
  %v2876 = vsub.s32 %v2873, %v2875
  %v2877 = vrot.slane %v2869, %v2876
  %v2879 = vunpack.c.l.s4 1983009808
  %v2880 = vunpack.c.0.s8 %v2879
  %v2881 = vlaneseq
  %v2882 = vshrl.u32 %v2881, 7
  %v2883 = vsub.s32 %v2880, %v2882
  %v2884 = vrot.slane %v2870, %v2883
  %v2885 = vcombine.low %v2877, %v2884
  %v2902 = vpack.c.bf16 %v2630, %v2630
  %v2903 = vpack.c.bf16 %v2647, %v2647
  %v2904 = vpack.c.bf16 %v2664, %v2664
  %v2905 = vpack.c.bf16 %v2681, %v2681
  %v2906 = vpack.c.bf16 %v2698, %v2698
  %v2907 = vpack.c.bf16 %v2715, %v2715
  %v2908 = vpack.c.bf16 %v2732, %v2732
  %v2909 = vpack.c.bf16 %v2749, %v2749
  %v2910 = vpack.c.bf16 %v2766, %v2766
  %v2911 = vpack.c.bf16 %v2783, %v2783
  %v2912 = vpack.c.bf16 %v2800, %v2800
  %v2913 = vpack.c.bf16 %v2817, %v2817
  %v2914 = vpack.c.bf16 %v2834, %v2834
  %v2915 = vpack.c.bf16 %v2851, %v2851
  %v2916 = vpack.c.bf16 %v2868, %v2868
  %v2917 = vpack.c.bf16 %v2885, %v2885
  %v2919 = vshrl.u32 %v2902, 16
  %v2921 = vrot.slane %v2919, 7
  %v2922 = vshll.u32 %v2902, 16
  %v2924 = vor.u32 %v2921, %v2922
  %v2926 = vshrl.u32 %v2903, 16
  %v2928 = vrot.slane %v2926, 7
  %v2929 = vshll.u32 %v2903, 16
  %v2931 = vor.u32 %v2928, %v2929
  %v2933 = vshrl.u32 %v2904, 16
  %v2935 = vrot.slane %v2933, 7
  %v2936 = vshll.u32 %v2904, 16
  %v2938 = vor.u32 %v2935, %v2936
  %v2940 = vshrl.u32 %v2905, 16
  %v2942 = vrot.slane %v2940, 7
  %v2943 = vshll.u32 %v2905, 16
  %v2945 = vor.u32 %v2942, %v2943
  %v2947 = vshrl.u32 %v2906, 16
  %v2949 = vrot.slane %v2947, 7
  %v2950 = vshll.u32 %v2906, 16
  %v2952 = vor.u32 %v2949, %v2950
  %v2954 = vshrl.u32 %v2907, 16
  %v2956 = vrot.slane %v2954, 7
  %v2957 = vshll.u32 %v2907, 16
  %v2959 = vor.u32 %v2956, %v2957
  %v2961 = vshrl.u32 %v2908, 16
  %v2963 = vrot.slane %v2961, 7
  %v2964 = vshll.u32 %v2908, 16
  %v2966 = vor.u32 %v2963, %v2964
  %v2968 = vshrl.u32 %v2909, 16
  %v2970 = vrot.slane %v2968, 7
  %v2971 = vshll.u32 %v2909, 16
  %v2973 = vor.u32 %v2970, %v2971
  %v2975 = vshrl.u32 %v2910, 16
  %v2977 = vrot.slane %v2975, 7
  %v2978 = vshll.u32 %v2910, 16
  %v2980 = vor.u32 %v2977, %v2978
  %v2982 = vshrl.u32 %v2911, 16
  %v2984 = vrot.slane %v2982, 7
  %v2985 = vshll.u32 %v2911, 16
  %v2987 = vor.u32 %v2984, %v2985
  %v2989 = vshrl.u32 %v2912, 16
  %v2991 = vrot.slane %v2989, 7
  %v2992 = vshll.u32 %v2912, 16
  %v2994 = vor.u32 %v2991, %v2992
  %v2996 = vshrl.u32 %v2913, 16
  %v2998 = vrot.slane %v2996, 7
  %v2999 = vshll.u32 %v2913, 16
  %v3001 = vor.u32 %v2998, %v2999
  %v3003 = vshrl.u32 %v2914, 16
  %v3005 = vrot.slane %v3003, 7
  %v3006 = vshll.u32 %v2914, 16
  %v3008 = vor.u32 %v3005, %v3006
  %v3010 = vshrl.u32 %v2915, 16
  %v3012 = vrot.slane %v3010, 7
  %v3013 = vshll.u32 %v2915, 16
  %v3015 = vor.u32 %v3012, %v3013
  %v3017 = vshrl.u32 %v2916, 16
  %v3019 = vrot.slane %v3017, 7
  %v3020 = vshll.u32 %v2916, 16
  %v3022 = vor.u32 %v3019, %v3020
  %v3024 = vshrl.u32 %v2917, 16
  %v3026 = vrot.slane %v3024, 7
  %v3027 = vshll.u32 %v2917, 16
  %v3029 = vor.u32 %v3026, %v3027
  %v3046 = vsel %vm157, 0, %v2924
  %v3047 = vsel %vm157, 0, %v2931
  %v3048 = vsel %vm157, 0, %v2938
  %v3049 = vsel %vm157, 0, %v2945
  %v3050 = vsel %vm157, 0, %v2952
  %v3051 = vsel %vm157, 0, %v2959
  %v3052 = vsel %vm157, 0, %v2966
  %v3053 = vsel %vm157, 0, %v2973
  %v3054 = vsel %vm157, 0, %v2980
  %v3055 = vsel %vm157, 0, %v2987
  %v3056 = vsel %vm157, 0, %v2994
  %v3057 = vsel %vm157, 0, %v3001
  %v3058 = vsel %vm157, 0, %v3008
  %v3059 = vsel %vm157, 0, %v3015
  %v3060 = vsel %vm157, 0, %v3022
  %v3061 = vsel %vm157, 0, %v3029
  %vm3062 = vcmask 1044480
  %vm3063 = vsmask.f32 4352
  %vm3064 = vmand %vm3062, %vm3063
  %v3065 = vsel %vm3064, %v158, 0
  %v3066 = vsel %vm3064, %v3046, 0
  %v3067 = vsel %vm3064, %v3047, 0
  %v3068 = vsel %vm3064, %v3048, 0
  %v3069 = vsel %vm3064, %v3049, 0
  %v3070 = vsel %vm3064, %v3050, 0
  %v3071 = vsel %vm3064, %v3051, 0
  %v3072 = vsel %vm3064, %v3052, 0
  %v3073 = vsel %vm3064, %v3053, 0
  %v3074 = vsel %vm3064, %v3054, 0
  %v3075 = vsel %vm3064, %v3055, 0
  %v3076 = vsel %vm3064, %v3056, 0
  %v3077 = vsel %vm3064, %v3057, 0
  %v3078 = vsel %vm3064, %v3058, 0
  %v3079 = vsel %vm3064, %v3059, 0
  %v3080 = vsel %vm3064, %v3060, 0
  %v3081 = vsel %vm3064, %v3061, 0
  %v3083 = vshrl.u32 %v3065, 16
  %v3085 = vshll.u32 %v3065, 16
  %v3087 = vrot.slane %v3085, 1
  %v3088 = vor.u32 %v3083, %v3087
  %v3090 = vshrl.u32 %v3066, 16
  %v3092 = vshll.u32 %v3066, 16
  %v3094 = vrot.slane %v3092, 1
  %v3095 = vor.u32 %v3090, %v3094
  %v3097 = vshrl.u32 %v3067, 16
  %v3099 = vshll.u32 %v3067, 16
  %v3101 = vrot.slane %v3099, 1
  %v3102 = vor.u32 %v3097, %v3101
  %v3104 = vshrl.u32 %v3068, 16
  %v3106 = vshll.u32 %v3068, 16
  %v3108 = vrot.slane %v3106, 1
  %v3109 = vor.u32 %v3104, %v3108
  %v3111 = vshrl.u32 %v3069, 16
  %v3113 = vshll.u32 %v3069, 16
  %v3115 = vrot.slane %v3113, 1
  %v3116 = vor.u32 %v3111, %v3115
  %v3118 = vshrl.u32 %v3070, 16
  %v3120 = vshll.u32 %v3070, 16
  %v3122 = vrot.slane %v3120, 1
  %v3123 = vor.u32 %v3118, %v3122
  %v3125 = vshrl.u32 %v3071, 16
  %v3127 = vshll.u32 %v3071, 16
  %v3129 = vrot.slane %v3127, 1
  %v3130 = vor.u32 %v3125, %v3129
  %v3132 = vshrl.u32 %v3072, 16
  %v3134 = vshll.u32 %v3072, 16
  %v3136 = vrot.slane %v3134, 1
  %v3137 = vor.u32 %v3132, %v3136
  %v3139 = vshrl.u32 %v3074, 16
  %v3141 = vshll.u32 %v3074, 16
  %v3143 = vrot.slane %v3141, 1
  %v3144 = vor.u32 %v3139, %v3143
  %v3146 = vshrl.u32 %v3075, 16
  %v3148 = vshll.u32 %v3075, 16
  %v3150 = vrot.slane %v3148, 1
  %v3151 = vor.u32 %v3146, %v3150
  %v3153 = vshrl.u32 %v3076, 16
  %v3155 = vshll.u32 %v3076, 16
  %v3157 = vrot.slane %v3155, 1
  %v3158 = vor.u32 %v3153, %v3157
  %v3160 = vshrl.u32 %v3077, 16
  %v3162 = vshll.u32 %v3077, 16
  %v3164 = vrot.slane %v3162, 1
  %v3165 = vor.u32 %v3160, %v3164
  %v3167 = vshrl.u32 %v3078, 16
  %v3169 = vshll.u32 %v3078, 16
  %v3171 = vrot.slane %v3169, 1
  %v3172 = vor.u32 %v3167, %v3171
  %v3174 = vshrl.u32 %v3079, 16
  %v3176 = vshll.u32 %v3079, 16
  %v3178 = vrot.slane %v3176, 1
  %v3179 = vor.u32 %v3174, %v3178
  %v3181 = vshrl.u32 %v3080, 16
  %v3183 = vshll.u32 %v3080, 16
  %v3185 = vrot.slane %v3183, 1
  %v3186 = vor.u32 %v3181, %v3185
  %3187 = vrot.lane.b32.xlu0 %v3088, 16
  %v3188 = vpop.permute.xlu0 %3187
  %3189 = vrot.lane.b32.xlu0 %v3095, 16
  %v3190 = vpop.permute.xlu0 %3189
  %3191 = vrot.lane.b32.xlu0 %v3102, 16
  %v3192 = vpop.permute.xlu0 %3191
  %3193 = vrot.lane.b32.xlu0 %v3109, 16
  %v3194 = vpop.permute.xlu0 %3193
  %3195 = vrot.lane.b32.xlu0 %v3116, 16
  %v3196 = vpop.permute.xlu0 %3195
  %3197 = vrot.lane.b32.xlu0 %v3123, 16
  %v3198 = vpop.permute.xlu0 %3197
  %3199 = vrot.lane.b32.xlu0 %v3130, 16
  %v3200 = vpop.permute.xlu0 %3199
  %3201 = vrot.lane.b32.xlu0 %v3137, 16
  %v3202 = vpop.permute.xlu0 %3201
  %3203 = vrot.lane.b32.xlu0 %v3144, 16
  %v3204 = vpop.permute.xlu0 %3203
  %3205 = vrot.lane.b32.xlu0 %v3151, 16
  %v3206 = vpop.permute.xlu0 %3205
  %3207 = vrot.lane.b32.xlu0 %v3158, 16
  %v3208 = vpop.permute.xlu0 %3207
  %3209 = vrot.lane.b32.xlu0 %v3165, 16
  %v3210 = vpop.permute.xlu0 %3209
  %3211 = vrot.lane.b32.xlu0 %v3172, 16
  %v3212 = vpop.permute.xlu0 %3211
  %3213 = vrot.lane.b32.xlu0 %v3179, 16
  %v3214 = vpop.permute.xlu0 %3213
  %3215 = vrot.lane.b32.xlu0 %v3186, 16
  %v3216 = vpop.permute.xlu0 %3215
  %3233 = vrot.lane.b32.xlu0 %v3066, 32
  %v3234 = vpop.permute.xlu0 %3233
  %3235 = vrot.lane.b32.xlu0 %v3067, 32
  %v3236 = vpop.permute.xlu0 %3235
  %3237 = vrot.lane.b32.xlu0 %v3068, 32
  %v3238 = vpop.permute.xlu0 %3237
  %3239 = vrot.lane.b32.xlu0 %v3069, 32
  %v3240 = vpop.permute.xlu0 %3239
  %3241 = vrot.lane.b32.xlu0 %v3070, 32
  %v3242 = vpop.permute.xlu0 %3241
  %3243 = vrot.lane.b32.xlu0 %v3071, 32
  %v3244 = vpop.permute.xlu0 %3243
  %3245 = vrot.lane.b32.xlu0 %v3072, 32
  %v3246 = vpop.permute.xlu0 %3245
  %3247 = vrot.lane.b32.xlu0 %v3073, 32
  %v3248 = vpop.permute.xlu0 %3247
  %3249 = vrot.lane.b32.xlu0 %v3074, 32
  %v3250 = vpop.permute.xlu0 %3249
  %3251 = vrot.lane.b32.xlu0 %v3075, 32
  %v3252 = vpop.permute.xlu0 %3251
  %3253 = vrot.lane.b32.xlu0 %v3076, 32
  %v3254 = vpop.permute.xlu0 %3253
  %3255 = vrot.lane.b32.xlu0 %v3077, 32
  %v3256 = vpop.permute.xlu0 %3255
  %3257 = vrot.lane.b32.xlu0 %v3078, 32
  %v3258 = vpop.permute.xlu0 %3257
  %3259 = vrot.lane.b32.xlu0 %v3079, 32
  %v3260 = vpop.permute.xlu0 %3259
  %3261 = vrot.lane.b32.xlu0 %v3080, 32
  %v3262 = vpop.permute.xlu0 %3261
  %3263 = vrot.lane.b32.xlu0 %v3081, 32
  %v3264 = vpop.permute.xlu0 %3263
  %v3266 = vshrl.u32 %v3073, 16
  %v3268 = vshll.u32 %v3073, 16
  %v3270 = vrot.slane %v3268, 1
  %v3271 = vor.u32 %v3266, %v3270
  %v3273 = vshrl.u32 %v3081, 16
  %v3275 = vshll.u32 %v3081, 16
  %v3277 = vrot.slane %v3275, 1
  %v3278 = vor.u32 %v3273, %v3277
  %3279 = vrot.lane.b32.xlu0 %v3095, 48
  %v3280 = vpop.permute.xlu0 %3279
  %3281 = vrot.lane.b32.xlu0 %v3102, 48
  %v3282 = vpop.permute.xlu0 %3281
  %3283 = vrot.lane.b32.xlu0 %v3109, 48
  %v3284 = vpop.permute.xlu0 %3283
  %3285 = vrot.lane.b32.xlu0 %v3116, 48
  %v3286 = vpop.permute.xlu0 %3285
  %3287 = vrot.lane.b32.xlu0 %v3123, 48
  %v3288 = vpop.permute.xlu0 %3287
  %3289 = vrot.lane.b32.xlu0 %v3130, 48
  %v3290 = vpop.permute.xlu0 %3289
  %3291 = vrot.lane.b32.xlu0 %v3137, 48
  %v3292 = vpop.permute.xlu0 %3291
  %3293 = vrot.lane.b32.xlu0 %v3271, 48
  %v3294 = vpop.permute.xlu0 %3293
  %3295 = vrot.lane.b32.xlu0 %v3144, 48
  %v3296 = vpop.permute.xlu0 %3295
  %3297 = vrot.lane.b32.xlu0 %v3151, 48
  %v3298 = vpop.permute.xlu0 %3297
  %3299 = vrot.lane.b32.xlu0 %v3158, 48
  %v3300 = vpop.permute.xlu0 %3299
  %3301 = vrot.lane.b32.xlu0 %v3165, 48
  %v3302 = vpop.permute.xlu0 %3301
  %3303 = vrot.lane.b32.xlu0 %v3172, 48
  %v3304 = vpop.permute.xlu0 %3303
  %3305 = vrot.lane.b32.xlu0 %v3179, 48
  %v3306 = vpop.permute.xlu0 %3305
  %3307 = vrot.lane.b32.xlu0 %v3186, 48
  %v3308 = vpop.permute.xlu0 %3307
  %3309 = vrot.lane.b32.xlu0 %v3278, 48
  %v3310 = vpop.permute.xlu0 %3309
  %v3312 = vsel %vm296, %v3065, %v3188
  %v3314 = vsel %vm296, %v3066, %v3190
  %v3316 = vsel %vm296, %v3067, %v3192
  %v3318 = vsel %vm296, %v3068, %v3194
  %v3320 = vsel %vm296, %v3069, %v3196
  %v3322 = vsel %vm296, %v3070, %v3198
  %v3324 = vsel %vm296, %v3071, %v3200
  %v3326 = vsel %vm296, %v3072, %v3202
  %v3328 = vsel %vm296, %v3074, %v3204
  %v3330 = vsel %vm296, %v3075, %v3206
  %v3332 = vsel %vm296, %v3076, %v3208
  %v3334 = vsel %vm296, %v3077, %v3210
  %v3336 = vsel %vm296, %v3078, %v3212
  %v3338 = vsel %vm296, %v3079, %v3214
  %v3340 = vsel %vm296, %v3080, %v3216
  %v3342 = vsel %vm311, %v3312, %v3234
  %v3344 = vsel %vm311, %v3314, %v3236
  %v3346 = vsel %vm311, %v3316, %v3238
  %v3348 = vsel %vm311, %v3318, %v3240
  %v3350 = vsel %vm311, %v3320, %v3242
  %v3352 = vsel %vm311, %v3322, %v3244
  %v3354 = vsel %vm311, %v3324, %v3246
  %v3356 = vsel %vm311, %v3326, %v3248
  %v3358 = vsel %vm311, %v3312, %v3250
  %v3360 = vsel %vm311, %v3328, %v3252
  %v3362 = vsel %vm311, %v3330, %v3254
  %v3364 = vsel %vm311, %v3332, %v3256
  %v3366 = vsel %vm311, %v3334, %v3258
  %v3368 = vsel %vm311, %v3336, %v3260
  %v3370 = vsel %vm311, %v3338, %v3262
  %v3372 = vsel %vm311, %v3340, %v3264
  %v3374 = vsel %vm328, %v3342, %v3280
  %v3376 = vsel %vm328, %v3344, %v3282
  %v3378 = vsel %vm328, %v3346, %v3284
  %v3380 = vsel %vm328, %v3348, %v3286
  %v3382 = vsel %vm328, %v3350, %v3288
  %v3384 = vsel %vm328, %v3352, %v3290
  %v3386 = vsel %vm328, %v3354, %v3292
  %v3388 = vsel %vm328, %v3356, %v3294
  %v3390 = vsel %vm328, %v3358, %v3296
  %v3392 = vsel %vm328, %v3360, %v3298
  %v3394 = vsel %vm328, %v3362, %v3300
  %v3396 = vsel %vm328, %v3364, %v3302
  %v3398 = vsel %vm328, %v3366, %v3304
  %v3400 = vsel %vm328, %v3368, %v3306
  %v3402 = vsel %vm328, %v3370, %v3308
  %v3404 = vsel %vm328, %v3372, %v3310
  %v3421 = vunpack.c.l.b16 %v3374
  %v3422 = vunpack.c.l.b16 %v3376
  %v3423 = vunpack.c.l.b16 %v3378
  %v3424 = vunpack.c.l.b16 %v3380
  %v3425 = vunpack.c.l.b16 %v3382
  %v3426 = vunpack.c.l.b16 %v3384
  %v3427 = vunpack.c.l.b16 %v3386
  %v3428 = vunpack.c.l.b16 %v3388
  %v3429 = vunpack.c.l.b16 %v3390
  %v3430 = vunpack.c.l.b16 %v3392
  %v3431 = vunpack.c.l.b16 %v3394
  %v3432 = vunpack.c.l.b16 %v3396
  %v3433 = vunpack.c.l.b16 %v3398
  %v3434 = vunpack.c.l.b16 %v3400
  %v3435 = vunpack.c.l.b16 %v3402
  %v3436 = vunpack.c.l.b16 %v3404
  %v3437 = vpack.c.b16 %v3422, %v3421
  %v3438 = vpack.c.b16 %v3424, %v3423
  %v3439 = vpack.c.b16 %v3426, %v3425
  %v3440 = vpack.c.b16 %v3428, %v3427
  %v3441 = vpack.c.b16 %v3430, %v3429
  %v3442 = vpack.c.b16 %v3432, %v3431
  %v3443 = vpack.c.b16 %v3434, %v3433
  %v3444 = vpack.c.b16 %v3436, %v3435
  %v3453 = vunpack.c.l.b16 %v2516
  %v3454 = vunpack.c.l.b16 %v2517
  %v3455 = vunpack.c.l.b16 %v2518
  %v3456 = vunpack.c.l.b16 %v2519
  %v3457 = vunpack.c.l.b16 %v2520
  %v3458 = vunpack.c.l.b16 %v2521
  %v3459 = vunpack.c.l.b16 %v2522
  %v3460 = vunpack.c.l.b16 %v2523
  %v3461 = vpack.c.b16 %v3454, %v3453
  %v3462 = vpack.c.b16 %v3456, %v3455
  %v3463 = vpack.c.b16 %v3458, %v3457
  %v3464 = vpack.c.b16 %v3460, %v3459
  %v3470 = vsel %vm411, %v3437, 0
  %v3473 = vsel %vm411, %v3438, 0
  %v3476 = vsel %vm411, %v3439, 0
  %v3479 = vsel %vm411, %v3440, 0
  %v3482 = vsel %vm411, %v3441, 0
  %v3485 = vsel %vm411, %v3442, 0
  %v3488 = vsel %vm411, %v3443, 0
  %v3491 = vsel %vm411, %v3444, 0
  %3493 = vmatprep.subr.bf16.mxu0 0
  %3494 = vmatpush1.bf16.msra.mxu0 %v3461
  %3495 = vmatprep.subr.bf16.mxu0 0
  %3496 = vmatpush1.bf16.msra.mxu0 %v3462
  %3497 = vmatprep.subr.bf16.mxu0 0
  %3498 = vmatpush1.bf16.msra.mxu0 %v3463
  %3499 = vmatprep.subr.bf16.mxu0 0
  %3500 = vmatpush1.bf16.msra.mxu0 %v3464
  %3501 = vmatprep.subr.bf16.mxu0 0
  %3502 = vmatpush1.bf16.msra.mxu0 0
  %3503 = vmatprep.subr.bf16.mxu0 0
  %3504 = vmatpush1.bf16.msra.mxu0 0
  %3505 = vmatprep.subr.bf16.mxu0 0
  %3506 = vmatpush1.bf16.msra.mxu0 0
  %3507 = vmatprep.subr.bf16.mxu0 0
  %3508 = vmatpush1.bf16.msra.mxu0 0
  %3509 = vmatprep.subr.bf16.mxu0 0
  %3510 = vmatpush1.bf16.msra.mxu0 0
  %3511 = vmatprep.subr.bf16.mxu0 0
  %3512 = vmatpush1.bf16.msra.mxu0 0
  %3513 = vmatprep.subr.bf16.mxu0 0
  %3514 = vmatpush1.bf16.msra.mxu0 0
  %3515 = vmatprep.subr.bf16.mxu0 0
  %3516 = vmatpush1.bf16.msra.mxu0 0
  %3517 = vmatprep.subr.bf16.mxu0 0
  %3518 = vmatpush1.bf16.msra.mxu0 0
  %3519 = vmatprep.subr.bf16.mxu0 0
  %3520 = vmatpush1.bf16.msra.mxu0 0
  %3521 = vmatprep.subr.bf16.mxu0 0
  %3522 = vmatpush1.bf16.msra.mxu0 0
  %3523 = vmatprep.subr.bf16.mxu0 0
  %3524 = vmatpush1.bf16.msra.mxu0 0
  %3525 = vmatprep.mubr.bf16.mxu0 0
  %3526 = vmatmul.mubr.bf16.gmra.mrb[0].mxu0 %v3470
  %v3527 = vpop.f32.mrb[0].mxu0
  %v3528 = vadd.f32 0.0, %v3527
  %v3529 = vpop.f32.mrb[0].mxu0
  %v3530 = vpop.f32.mrb[0].mxu0
  %v3531 = vadd.f32 0.0, %v3530
  %v3532 = vpop.f32.mrb[0].mxu0
  %3533 = vmatprep.mubr.bf16.mxu0 0
  %3534 = vmatmul.mubr.bf16.gmra.mrb[0].mxu0 %v3473
  %v3535 = vpop.f32.mrb[0].mxu0
  %v3536 = vadd.f32 0.0, %v3535
  %v3537 = vpop.f32.mrb[0].mxu0
  %v3538 = vpop.f32.mrb[0].mxu0
  %v3539 = vadd.f32 0.0, %v3538
  %v3540 = vpop.f32.mrb[0].mxu0
  %3541 = vmatprep.mubr.bf16.mxu0 0
  %3542 = vmatmul.mubr.bf16.gmra.mrb[0].mxu0 %v3476
  %v3543 = vpop.f32.mrb[0].mxu0
  %v3544 = vadd.f32 0.0, %v3543
  %v3545 = vpop.f32.mrb[0].mxu0
  %v3546 = vpop.f32.mrb[0].mxu0
  %v3547 = vadd.f32 0.0, %v3546
  %v3548 = vpop.f32.mrb[0].mxu0
  %3549 = vmatprep.mubr.bf16.mxu0 0
  %3550 = vmatmul.mubr.bf16.gmra.mrb[0].mxu0 %v3479
  %v3551 = vpop.f32.mrb[0].mxu0
  %v3552 = vadd.f32 0.0, %v3551
  %v3553 = vpop.f32.mrb[0].mxu0
  %v3554 = vpop.f32.mrb[0].mxu0
  %v3555 = vadd.f32 0.0, %v3554
  %v3556 = vpop.f32.mrb[0].mxu0
  %3557 = vmatprep.mubr.bf16.mxu0 0
  %3558 = vmatmul.mubr.bf16.gmra.mrb[0].mxu0 %v3482
  %v3559 = vpop.f32.mrb[0].mxu0
  %v3560 = vadd.f32 0.0, %v3559
  %v3561 = vpop.f32.mrb[0].mxu0
  %v3562 = vpop.f32.mrb[0].mxu0
  %v3563 = vadd.f32 0.0, %v3562
  %v3564 = vpop.f32.mrb[0].mxu0
  %3565 = vmatprep.mubr.bf16.mxu0 0
  %3566 = vmatmul.mubr.bf16.gmra.mrb[0].mxu0 %v3485
  %v3567 = vpop.f32.mrb[0].mxu0
  %v3568 = vadd.f32 0.0, %v3567
  %v3569 = vpop.f32.mrb[0].mxu0
  %v3570 = vpop.f32.mrb[0].mxu0
  %v3571 = vadd.f32 0.0, %v3570
  %v3572 = vpop.f32.mrb[0].mxu0
  %3573 = vmatprep.mubr.bf16.mxu0 0
  %3574 = vmatmul.mubr.bf16.gmra.mrb[0].mxu0 %v3488
  %v3575 = vpop.f32.mrb[0].mxu0
  %v3576 = vadd.f32 0.0, %v3575
  %v3577 = vpop.f32.mrb[0].mxu0
  %v3578 = vpop.f32.mrb[0].mxu0
  %v3579 = vadd.f32 0.0, %v3578
  %v3580 = vpop.f32.mrb[0].mxu0
  %3581 = vmatprep.mubr.bf16.mxu0 0
  %3582 = vmatmul.mubr.bf16.gmra.mrb[0].mxu0 %v3491
  %v3583 = vpop.f32.mrb[0].mxu0
  %v3584 = vadd.f32 0.0, %v3583
  %v3585 = vpop.f32.mrb[0].mxu0
  %v3586 = vpop.f32.mrb[0].mxu0
  %v3587 = vadd.f32 0.0, %v3586
  %v3588 = vpop.f32.mrb[0].mxu0
  %3589 = vdwg.mxu0
  %v3590 = vunpack.c.h.b16 %v3374
  %v3591 = vunpack.c.h.b16 %v3376
  %v3592 = vunpack.c.h.b16 %v3378
  %v3593 = vunpack.c.h.b16 %v3380
  %v3594 = vunpack.c.h.b16 %v3382
  %v3595 = vunpack.c.h.b16 %v3384
  %v3596 = vunpack.c.h.b16 %v3386
  %v3597 = vunpack.c.h.b16 %v3388
  %v3598 = vunpack.c.h.b16 %v3390
  %v3599 = vunpack.c.h.b16 %v3392
  %v3600 = vunpack.c.h.b16 %v3394
  %v3601 = vunpack.c.h.b16 %v3396
  %v3602 = vunpack.c.h.b16 %v3398
  %v3603 = vunpack.c.h.b16 %v3400
  %v3604 = vunpack.c.h.b16 %v3402
  %v3605 = vunpack.c.h.b16 %v3404
  %v3606 = vpack.c.b16 %v3421, %v3421
  %v3607 = vpack.c.b16 %v3590, %v3590
  %v3608 = vpack.c.b16 %v3422, %v3422
  %v3609 = vpack.c.b16 %v3591, %v3591
  %v3610 = vpack.c.b16 %v3423, %v3423
  %v3611 = vpack.c.b16 %v3592, %v3592
  %v3612 = vpack.c.b16 %v3424, %v3424
  %v3613 = vpack.c.b16 %v3593, %v3593
  %v3614 = vpack.c.b16 %v3425, %v3425
  %v3615 = vpack.c.b16 %v3594, %v3594
  %v3616 = vpack.c.b16 %v3426, %v3426
  %v3617 = vpack.c.b16 %v3595, %v3595
  %v3618 = vpack.c.b16 %v3427, %v3427
  %v3619 = vpack.c.b16 %v3596, %v3596
  %v3620 = vpack.c.b16 %v3428, %v3428
  %v3621 = vpack.c.b16 %v3597, %v3597
  %v3622 = vpack.c.b16 %v3429, %v3429
  %v3623 = vpack.c.b16 %v3598, %v3598
  %v3624 = vpack.c.b16 %v3430, %v3430
  %v3625 = vpack.c.b16 %v3599, %v3599
  %v3626 = vpack.c.b16 %v3431, %v3431
  %v3627 = vpack.c.b16 %v3600, %v3600
  %v3628 = vpack.c.b16 %v3432, %v3432
  %v3629 = vpack.c.b16 %v3601, %v3601
  %v3630 = vpack.c.b16 %v3433, %v3433
  %v3631 = vpack.c.b16 %v3602, %v3602
  %v3632 = vpack.c.b16 %v3434, %v3434
  %v3633 = vpack.c.b16 %v3603, %v3603
  %v3634 = vpack.c.b16 %v3435, %v3435
  %v3635 = vpack.c.b16 %v3604, %v3604
  %v3636 = vpack.c.b16 %v3436, %v3436
  %v3637 = vpack.c.b16 %v3605, %v3605
  %vm3638 = vsmask.f32 3328
  %vm3639 = vsmask.f32 7440
  %vm3640 = vmor %vm3638, %vm3639
  %v3642 = vshrl.u32 %v3606, 16
  %v3644 = vrot.slane %v3642, 4
  %v3645 = vshll.u32 %v3606, 16
  %v3647 = vrot.slane %v3645, 5
  %v3648 = vor.u32 %v3644, %v3647
  %v3649 = vrot.slane %v3648, 4
  %v3651 = vshll.u32 %v3607, 16
  %v3653 = vrot.slane %v3651, 5
  %v3654 = vsel %vm3640, %v3649, %v3653
  %v3656 = vshrl.u32 %v3608, 16
  %v3658 = vrot.slane %v3656, 4
  %v3659 = vshll.u32 %v3608, 16
  %v3661 = vrot.slane %v3659, 5
  %v3662 = vor.u32 %v3658, %v3661
  %v3663 = vrot.slane %v3662, 4
  %v3665 = vshll.u32 %v3609, 16
  %v3667 = vrot.slane %v3665, 5
  %v3668 = vsel %vm3640, %v3663, %v3667
  %v3670 = vshrl.u32 %v3610, 16
  %v3672 = vrot.slane %v3670, 4
  %v3673 = vshll.u32 %v3610, 16
  %v3675 = vrot.slane %v3673, 5
  %v3676 = vor.u32 %v3672, %v3675
  %v3677 = vrot.slane %v3676, 4
  %v3679 = vshll.u32 %v3611, 16
  %v3681 = vrot.slane %v3679, 5
  %v3682 = vsel %vm3640, %v3677, %v3681
  %v3684 = vshrl.u32 %v3612, 16
  %v3686 = vrot.slane %v3684, 4
  %v3687 = vshll.u32 %v3612, 16
  %v3689 = vrot.slane %v3687, 5
  %v3690 = vor.u32 %v3686, %v3689
  %v3691 = vrot.slane %v3690, 4
  %v3693 = vshll.u32 %v3613, 16
  %v3695 = vrot.slane %v3693, 5
  %v3696 = vsel %vm3640, %v3691, %v3695
  %v3698 = vshrl.u32 %v3614, 16
  %v3700 = vrot.slane %v3698, 4
  %v3701 = vshll.u32 %v3614, 16
  %v3703 = vrot.slane %v3701, 5
  %v3704 = vor.u32 %v3700, %v3703
  %v3705 = vrot.slane %v3704, 4
  %v3707 = vshll.u32 %v3615, 16
  %v3709 = vrot.slane %v3707, 5
  %v3710 = vsel %vm3640, %v3705, %v3709
  %v3712 = vshrl.u32 %v3616, 16
  %v3714 = vrot.slane %v3712, 4
  %v3715 = vshll.u32 %v3616, 16
  %v3717 = vrot.slane %v3715, 5
  %v3718 = vor.u32 %v3714, %v3717
  %v3719 = vrot.slane %v3718, 4
  %v3721 = vshll.u32 %v3617, 16
  %v3723 = vrot.slane %v3721, 5
  %v3724 = vsel %vm3640, %v3719, %v3723
  %v3726 = vshrl.u32 %v3618, 16
  %v3728 = vrot.slane %v3726, 4
  %v3729 = vshll.u32 %v3618, 16
  %v3731 = vrot.slane %v3729, 5
  %v3732 = vor.u32 %v3728, %v3731
  %v3733 = vrot.slane %v3732, 4
  %v3735 = vshll.u32 %v3619, 16
  %v3737 = vrot.slane %v3735, 5
  %v3738 = vsel %vm3640, %v3733, %v3737
  %v3740 = vshrl.u32 %v3620, 16
  %v3742 = vrot.slane %v3740, 4
  %v3743 = vshll.u32 %v3620, 16
  %v3745 = vrot.slane %v3743, 5
  %v3746 = vor.u32 %v3742, %v3745
  %v3747 = vrot.slane %v3746, 4
  %v3749 = vshll.u32 %v3621, 16
  %v3751 = vrot.slane %v3749, 5
  %v3752 = vsel %vm3640, %v3747, %v3751
  %v3754 = vshrl.u32 %v3622, 16
  %v3756 = vrot.slane %v3754, 4
  %v3757 = vshll.u32 %v3622, 16
  %v3759 = vrot.slane %v3757, 5
  %v3760 = vor.u32 %v3756, %v3759
  %v3761 = vrot.slane %v3760, 4
  %v3763 = vshll.u32 %v3623, 16
  %v3765 = vrot.slane %v3763, 5
  %v3766 = vsel %vm3640, %v3761, %v3765
  %v3768 = vshrl.u32 %v3624, 16
  %v3770 = vrot.slane %v3768, 4
  %v3771 = vshll.u32 %v3624, 16
  %v3773 = vrot.slane %v3771, 5
  %v3774 = vor.u32 %v3770, %v3773
  %v3775 = vrot.slane %v3774, 4
  %v3777 = vshll.u32 %v3625, 16
  %v3779 = vrot.slane %v3777, 5
  %v3780 = vsel %vm3640, %v3775, %v3779
  %v3782 = vshrl.u32 %v3626, 16
  %v3784 = vrot.slane %v3782, 4
  %v3785 = vshll.u32 %v3626, 16
  %v3787 = vrot.slane %v3785, 5
  %v3788 = vor.u32 %v3784, %v3787
  %v3789 = vrot.slane %v3788, 4
  %v3791 = vshll.u32 %v3627, 16
  %v3793 = vrot.slane %v3791, 5
  %v3794 = vsel %vm3640, %v3789, %v3793
  %v3796 = vshrl.u32 %v3628, 16
  %v3798 = vrot.slane %v3796, 4
  %v3799 = vshll.u32 %v3628, 16
  %v3801 = vrot.slane %v3799, 5
  %v3802 = vor.u32 %v3798, %v3801
  %v3803 = vrot.slane %v3802, 4
  %v3805 = vshll.u32 %v3629, 16
  %v3807 = vrot.slane %v3805, 5
  %v3808 = vsel %vm3640, %v3803, %v3807
  %v3810 = vshrl.u32 %v3630, 16
  %v3812 = vrot.slane %v3810, 4
  %v3813 = vshll.u32 %v3630, 16
  %v3815 = vrot.slane %v3813, 5
  %v3816 = vor.u32 %v3812, %v3815
  %v3817 = vrot.slane %v3816, 4
  %v3819 = vshll.u32 %v3631, 16
  %v3821 = vrot.slane %v3819, 5
  %v3822 = vsel %vm3640, %v3817, %v3821
  %v3824 = vshrl.u32 %v3632, 16
  %v3826 = vrot.slane %v3824, 4
  %v3827 = vshll.u32 %v3632, 16
  %v3829 = vrot.slane %v3827, 5
  %v3830 = vor.u32 %v3826, %v3829
  %v3831 = vrot.slane %v3830, 4
  %v3833 = vshll.u32 %v3633, 16
  %v3835 = vrot.slane %v3833, 5
  %v3836 = vsel %vm3640, %v3831, %v3835
  %v3838 = vshrl.u32 %v3634, 16
  %v3840 = vrot.slane %v3838, 4
  %v3841 = vshll.u32 %v3634, 16
  %v3843 = vrot.slane %v3841, 5
  %v3844 = vor.u32 %v3840, %v3843
  %v3845 = vrot.slane %v3844, 4
  %v3847 = vshll.u32 %v3635, 16
  %v3849 = vrot.slane %v3847, 5
  %v3850 = vsel %vm3640, %v3845, %v3849
  %v3852 = vshrl.u32 %v3636, 16
  %v3854 = vrot.slane %v3852, 4
  %v3855 = vshll.u32 %v3636, 16
  %v3857 = vrot.slane %v3855, 5
  %v3858 = vor.u32 %v3854, %v3857
  %v3859 = vrot.slane %v3858, 4
  %v3861 = vshll.u32 %v3637, 16
  %v3863 = vrot.slane %v3861, 5
  %v3864 = vsel %vm3640, %v3859, %v3863
  %v3865 = vunpack.c.l.b16 %v3654
  %v3866 = vunpack.c.l.b16 %v3668
  %v3867 = vunpack.c.l.b16 %v3682
  %v3868 = vunpack.c.l.b16 %v3696
  %v3869 = vunpack.c.l.b16 %v3710
  %v3870 = vunpack.c.l.b16 %v3724
  %v3871 = vunpack.c.l.b16 %v3738
  %v3872 = vunpack.c.l.b16 %v3752
  %v3873 = vunpack.c.l.b16 %v3766
  %v3874 = vunpack.c.l.b16 %v3780
  %v3875 = vunpack.c.l.b16 %v3794
  %v3876 = vunpack.c.l.b16 %v3808
  %v3877 = vunpack.c.l.b16 %v3822
  %v3878 = vunpack.c.l.b16 %v3836
  %v3879 = vunpack.c.l.b16 %v3850
  %v3880 = vunpack.c.l.b16 %v3864
  %v3881 = vpack.c.b16 %v3866, %v3865
  %v3882 = vpack.c.b16 %v3868, %v3867
  %v3883 = vpack.c.b16 %v3870, %v3869
  %v3884 = vpack.c.b16 %v3872, %v3871
  %v3885 = vpack.c.b16 %v3874, %v3873
  %v3886 = vpack.c.b16 %v3876, %v3875
  %v3887 = vpack.c.b16 %v3878, %v3877
  %v3888 = vpack.c.b16 %v3880, %v3879
  %v3897 = vunpack.c.l.b16 %v2524
  %v3898 = vunpack.c.l.b16 %v2525
  %v3899 = vunpack.c.l.b16 %v2526
  %v3900 = vunpack.c.l.b16 %v2527
  %v3901 = vunpack.c.l.b16 %v2528
  %v3902 = vunpack.c.l.b16 %v2529
  %v3903 = vunpack.c.l.b16 %v2530
  %v3904 = vunpack.c.l.b16 %v2531
  %v3905 = vpack.c.b16 %v3898, %v3897
  %v3906 = vpack.c.b16 %v3900, %v3899
  %v3907 = vpack.c.b16 %v3902, %v3901
  %v3908 = vpack.c.b16 %v3904, %v3903
  %v3914 = vsel %vm411, %v3881, 0
  %v3917 = vsel %vm411, %v3882, 0
  %v3920 = vsel %vm411, %v3883, 0
  %v3923 = vsel %vm411, %v3884, 0
  %v3926 = vsel %vm411, %v3885, 0
  %v3929 = vsel %vm411, %v3886, 0
  %v3932 = vsel %vm411, %v3887, 0
  %v3935 = vsel %vm411, %v3888, 0
  %3937 = vmatprep.subr.bf16.mxu0 0
  %3938 = vmatpush1.bf16.msra.mxu0 %v3905
  %3939 = vmatprep.subr.bf16.mxu0 0
  %3940 = vmatpush1.bf16.msra.mxu0 %v3906
  %3941 = vmatprep.subr.bf16.mxu0 0
  %3942 = vmatpush1.bf16.msra.mxu0 %v3907
  %3943 = vmatprep.subr.bf16.mxu0 0
  %3944 = vmatpush1.bf16.msra.mxu0 %v3908
  %3945 = vmatprep.subr.bf16.mxu0 0
  %3946 = vmatpush1.bf16.msra.mxu0 0
  %3947 = vmatprep.subr.bf16.mxu0 0
  %3948 = vmatpush1.bf16.msra.mxu0 0
  %3949 = vmatprep.subr.bf16.mxu0 0
  %3950 = vmatpush1.bf16.msra.mxu0 0
  %3951 = vmatprep.subr.bf16.mxu0 0
  %3952 = vmatpush1.bf16.msra.mxu0 0
  %3953 = vmatprep.subr.bf16.mxu0 0
  %3954 = vmatpush1.bf16.msra.mxu0 0
  %3955 = vmatprep.subr.bf16.mxu0 0
  %3956 = vmatpush1.bf16.msra.mxu0 0
  %3957 = vmatprep.subr.bf16.mxu0 0
  %3958 = vmatpush1.bf16.msra.mxu0 0
  %3959 = vmatprep.subr.bf16.mxu0 0
  %3960 = vmatpush1.bf16.msra.mxu0 0
  %3961 = vmatprep.subr.bf16.mxu0 0
  %3962 = vmatpush1.bf16.msra.mxu0 0
  %3963 = vmatprep.subr.bf16.mxu0 0
  %3964 = vmatpush1.bf16.msra.mxu0 0
  %3965 = vmatprep.subr.bf16.mxu0 0
  %3966 = vmatpush1.bf16.msra.mxu0 0
  %3967 = vmatprep.subr.bf16.mxu0 0
  %3968 = vmatpush1.bf16.msra.mxu0 0
  %3969 = vmatprep.mubr.bf16.mxu0 0
  %3970 = vmatmul.mubr.bf16.gmra.mrb[0].mxu0 %v3914
  %v3971 = vpop.f32.mrb[0].mxu0
  %v3972 = vadd.f32 0.0, %v3971
  %v3973 = vpop.f32.mrb[0].mxu0
  %v3974 = vpop.f32.mrb[0].mxu0
  %v3975 = vadd.f32 0.0, %v3974
  %v3976 = vpop.f32.mrb[0].mxu0
  %3977 = vmatprep.mubr.bf16.mxu0 0
  %3978 = vmatmul.mubr.bf16.gmra.mrb[0].mxu0 %v3917
  %v3979 = vpop.f32.mrb[0].mxu0
  %v3980 = vadd.f32 0.0, %v3979
  %v3981 = vpop.f32.mrb[0].mxu0
  %v3982 = vpop.f32.mrb[0].mxu0
  %v3983 = vadd.f32 0.0, %v3982
  %v3984 = vpop.f32.mrb[0].mxu0
  %3985 = vmatprep.mubr.bf16.mxu0 0
  %3986 = vmatmul.mubr.bf16.gmra.mrb[0].mxu0 %v3920
  %v3987 = vpop.f32.mrb[0].mxu0
  %v3988 = vadd.f32 0.0, %v3987
  %v3989 = vpop.f32.mrb[0].mxu0
  %v3990 = vpop.f32.mrb[0].mxu0
  %v3991 = vadd.f32 0.0, %v3990
  %v3992 = vpop.f32.mrb[0].mxu0
  %3993 = vmatprep.mubr.bf16.mxu0 0
  %3994 = vmatmul.mubr.bf16.gmra.mrb[0].mxu0 %v3923
  %v3995 = vpop.f32.mrb[0].mxu0
  %v3996 = vadd.f32 0.0, %v3995
  %v3997 = vpop.f32.mrb[0].mxu0
  %v3998 = vpop.f32.mrb[0].mxu0
  %v3999 = vadd.f32 0.0, %v3998
  %v4000 = vpop.f32.mrb[0].mxu0
  %4001 = vmatprep.mubr.bf16.mxu0 0
  %4002 = vmatmul.mubr.bf16.gmra.mrb[0].mxu0 %v3926
  %v4003 = vpop.f32.mrb[0].mxu0
  %v4004 = vadd.f32 0.0, %v4003
  %v4005 = vpop.f32.mrb[0].mxu0
  %v4006 = vpop.f32.mrb[0].mxu0
  %v4007 = vadd.f32 0.0, %v4006
  %v4008 = vpop.f32.mrb[0].mxu0
  %4009 = vmatprep.mubr.bf16.mxu0 0
  %4010 = vmatmul.mubr.bf16.gmra.mrb[0].mxu0 %v3929
  %v4011 = vpop.f32.mrb[0].mxu0
  %v4012 = vadd.f32 0.0, %v4011
  %v4013 = vpop.f32.mrb[0].mxu0
  %v4014 = vpop.f32.mrb[0].mxu0
  %v4015 = vadd.f32 0.0, %v4014
  %v4016 = vpop.f32.mrb[0].mxu0
  %4017 = vmatprep.mubr.bf16.mxu0 0
  %4018 = vmatmul.mubr.bf16.gmra.mrb[0].mxu0 %v3932
  %v4019 = vpop.f32.mrb[0].mxu0
  %v4020 = vadd.f32 0.0, %v4019
  %v4021 = vpop.f32.mrb[0].mxu0
  %v4022 = vpop.f32.mrb[0].mxu0
  %v4023 = vadd.f32 0.0, %v4022
  %v4024 = vpop.f32.mrb[0].mxu0
  %4025 = vmatprep.mubr.bf16.mxu0 0
  %4026 = vmatmul.mubr.bf16.gmra.mrb[0].mxu0 %v3935
  %v4027 = vpop.f32.mrb[0].mxu0
  %v4028 = vadd.f32 0.0, %v4027
  %v4029 = vpop.f32.mrb[0].mxu0
  %v4030 = vpop.f32.mrb[0].mxu0
  %v4031 = vadd.f32 0.0, %v4030
  %v4032 = vpop.f32.mrb[0].mxu0
  %4033 = vdwg.mxu0
  %4034 = vrot.lane.b32.xlu0 %v3271, 16
  %v4035 = vpop.permute.xlu0 %4034
  %4036 = vrot.lane.b32.xlu0 %v3278, 16
  %v4037 = vpop.permute.xlu0 %4036
  %4039 = vrot.lane.b32.xlu0 %v3065, 32
  %v4040 = vpop.permute.xlu0 %4039
  %4041 = vrot.lane.b32.xlu0 %v3088, 48
  %v4042 = vpop.permute.xlu0 %4041
  %v4044 = vsel %vm296, %v3073, %v4035
  %v4046 = vsel %vm296, %v3081, %v4037
  %v4048 = vsel %vm311, %v4044, %v4040
  %v4049 = vsel %vm311, %v4046, %v4040
  %v4051 = vsel %vm328, %v4048, %v4042
  %v4052 = vsel %vm328, %v4049, %v4042
  %v4055 = vunpack.c.l.b16 %v4051
  %v4056 = vunpack.c.l.b16 %v4052
  %v4057 = vpack.c.b16 %v3423, %v3422
  %v4058 = vpack.c.b16 %v3425, %v3424
  %v4059 = vpack.c.b16 %v3427, %v3426
  %v4060 = vpack.c.b16 %v4055, %v3428
  %v4061 = vpack.c.b16 %v3431, %v3430
  %v4062 = vpack.c.b16 %v3433, %v3432
  %v4063 = vpack.c.b16 %v3435, %v3434
  %v4064 = vpack.c.b16 %v4056, %v3436
  %v4073 = vunpack.c.l.b16 %v2532
  %v4074 = vunpack.c.l.b16 %v2533
  %v4075 = vunpack.c.l.b16 %v2534
  %v4076 = vunpack.c.l.b16 %v2535
  %v4077 = vunpack.c.l.b16 %v2536
  %v4078 = vunpack.c.l.b16 %v2537
  %v4079 = vunpack.c.l.b16 %v2538
  %v4080 = vunpack.c.l.b16 %v2539
  %v4081 = vpack.c.b16 %v4074, %v4073
  %v4082 = vpack.c.b16 %v4076, %v4075
  %v4083 = vpack.c.b16 %v4078, %v4077
  %v4084 = vpack.c.b16 %v4080, %v4079
  %v4090 = vsel %vm411, %v4057, 0
  %v4093 = vsel %vm411, %v4058, 0
  %v4096 = vsel %vm411, %v4059, 0
  %v4099 = vsel %vm411, %v4060, 0
  %v4102 = vsel %vm411, %v4061, 0
  %v4105 = vsel %vm411, %v4062, 0
  %v4108 = vsel %vm411, %v4063, 0
  %v4111 = vsel %vm411, %v4064, 0
  %4113 = vmatprep.subr.bf16.mxu0 0
  %4114 = vmatpush1.bf16.msra.mxu0 %v4081
  %4115 = vmatprep.subr.bf16.mxu0 0
  %4116 = vmatpush1.bf16.msra.mxu0 %v4082
  %4117 = vmatprep.subr.bf16.mxu0 0
  %4118 = vmatpush1.bf16.msra.mxu0 %v4083
  %4119 = vmatprep.subr.bf16.mxu0 0
  %4120 = vmatpush1.bf16.msra.mxu0 %v4084
  %4121 = vmatprep.subr.bf16.mxu0 0
  %4122 = vmatpush1.bf16.msra.mxu0 0
  %4123 = vmatprep.subr.bf16.mxu0 0
  %4124 = vmatpush1.bf16.msra.mxu0 0
  %4125 = vmatprep.subr.bf16.mxu0 0
  %4126 = vmatpush1.bf16.msra.mxu0 0
  %4127 = vmatprep.subr.bf16.mxu0 0
  %4128 = vmatpush1.bf16.msra.mxu0 0
  %4129 = vmatprep.subr.bf16.mxu0 0
  %4130 = vmatpush1.bf16.msra.mxu0 0
  %4131 = vmatprep.subr.bf16.mxu0 0
  %4132 = vmatpush1.bf16.msra.mxu0 0
  %4133 = vmatprep.subr.bf16.mxu0 0
  %4134 = vmatpush1.bf16.msra.mxu0 0
  %4135 = vmatprep.subr.bf16.mxu0 0
  %4136 = vmatpush1.bf16.msra.mxu0 0
  %4137 = vmatprep.subr.bf16.mxu0 0
  %4138 = vmatpush1.bf16.msra.mxu0 0
  %4139 = vmatprep.subr.bf16.mxu0 0
  %4140 = vmatpush1.bf16.msra.mxu0 0
  %4141 = vmatprep.subr.bf16.mxu0 0
  %4142 = vmatpush1.bf16.msra.mxu0 0
  %4143 = vmatprep.subr.bf16.mxu0 0
  %4144 = vmatpush1.bf16.msra.mxu0 0
  %4145 = vmatprep.mubr.bf16.mxu0 0
  %4146 = vmatmul.mubr.bf16.gmra.mrb[0].mxu0 %v4090
  %v4147 = vpop.f32.mrb[0].mxu0
  %v4148 = vadd.f32 0.0, %v4147
  %v4149 = vpop.f32.mrb[0].mxu0
  %v4150 = vpop.f32.mrb[0].mxu0
  %v4151 = vadd.f32 0.0, %v4150
  %v4152 = vpop.f32.mrb[0].mxu0
  %4153 = vmatprep.mubr.bf16.mxu0 0
  %4154 = vmatmul.mubr.bf16.gmra.mrb[0].mxu0 %v4093
  %v4155 = vpop.f32.mrb[0].mxu0
  %v4156 = vadd.f32 0.0, %v4155
  %v4157 = vpop.f32.mrb[0].mxu0
  %v4158 = vpop.f32.mrb[0].mxu0
  %v4159 = vadd.f32 0.0, %v4158
  %v4160 = vpop.f32.mrb[0].mxu0
  %4161 = vmatprep.mubr.bf16.mxu0 0
  %4162 = vmatmul.mubr.bf16.gmra.mrb[0].mxu0 %v4096
  %v4163 = vpop.f32.mrb[0].mxu0
  %v4164 = vadd.f32 0.0, %v4163
  %v4165 = vpop.f32.mrb[0].mxu0
  %v4166 = vpop.f32.mrb[0].mxu0
  %v4167 = vadd.f32 0.0, %v4166
  %v4168 = vpop.f32.mrb[0].mxu0
  %4169 = vmatprep.mubr.bf16.mxu0 0
  %4170 = vmatmul.mubr.bf16.gmra.mrb[0].mxu0 %v4099
  %v4171 = vpop.f32.mrb[0].mxu0
  %v4172 = vadd.f32 0.0, %v4171
  %v4173 = vpop.f32.mrb[0].mxu0
  %v4174 = vpop.f32.mrb[0].mxu0
  %v4175 = vadd.f32 0.0, %v4174
  %v4176 = vpop.f32.mrb[0].mxu0
  %4177 = vmatprep.mubr.bf16.mxu0 0
  %4178 = vmatmul.mubr.bf16.gmra.mrb[0].mxu0 %v4102
  %v4179 = vpop.f32.mrb[0].mxu0
  %v4180 = vadd.f32 0.0, %v4179
  %v4181 = vpop.f32.mrb[0].mxu0
  %v4182 = vpop.f32.mrb[0].mxu0
  %v4183 = vadd.f32 0.0, %v4182
  %v4184 = vpop.f32.mrb[0].mxu0
  %4185 = vmatprep.mubr.bf16.mxu0 0
  %4186 = vmatmul.mubr.bf16.gmra.mrb[0].mxu0 %v4105
  %v4187 = vpop.f32.mrb[0].mxu0
  %v4188 = vadd.f32 0.0, %v4187
  %v4189 = vpop.f32.mrb[0].mxu0
  %v4190 = vpop.f32.mrb[0].mxu0
  %v4191 = vadd.f32 0.0, %v4190
  %v4192 = vpop.f32.mrb[0].mxu0
  %4193 = vmatprep.mubr.bf16.mxu0 0
  %4194 = vmatmul.mubr.bf16.gmra.mrb[0].mxu0 %v4108
  %v4195 = vpop.f32.mrb[0].mxu0
  %v4196 = vadd.f32 0.0, %v4195
  %v4197 = vpop.f32.mrb[0].mxu0
  %v4198 = vpop.f32.mrb[0].mxu0
  %v4199 = vadd.f32 0.0, %v4198
  %v4200 = vpop.f32.mrb[0].mxu0
  %4201 = vmatprep.mubr.bf16.mxu0 0
  %4202 = vmatmul.mubr.bf16.gmra.mrb[0].mxu0 %v4111
  %v4203 = vpop.f32.mrb[0].mxu0
  %v4204 = vadd.f32 0.0, %v4203
  %v4205 = vpop.f32.mrb[0].mxu0
  %v4206 = vpop.f32.mrb[0].mxu0
  %v4207 = vadd.f32 0.0, %v4206
  %v4208 = vpop.f32.mrb[0].mxu0
  %4209 = vdwg.mxu0
  %v4210 = vunpack.c.h.b16 %v4051
  %v4211 = vunpack.c.h.b16 %v4052
  %v4212 = vpack.c.b16 %v4055, %v4055
  %v4213 = vpack.c.b16 %v4210, %v4210
  %v4214 = vpack.c.b16 %v4056, %v4056
  %v4215 = vpack.c.b16 %v4211, %v4211
  %v4217 = vshrl.u32 %v4212, 16
  %v4219 = vrot.slane %v4217, 4
  %v4220 = vshll.u32 %v4212, 16
  %v4222 = vrot.slane %v4220, 5
  %v4223 = vor.u32 %v4219, %v4222
  %v4224 = vrot.slane %v4223, 4
  %v4226 = vshll.u32 %v4213, 16
  %v4228 = vrot.slane %v4226, 5
  %v4229 = vsel %vm3640, %v4224, %v4228
  %v4231 = vshrl.u32 %v4214, 16
  %v4233 = vrot.slane %v4231, 4
  %v4234 = vshll.u32 %v4214, 16
  %v4236 = vrot.slane %v4234, 5
  %v4237 = vor.u32 %v4233, %v4236
  %v4238 = vrot.slane %v4237, 4
  %v4240 = vshll.u32 %v4215, 16
  %v4242 = vrot.slane %v4240, 5
  %v4243 = vsel %vm3640, %v4238, %v4242
  %v4244 = vunpack.c.l.b16 %v4229
  %v4245 = vunpack.c.l.b16 %v4243
  %v4246 = vpack.c.b16 %v3867, %v3866
  %v4247 = vpack.c.b16 %v3869, %v3868
  %v4248 = vpack.c.b16 %v3871, %v3870
  %v4249 = vpack.c.b16 %v4244, %v3872
  %v4250 = vpack.c.b16 %v3875, %v3874
  %v4251 = vpack.c.b16 %v3877, %v3876
  %v4252 = vpack.c.b16 %v3879, %v3878
  %v4253 = vpack.c.b16 %v4245, %v3880
  %v4262 = vunpack.c.l.b16 %v2540
  %v4263 = vunpack.c.l.b16 %v2541
  %v4264 = vunpack.c.l.b16 %v2542
  %v4265 = vunpack.c.l.b16 %v2543
  %v4266 = vunpack.c.l.b16 %v2544
  %v4267 = vunpack.c.l.b16 %v2545
  %v4268 = vunpack.c.l.b16 %v2546
  %v4269 = vunpack.c.l.b16 %v2547
  %v4270 = vpack.c.b16 %v4263, %v4262
  %v4271 = vpack.c.b16 %v4265, %v4264
  %v4272 = vpack.c.b16 %v4267, %v4266
  %v4273 = vpack.c.b16 %v4269, %v4268
  %v4279 = vsel %vm411, %v4246, 0
  %v4282 = vsel %vm411, %v4247, 0
  %v4285 = vsel %vm411, %v4248, 0
  %v4288 = vsel %vm411, %v4249, 0
  %v4291 = vsel %vm411, %v4250, 0
  %v4294 = vsel %vm411, %v4251, 0
  %v4297 = vsel %vm411, %v4252, 0
  %v4300 = vsel %vm411, %v4253, 0
  %4302 = vmatprep.subr.bf16.mxu0 0
  %4303 = vmatpush1.bf16.msra.mxu0 %v4270
  %4304 = vmatprep.subr.bf16.mxu0 0
  %4305 = vmatpush1.bf16.msra.mxu0 %v4271
  %4306 = vmatprep.subr.bf16.mxu0 0
  %4307 = vmatpush1.bf16.msra.mxu0 %v4272
  %4308 = vmatprep.subr.bf16.mxu0 0
  %4309 = vmatpush1.bf16.msra.mxu0 %v4273
  %4310 = vmatprep.subr.bf16.mxu0 0
  %4311 = vmatpush1.bf16.msra.mxu0 0
  %4312 = vmatprep.subr.bf16.mxu0 0
  %4313 = vmatpush1.bf16.msra.mxu0 0
  %4314 = vmatprep.subr.bf16.mxu0 0
  %4315 = vmatpush1.bf16.msra.mxu0 0
  %4316 = vmatprep.subr.bf16.mxu0 0
  %4317 = vmatpush1.bf16.msra.mxu0 0
  %4318 = vmatprep.subr.bf16.mxu0 0
  %4319 = vmatpush1.bf16.msra.mxu0 0
  %4320 = vmatprep.subr.bf16.mxu0 0
  %4321 = vmatpush1.bf16.msra.mxu0 0
  %4322 = vmatprep.subr.bf16.mxu0 0
  %4323 = vmatpush1.bf16.msra.mxu0 0
  %4324 = vmatprep.subr.bf16.mxu0 0
  %4325 = vmatpush1.bf16.msra.mxu0 0
  %4326 = vmatprep.subr.bf16.mxu0 0
  %4327 = vmatpush1.bf16.msra.mxu0 0
  %4328 = vmatprep.subr.bf16.mxu0 0
  %4329 = vmatpush1.bf16.msra.mxu0 0
  %4330 = vmatprep.subr.bf16.mxu0 0
  %4331 = vmatpush1.bf16.msra.mxu0 0
  %4332 = vmatprep.subr.bf16.mxu0 0
  %4333 = vmatpush1.bf16.msra.mxu0 0
  %4334 = vmatprep.mubr.bf16.mxu0 0
  %4335 = vmatmul.mubr.bf16.gmra.mrb[0].mxu0 %v4279
  %v4336 = vpop.f32.mrb[0].mxu0
  %v4337 = vadd.f32 0.0, %v4336
  %v4338 = vpop.f32.mrb[0].mxu0
  %v4339 = vpop.f32.mrb[0].mxu0
  %v4340 = vadd.f32 0.0, %v4339
  %v4341 = vpop.f32.mrb[0].mxu0
  %4342 = vmatprep.mubr.bf16.mxu0 0
  %4343 = vmatmul.mubr.bf16.gmra.mrb[0].mxu0 %v4282
  %v4344 = vpop.f32.mrb[0].mxu0
  %v4345 = vadd.f32 0.0, %v4344
  %v4346 = vpop.f32.mrb[0].mxu0
  %v4347 = vpop.f32.mrb[0].mxu0
  %v4348 = vadd.f32 0.0, %v4347
  %v4349 = vpop.f32.mrb[0].mxu0
  %4350 = vmatprep.mubr.bf16.mxu0 0
  %4351 = vmatmul.mubr.bf16.gmra.mrb[0].mxu0 %v4285
  %v4352 = vpop.f32.mrb[0].mxu0
  %v4353 = vadd.f32 0.0, %v4352
  %v4354 = vpop.f32.mrb[0].mxu0
  %v4355 = vpop.f32.mrb[0].mxu0
  %v4356 = vadd.f32 0.0, %v4355
  %v4357 = vpop.f32.mrb[0].mxu0
  %4358 = vmatprep.mubr.bf16.mxu0 0
  %4359 = vmatmul.mubr.bf16.gmra.mrb[0].mxu0 %v4288
  %v4360 = vpop.f32.mrb[0].mxu0
  %v4361 = vadd.f32 0.0, %v4360
  %v4362 = vpop.f32.mrb[0].mxu0
  %v4363 = vpop.f32.mrb[0].mxu0
  %v4364 = vadd.f32 0.0, %v4363
  %v4365 = vpop.f32.mrb[0].mxu0
  %4366 = vmatprep.mubr.bf16.mxu0 0
  %4367 = vmatmul.mubr.bf16.gmra.mrb[0].mxu0 %v4291
  %v4368 = vpop.f32.mrb[0].mxu0
  %v4369 = vadd.f32 0.0, %v4368
  %v4370 = vpop.f32.mrb[0].mxu0
  %v4371 = vpop.f32.mrb[0].mxu0
  %v4372 = vadd.f32 0.0, %v4371
  %v4373 = vpop.f32.mrb[0].mxu0
  %4374 = vmatprep.mubr.bf16.mxu0 0
  %4375 = vmatmul.mubr.bf16.gmra.mrb[0].mxu0 %v4294
  %v4376 = vpop.f32.mrb[0].mxu0
  %v4377 = vadd.f32 0.0, %v4376
  %v4378 = vpop.f32.mrb[0].mxu0
  %v4379 = vpop.f32.mrb[0].mxu0
  %v4380 = vadd.f32 0.0, %v4379
  %v4381 = vpop.f32.mrb[0].mxu0
  %4382 = vmatprep.mubr.bf16.mxu0 0
  %4383 = vmatmul.mubr.bf16.gmra.mrb[0].mxu0 %v4297
  %v4384 = vpop.f32.mrb[0].mxu0
  %v4385 = vadd.f32 0.0, %v4384
  %v4386 = vpop.f32.mrb[0].mxu0
  %v4387 = vpop.f32.mrb[0].mxu0
  %v4388 = vadd.f32 0.0, %v4387
  %v4389 = vpop.f32.mrb[0].mxu0
  %4390 = vmatprep.mubr.bf16.mxu0 0
  %4391 = vmatmul.mubr.bf16.gmra.mrb[0].mxu0 %v4300
  %v4392 = vpop.f32.mrb[0].mxu0
  %v4393 = vadd.f32 0.0, %v4392
  %v4394 = vpop.f32.mrb[0].mxu0
  %v4395 = vpop.f32.mrb[0].mxu0
  %v4396 = vadd.f32 0.0, %v4395
  %v4397 = vpop.f32.mrb[0].mxu0
  %4398 = vdwg.mxu0
  %vm4399 = vcmask 64512
  %v4400 = vsel %vm4399, %v3528, 0.0
  %v4401 = vsel %vm4399, %v3531, 0.0
  %v4402 = vadd.f32 %v4400, %v4401
  %v4403 = vsel %vm4399, %v3536, 0.0
  %v4404 = vadd.f32 %v4402, %v4403
  %v4405 = vsel %vm4399, %v3539, 0.0
  %v4406 = vadd.f32 %v4404, %v4405
  %v4407 = vsel %vm4399, %v3544, 0.0
  %v4408 = vadd.f32 %v4406, %v4407
  %v4409 = vsel %vm4399, %v3547, 0.0
  %v4410 = vadd.f32 %v4408, %v4409
  %v4411 = vsel %vm4399, %v3552, 0.0
  %v4412 = vadd.f32 %v4410, %v4411
  %v4413 = vsel %vm4399, %v3555, 0.0
  %v4414 = vadd.f32 %v4412, %v4413
  %v4415 = vsel %vm4399, %v3560, 0.0
  %v4416 = vadd.f32 %v4414, %v4415
  %v4417 = vsel %vm4399, %v3563, 0.0
  %v4418 = vadd.f32 %v4416, %v4417
  %v4419 = vsel %vm4399, %v3568, 0.0
  %v4420 = vadd.f32 %v4418, %v4419
  %v4421 = vsel %vm4399, %v3571, 0.0
  %v4422 = vadd.f32 %v4420, %v4421
  %v4423 = vsel %vm4399, %v3576, 0.0
  %v4424 = vadd.f32 %v4422, %v4423
  %v4425 = vsel %vm4399, %v3579, 0.0
  %v4426 = vadd.f32 %v4424, %v4425
  %v4427 = vsel %vm4399, %v3584, 0.0
  %v4428 = vadd.f32 %v4426, %v4427
  %v4429 = vsel %vm4399, %v3587, 0.0
  %v4430 = vadd.f32 %v4428, %v4429
  %v4431 = vrot.slane %v4430, 4
  %v4432 = vadd.f32 %v4430, %v4431
  %v4433 = vrot.slane %v4432, 2
  %v4434 = vadd.f32 %v4432, %v4433
  %v4435 = vrot.slane %v4434, 1
  %v4436 = vadd.f32 %v4434, %v4435
  %v4437 = vmul.f32 %v3528, %v3528
  %v4438 = vmul.f32 %v3531, %v3531
  %v4439 = vmul.f32 %v3536, %v3536
  %v4440 = vmul.f32 %v3539, %v3539
  %v4441 = vmul.f32 %v3544, %v3544
  %v4442 = vmul.f32 %v3547, %v3547
  %v4443 = vmul.f32 %v3552, %v3552
  %v4444 = vmul.f32 %v3555, %v3555
  %v4445 = vmul.f32 %v3560, %v3560
  %v4446 = vmul.f32 %v3563, %v3563
  %v4447 = vmul.f32 %v3568, %v3568
  %v4448 = vmul.f32 %v3571, %v3571
  %v4449 = vmul.f32 %v3576, %v3576
  %v4450 = vmul.f32 %v3579, %v3579
  %v4451 = vmul.f32 %v3584, %v3584
  %v4452 = vmul.f32 %v3587, %v3587
  %v4453 = vsel %vm4399, %v4437, 0.0
  %v4454 = vsel %vm4399, %v4438, 0.0
  %v4455 = vadd.f32 %v4453, %v4454
  %v4456 = vsel %vm4399, %v4439, 0.0
  %v4457 = vadd.f32 %v4455, %v4456
  %v4458 = vsel %vm4399, %v4440, 0.0
  %v4459 = vadd.f32 %v4457, %v4458
  %v4460 = vsel %vm4399, %v4441, 0.0
  %v4461 = vadd.f32 %v4459, %v4460
  %v4462 = vsel %vm4399, %v4442, 0.0
  %v4463 = vadd.f32 %v4461, %v4462
  %v4464 = vsel %vm4399, %v4443, 0.0
  %v4465 = vadd.f32 %v4463, %v4464
  %v4466 = vsel %vm4399, %v4444, 0.0
  %v4467 = vadd.f32 %v4465, %v4466
  %v4468 = vsel %vm4399, %v4445, 0.0
  %v4469 = vadd.f32 %v4467, %v4468
  %v4470 = vsel %vm4399, %v4446, 0.0
  %v4471 = vadd.f32 %v4469, %v4470
  %v4472 = vsel %vm4399, %v4447, 0.0
  %v4473 = vadd.f32 %v4471, %v4472
  %v4474 = vsel %vm4399, %v4448, 0.0
  %v4475 = vadd.f32 %v4473, %v4474
  %v4476 = vsel %vm4399, %v4449, 0.0
  %v4477 = vadd.f32 %v4475, %v4476
  %v4478 = vsel %vm4399, %v4450, 0.0
  %v4479 = vadd.f32 %v4477, %v4478
  %v4480 = vsel %vm4399, %v4451, 0.0
  %v4481 = vadd.f32 %v4479, %v4480
  %v4482 = vsel %vm4399, %v4452, 0.0
  %v4483 = vadd.f32 %v4481, %v4482
  %v4484 = vrot.slane %v4483, 4
  %v4485 = vadd.f32 %v4483, %v4484
  %v4486 = vrot.slane %v4485, 2
  %v4487 = vadd.f32 %v4485, %v4486
  %v4488 = vrot.slane %v4487, 1
  %v4489 = vadd.f32 %v4487, %v4488
  %v4490 = vsel %vm4399, %v3972, 0.0
  %v4491 = vsel %vm4399, %v3975, 0.0
  %v4492 = vadd.f32 %v4490, %v4491
  %v4493 = vsel %vm4399, %v3980, 0.0
  %v4494 = vadd.f32 %v4492, %v4493
  %v4495 = vsel %vm4399, %v3983, 0.0
  %v4496 = vadd.f32 %v4494, %v4495
  %v4497 = vsel %vm4399, %v3988, 0.0
  %v4498 = vadd.f32 %v4496, %v4497
  %v4499 = vsel %vm4399, %v3991, 0.0
  %v4500 = vadd.f32 %v4498, %v4499
  %v4501 = vsel %vm4399, %v3996, 0.0
  %v4502 = vadd.f32 %v4500, %v4501
  %v4503 = vsel %vm4399, %v3999, 0.0
  %v4504 = vadd.f32 %v4502, %v4503
  %v4505 = vsel %vm4399, %v4004, 0.0
  %v4506 = vadd.f32 %v4504, %v4505
  %v4507 = vsel %vm4399, %v4007, 0.0
  %v4508 = vadd.f32 %v4506, %v4507
  %v4509 = vsel %vm4399, %v4012, 0.0
  %v4510 = vadd.f32 %v4508, %v4509
  %v4511 = vsel %vm4399, %v4015, 0.0
  %v4512 = vadd.f32 %v4510, %v4511
  %v4513 = vsel %vm4399, %v4020, 0.0
  %v4514 = vadd.f32 %v4512, %v4513
  %v4515 = vsel %vm4399, %v4023, 0.0
  %v4516 = vadd.f32 %v4514, %v4515
  %v4517 = vsel %vm4399, %v4028, 0.0
  %v4518 = vadd.f32 %v4516, %v4517
  %v4519 = vsel %vm4399, %v4031, 0.0
  %v4520 = vadd.f32 %v4518, %v4519
  %v4521 = vrot.slane %v4520, 4
  %v4522 = vadd.f32 %v4520, %v4521
  %v4523 = vrot.slane %v4522, 2
  %v4524 = vadd.f32 %v4522, %v4523
  %v4525 = vrot.slane %v4524, 1
  %v4526 = vadd.f32 %v4524, %v4525
  %v4527 = vadd.f32 %v4436, %v4526
  %v4528 = vmul.f32 %v3972, %v3972
  %v4529 = vmul.f32 %v3975, %v3975
  %v4530 = vmul.f32 %v3980, %v3980
  %v4531 = vmul.f32 %v3983, %v3983
  %v4532 = vmul.f32 %v3988, %v3988
  %v4533 = vmul.f32 %v3991, %v3991
  %v4534 = vmul.f32 %v3996, %v3996
  %v4535 = vmul.f32 %v3999, %v3999
  %v4536 = vmul.f32 %v4004, %v4004
  %v4537 = vmul.f32 %v4007, %v4007
  %v4538 = vmul.f32 %v4012, %v4012
  %v4539 = vmul.f32 %v4015, %v4015
  %v4540 = vmul.f32 %v4020, %v4020
  %v4541 = vmul.f32 %v4023, %v4023
  %v4542 = vmul.f32 %v4028, %v4028
  %v4543 = vmul.f32 %v4031, %v4031
  %v4544 = vsel %vm4399, %v4528, 0.0
  %v4545 = vsel %vm4399, %v4529, 0.0
  %v4546 = vadd.f32 %v4544, %v4545
  %v4547 = vsel %vm4399, %v4530, 0.0
  %v4548 = vadd.f32 %v4546, %v4547
  %v4549 = vsel %vm4399, %v4531, 0.0
  %v4550 = vadd.f32 %v4548, %v4549
  %v4551 = vsel %vm4399, %v4532, 0.0
  %v4552 = vadd.f32 %v4550, %v4551
  %v4553 = vsel %vm4399, %v4533, 0.0
  %v4554 = vadd.f32 %v4552, %v4553
  %v4555 = vsel %vm4399, %v4534, 0.0
  %v4556 = vadd.f32 %v4554, %v4555
  %v4557 = vsel %vm4399, %v4535, 0.0
  %v4558 = vadd.f32 %v4556, %v4557
  %v4559 = vsel %vm4399, %v4536, 0.0
  %v4560 = vadd.f32 %v4558, %v4559
  %v4561 = vsel %vm4399, %v4537, 0.0
  %v4562 = vadd.f32 %v4560, %v4561
  %v4563 = vsel %vm4399, %v4538, 0.0
  %v4564 = vadd.f32 %v4562, %v4563
  %v4565 = vsel %vm4399, %v4539, 0.0
  %v4566 = vadd.f32 %v4564, %v4565
  %v4567 = vsel %vm4399, %v4540, 0.0
  %v4568 = vadd.f32 %v4566, %v4567
  %v4569 = vsel %vm4399, %v4541, 0.0
  %v4570 = vadd.f32 %v4568, %v4569
  %v4571 = vsel %vm4399, %v4542, 0.0
  %v4572 = vadd.f32 %v4570, %v4571
  %v4573 = vsel %vm4399, %v4543, 0.0
  %v4574 = vadd.f32 %v4572, %v4573
  %v4575 = vrot.slane %v4574, 4
  %v4576 = vadd.f32 %v4574, %v4575
  %v4577 = vrot.slane %v4576, 2
  %v4578 = vadd.f32 %v4576, %v4577
  %v4579 = vrot.slane %v4578, 1
  %v4580 = vadd.f32 %v4578, %v4579
  %v4581 = vadd.f32 %v4489, %v4580
  %v4582 = vsel %vm4399, %v4148, 0.0
  %v4583 = vsel %vm4399, %v4151, 0.0
  %v4584 = vadd.f32 %v4582, %v4583
  %v4585 = vsel %vm4399, %v4156, 0.0
  %v4586 = vadd.f32 %v4584, %v4585
  %v4587 = vsel %vm4399, %v4159, 0.0
  %v4588 = vadd.f32 %v4586, %v4587
  %v4589 = vsel %vm4399, %v4164, 0.0
  %v4590 = vadd.f32 %v4588, %v4589
  %v4591 = vsel %vm4399, %v4167, 0.0
  %v4592 = vadd.f32 %v4590, %v4591
  %v4593 = vsel %vm4399, %v4172, 0.0
  %v4594 = vadd.f32 %v4592, %v4593
  %v4595 = vsel %vm4399, %v4175, 0.0
  %v4596 = vadd.f32 %v4594, %v4595
  %v4597 = vsel %vm4399, %v4180, 0.0
  %v4598 = vadd.f32 %v4596, %v4597
  %v4599 = vsel %vm4399, %v4183, 0.0
  %v4600 = vadd.f32 %v4598, %v4599
  %v4601 = vsel %vm4399, %v4188, 0.0
  %v4602 = vadd.f32 %v4600, %v4601
  %v4603 = vsel %vm4399, %v4191, 0.0
  %v4604 = vadd.f32 %v4602, %v4603
  %v4605 = vsel %vm4399, %v4196, 0.0
  %v4606 = vadd.f32 %v4604, %v4605
  %v4607 = vsel %vm4399, %v4199, 0.0
  %v4608 = vadd.f32 %v4606, %v4607
  %v4609 = vsel %vm4399, %v4204, 0.0
  %v4610 = vadd.f32 %v4608, %v4609
  %v4611 = vsel %vm4399, %v4207, 0.0
  %v4612 = vadd.f32 %v4610, %v4611
  %v4613 = vrot.slane %v4612, 4
  %v4614 = vadd.f32 %v4612, %v4613
  %v4615 = vrot.slane %v4614, 2
  %v4616 = vadd.f32 %v4614, %v4615
  %v4617 = vrot.slane %v4616, 1
  %v4618 = vadd.f32 %v4616, %v4617
  %v4619 = vadd.f32 %v4527, %v4618
  %v4620 = vmul.f32 %v4148, %v4148
  %v4621 = vmul.f32 %v4151, %v4151
  %v4622 = vmul.f32 %v4156, %v4156
  %v4623 = vmul.f32 %v4159, %v4159
  %v4624 = vmul.f32 %v4164, %v4164
  %v4625 = vmul.f32 %v4167, %v4167
  %v4626 = vmul.f32 %v4172, %v4172
  %v4627 = vmul.f32 %v4175, %v4175
  %v4628 = vmul.f32 %v4180, %v4180
  %v4629 = vmul.f32 %v4183, %v4183
  %v4630 = vmul.f32 %v4188, %v4188
  %v4631 = vmul.f32 %v4191, %v4191
  %v4632 = vmul.f32 %v4196, %v4196
  %v4633 = vmul.f32 %v4199, %v4199
  %v4634 = vmul.f32 %v4204, %v4204
  %v4635 = vmul.f32 %v4207, %v4207
  %v4636 = vsel %vm4399, %v4620, 0.0
  %v4637 = vsel %vm4399, %v4621, 0.0
  %v4638 = vadd.f32 %v4636, %v4637
  %v4639 = vsel %vm4399, %v4622, 0.0
  %v4640 = vadd.f32 %v4638, %v4639
  %v4641 = vsel %vm4399, %v4623, 0.0
  %v4642 = vadd.f32 %v4640, %v4641
  %v4643 = vsel %vm4399, %v4624, 0.0
  %v4644 = vadd.f32 %v4642, %v4643
  %v4645 = vsel %vm4399, %v4625, 0.0
  %v4646 = vadd.f32 %v4644, %v4645
  %v4647 = vsel %vm4399, %v4626, 0.0
  %v4648 = vadd.f32 %v4646, %v4647
  %v4649 = vsel %vm4399, %v4627, 0.0
  %v4650 = vadd.f32 %v4648, %v4649
  %v4651 = vsel %vm4399, %v4628, 0.0
  %v4652 = vadd.f32 %v4650, %v4651
  %v4653 = vsel %vm4399, %v4629, 0.0
  %v4654 = vadd.f32 %v4652, %v4653
  %v4655 = vsel %vm4399, %v4630, 0.0
  %v4656 = vadd.f32 %v4654, %v4655
  %v4657 = vsel %vm4399, %v4631, 0.0
  %v4658 = vadd.f32 %v4656, %v4657
  %v4659 = vsel %vm4399, %v4632, 0.0
  %v4660 = vadd.f32 %v4658, %v4659
  %v4661 = vsel %vm4399, %v4633, 0.0
  %v4662 = vadd.f32 %v4660, %v4661
  %v4663 = vsel %vm4399, %v4634, 0.0
  %v4664 = vadd.f32 %v4662, %v4663
  %v4665 = vsel %vm4399, %v4635, 0.0
  %v4666 = vadd.f32 %v4664, %v4665
  %v4667 = vrot.slane %v4666, 4
  %v4668 = vadd.f32 %v4666, %v4667
  %v4669 = vrot.slane %v4668, 2
  %v4670 = vadd.f32 %v4668, %v4669
  %v4671 = vrot.slane %v4670, 1
  %v4672 = vadd.f32 %v4670, %v4671
  %v4673 = vadd.f32 %v4581, %v4672
  %v4674 = vsel %vm4399, %v4337, 0.0
  %v4675 = vsel %vm4399, %v4340, 0.0
  %v4676 = vadd.f32 %v4674, %v4675
  %v4677 = vsel %vm4399, %v4345, 0.0
  %v4678 = vadd.f32 %v4676, %v4677
  %v4679 = vsel %vm4399, %v4348, 0.0
  %v4680 = vadd.f32 %v4678, %v4679
  %v4681 = vsel %vm4399, %v4353, 0.0
  %v4682 = vadd.f32 %v4680, %v4681
  %v4683 = vsel %vm4399, %v4356, 0.0
  %v4684 = vadd.f32 %v4682, %v4683
  %v4685 = vsel %vm4399, %v4361, 0.0
  %v4686 = vadd.f32 %v4684, %v4685
  %v4687 = vsel %vm4399, %v4364, 0.0
  %v4688 = vadd.f32 %v4686, %v4687
  %v4689 = vsel %vm4399, %v4369, 0.0
  %v4690 = vadd.f32 %v4688, %v4689
  %v4691 = vsel %vm4399, %v4372, 0.0
  %v4692 = vadd.f32 %v4690, %v4691
  %v4693 = vsel %vm4399, %v4377, 0.0
  %v4694 = vadd.f32 %v4692, %v4693
  %v4695 = vsel %vm4399, %v4380, 0.0
  %v4696 = vadd.f32 %v4694, %v4695
  %v4697 = vsel %vm4399, %v4385, 0.0
  %v4698 = vadd.f32 %v4696, %v4697
  %v4699 = vsel %vm4399, %v4388, 0.0
  %v4700 = vadd.f32 %v4698, %v4699
  %v4701 = vsel %vm4399, %v4393, 0.0
  %v4702 = vadd.f32 %v4700, %v4701
  %v4703 = vsel %vm4399, %v4396, 0.0
  %v4704 = vadd.f32 %v4702, %v4703
  %v4705 = vrot.slane %v4704, 4
  %v4706 = vadd.f32 %v4704, %v4705
  %v4707 = vrot.slane %v4706, 2
  %v4708 = vadd.f32 %v4706, %v4707
  %v4709 = vrot.slane %v4708, 1
  %v4710 = vadd.f32 %v4708, %v4709
  %v4711 = vadd.f32 %v4619, %v4710
  %v4712 = vmul.f32 %v4337, %v4337
  %v4713 = vmul.f32 %v4340, %v4340
  %v4714 = vmul.f32 %v4345, %v4345
  %v4715 = vmul.f32 %v4348, %v4348
  %v4716 = vmul.f32 %v4353, %v4353
  %v4717 = vmul.f32 %v4356, %v4356
  %v4718 = vmul.f32 %v4361, %v4361
  %v4719 = vmul.f32 %v4364, %v4364
  %v4720 = vmul.f32 %v4369, %v4369
  %v4721 = vmul.f32 %v4372, %v4372
  %v4722 = vmul.f32 %v4377, %v4377
  %v4723 = vmul.f32 %v4380, %v4380
  %v4724 = vmul.f32 %v4385, %v4385
  %v4725 = vmul.f32 %v4388, %v4388
  %v4726 = vmul.f32 %v4393, %v4393
  %v4727 = vmul.f32 %v4396, %v4396
  %v4728 = vsel %vm4399, %v4712, 0.0
  %v4729 = vsel %vm4399, %v4713, 0.0
  %v4730 = vadd.f32 %v4728, %v4729
  %v4731 = vsel %vm4399, %v4714, 0.0
  %v4732 = vadd.f32 %v4730, %v4731
  %v4733 = vsel %vm4399, %v4715, 0.0
  %v4734 = vadd.f32 %v4732, %v4733
  %v4735 = vsel %vm4399, %v4716, 0.0
  %v4736 = vadd.f32 %v4734, %v4735
  %v4737 = vsel %vm4399, %v4717, 0.0
  %v4738 = vadd.f32 %v4736, %v4737
  %v4739 = vsel %vm4399, %v4718, 0.0
  %v4740 = vadd.f32 %v4738, %v4739
  %v4741 = vsel %vm4399, %v4719, 0.0
  %v4742 = vadd.f32 %v4740, %v4741
  %v4743 = vsel %vm4399, %v4720, 0.0
  %v4744 = vadd.f32 %v4742, %v4743
  %v4745 = vsel %vm4399, %v4721, 0.0
  %v4746 = vadd.f32 %v4744, %v4745
  %v4747 = vsel %vm4399, %v4722, 0.0
  %v4748 = vadd.f32 %v4746, %v4747
  %v4749 = vsel %vm4399, %v4723, 0.0
  %v4750 = vadd.f32 %v4748, %v4749
  %v4751 = vsel %vm4399, %v4724, 0.0
  %v4752 = vadd.f32 %v4750, %v4751
  %v4753 = vsel %vm4399, %v4725, 0.0
  %v4754 = vadd.f32 %v4752, %v4753
  %v4755 = vsel %vm4399, %v4726, 0.0
  %v4756 = vadd.f32 %v4754, %v4755
  %v4757 = vsel %vm4399, %v4727, 0.0
  %v4758 = vadd.f32 %v4756, %v4757
  %v4759 = vrot.slane %v4758, 4
  %v4760 = vadd.f32 %v4758, %v4759
  %v4761 = vrot.slane %v4760, 2
  %v4762 = vadd.f32 %v4760, %v4761
  %v4763 = vrot.slane %v4762, 1
  %v4764 = vadd.f32 %v4762, %v4763
  %v4765 = vadd.f32 %v4673, %v4764
  %v4766 = vrcp.pop 512.0
  %v4767 = vmul.f32 %v4711, %v4766
  %v4768 = vmul.f32 %v4765, %v4766
  %v4769 = vmul.f32 %v4767, %v4767
  %v4770 = vsub.f32 %v4768, %v4769
  %v4771 = vmax.f32 %v4770, 0.0
  %v4772 = vadd.f32 %v4771, 1e-05
  %v4773 = vrsqrt.pop %v4772
  %v4774 = vmul.f32 %v2548, %v4773
  %v4775 = vmul.f32 %v4767, %v4774
  %v4776 = vsub.f32 %v2549, %v4775
  %v4778 = vlaneseq
  %v4779 = vshrl.u32 %v4778, 7
  %v4780 = vsub.s32 0, %v4779
  %v4781 = vrot.slane %v4774, %v4780
  %v4783 = vmul.f32 %v3528, %v4781
  %v4784 = vmul.f32 %v3531, %v4781
  %v4785 = vmul.f32 %v3536, %v4781
  %v4786 = vmul.f32 %v3539, %v4781
  %v4787 = vmul.f32 %v3544, %v4781
  %v4788 = vmul.f32 %v3547, %v4781
  %v4789 = vmul.f32 %v3552, %v4781
  %v4790 = vmul.f32 %v3555, %v4781
  %v4791 = vmul.f32 %v3560, %v4781
  %v4792 = vmul.f32 %v3563, %v4781
  %v4793 = vmul.f32 %v3568, %v4781
  %v4794 = vmul.f32 %v3571, %v4781
  %v4795 = vmul.f32 %v3576, %v4781
  %v4796 = vmul.f32 %v3579, %v4781
  %v4797 = vmul.f32 %v3584, %v4781
  %v4798 = vmul.f32 %v3587, %v4781
  %v4800 = vlaneseq
  %v4801 = vshrl.u32 %v4800, 7
  %v4802 = vsub.s32 0, %v4801
  %v4803 = vrot.slane %v4776, %v4802
  %v4805 = vadd.f32 %v4783, %v4803
  %v4806 = vadd.f32 %v4784, %v4803
  %v4807 = vadd.f32 %v4785, %v4803
  %v4808 = vadd.f32 %v4786, %v4803
  %v4809 = vadd.f32 %v4787, %v4803
  %v4810 = vadd.f32 %v4788, %v4803
  %v4811 = vadd.f32 %v4789, %v4803
  %v4812 = vadd.f32 %v4790, %v4803
  %v4813 = vadd.f32 %v4791, %v4803
  %v4814 = vadd.f32 %v4792, %v4803
  %v4815 = vadd.f32 %v4793, %v4803
  %v4816 = vadd.f32 %v4794, %v4803
  %v4817 = vadd.f32 %v4795, %v4803
  %v4818 = vadd.f32 %v4796, %v4803
  %v4819 = vadd.f32 %v4797, %v4803
  %v4820 = vadd.f32 %v4798, %v4803
  %v4821 = vmul.f32 %v4805, 0.2
  %v4822 = vmul.f32 %v4806, 0.2
  %v4823 = vmul.f32 %v4807, 0.2
  %v4824 = vmul.f32 %v4808, 0.2
  %v4825 = vmul.f32 %v4809, 0.2
  %v4826 = vmul.f32 %v4810, 0.2
  %v4827 = vmul.f32 %v4811, 0.2
  %v4828 = vmul.f32 %v4812, 0.2
  %v4829 = vmul.f32 %v4813, 0.2
  %v4830 = vmul.f32 %v4814, 0.2
  %v4831 = vmul.f32 %v4815, 0.2
  %v4832 = vmul.f32 %v4816, 0.2
  %v4833 = vmul.f32 %v4817, 0.2
  %v4834 = vmul.f32 %v4818, 0.2
  %v4835 = vmul.f32 %v4819, 0.2
  %v4836 = vmul.f32 %v4820, 0.2
  %v4837 = vmax.f32 %v4805, %v4821
  %v4838 = vmax.f32 %v4806, %v4822
  %v4839 = vmax.f32 %v4807, %v4823
  %v4840 = vmax.f32 %v4808, %v4824
  %v4841 = vmax.f32 %v4809, %v4825
  %v4842 = vmax.f32 %v4810, %v4826
  %v4843 = vmax.f32 %v4811, %v4827
  %v4844 = vmax.f32 %v4812, %v4828
  %v4845 = vmax.f32 %v4813, %v4829
  %v4846 = vmax.f32 %v4814, %v4830
  %v4847 = vmax.f32 %v4815, %v4831
  %v4848 = vmax.f32 %v4816, %v4832
  %v4849 = vmax.f32 %v4817, %v4833
  %v4850 = vmax.f32 %v4818, %v4834
  %v4851 = vmax.f32 %v4819, %v4835
  %v4852 = vmax.f32 %v4820, %v4836
  %v4853 = vmul.f32 %v3972, %v4781
  %v4854 = vmul.f32 %v3975, %v4781
  %v4855 = vmul.f32 %v3980, %v4781
  %v4856 = vmul.f32 %v3983, %v4781
  %v4857 = vmul.f32 %v3988, %v4781
  %v4858 = vmul.f32 %v3991, %v4781
  %v4859 = vmul.f32 %v3996, %v4781
  %v4860 = vmul.f32 %v3999, %v4781
  %v4861 = vmul.f32 %v4004, %v4781
  %v4862 = vmul.f32 %v4007, %v4781
  %v4863 = vmul.f32 %v4012, %v4781
  %v4864 = vmul.f32 %v4015, %v4781
  %v4865 = vmul.f32 %v4020, %v4781
  %v4866 = vmul.f32 %v4023, %v4781
  %v4867 = vmul.f32 %v4028, %v4781
  %v4868 = vmul.f32 %v4031, %v4781
  %v4869 = vadd.f32 %v4853, %v4803
  %v4870 = vadd.f32 %v4854, %v4803
  %v4871 = vadd.f32 %v4855, %v4803
  %v4872 = vadd.f32 %v4856, %v4803
  %v4873 = vadd.f32 %v4857, %v4803
  %v4874 = vadd.f32 %v4858, %v4803
  %v4875 = vadd.f32 %v4859, %v4803
  %v4876 = vadd.f32 %v4860, %v4803
  %v4877 = vadd.f32 %v4861, %v4803
  %v4878 = vadd.f32 %v4862, %v4803
  %v4879 = vadd.f32 %v4863, %v4803
  %v4880 = vadd.f32 %v4864, %v4803
  %v4881 = vadd.f32 %v4865, %v4803
  %v4882 = vadd.f32 %v4866, %v4803
  %v4883 = vadd.f32 %v4867, %v4803
  %v4884 = vadd.f32 %v4868, %v4803
  %v4885 = vmul.f32 %v4869, 0.2
  %v4886 = vmul.f32 %v4870, 0.2
  %v4887 = vmul.f32 %v4871, 0.2
  %v4888 = vmul.f32 %v4872, 0.2
  %v4889 = vmul.f32 %v4873, 0.2
  %v4890 = vmul.f32 %v4874, 0.2
  %v4891 = vmul.f32 %v4875, 0.2
  %v4892 = vmul.f32 %v4876, 0.2
  %v4893 = vmul.f32 %v4877, 0.2
  %v4894 = vmul.f32 %v4878, 0.2
  %v4895 = vmul.f32 %v4879, 0.2
  %v4896 = vmul.f32 %v4880, 0.2
  %v4897 = vmul.f32 %v4881, 0.2
  %v4898 = vmul.f32 %v4882, 0.2
  %v4899 = vmul.f32 %v4883, 0.2
  %v4900 = vmul.f32 %v4884, 0.2
  %v4901 = vmax.f32 %v4869, %v4885
  %v4902 = vmax.f32 %v4870, %v4886
  %v4903 = vmax.f32 %v4871, %v4887
  %v4904 = vmax.f32 %v4872, %v4888
  %v4905 = vmax.f32 %v4873, %v4889
  %v4906 = vmax.f32 %v4874, %v4890
  %v4907 = vmax.f32 %v4875, %v4891
  %v4908 = vmax.f32 %v4876, %v4892
  %v4909 = vmax.f32 %v4877, %v4893
  %v4910 = vmax.f32 %v4878, %v4894
  %v4911 = vmax.f32 %v4879, %v4895
  %v4912 = vmax.f32 %v4880, %v4896
  %v4913 = vmax.f32 %v4881, %v4897
  %v4914 = vmax.f32 %v4882, %v4898
  %v4915 = vmax.f32 %v4883, %v4899
  %v4916 = vmax.f32 %v4884, %v4900
  %v4917 = vmul.f32 %v4148, %v4781
  %v4918 = vmul.f32 %v4151, %v4781
  %v4919 = vmul.f32 %v4156, %v4781
  %v4920 = vmul.f32 %v4159, %v4781
  %v4921 = vmul.f32 %v4164, %v4781
  %v4922 = vmul.f32 %v4167, %v4781
  %v4923 = vmul.f32 %v4172, %v4781
  %v4924 = vmul.f32 %v4175, %v4781
  %v4925 = vmul.f32 %v4180, %v4781
  %v4926 = vmul.f32 %v4183, %v4781
  %v4927 = vmul.f32 %v4188, %v4781
  %v4928 = vmul.f32 %v4191, %v4781
  %v4929 = vmul.f32 %v4196, %v4781
  %v4930 = vmul.f32 %v4199, %v4781
  %v4931 = vmul.f32 %v4204, %v4781
  %v4932 = vmul.f32 %v4207, %v4781
  %v4933 = vadd.f32 %v4917, %v4803
  %v4934 = vadd.f32 %v4918, %v4803
  %v4935 = vadd.f32 %v4919, %v4803
  %v4936 = vadd.f32 %v4920, %v4803
  %v4937 = vadd.f32 %v4921, %v4803
  %v4938 = vadd.f32 %v4922, %v4803
  %v4939 = vadd.f32 %v4923, %v4803
  %v4940 = vadd.f32 %v4924, %v4803
  %v4941 = vadd.f32 %v4925, %v4803
  %v4942 = vadd.f32 %v4926, %v4803
  %v4943 = vadd.f32 %v4927, %v4803
  %v4944 = vadd.f32 %v4928, %v4803
  %v4945 = vadd.f32 %v4929, %v4803
  %v4946 = vadd.f32 %v4930, %v4803
  %v4947 = vadd.f32 %v4931, %v4803
  %v4948 = vadd.f32 %v4932, %v4803
  %v4949 = vmul.f32 %v4933, 0.2
  %v4950 = vmul.f32 %v4934, 0.2
  %v4951 = vmul.f32 %v4935, 0.2
  %v4952 = vmul.f32 %v4936, 0.2
  %v4953 = vmul.f32 %v4937, 0.2
  %v4954 = vmul.f32 %v4938, 0.2
  %v4955 = vmul.f32 %v4939, 0.2
  %v4956 = vmul.f32 %v4940, 0.2
  %v4957 = vmul.f32 %v4941, 0.2
  %v4958 = vmul.f32 %v4942, 0.2
  %v4959 = vmul.f32 %v4943, 0.2
  %v4960 = vmul.f32 %v4944, 0.2
  %v4961 = vmul.f32 %v4945, 0.2
  %v4962 = vmul.f32 %v4946, 0.2
  %v4963 = vmul.f32 %v4947, 0.2
  %v4964 = vmul.f32 %v4948, 0.2
  %v4965 = vmax.f32 %v4933, %v4949
  %v4966 = vmax.f32 %v4934, %v4950
  %v4967 = vmax.f32 %v4935, %v4951
  %v4968 = vmax.f32 %v4936, %v4952
  %v4969 = vmax.f32 %v4937, %v4953
  %v4970 = vmax.f32 %v4938, %v4954
  %v4971 = vmax.f32 %v4939, %v4955
  %v4972 = vmax.f32 %v4940, %v4956
  %v4973 = vmax.f32 %v4941, %v4957
  %v4974 = vmax.f32 %v4942, %v4958
  %v4975 = vmax.f32 %v4943, %v4959
  %v4976 = vmax.f32 %v4944, %v4960
  %v4977 = vmax.f32 %v4945, %v4961
  %v4978 = vmax.f32 %v4946, %v4962
  %v4979 = vmax.f32 %v4947, %v4963
  %v4980 = vmax.f32 %v4948, %v4964
  %v4981 = vmul.f32 %v4337, %v4781
  %v4982 = vmul.f32 %v4340, %v4781
  %v4983 = vmul.f32 %v4345, %v4781
  %v4984 = vmul.f32 %v4348, %v4781
  %v4985 = vmul.f32 %v4353, %v4781
  %v4986 = vmul.f32 %v4356, %v4781
  %v4987 = vmul.f32 %v4361, %v4781
  %v4988 = vmul.f32 %v4364, %v4781
  %v4989 = vmul.f32 %v4369, %v4781
  %v4990 = vmul.f32 %v4372, %v4781
  %v4991 = vmul.f32 %v4377, %v4781
  %v4992 = vmul.f32 %v4380, %v4781
  %v4993 = vmul.f32 %v4385, %v4781
  %v4994 = vmul.f32 %v4388, %v4781
  %v4995 = vmul.f32 %v4393, %v4781
  %v4996 = vmul.f32 %v4396, %v4781
  %v4997 = vadd.f32 %v4981, %v4803
  %v4998 = vadd.f32 %v4982, %v4803
  %v4999 = vadd.f32 %v4983, %v4803
  %v5000 = vadd.f32 %v4984, %v4803
  %v5001 = vadd.f32 %v4985, %v4803
  %v5002 = vadd.f32 %v4986, %v4803
  %v5003 = vadd.f32 %v4987, %v4803
  %v5004 = vadd.f32 %v4988, %v4803
  %v5005 = vadd.f32 %v4989, %v4803
  %v5006 = vadd.f32 %v4990, %v4803
  %v5007 = vadd.f32 %v4991, %v4803
  %v5008 = vadd.f32 %v4992, %v4803
  %v5009 = vadd.f32 %v4993, %v4803
  %v5010 = vadd.f32 %v4994, %v4803
  %v5011 = vadd.f32 %v4995, %v4803
  %v5012 = vadd.f32 %v4996, %v4803
  %v5013 = vmul.f32 %v4997, 0.2
  %v5014 = vmul.f32 %v4998, 0.2
  %v5015 = vmul.f32 %v4999, 0.2
  %v5016 = vmul.f32 %v5000, 0.2
  %v5017 = vmul.f32 %v5001, 0.2
  %v5018 = vmul.f32 %v5002, 0.2
  %v5019 = vmul.f32 %v5003, 0.2
  %v5020 = vmul.f32 %v5004, 0.2
  %v5021 = vmul.f32 %v5005, 0.2
  %v5022 = vmul.f32 %v5006, 0.2
  %v5023 = vmul.f32 %v5007, 0.2
  %v5024 = vmul.f32 %v5008, 0.2
  %v5025 = vmul.f32 %v5009, 0.2
  %v5026 = vmul.f32 %v5010, 0.2
  %v5027 = vmul.f32 %v5011, 0.2
  %v5028 = vmul.f32 %v5012, 0.2
  %v5029 = vmax.f32 %v4997, %v5013
  %v5030 = vmax.f32 %v4998, %v5014
  %v5031 = vmax.f32 %v4999, %v5015
  %v5032 = vmax.f32 %v5000, %v5016
  %v5033 = vmax.f32 %v5001, %v5017
  %v5034 = vmax.f32 %v5002, %v5018
  %v5035 = vmax.f32 %v5003, %v5019
  %v5036 = vmax.f32 %v5004, %v5020
  %v5037 = vmax.f32 %v5005, %v5021
  %v5038 = vmax.f32 %v5006, %v5022
  %v5039 = vmax.f32 %v5007, %v5023
  %v5040 = vmax.f32 %v5008, %v5024
  %v5041 = vmax.f32 %v5009, %v5025
  %v5042 = vmax.f32 %v5010, %v5026
  %v5043 = vmax.f32 %v5011, %v5027
  %v5044 = vmax.f32 %v5012, %v5028
  %v5061 = vcombine.high %v4837, %v4837
  %v5063 = vunpack.c.l.s4 1966171168
  %v5064 = vunpack.c.0.s8 %v5063
  %v5065 = vlaneseq
  %v5066 = vshrl.u32 %v5065, 7
  %v5067 = vsub.s32 %v5064, %v5066
  %v5068 = vrot.slane %v4837, %v5067
  %v5070 = vunpack.c.l.s4 1966171168
  %v5071 = vunpack.c.0.s8 %v5070
  %v5072 = vlaneseq
  %v5073 = vshrl.u32 %v5072, 7
  %v5074 = vsub.s32 %v5071, %v5073
  %v5075 = vrot.slane %v5061, %v5074
  %v5076 = vcombine.high %v5068, %v5068
  %v5077 = vcombine.high %v5075, %v5075
  %v5079 = vunpack.c.l.s4 1966171168
  %v5080 = vunpack.c.0.s8 %v5079
  %v5081 = vlaneseq
  %v5082 = vshrl.u32 %v5081, 7
  %v5083 = vsub.s32 %v5080, %v5082
  %v5084 = vrot.slane %v5068, %v5083
  %v5086 = vunpack.c.l.s4 1966171168
  %v5087 = vunpack.c.0.s8 %v5086
  %v5088 = vlaneseq
  %v5089 = vshrl.u32 %v5088, 7
  %v5090 = vsub.s32 %v5087, %v5089
  %v5091 = vrot.slane %v5075, %v5090
  %v5093 = vunpack.c.l.s4 1966171168
  %v5094 = vunpack.c.0.s8 %v5093
  %v5095 = vlaneseq
  %v5096 = vshrl.u32 %v5095, 7
  %v5097 = vsub.s32 %v5094, %v5096
  %v5098 = vrot.slane %v5076, %v5097
  %v5100 = vunpack.c.l.s4 1966171168
  %v5101 = vunpack.c.0.s8 %v5100
  %v5102 = vlaneseq
  %v5103 = vshrl.u32 %v5102, 7
  %v5104 = vsub.s32 %v5101, %v5103
  %v5105 = vrot.slane %v5077, %v5104
  %v5106 = vcombine.high %v5084, %v5084
  %v5107 = vcombine.high %v5091, %v5091
  %v5108 = vcombine.high %v5098, %v5098
  %v5109 = vcombine.high %v5105, %v5105
  %v5110 = vcombine.high %v4838, %v4838
  %v5112 = vunpack.c.l.s4 1966171168
  %v5113 = vunpack.c.0.s8 %v5112
  %v5114 = vlaneseq
  %v5115 = vshrl.u32 %v5114, 7
  %v5116 = vsub.s32 %v5113, %v5115
  %v5117 = vrot.slane %v4838, %v5116
  %v5119 = vunpack.c.l.s4 1966171168
  %v5120 = vunpack.c.0.s8 %v5119
  %v5121 = vlaneseq
  %v5122 = vshrl.u32 %v5121, 7
  %v5123 = vsub.s32 %v5120, %v5122
  %v5124 = vrot.slane %v5110, %v5123
  %v5125 = vcombine.high %v5117, %v5117
  %v5126 = vcombine.high %v5124, %v5124
  %v5128 = vunpack.c.l.s4 1966171168
  %v5129 = vunpack.c.0.s8 %v5128
  %v5130 = vlaneseq
  %v5131 = vshrl.u32 %v5130, 7
  %v5132 = vsub.s32 %v5129, %v5131
  %v5133 = vrot.slane %v5117, %v5132
  %v5135 = vunpack.c.l.s4 1966171168
  %v5136 = vunpack.c.0.s8 %v5135
  %v5137 = vlaneseq
  %v5138 = vshrl.u32 %v5137, 7
  %v5139 = vsub.s32 %v5136, %v5138
  %v5140 = vrot.slane %v5124, %v5139
  %v5142 = vunpack.c.l.s4 1966171168
  %v5143 = vunpack.c.0.s8 %v5142
  %v5144 = vlaneseq
  %v5145 = vshrl.u32 %v5144, 7
  %v5146 = vsub.s32 %v5143, %v5145
  %v5147 = vrot.slane %v5125, %v5146
  %v5149 = vunpack.c.l.s4 1966171168
  %v5150 = vunpack.c.0.s8 %v5149
  %v5151 = vlaneseq
  %v5152 = vshrl.u32 %v5151, 7
  %v5153 = vsub.s32 %v5150, %v5152
  %v5154 = vrot.slane %v5126, %v5153
  %v5155 = vcombine.high %v5133, %v5133
  %v5156 = vcombine.high %v5140, %v5140
  %v5157 = vcombine.high %v5147, %v5147
  %v5158 = vcombine.high %v5154, %v5154
  %v5159 = vcombine.high %v4839, %v4839
  %v5161 = vunpack.c.l.s4 1966171168
  %v5162 = vunpack.c.0.s8 %v5161
  %v5163 = vlaneseq
  %v5164 = vshrl.u32 %v5163, 7
  %v5165 = vsub.s32 %v5162, %v5164
  %v5166 = vrot.slane %v4839, %v5165
  %v5168 = vunpack.c.l.s4 1966171168
  %v5169 = vunpack.c.0.s8 %v5168
  %v5170 = vlaneseq
  %v5171 = vshrl.u32 %v5170, 7
  %v5172 = vsub.s32 %v5169, %v5171
  %v5173 = vrot.slane %v5159, %v5172
  %v5174 = vcombine.high %v5166, %v5166
  %v5175 = vcombine.high %v5173, %v5173
  %v5177 = vunpack.c.l.s4 1966171168
  %v5178 = vunpack.c.0.s8 %v5177
  %v5179 = vlaneseq
  %v5180 = vshrl.u32 %v5179, 7
  %v5181 = vsub.s32 %v5178, %v5180
  %v5182 = vrot.slane %v5166, %v5181
  %v5184 = vunpack.c.l.s4 1966171168
  %v5185 = vunpack.c.0.s8 %v5184
  %v5186 = vlaneseq
  %v5187 = vshrl.u32 %v5186, 7
  %v5188 = vsub.s32 %v5185, %v5187
  %v5189 = vrot.slane %v5173, %v5188
  %v5191 = vunpack.c.l.s4 1966171168
  %v5192 = vunpack.c.0.s8 %v5191
  %v5193 = vlaneseq
  %v5194 = vshrl.u32 %v5193, 7
  %v5195 = vsub.s32 %v5192, %v5194
  %v5196 = vrot.slane %v5174, %v5195
  %v5198 = vunpack.c.l.s4 1966171168
  %v5199 = vunpack.c.0.s8 %v5198
  %v5200 = vlaneseq
  %v5201 = vshrl.u32 %v5200, 7
  %v5202 = vsub.s32 %v5199, %v5201
  %v5203 = vrot.slane %v5175, %v5202
  %v5204 = vcombine.high %v5182, %v5182
  %v5205 = vcombine.high %v5189, %v5189
  %v5206 = vcombine.high %v5196, %v5196
  %v5207 = vcombine.high %v5203, %v5203
  %v5208 = vcombine.high %v4840, %v4840
  %v5210 = vunpack.c.l.s4 1966171168
  %v5211 = vunpack.c.0.s8 %v5210
  %v5212 = vlaneseq
  %v5213 = vshrl.u32 %v5212, 7
  %v5214 = vsub.s32 %v5211, %v5213
  %v5215 = vrot.slane %v4840, %v5214
  %v5217 = vunpack.c.l.s4 1966171168
  %v5218 = vunpack.c.0.s8 %v5217
  %v5219 = vlaneseq
  %v5220 = vshrl.u32 %v5219, 7
  %v5221 = vsub.s32 %v5218, %v5220
  %v5222 = vrot.slane %v5208, %v5221
  %v5223 = vcombine.high %v5215, %v5215
  %v5224 = vcombine.high %v5222, %v5222
  %v5226 = vunpack.c.l.s4 1966171168
  %v5227 = vunpack.c.0.s8 %v5226
  %v5228 = vlaneseq
  %v5229 = vshrl.u32 %v5228, 7
  %v5230 = vsub.s32 %v5227, %v5229
  %v5231 = vrot.slane %v5215, %v5230
  %v5233 = vunpack.c.l.s4 1966171168
  %v5234 = vunpack.c.0.s8 %v5233
  %v5235 = vlaneseq
  %v5236 = vshrl.u32 %v5235, 7
  %v5237 = vsub.s32 %v5234, %v5236
  %v5238 = vrot.slane %v5222, %v5237
  %v5240 = vunpack.c.l.s4 1966171168
  %v5241 = vunpack.c.0.s8 %v5240
  %v5242 = vlaneseq
  %v5243 = vshrl.u32 %v5242, 7
  %v5244 = vsub.s32 %v5241, %v5243
  %v5245 = vrot.slane %v5223, %v5244
  %v5247 = vunpack.c.l.s4 1966171168
  %v5248 = vunpack.c.0.s8 %v5247
  %v5249 = vlaneseq
  %v5250 = vshrl.u32 %v5249, 7
  %v5251 = vsub.s32 %v5248, %v5250
  %v5252 = vrot.slane %v5224, %v5251
  %v5253 = vcombine.high %v5231, %v5231
  %v5254 = vcombine.high %v5238, %v5238
  %v5255 = vcombine.high %v5245, %v5245
  %v5256 = vcombine.high %v5252, %v5252
  %v5257 = vcombine.high %v4841, %v4841
  %v5259 = vunpack.c.l.s4 1966171168
  %v5260 = vunpack.c.0.s8 %v5259
  %v5261 = vlaneseq
  %v5262 = vshrl.u32 %v5261, 7
  %v5263 = vsub.s32 %v5260, %v5262
  %v5264 = vrot.slane %v4841, %v5263
  %v5266 = vunpack.c.l.s4 1966171168
  %v5267 = vunpack.c.0.s8 %v5266
  %v5268 = vlaneseq
  %v5269 = vshrl.u32 %v5268, 7
  %v5270 = vsub.s32 %v5267, %v5269
  %v5271 = vrot.slane %v5257, %v5270
  %v5272 = vcombine.high %v5264, %v5264
  %v5273 = vcombine.high %v5271, %v5271
  %v5275 = vunpack.c.l.s4 1966171168
  %v5276 = vunpack.c.0.s8 %v5275
  %v5277 = vlaneseq
  %v5278 = vshrl.u32 %v5277, 7
  %v5279 = vsub.s32 %v5276, %v5278
  %v5280 = vrot.slane %v5264, %v5279
  %v5282 = vunpack.c.l.s4 1966171168
  %v5283 = vunpack.c.0.s8 %v5282
  %v5284 = vlaneseq
  %v5285 = vshrl.u32 %v5284, 7
  %v5286 = vsub.s32 %v5283, %v5285
  %v5287 = vrot.slane %v5271, %v5286
  %v5289 = vunpack.c.l.s4 1966171168
  %v5290 = vunpack.c.0.s8 %v5289
  %v5291 = vlaneseq
  %v5292 = vshrl.u32 %v5291, 7
  %v5293 = vsub.s32 %v5290, %v5292
  %v5294 = vrot.slane %v5272, %v5293
  %v5296 = vunpack.c.l.s4 1966171168
  %v5297 = vunpack.c.0.s8 %v5296
  %v5298 = vlaneseq
  %v5299 = vshrl.u32 %v5298, 7
  %v5300 = vsub.s32 %v5297, %v5299
  %v5301 = vrot.slane %v5273, %v5300
  %v5302 = vcombine.high %v5280, %v5280
  %v5303 = vcombine.high %v5287, %v5287
  %v5304 = vcombine.high %v5294, %v5294
  %v5305 = vcombine.high %v5301, %v5301
  %v5306 = vcombine.high %v4842, %v4842
  %v5308 = vunpack.c.l.s4 1966171168
  %v5309 = vunpack.c.0.s8 %v5308
  %v5310 = vlaneseq
  %v5311 = vshrl.u32 %v5310, 7
  %v5312 = vsub.s32 %v5309, %v5311
  %v5313 = vrot.slane %v4842, %v5312
  %v5315 = vunpack.c.l.s4 1966171168
  %v5316 = vunpack.c.0.s8 %v5315
  %v5317 = vlaneseq
  %v5318 = vshrl.u32 %v5317, 7
  %v5319 = vsub.s32 %v5316, %v5318
  %v5320 = vrot.slane %v5306, %v5319
  %v5321 = vcombine.high %v5313, %v5313
  %v5322 = vcombine.high %v5320, %v5320
  %v5324 = vunpack.c.l.s4 1966171168
  %v5325 = vunpack.c.0.s8 %v5324
  %v5326 = vlaneseq
  %v5327 = vshrl.u32 %v5326, 7
  %v5328 = vsub.s32 %v5325, %v5327
  %v5329 = vrot.slane %v5313, %v5328
  %v5331 = vunpack.c.l.s4 1966171168
  %v5332 = vunpack.c.0.s8 %v5331
  %v5333 = vlaneseq
  %v5334 = vshrl.u32 %v5333, 7
  %v5335 = vsub.s32 %v5332, %v5334
  %v5336 = vrot.slane %v5320, %v5335
  %v5338 = vunpack.c.l.s4 1966171168
  %v5339 = vunpack.c.0.s8 %v5338
  %v5340 = vlaneseq
  %v5341 = vshrl.u32 %v5340, 7
  %v5342 = vsub.s32 %v5339, %v5341
  %v5343 = vrot.slane %v5321, %v5342
  %v5345 = vunpack.c.l.s4 1966171168
  %v5346 = vunpack.c.0.s8 %v5345
  %v5347 = vlaneseq
  %v5348 = vshrl.u32 %v5347, 7
  %v5349 = vsub.s32 %v5346, %v5348
  %v5350 = vrot.slane %v5322, %v5349
  %v5351 = vcombine.high %v5329, %v5329
  %v5352 = vcombine.high %v5336, %v5336
  %v5353 = vcombine.high %v5343, %v5343
  %v5354 = vcombine.high %v5350, %v5350
  %v5355 = vcombine.high %v4843, %v4843
  %v5357 = vunpack.c.l.s4 1966171168
  %v5358 = vunpack.c.0.s8 %v5357
  %v5359 = vlaneseq
  %v5360 = vshrl.u32 %v5359, 7
  %v5361 = vsub.s32 %v5358, %v5360
  %v5362 = vrot.slane %v4843, %v5361
  %v5364 = vunpack.c.l.s4 1966171168
  %v5365 = vunpack.c.0.s8 %v5364
  %v5366 = vlaneseq
  %v5367 = vshrl.u32 %v5366, 7
  %v5368 = vsub.s32 %v5365, %v5367
  %v5369 = vrot.slane %v5355, %v5368
  %v5370 = vcombine.high %v5362, %v5362
  %v5371 = vcombine.high %v5369, %v5369
  %v5373 = vunpack.c.l.s4 1966171168
  %v5374 = vunpack.c.0.s8 %v5373
  %v5375 = vlaneseq
  %v5376 = vshrl.u32 %v5375, 7
  %v5377 = vsub.s32 %v5374, %v5376
  %v5378 = vrot.slane %v5362, %v5377
  %v5380 = vunpack.c.l.s4 1966171168
  %v5381 = vunpack.c.0.s8 %v5380
  %v5382 = vlaneseq
  %v5383 = vshrl.u32 %v5382, 7
  %v5384 = vsub.s32 %v5381, %v5383
  %v5385 = vrot.slane %v5369, %v5384
  %v5387 = vunpack.c.l.s4 1966171168
  %v5388 = vunpack.c.0.s8 %v5387
  %v5389 = vlaneseq
  %v5390 = vshrl.u32 %v5389, 7
  %v5391 = vsub.s32 %v5388, %v5390
  %v5392 = vrot.slane %v5370, %v5391
  %v5394 = vunpack.c.l.s4 1966171168
  %v5395 = vunpack.c.0.s8 %v5394
  %v5396 = vlaneseq
  %v5397 = vshrl.u32 %v5396, 7
  %v5398 = vsub.s32 %v5395, %v5397
  %v5399 = vrot.slane %v5371, %v5398
  %v5400 = vcombine.high %v5378, %v5378
  %v5401 = vcombine.high %v5385, %v5385
  %v5402 = vcombine.high %v5392, %v5392
  %v5403 = vcombine.high %v5399, %v5399
  %v5404 = vcombine.high %v4844, %v4844
  %v5406 = vunpack.c.l.s4 1966171168
  %v5407 = vunpack.c.0.s8 %v5406
  %v5408 = vlaneseq
  %v5409 = vshrl.u32 %v5408, 7
  %v5410 = vsub.s32 %v5407, %v5409
  %v5411 = vrot.slane %v4844, %v5410
  %v5413 = vunpack.c.l.s4 1966171168
  %v5414 = vunpack.c.0.s8 %v5413
  %v5415 = vlaneseq
  %v5416 = vshrl.u32 %v5415, 7
  %v5417 = vsub.s32 %v5414, %v5416
  %v5418 = vrot.slane %v5404, %v5417
  %v5419 = vcombine.high %v5411, %v5411
  %v5420 = vcombine.high %v5418, %v5418
  %v5422 = vunpack.c.l.s4 1966171168
  %v5423 = vunpack.c.0.s8 %v5422
  %v5424 = vlaneseq
  %v5425 = vshrl.u32 %v5424, 7
  %v5426 = vsub.s32 %v5423, %v5425
  %v5427 = vrot.slane %v5411, %v5426
  %v5429 = vunpack.c.l.s4 1966171168
  %v5430 = vunpack.c.0.s8 %v5429
  %v5431 = vlaneseq
  %v5432 = vshrl.u32 %v5431, 7
  %v5433 = vsub.s32 %v5430, %v5432
  %v5434 = vrot.slane %v5418, %v5433
  %v5436 = vunpack.c.l.s4 1966171168
  %v5437 = vunpack.c.0.s8 %v5436
  %v5438 = vlaneseq
  %v5439 = vshrl.u32 %v5438, 7
  %v5440 = vsub.s32 %v5437, %v5439
  %v5441 = vrot.slane %v5419, %v5440
  %v5443 = vunpack.c.l.s4 1966171168
  %v5444 = vunpack.c.0.s8 %v5443
  %v5445 = vlaneseq
  %v5446 = vshrl.u32 %v5445, 7
  %v5447 = vsub.s32 %v5444, %v5446
  %v5448 = vrot.slane %v5420, %v5447
  %v5449 = vcombine.high %v5427, %v5427
  %v5450 = vcombine.high %v5434, %v5434
  %v5451 = vcombine.high %v5441, %v5441
  %v5452 = vcombine.high %v5448, %v5448
  %v5453 = vcombine.high %v4845, %v4845
  %v5455 = vunpack.c.l.s4 1966171168
  %v5456 = vunpack.c.0.s8 %v5455
  %v5457 = vlaneseq
  %v5458 = vshrl.u32 %v5457, 7
  %v5459 = vsub.s32 %v5456, %v5458
  %v5460 = vrot.slane %v4845, %v5459
  %v5462 = vunpack.c.l.s4 1966171168
  %v5463 = vunpack.c.0.s8 %v5462
  %v5464 = vlaneseq
  %v5465 = vshrl.u32 %v5464, 7
  %v5466 = vsub.s32 %v5463, %v5465
  %v5467 = vrot.slane %v5453, %v5466
  %v5468 = vcombine.high %v5460, %v5460
  %v5469 = vcombine.high %v5467, %v5467
  %v5471 = vunpack.c.l.s4 1966171168
  %v5472 = vunpack.c.0.s8 %v5471
  %v5473 = vlaneseq
  %v5474 = vshrl.u32 %v5473, 7
  %v5475 = vsub.s32 %v5472, %v5474
  %v5476 = vrot.slane %v5460, %v5475
  %v5478 = vunpack.c.l.s4 1966171168
  %v5479 = vunpack.c.0.s8 %v5478
  %v5480 = vlaneseq
  %v5481 = vshrl.u32 %v5480, 7
  %v5482 = vsub.s32 %v5479, %v5481
  %v5483 = vrot.slane %v5467, %v5482
  %v5485 = vunpack.c.l.s4 1966171168
  %v5486 = vunpack.c.0.s8 %v5485
  %v5487 = vlaneseq
  %v5488 = vshrl.u32 %v5487, 7
  %v5489 = vsub.s32 %v5486, %v5488
  %v5490 = vrot.slane %v5468, %v5489
  %v5492 = vunpack.c.l.s4 1966171168
  %v5493 = vunpack.c.0.s8 %v5492
  %v5494 = vlaneseq
  %v5495 = vshrl.u32 %v5494, 7
  %v5496 = vsub.s32 %v5493, %v5495
  %v5497 = vrot.slane %v5469, %v5496
  %v5498 = vcombine.high %v5476, %v5476
  %v5499 = vcombine.high %v5483, %v5483
  %v5500 = vcombine.high %v5490, %v5490
  %v5501 = vcombine.high %v5497, %v5497
  %v5502 = vcombine.high %v4846, %v4846
  %v5504 = vunpack.c.l.s4 1966171168
  %v5505 = vunpack.c.0.s8 %v5504
  %v5506 = vlaneseq
  %v5507 = vshrl.u32 %v5506, 7
  %v5508 = vsub.s32 %v5505, %v5507
  %v5509 = vrot.slane %v4846, %v5508
  %v5511 = vunpack.c.l.s4 1966171168
  %v5512 = vunpack.c.0.s8 %v5511
  %v5513 = vlaneseq
  %v5514 = vshrl.u32 %v5513, 7
  %v5515 = vsub.s32 %v5512, %v5514
  %v5516 = vrot.slane %v5502, %v5515
  %v5517 = vcombine.high %v5509, %v5509
  %v5518 = vcombine.high %v5516, %v5516
  %v5520 = vunpack.c.l.s4 1966171168
  %v5521 = vunpack.c.0.s8 %v5520
  %v5522 = vlaneseq
  %v5523 = vshrl.u32 %v5522, 7
  %v5524 = vsub.s32 %v5521, %v5523
  %v5525 = vrot.slane %v5509, %v5524
  %v5527 = vunpack.c.l.s4 1966171168
  %v5528 = vunpack.c.0.s8 %v5527
  %v5529 = vlaneseq
  %v5530 = vshrl.u32 %v5529, 7
  %v5531 = vsub.s32 %v5528, %v5530
  %v5532 = vrot.slane %v5516, %v5531
  %v5534 = vunpack.c.l.s4 1966171168
  %v5535 = vunpack.c.0.s8 %v5534
  %v5536 = vlaneseq
  %v5537 = vshrl.u32 %v5536, 7
  %v5538 = vsub.s32 %v5535, %v5537
  %v5539 = vrot.slane %v5517, %v5538
  %v5541 = vunpack.c.l.s4 1966171168
  %v5542 = vunpack.c.0.s8 %v5541
  %v5543 = vlaneseq
  %v5544 = vshrl.u32 %v5543, 7
  %v5545 = vsub.s32 %v5542, %v5544
  %v5546 = vrot.slane %v5518, %v5545
  %v5547 = vcombine.high %v5525, %v5525
  %v5548 = vcombine.high %v5532, %v5532
  %v5549 = vcombine.high %v5539, %v5539
  %v5550 = vcombine.high %v5546, %v5546
  %v5551 = vcombine.high %v4847, %v4847
  %v5553 = vunpack.c.l.s4 1966171168
  %v5554 = vunpack.c.0.s8 %v5553
  %v5555 = vlaneseq
  %v5556 = vshrl.u32 %v5555, 7
  %v5557 = vsub.s32 %v5554, %v5556
  %v5558 = vrot.slane %v4847, %v5557
  %v5560 = vunpack.c.l.s4 1966171168
  %v5561 = vunpack.c.0.s8 %v5560
  %v5562 = vlaneseq
  %v5563 = vshrl.u32 %v5562, 7
  %v5564 = vsub.s32 %v5561, %v5563
  %v5565 = vrot.slane %v5551, %v5564
  %v5566 = vcombine.high %v5558, %v5558
  %v5567 = vcombine.high %v5565, %v5565
  %v5569 = vunpack.c.l.s4 1966171168
  %v5570 = vunpack.c.0.s8 %v5569
  %v5571 = vlaneseq
  %v5572 = vshrl.u32 %v5571, 7
  %v5573 = vsub.s32 %v5570, %v5572
  %v5574 = vrot.slane %v5558, %v5573
  %v5576 = vunpack.c.l.s4 1966171168
  %v5577 = vunpack.c.0.s8 %v5576
  %v5578 = vlaneseq
  %v5579 = vshrl.u32 %v5578, 7
  %v5580 = vsub.s32 %v5577, %v5579
  %v5581 = vrot.slane %v5565, %v5580
  %v5583 = vunpack.c.l.s4 1966171168
  %v5584 = vunpack.c.0.s8 %v5583
  %v5585 = vlaneseq
  %v5586 = vshrl.u32 %v5585, 7
  %v5587 = vsub.s32 %v5584, %v5586
  %v5588 = vrot.slane %v5566, %v5587
  %v5590 = vunpack.c.l.s4 1966171168
  %v5591 = vunpack.c.0.s8 %v5590
  %v5592 = vlaneseq
  %v5593 = vshrl.u32 %v5592, 7
  %v5594 = vsub.s32 %v5591, %v5593
  %v5595 = vrot.slane %v5567, %v5594
  %v5596 = vcombine.high %v5574, %v5574
  %v5597 = vcombine.high %v5581, %v5581
  %v5598 = vcombine.high %v5588, %v5588
  %v5599 = vcombine.high %v5595, %v5595
  %v5600 = vcombine.high %v4848, %v4848
  %v5602 = vunpack.c.l.s4 1966171168
  %v5603 = vunpack.c.0.s8 %v5602
  %v5604 = vlaneseq
  %v5605 = vshrl.u32 %v5604, 7
  %v5606 = vsub.s32 %v5603, %v5605
  %v5607 = vrot.slane %v4848, %v5606
  %v5609 = vunpack.c.l.s4 1966171168
  %v5610 = vunpack.c.0.s8 %v5609
  %v5611 = vlaneseq
  %v5612 = vshrl.u32 %v5611, 7
  %v5613 = vsub.s32 %v5610, %v5612
  %v5614 = vrot.slane %v5600, %v5613
  %v5615 = vcombine.high %v5607, %v5607
  %v5616 = vcombine.high %v5614, %v5614
  %v5618 = vunpack.c.l.s4 1966171168
  %v5619 = vunpack.c.0.s8 %v5618
  %v5620 = vlaneseq
  %v5621 = vshrl.u32 %v5620, 7
  %v5622 = vsub.s32 %v5619, %v5621
  %v5623 = vrot.slane %v5607, %v5622
  %v5625 = vunpack.c.l.s4 1966171168
  %v5626 = vunpack.c.0.s8 %v5625
  %v5627 = vlaneseq
  %v5628 = vshrl.u32 %v5627, 7
  %v5629 = vsub.s32 %v5626, %v5628
  %v5630 = vrot.slane %v5614, %v5629
  %v5632 = vunpack.c.l.s4 1966171168
  %v5633 = vunpack.c.0.s8 %v5632
  %v5634 = vlaneseq
  %v5635 = vshrl.u32 %v5634, 7
  %v5636 = vsub.s32 %v5633, %v5635
  %v5637 = vrot.slane %v5615, %v5636
  %v5639 = vunpack.c.l.s4 1966171168
  %v5640 = vunpack.c.0.s8 %v5639
  %v5641 = vlaneseq
  %v5642 = vshrl.u32 %v5641, 7
  %v5643 = vsub.s32 %v5640, %v5642
  %v5644 = vrot.slane %v5616, %v5643
  %v5645 = vcombine.high %v5623, %v5623
  %v5646 = vcombine.high %v5630, %v5630
  %v5647 = vcombine.high %v5637, %v5637
  %v5648 = vcombine.high %v5644, %v5644
  %v5649 = vcombine.high %v4849, %v4849
  %v5651 = vunpack.c.l.s4 1966171168
  %v5652 = vunpack.c.0.s8 %v5651
  %v5653 = vlaneseq
  %v5654 = vshrl.u32 %v5653, 7
  %v5655 = vsub.s32 %v5652, %v5654
  %v5656 = vrot.slane %v4849, %v5655
  %v5658 = vunpack.c.l.s4 1966171168
  %v5659 = vunpack.c.0.s8 %v5658
  %v5660 = vlaneseq
  %v5661 = vshrl.u32 %v5660, 7
  %v5662 = vsub.s32 %v5659, %v5661
  %v5663 = vrot.slane %v5649, %v5662
  %v5664 = vcombine.high %v5656, %v5656
  %v5665 = vcombine.high %v5663, %v5663
  %v5667 = vunpack.c.l.s4 1966171168
  %v5668 = vunpack.c.0.s8 %v5667
  %v5669 = vlaneseq
  %v5670 = vshrl.u32 %v5669, 7
  %v5671 = vsub.s32 %v5668, %v5670
  %v5672 = vrot.slane %v5656, %v5671
  %v5674 = vunpack.c.l.s4 1966171168
  %v5675 = vunpack.c.0.s8 %v5674
  %v5676 = vlaneseq
  %v5677 = vshrl.u32 %v5676, 7
  %v5678 = vsub.s32 %v5675, %v5677
  %v5679 = vrot.slane %v5663, %v5678
  %v5681 = vunpack.c.l.s4 1966171168
  %v5682 = vunpack.c.0.s8 %v5681
  %v5683 = vlaneseq
  %v5684 = vshrl.u32 %v5683, 7
  %v5685 = vsub.s32 %v5682, %v5684
  %v5686 = vrot.slane %v5664, %v5685
  %v5688 = vunpack.c.l.s4 1966171168
  %v5689 = vunpack.c.0.s8 %v5688
  %v5690 = vlaneseq
  %v5691 = vshrl.u32 %v5690, 7
  %v5692 = vsub.s32 %v5689, %v5691
  %v5693 = vrot.slane %v5665, %v5692
  %v5694 = vcombine.high %v5672, %v5672
  %v5695 = vcombine.high %v5679, %v5679
  %v5696 = vcombine.high %v5686, %v5686
  %v5697 = vcombine.high %v5693, %v5693
  %v5698 = vcombine.high %v4850, %v4850
  %v5700 = vunpack.c.l.s4 1966171168
  %v5701 = vunpack.c.0.s8 %v5700
  %v5702 = vlaneseq
  %v5703 = vshrl.u32 %v5702, 7
  %v5704 = vsub.s32 %v5701, %v5703
  %v5705 = vrot.slane %v4850, %v5704
  %v5707 = vunpack.c.l.s4 1966171168
  %v5708 = vunpack.c.0.s8 %v5707
  %v5709 = vlaneseq
  %v5710 = vshrl.u32 %v5709, 7
  %v5711 = vsub.s32 %v5708, %v5710
  %v5712 = vrot.slane %v5698, %v5711
  %v5713 = vcombine.high %v5705, %v5705
  %v5714 = vcombine.high %v5712, %v5712
  %v5716 = vunpack.c.l.s4 1966171168
  %v5717 = vunpack.c.0.s8 %v5716
  %v5718 = vlaneseq
  %v5719 = vshrl.u32 %v5718, 7
  %v5720 = vsub.s32 %v5717, %v5719
  %v5721 = vrot.slane %v5705, %v5720
  %v5723 = vunpack.c.l.s4 1966171168
  %v5724 = vunpack.c.0.s8 %v5723
  %v5725 = vlaneseq
  %v5726 = vshrl.u32 %v5725, 7
  %v5727 = vsub.s32 %v5724, %v5726
  %v5728 = vrot.slane %v5712, %v5727
  %v5730 = vunpack.c.l.s4 1966171168
  %v5731 = vunpack.c.0.s8 %v5730
  %v5732 = vlaneseq
  %v5733 = vshrl.u32 %v5732, 7
  %v5734 = vsub.s32 %v5731, %v5733
  %v5735 = vrot.slane %v5713, %v5734
  %v5737 = vunpack.c.l.s4 1966171168
  %v5738 = vunpack.c.0.s8 %v5737
  %v5739 = vlaneseq
  %v5740 = vshrl.u32 %v5739, 7
  %v5741 = vsub.s32 %v5738, %v5740
  %v5742 = vrot.slane %v5714, %v5741
  %v5743 = vcombine.high %v5721, %v5721
  %v5744 = vcombine.high %v5728, %v5728
  %v5745 = vcombine.high %v5735, %v5735
  %v5746 = vcombine.high %v5742, %v5742
  %v5747 = vcombine.high %v4851, %v4851
  %v5749 = vunpack.c.l.s4 1966171168
  %v5750 = vunpack.c.0.s8 %v5749
  %v5751 = vlaneseq
  %v5752 = vshrl.u32 %v5751, 7
  %v5753 = vsub.s32 %v5750, %v5752
  %v5754 = vrot.slane %v4851, %v5753
  %v5756 = vunpack.c.l.s4 1966171168
  %v5757 = vunpack.c.0.s8 %v5756
  %v5758 = vlaneseq
  %v5759 = vshrl.u32 %v5758, 7
  %v5760 = vsub.s32 %v5757, %v5759
  %v5761 = vrot.slane %v5747, %v5760
  %v5762 = vcombine.high %v5754, %v5754
  %v5763 = vcombine.high %v5761, %v5761
  %v5765 = vunpack.c.l.s4 1966171168
  %v5766 = vunpack.c.0.s8 %v5765
  %v5767 = vlaneseq
  %v5768 = vshrl.u32 %v5767, 7
  %v5769 = vsub.s32 %v5766, %v5768
  %v5770 = vrot.slane %v5754, %v5769
  %v5772 = vunpack.c.l.s4 1966171168
  %v5773 = vunpack.c.0.s8 %v5772
  %v5774 = vlaneseq
  %v5775 = vshrl.u32 %v5774, 7
  %v5776 = vsub.s32 %v5773, %v5775
  %v5777 = vrot.slane %v5761, %v5776
  %v5779 = vunpack.c.l.s4 1966171168
  %v5780 = vunpack.c.0.s8 %v5779
  %v5781 = vlaneseq
  %v5782 = vshrl.u32 %v5781, 7
  %v5783 = vsub.s32 %v5780, %v5782
  %v5784 = vrot.slane %v5762, %v5783
  %v5786 = vunpack.c.l.s4 1966171168
  %v5787 = vunpack.c.0.s8 %v5786
  %v5788 = vlaneseq
  %v5789 = vshrl.u32 %v5788, 7
  %v5790 = vsub.s32 %v5787, %v5789
  %v5791 = vrot.slane %v5763, %v5790
  %v5792 = vcombine.high %v5770, %v5770
  %v5793 = vcombine.high %v5777, %v5777
  %v5794 = vcombine.high %v5784, %v5784
  %v5795 = vcombine.high %v5791, %v5791
  %v5796 = vcombine.high %v4852, %v4852
  %v5798 = vunpack.c.l.s4 1966171168
  %v5799 = vunpack.c.0.s8 %v5798
  %v5800 = vlaneseq
  %v5801 = vshrl.u32 %v5800, 7
  %v5802 = vsub.s32 %v5799, %v5801
  %v5803 = vrot.slane %v4852, %v5802
  %v5805 = vunpack.c.l.s4 1966171168
  %v5806 = vunpack.c.0.s8 %v5805
  %v5807 = vlaneseq
  %v5808 = vshrl.u32 %v5807, 7
  %v5809 = vsub.s32 %v5806, %v5808
  %v5810 = vrot.slane %v5796, %v5809
  %v5811 = vcombine.high %v5803, %v5803
  %v5812 = vcombine.high %v5810, %v5810
  %v5814 = vunpack.c.l.s4 1966171168
  %v5815 = vunpack.c.0.s8 %v5814
  %v5816 = vlaneseq
  %v5817 = vshrl.u32 %v5816, 7
  %v5818 = vsub.s32 %v5815, %v5817
  %v5819 = vrot.slane %v5803, %v5818
  %v5821 = vunpack.c.l.s4 1966171168
  %v5822 = vunpack.c.0.s8 %v5821
  %v5823 = vlaneseq
  %v5824 = vshrl.u32 %v5823, 7
  %v5825 = vsub.s32 %v5822, %v5824
  %v5826 = vrot.slane %v5810, %v5825
  %v5828 = vunpack.c.l.s4 1966171168
  %v5829 = vunpack.c.0.s8 %v5828
  %v5830 = vlaneseq
  %v5831 = vshrl.u32 %v5830, 7
  %v5832 = vsub.s32 %v5829, %v5831
  %v5833 = vrot.slane %v5811, %v5832
  %v5835 = vunpack.c.l.s4 1966171168
  %v5836 = vunpack.c.0.s8 %v5835
  %v5837 = vlaneseq
  %v5838 = vshrl.u32 %v5837, 7
  %v5839 = vsub.s32 %v5836, %v5838
  %v5840 = vrot.slane %v5812, %v5839
  %v5841 = vcombine.high %v5819, %v5819
  %v5842 = vcombine.high %v5826, %v5826
  %v5843 = vcombine.high %v5833, %v5833
  %v5844 = vcombine.high %v5840, %v5840
  %v5989 = vcombine.high %v4901, %v4901
  %v5991 = vunpack.c.l.s4 1966171168
  %v5992 = vunpack.c.0.s8 %v5991
  %v5993 = vlaneseq
  %v5994 = vshrl.u32 %v5993, 7
  %v5995 = vsub.s32 %v5992, %v5994
  %v5996 = vrot.slane %v4901, %v5995
  %v5998 = vunpack.c.l.s4 1966171168
  %v5999 = vunpack.c.0.s8 %v5998
  %v6000 = vlaneseq
  %v6001 = vshrl.u32 %v6000, 7
  %v6002 = vsub.s32 %v5999, %v6001
  %v6003 = vrot.slane %v5989, %v6002
  %v6004 = vcombine.high %v5996, %v5996
  %v6005 = vcombine.high %v6003, %v6003
  %v6007 = vunpack.c.l.s4 1966171168
  %v6008 = vunpack.c.0.s8 %v6007
  %v6009 = vlaneseq
  %v6010 = vshrl.u32 %v6009, 7
  %v6011 = vsub.s32 %v6008, %v6010
  %v6012 = vrot.slane %v5996, %v6011
  %v6014 = vunpack.c.l.s4 1966171168
  %v6015 = vunpack.c.0.s8 %v6014
  %v6016 = vlaneseq
  %v6017 = vshrl.u32 %v6016, 7
  %v6018 = vsub.s32 %v6015, %v6017
  %v6019 = vrot.slane %v6003, %v6018
  %v6021 = vunpack.c.l.s4 1966171168
  %v6022 = vunpack.c.0.s8 %v6021
  %v6023 = vlaneseq
  %v6024 = vshrl.u32 %v6023, 7
  %v6025 = vsub.s32 %v6022, %v6024
  %v6026 = vrot.slane %v6004, %v6025
  %v6028 = vunpack.c.l.s4 1966171168
  %v6029 = vunpack.c.0.s8 %v6028
  %v6030 = vlaneseq
  %v6031 = vshrl.u32 %v6030, 7
  %v6032 = vsub.s32 %v6029, %v6031
  %v6033 = vrot.slane %v6005, %v6032
  %v6034 = vcombine.high %v6012, %v6012
  %v6035 = vcombine.high %v6019, %v6019
  %v6036 = vcombine.high %v6026, %v6026
  %v6037 = vcombine.high %v6033, %v6033
  %v6038 = vcombine.high %v4902, %v4902
  %v6040 = vunpack.c.l.s4 1966171168
  %v6041 = vunpack.c.0.s8 %v6040
  %v6042 = vlaneseq
  %v6043 = vshrl.u32 %v6042, 7
  %v6044 = vsub.s32 %v6041, %v6043
  %v6045 = vrot.slane %v4902, %v6044
  %v6047 = vunpack.c.l.s4 1966171168
  %v6048 = vunpack.c.0.s8 %v6047
  %v6049 = vlaneseq
  %v6050 = vshrl.u32 %v6049, 7
  %v6051 = vsub.s32 %v6048, %v6050
  %v6052 = vrot.slane %v6038, %v6051
  %v6053 = vcombine.high %v6045, %v6045
  %v6054 = vcombine.high %v6052, %v6052
  %v6056 = vunpack.c.l.s4 1966171168
  %v6057 = vunpack.c.0.s8 %v6056
  %v6058 = vlaneseq
  %v6059 = vshrl.u32 %v6058, 7
  %v6060 = vsub.s32 %v6057, %v6059
  %v6061 = vrot.slane %v6045, %v6060
  %v6063 = vunpack.c.l.s4 1966171168
  %v6064 = vunpack.c.0.s8 %v6063
  %v6065 = vlaneseq
  %v6066 = vshrl.u32 %v6065, 7
  %v6067 = vsub.s32 %v6064, %v6066
  %v6068 = vrot.slane %v6052, %v6067
  %v6070 = vunpack.c.l.s4 1966171168
  %v6071 = vunpack.c.0.s8 %v6070
  %v6072 = vlaneseq
  %v6073 = vshrl.u32 %v6072, 7
  %v6074 = vsub.s32 %v6071, %v6073
  %v6075 = vrot.slane %v6053, %v6074
  %v6077 = vunpack.c.l.s4 1966171168
  %v6078 = vunpack.c.0.s8 %v6077
  %v6079 = vlaneseq
  %v6080 = vshrl.u32 %v6079, 7
  %v6081 = vsub.s32 %v6078, %v6080
  %v6082 = vrot.slane %v6054, %v6081
  %v6083 = vcombine.high %v6061, %v6061
  %v6084 = vcombine.high %v6068, %v6068
  %v6085 = vcombine.high %v6075, %v6075
  %v6086 = vcombine.high %v6082, %v6082
  %v6087 = vcombine.high %v4903, %v4903
  %v6089 = vunpack.c.l.s4 1966171168
  %v6090 = vunpack.c.0.s8 %v6089
  %v6091 = vlaneseq
  %v6092 = vshrl.u32 %v6091, 7
  %v6093 = vsub.s32 %v6090, %v6092
  %v6094 = vrot.slane %v4903, %v6093
  %v6096 = vunpack.c.l.s4 1966171168
  %v6097 = vunpack.c.0.s8 %v6096
  %v6098 = vlaneseq
  %v6099 = vshrl.u32 %v6098, 7
  %v6100 = vsub.s32 %v6097, %v6099
  %v6101 = vrot.slane %v6087, %v6100
  %v6102 = vcombine.high %v6094, %v6094
  %v6103 = vcombine.high %v6101, %v6101
  %v6105 = vunpack.c.l.s4 1966171168
  %v6106 = vunpack.c.0.s8 %v6105
  %v6107 = vlaneseq
  %v6108 = vshrl.u32 %v6107, 7
  %v6109 = vsub.s32 %v6106, %v6108
  %v6110 = vrot.slane %v6094, %v6109
  %v6112 = vunpack.c.l.s4 1966171168
  %v6113 = vunpack.c.0.s8 %v6112
  %v6114 = vlaneseq
  %v6115 = vshrl.u32 %v6114, 7
  %v6116 = vsub.s32 %v6113, %v6115
  %v6117 = vrot.slane %v6101, %v6116
  %v6119 = vunpack.c.l.s4 1966171168
  %v6120 = vunpack.c.0.s8 %v6119
  %v6121 = vlaneseq
  %v6122 = vshrl.u32 %v6121, 7
  %v6123 = vsub.s32 %v6120, %v6122
  %v6124 = vrot.slane %v6102, %v6123
  %v6126 = vunpack.c.l.s4 1966171168
  %v6127 = vunpack.c.0.s8 %v6126
  %v6128 = vlaneseq
  %v6129 = vshrl.u32 %v6128, 7
  %v6130 = vsub.s32 %v6127, %v6129
  %v6131 = vrot.slane %v6103, %v6130
  %v6132 = vcombine.high %v6110, %v6110
  %v6133 = vcombine.high %v6117, %v6117
  %v6134 = vcombine.high %v6124, %v6124
  %v6135 = vcombine.high %v6131, %v6131
  %v6136 = vcombine.high %v4904, %v4904
  %v6138 = vunpack.c.l.s4 1966171168
  %v6139 = vunpack.c.0.s8 %v6138
  %v6140 = vlaneseq
  %v6141 = vshrl.u32 %v6140, 7
  %v6142 = vsub.s32 %v6139, %v6141
  %v6143 = vrot.slane %v4904, %v6142
  %v6145 = vunpack.c.l.s4 1966171168
  %v6146 = vunpack.c.0.s8 %v6145
  %v6147 = vlaneseq
  %v6148 = vshrl.u32 %v6147, 7
  %v6149 = vsub.s32 %v6146, %v6148
  %v6150 = vrot.slane %v6136, %v6149
  %v6151 = vcombine.high %v6143, %v6143
  %v6152 = vcombine.high %v6150, %v6150
  %v6154 = vunpack.c.l.s4 1966171168
  %v6155 = vunpack.c.0.s8 %v6154
  %v6156 = vlaneseq
  %v6157 = vshrl.u32 %v6156, 7
  %v6158 = vsub.s32 %v6155, %v6157
  %v6159 = vrot.slane %v6143, %v6158
  %v6161 = vunpack.c.l.s4 1966171168
  %v6162 = vunpack.c.0.s8 %v6161
  %v6163 = vlaneseq
  %v6164 = vshrl.u32 %v6163, 7
  %v6165 = vsub.s32 %v6162, %v6164
  %v6166 = vrot.slane %v6150, %v6165
  %v6168 = vunpack.c.l.s4 1966171168
  %v6169 = vunpack.c.0.s8 %v6168
  %v6170 = vlaneseq
  %v6171 = vshrl.u32 %v6170, 7
  %v6172 = vsub.s32 %v6169, %v6171
  %v6173 = vrot.slane %v6151, %v6172
  %v6175 = vunpack.c.l.s4 1966171168
  %v6176 = vunpack.c.0.s8 %v6175
  %v6177 = vlaneseq
  %v6178 = vshrl.u32 %v6177, 7
  %v6179 = vsub.s32 %v6176, %v6178
  %v6180 = vrot.slane %v6152, %v6179
  %v6181 = vcombine.high %v6159, %v6159
  %v6182 = vcombine.high %v6166, %v6166
  %v6183 = vcombine.high %v6173, %v6173
  %v6184 = vcombine.high %v6180, %v6180
  %v6185 = vcombine.high %v4905, %v4905
  %v6187 = vunpack.c.l.s4 1966171168
  %v6188 = vunpack.c.0.s8 %v6187
  %v6189 = vlaneseq
  %v6190 = vshrl.u32 %v6189, 7
  %v6191 = vsub.s32 %v6188, %v6190
  %v6192 = vrot.slane %v4905, %v6191
  %v6194 = vunpack.c.l.s4 1966171168
  %v6195 = vunpack.c.0.s8 %v6194
  %v6196 = vlaneseq
  %v6197 = vshrl.u32 %v6196, 7
  %v6198 = vsub.s32 %v6195, %v6197
  %v6199 = vrot.slane %v6185, %v6198
  %v6200 = vcombine.high %v6192, %v6192
  %v6201 = vcombine.high %v6199, %v6199
  %v6203 = vunpack.c.l.s4 1966171168
  %v6204 = vunpack.c.0.s8 %v6203
  %v6205 = vlaneseq
  %v6206 = vshrl.u32 %v6205, 7
  %v6207 = vsub.s32 %v6204, %v6206
  %v6208 = vrot.slane %v6192, %v6207
  %v6210 = vunpack.c.l.s4 1966171168
  %v6211 = vunpack.c.0.s8 %v6210
  %v6212 = vlaneseq
  %v6213 = vshrl.u32 %v6212, 7
  %v6214 = vsub.s32 %v6211, %v6213
  %v6215 = vrot.slane %v6199, %v6214
  %v6217 = vunpack.c.l.s4 1966171168
  %v6218 = vunpack.c.0.s8 %v6217
  %v6219 = vlaneseq
  %v6220 = vshrl.u32 %v6219, 7
  %v6221 = vsub.s32 %v6218, %v6220
  %v6222 = vrot.slane %v6200, %v6221
  %v6224 = vunpack.c.l.s4 1966171168
  %v6225 = vunpack.c.0.s8 %v6224
  %v6226 = vlaneseq
  %v6227 = vshrl.u32 %v6226, 7
  %v6228 = vsub.s32 %v6225, %v6227
  %v6229 = vrot.slane %v6201, %v6228
  %v6230 = vcombine.high %v6208, %v6208
  %v6231 = vcombine.high %v6215, %v6215
  %v6232 = vcombine.high %v6222, %v6222
  %v6233 = vcombine.high %v6229, %v6229
  %v6234 = vcombine.high %v4906, %v4906
  %v6236 = vunpack.c.l.s4 1966171168
  %v6237 = vunpack.c.0.s8 %v6236
  %v6238 = vlaneseq
  %v6239 = vshrl.u32 %v6238, 7
  %v6240 = vsub.s32 %v6237, %v6239
  %v6241 = vrot.slane %v4906, %v6240
  %v6243 = vunpack.c.l.s4 1966171168
  %v6244 = vunpack.c.0.s8 %v6243
  %v6245 = vlaneseq
  %v6246 = vshrl.u32 %v6245, 7
  %v6247 = vsub.s32 %v6244, %v6246
  %v6248 = vrot.slane %v6234, %v6247
  %v6249 = vcombine.high %v6241, %v6241
  %v6250 = vcombine.high %v6248, %v6248
  %v6252 = vunpack.c.l.s4 1966171168
  %v6253 = vunpack.c.0.s8 %v6252
  %v6254 = vlaneseq
  %v6255 = vshrl.u32 %v6254, 7
  %v6256 = vsub.s32 %v6253, %v6255
  %v6257 = vrot.slane %v6241, %v6256
  %v6259 = vunpack.c.l.s4 1966171168
  %v6260 = vunpack.c.0.s8 %v6259
  %v6261 = vlaneseq
  %v6262 = vshrl.u32 %v6261, 7
  %v6263 = vsub.s32 %v6260, %v6262
  %v6264 = vrot.slane %v6248, %v6263
  %v6266 = vunpack.c.l.s4 1966171168
  %v6267 = vunpack.c.0.s8 %v6266
  %v6268 = vlaneseq
  %v6269 = vshrl.u32 %v6268, 7
  %v6270 = vsub.s32 %v6267, %v6269
  %v6271 = vrot.slane %v6249, %v6270
  %v6273 = vunpack.c.l.s4 1966171168
  %v6274 = vunpack.c.0.s8 %v6273
  %v6275 = vlaneseq
  %v6276 = vshrl.u32 %v6275, 7
  %v6277 = vsub.s32 %v6274, %v6276
  %v6278 = vrot.slane %v6250, %v6277
  %v6279 = vcombine.high %v6257, %v6257
  %v6280 = vcombine.high %v6264, %v6264
  %v6281 = vcombine.high %v6271, %v6271
  %v6282 = vcombine.high %v6278, %v6278
  %v6283 = vcombine.high %v4907, %v4907
  %v6285 = vunpack.c.l.s4 1966171168
  %v6286 = vunpack.c.0.s8 %v6285
  %v6287 = vlaneseq
  %v6288 = vshrl.u32 %v6287, 7
  %v6289 = vsub.s32 %v6286, %v6288
  %v6290 = vrot.slane %v4907, %v6289
  %v6292 = vunpack.c.l.s4 1966171168
  %v6293 = vunpack.c.0.s8 %v6292
  %v6294 = vlaneseq
  %v6295 = vshrl.u32 %v6294, 7
  %v6296 = vsub.s32 %v6293, %v6295
  %v6297 = vrot.slane %v6283, %v6296
  %v6298 = vcombine.high %v6290, %v6290
  %v6299 = vcombine.high %v6297, %v6297
  %v6301 = vunpack.c.l.s4 1966171168
  %v6302 = vunpack.c.0.s8 %v6301
  %v6303 = vlaneseq
  %v6304 = vshrl.u32 %v6303, 7
  %v6305 = vsub.s32 %v6302, %v6304
  %v6306 = vrot.slane %v6290, %v6305
  %v6308 = vunpack.c.l.s4 1966171168
  %v6309 = vunpack.c.0.s8 %v6308
  %v6310 = vlaneseq
  %v6311 = vshrl.u32 %v6310, 7
  %v6312 = vsub.s32 %v6309, %v6311
  %v6313 = vrot.slane %v6297, %v6312
  %v6315 = vunpack.c.l.s4 1966171168
  %v6316 = vunpack.c.0.s8 %v6315
  %v6317 = vlaneseq
  %v6318 = vshrl.u32 %v6317, 7
  %v6319 = vsub.s32 %v6316, %v6318
  %v6320 = vrot.slane %v6298, %v6319
  %v6322 = vunpack.c.l.s4 1966171168
  %v6323 = vunpack.c.0.s8 %v6322
  %v6324 = vlaneseq
  %v6325 = vshrl.u32 %v6324, 7
  %v6326 = vsub.s32 %v6323, %v6325
  %v6327 = vrot.slane %v6299, %v6326
  %v6328 = vcombine.high %v6306, %v6306
  %v6329 = vcombine.high %v6313, %v6313
  %v6330 = vcombine.high %v6320, %v6320
  %v6331 = vcombine.high %v6327, %v6327
  %v6332 = vcombine.high %v4908, %v4908
  %v6334 = vunpack.c.l.s4 1966171168
  %v6335 = vunpack.c.0.s8 %v6334
  %v6336 = vlaneseq
  %v6337 = vshrl.u32 %v6336, 7
  %v6338 = vsub.s32 %v6335, %v6337
  %v6339 = vrot.slane %v4908, %v6338
  %v6341 = vunpack.c.l.s4 1966171168
  %v6342 = vunpack.c.0.s8 %v6341
  %v6343 = vlaneseq
  %v6344 = vshrl.u32 %v6343, 7
  %v6345 = vsub.s32 %v6342, %v6344
  %v6346 = vrot.slane %v6332, %v6345
  %v6347 = vcombine.high %v6339, %v6339
  %v6348 = vcombine.high %v6346, %v6346
  %v6350 = vunpack.c.l.s4 1966171168
  %v6351 = vunpack.c.0.s8 %v6350
  %v6352 = vlaneseq
  %v6353 = vshrl.u32 %v6352, 7
  %v6354 = vsub.s32 %v6351, %v6353
  %v6355 = vrot.slane %v6339, %v6354
  %v6357 = vunpack.c.l.s4 1966171168
  %v6358 = vunpack.c.0.s8 %v6357
  %v6359 = vlaneseq
  %v6360 = vshrl.u32 %v6359, 7
  %v6361 = vsub.s32 %v6358, %v6360
  %v6362 = vrot.slane %v6346, %v6361
  %v6364 = vunpack.c.l.s4 1966171168
  %v6365 = vunpack.c.0.s8 %v6364
  %v6366 = vlaneseq
  %v6367 = vshrl.u32 %v6366, 7
  %v6368 = vsub.s32 %v6365, %v6367
  %v6369 = vrot.slane %v6347, %v6368
  %v6371 = vunpack.c.l.s4 1966171168
  %v6372 = vunpack.c.0.s8 %v6371
  %v6373 = vlaneseq
  %v6374 = vshrl.u32 %v6373, 7
  %v6375 = vsub.s32 %v6372, %v6374
  %v6376 = vrot.slane %v6348, %v6375
  %v6377 = vcombine.high %v6355, %v6355
  %v6378 = vcombine.high %v6362, %v6362
  %v6379 = vcombine.high %v6369, %v6369
  %v6380 = vcombine.high %v6376, %v6376
  %v6381 = vcombine.high %v4909, %v4909
  %v6383 = vunpack.c.l.s4 1966171168
  %v6384 = vunpack.c.0.s8 %v6383
  %v6385 = vlaneseq
  %v6386 = vshrl.u32 %v6385, 7
  %v6387 = vsub.s32 %v6384, %v6386
  %v6388 = vrot.slane %v4909, %v6387
  %v6390 = vunpack.c.l.s4 1966171168
  %v6391 = vunpack.c.0.s8 %v6390
  %v6392 = vlaneseq
  %v6393 = vshrl.u32 %v6392, 7
  %v6394 = vsub.s32 %v6391, %v6393
  %v6395 = vrot.slane %v6381, %v6394
  %v6396 = vcombine.high %v6388, %v6388
  %v6397 = vcombine.high %v6395, %v6395
  %v6399 = vunpack.c.l.s4 1966171168
  %v6400 = vunpack.c.0.s8 %v6399
  %v6401 = vlaneseq
  %v6402 = vshrl.u32 %v6401, 7
  %v6403 = vsub.s32 %v6400, %v6402
  %v6404 = vrot.slane %v6388, %v6403
  %v6406 = vunpack.c.l.s4 1966171168
  %v6407 = vunpack.c.0.s8 %v6406
  %v6408 = vlaneseq
  %v6409 = vshrl.u32 %v6408, 7
  %v6410 = vsub.s32 %v6407, %v6409
  %v6411 = vrot.slane %v6395, %v6410
  %v6413 = vunpack.c.l.s4 1966171168
  %v6414 = vunpack.c.0.s8 %v6413
  %v6415 = vlaneseq
  %v6416 = vshrl.u32 %v6415, 7
  %v6417 = vsub.s32 %v6414, %v6416
  %v6418 = vrot.slane %v6396, %v6417
  %v6420 = vunpack.c.l.s4 1966171168
  %v6421 = vunpack.c.0.s8 %v6420
  %v6422 = vlaneseq
  %v6423 = vshrl.u32 %v6422, 7
  %v6424 = vsub.s32 %v6421, %v6423
  %v6425 = vrot.slane %v6397, %v6424
  %v6426 = vcombine.high %v6404, %v6404
  %v6427 = vcombine.high %v6411, %v6411
  %v6428 = vcombine.high %v6418, %v6418
  %v6429 = vcombine.high %v6425, %v6425
  %v6430 = vcombine.high %v4910, %v4910
  %v6432 = vunpack.c.l.s4 1966171168
  %v6433 = vunpack.c.0.s8 %v6432
  %v6434 = vlaneseq
  %v6435 = vshrl.u32 %v6434, 7
  %v6436 = vsub.s32 %v6433, %v6435
  %v6437 = vrot.slane %v4910, %v6436
  %v6439 = vunpack.c.l.s4 1966171168
  %v6440 = vunpack.c.0.s8 %v6439
  %v6441 = vlaneseq
  %v6442 = vshrl.u32 %v6441, 7
  %v6443 = vsub.s32 %v6440, %v6442
  %v6444 = vrot.slane %v6430, %v6443
  %v6445 = vcombine.high %v6437, %v6437
  %v6446 = vcombine.high %v6444, %v6444
  %v6448 = vunpack.c.l.s4 1966171168
  %v6449 = vunpack.c.0.s8 %v6448
  %v6450 = vlaneseq
  %v6451 = vshrl.u32 %v6450, 7
  %v6452 = vsub.s32 %v6449, %v6451
  %v6453 = vrot.slane %v6437, %v6452
  %v6455 = vunpack.c.l.s4 1966171168
  %v6456 = vunpack.c.0.s8 %v6455
  %v6457 = vlaneseq
  %v6458 = vshrl.u32 %v6457, 7
  %v6459 = vsub.s32 %v6456, %v6458
  %v6460 = vrot.slane %v6444, %v6459
  %v6462 = vunpack.c.l.s4 1966171168
  %v6463 = vunpack.c.0.s8 %v6462
  %v6464 = vlaneseq
  %v6465 = vshrl.u32 %v6464, 7
  %v6466 = vsub.s32 %v6463, %v6465
  %v6467 = vrot.slane %v6445, %v6466
  %v6469 = vunpack.c.l.s4 1966171168
  %v6470 = vunpack.c.0.s8 %v6469
  %v6471 = vlaneseq
  %v6472 = vshrl.u32 %v6471, 7
  %v6473 = vsub.s32 %v6470, %v6472
  %v6474 = vrot.slane %v6446, %v6473
  %v6475 = vcombine.high %v6453, %v6453
  %v6476 = vcombine.high %v6460, %v6460
  %v6477 = vcombine.high %v6467, %v6467
  %v6478 = vcombine.high %v6474, %v6474
  %v6479 = vcombine.high %v4911, %v4911
  %v6481 = vunpack.c.l.s4 1966171168
  %v6482 = vunpack.c.0.s8 %v6481
  %v6483 = vlaneseq
  %v6484 = vshrl.u32 %v6483, 7
  %v6485 = vsub.s32 %v6482, %v6484
  %v6486 = vrot.slane %v4911, %v6485
  %v6488 = vunpack.c.l.s4 1966171168
  %v6489 = vunpack.c.0.s8 %v6488
  %v6490 = vlaneseq
  %v6491 = vshrl.u32 %v6490, 7
  %v6492 = vsub.s32 %v6489, %v6491
  %v6493 = vrot.slane %v6479, %v6492
  %v6494 = vcombine.high %v6486, %v6486
  %v6495 = vcombine.high %v6493, %v6493
  %v6497 = vunpack.c.l.s4 1966171168
  %v6498 = vunpack.c.0.s8 %v6497
  %v6499 = vlaneseq
  %v6500 = vshrl.u32 %v6499, 7
  %v6501 = vsub.s32 %v6498, %v6500
  %v6502 = vrot.slane %v6486, %v6501
  %v6504 = vunpack.c.l.s4 1966171168
  %v6505 = vunpack.c.0.s8 %v6504
  %v6506 = vlaneseq
  %v6507 = vshrl.u32 %v6506, 7
  %v6508 = vsub.s32 %v6505, %v6507
  %v6509 = vrot.slane %v6493, %v6508
  %v6511 = vunpack.c.l.s4 1966171168
  %v6512 = vunpack.c.0.s8 %v6511
  %v6513 = vlaneseq
  %v6514 = vshrl.u32 %v6513, 7
  %v6515 = vsub.s32 %v6512, %v6514
  %v6516 = vrot.slane %v6494, %v6515
  %v6518 = vunpack.c.l.s4 1966171168
  %v6519 = vunpack.c.0.s8 %v6518
  %v6520 = vlaneseq
  %v6521 = vshrl.u32 %v6520, 7
  %v6522 = vsub.s32 %v6519, %v6521
  %v6523 = vrot.slane %v6495, %v6522
  %v6524 = vcombine.high %v6502, %v6502
  %v6525 = vcombine.high %v6509, %v6509
  %v6526 = vcombine.high %v6516, %v6516
  %v6527 = vcombine.high %v6523, %v6523
  %v6528 = vcombine.high %v4912, %v4912
  %v6530 = vunpack.c.l.s4 1966171168
  %v6531 = vunpack.c.0.s8 %v6530
  %v6532 = vlaneseq
  %v6533 = vshrl.u32 %v6532, 7
  %v6534 = vsub.s32 %v6531, %v6533
  %v6535 = vrot.slane %v4912, %v6534
  %v6537 = vunpack.c.l.s4 1966171168
  %v6538 = vunpack.c.0.s8 %v6537
  %v6539 = vlaneseq
  %v6540 = vshrl.u32 %v6539, 7
  %v6541 = vsub.s32 %v6538, %v6540
  %v6542 = vrot.slane %v6528, %v6541
  %v6543 = vcombine.high %v6535, %v6535
  %v6544 = vcombine.high %v6542, %v6542
  %v6546 = vunpack.c.l.s4 1966171168
  %v6547 = vunpack.c.0.s8 %v6546
  %v6548 = vlaneseq
  %v6549 = vshrl.u32 %v6548, 7
  %v6550 = vsub.s32 %v6547, %v6549
  %v6551 = vrot.slane %v6535, %v6550
  %v6553 = vunpack.c.l.s4 1966171168
  %v6554 = vunpack.c.0.s8 %v6553
  %v6555 = vlaneseq
  %v6556 = vshrl.u32 %v6555, 7
  %v6557 = vsub.s32 %v6554, %v6556
  %v6558 = vrot.slane %v6542, %v6557
  %v6560 = vunpack.c.l.s4 1966171168
  %v6561 = vunpack.c.0.s8 %v6560
  %v6562 = vlaneseq
  %v6563 = vshrl.u32 %v6562, 7
  %v6564 = vsub.s32 %v6561, %v6563
  %v6565 = vrot.slane %v6543, %v6564
  %v6567 = vunpack.c.l.s4 1966171168
  %v6568 = vunpack.c.0.s8 %v6567
  %v6569 = vlaneseq
  %v6570 = vshrl.u32 %v6569, 7
  %v6571 = vsub.s32 %v6568, %v6570
  %v6572 = vrot.slane %v6544, %v6571
  %v6573 = vcombine.high %v6551, %v6551
  %v6574 = vcombine.high %v6558, %v6558
  %v6575 = vcombine.high %v6565, %v6565
  %v6576 = vcombine.high %v6572, %v6572
  %v6577 = vcombine.high %v4913, %v4913
  %v6579 = vunpack.c.l.s4 1966171168
  %v6580 = vunpack.c.0.s8 %v6579
  %v6581 = vlaneseq
  %v6582 = vshrl.u32 %v6581, 7
  %v6583 = vsub.s32 %v6580, %v6582
  %v6584 = vrot.slane %v4913, %v6583
  %v6586 = vunpack.c.l.s4 1966171168
  %v6587 = vunpack.c.0.s8 %v6586
  %v6588 = vlaneseq
  %v6589 = vshrl.u32 %v6588, 7
  %v6590 = vsub.s32 %v6587, %v6589
  %v6591 = vrot.slane %v6577, %v6590
  %v6592 = vcombine.high %v6584, %v6584
  %v6593 = vcombine.high %v6591, %v6591
  %v6595 = vunpack.c.l.s4 1966171168
  %v6596 = vunpack.c.0.s8 %v6595
  %v6597 = vlaneseq
  %v6598 = vshrl.u32 %v6597, 7
  %v6599 = vsub.s32 %v6596, %v6598
  %v6600 = vrot.slane %v6584, %v6599
  %v6602 = vunpack.c.l.s4 1966171168
  %v6603 = vunpack.c.0.s8 %v6602
  %v6604 = vlaneseq
  %v6605 = vshrl.u32 %v6604, 7
  %v6606 = vsub.s32 %v6603, %v6605
  %v6607 = vrot.slane %v6591, %v6606
  %v6609 = vunpack.c.l.s4 1966171168
  %v6610 = vunpack.c.0.s8 %v6609
  %v6611 = vlaneseq
  %v6612 = vshrl.u32 %v6611, 7
  %v6613 = vsub.s32 %v6610, %v6612
  %v6614 = vrot.slane %v6592, %v6613
  %v6616 = vunpack.c.l.s4 1966171168
  %v6617 = vunpack.c.0.s8 %v6616
  %v6618 = vlaneseq
  %v6619 = vshrl.u32 %v6618, 7
  %v6620 = vsub.s32 %v6617, %v6619
  %v6621 = vrot.slane %v6593, %v6620
  %v6622 = vcombine.high %v6600, %v6600
  %v6623 = vcombine.high %v6607, %v6607
  %v6624 = vcombine.high %v6614, %v6614
  %v6625 = vcombine.high %v6621, %v6621
  %v6626 = vcombine.high %v4914, %v4914
  %v6628 = vunpack.c.l.s4 1966171168
  %v6629 = vunpack.c.0.s8 %v6628
  %v6630 = vlaneseq
  %v6631 = vshrl.u32 %v6630, 7
  %v6632 = vsub.s32 %v6629, %v6631
  %v6633 = vrot.slane %v4914, %v6632
  %v6635 = vunpack.c.l.s4 1966171168
  %v6636 = vunpack.c.0.s8 %v6635
  %v6637 = vlaneseq
  %v6638 = vshrl.u32 %v6637, 7
  %v6639 = vsub.s32 %v6636, %v6638
  %v6640 = vrot.slane %v6626, %v6639
  %v6641 = vcombine.high %v6633, %v6633
  %v6642 = vcombine.high %v6640, %v6640
  %v6644 = vunpack.c.l.s4 1966171168
  %v6645 = vunpack.c.0.s8 %v6644
  %v6646 = vlaneseq
  %v6647 = vshrl.u32 %v6646, 7
  %v6648 = vsub.s32 %v6645, %v6647
  %v6649 = vrot.slane %v6633, %v6648
  %v6651 = vunpack.c.l.s4 1966171168
  %v6652 = vunpack.c.0.s8 %v6651
  %v6653 = vlaneseq
  %v6654 = vshrl.u32 %v6653, 7
  %v6655 = vsub.s32 %v6652, %v6654
  %v6656 = vrot.slane %v6640, %v6655
  %v6658 = vunpack.c.l.s4 1966171168
  %v6659 = vunpack.c.0.s8 %v6658
  %v6660 = vlaneseq
  %v6661 = vshrl.u32 %v6660, 7
  %v6662 = vsub.s32 %v6659, %v6661
  %v6663 = vrot.slane %v6641, %v6662
  %v6665 = vunpack.c.l.s4 1966171168
  %v6666 = vunpack.c.0.s8 %v6665
  %v6667 = vlaneseq
  %v6668 = vshrl.u32 %v6667, 7
  %v6669 = vsub.s32 %v6666, %v6668
  %v6670 = vrot.slane %v6642, %v6669
  %v6671 = vcombine.high %v6649, %v6649
  %v6672 = vcombine.high %v6656, %v6656
  %v6673 = vcombine.high %v6663, %v6663
  %v6674 = vcombine.high %v6670, %v6670
  %v6675 = vcombine.high %v4915, %v4915
  %v6677 = vunpack.c.l.s4 1966171168
  %v6678 = vunpack.c.0.s8 %v6677
  %v6679 = vlaneseq
  %v6680 = vshrl.u32 %v6679, 7
  %v6681 = vsub.s32 %v6678, %v6680
  %v6682 = vrot.slane %v4915, %v6681
  %v6684 = vunpack.c.l.s4 1966171168
  %v6685 = vunpack.c.0.s8 %v6684
  %v6686 = vlaneseq
  %v6687 = vshrl.u32 %v6686, 7
  %v6688 = vsub.s32 %v6685, %v6687
  %v6689 = vrot.slane %v6675, %v6688
  %v6690 = vcombine.high %v6682, %v6682
  %v6691 = vcombine.high %v6689, %v6689
  %v6693 = vunpack.c.l.s4 1966171168
  %v6694 = vunpack.c.0.s8 %v6693
  %v6695 = vlaneseq
  %v6696 = vshrl.u32 %v6695, 7
  %v6697 = vsub.s32 %v6694, %v6696
  %v6698 = vrot.slane %v6682, %v6697
  %v6700 = vunpack.c.l.s4 1966171168
  %v6701 = vunpack.c.0.s8 %v6700
  %v6702 = vlaneseq
  %v6703 = vshrl.u32 %v6702, 7
  %v6704 = vsub.s32 %v6701, %v6703
  %v6705 = vrot.slane %v6689, %v6704
  %v6707 = vunpack.c.l.s4 1966171168
  %v6708 = vunpack.c.0.s8 %v6707
  %v6709 = vlaneseq
  %v6710 = vshrl.u32 %v6709, 7
  %v6711 = vsub.s32 %v6708, %v6710
  %v6712 = vrot.slane %v6690, %v6711
  %v6714 = vunpack.c.l.s4 1966171168
  %v6715 = vunpack.c.0.s8 %v6714
  %v6716 = vlaneseq
  %v6717 = vshrl.u32 %v6716, 7
  %v6718 = vsub.s32 %v6715, %v6717
  %v6719 = vrot.slane %v6691, %v6718
  %v6720 = vcombine.high %v6698, %v6698
  %v6721 = vcombine.high %v6705, %v6705
  %v6722 = vcombine.high %v6712, %v6712
  %v6723 = vcombine.high %v6719, %v6719
  %v6724 = vcombine.high %v4916, %v4916
  %v6726 = vunpack.c.l.s4 1966171168
  %v6727 = vunpack.c.0.s8 %v6726
  %v6728 = vlaneseq
  %v6729 = vshrl.u32 %v6728, 7
  %v6730 = vsub.s32 %v6727, %v6729
  %v6731 = vrot.slane %v4916, %v6730
  %v6733 = vunpack.c.l.s4 1966171168
  %v6734 = vunpack.c.0.s8 %v6733
  %v6735 = vlaneseq
  %v6736 = vshrl.u32 %v6735, 7
  %v6737 = vsub.s32 %v6734, %v6736
  %v6738 = vrot.slane %v6724, %v6737
  %v6739 = vcombine.high %v6731, %v6731
  %v6740 = vcombine.high %v6738, %v6738
  %v6742 = vunpack.c.l.s4 1966171168
  %v6743 = vunpack.c.0.s8 %v6742
  %v6744 = vlaneseq
  %v6745 = vshrl.u32 %v6744, 7
  %v6746 = vsub.s32 %v6743, %v6745
  %v6747 = vrot.slane %v6731, %v6746
  %v6749 = vunpack.c.l.s4 1966171168
  %v6750 = vunpack.c.0.s8 %v6749
  %v6751 = vlaneseq
  %v6752 = vshrl.u32 %v6751, 7
  %v6753 = vsub.s32 %v6750, %v6752
  %v6754 = vrot.slane %v6738, %v6753
  %v6756 = vunpack.c.l.s4 1966171168
  %v6757 = vunpack.c.0.s8 %v6756
  %v6758 = vlaneseq
  %v6759 = vshrl.u32 %v6758, 7
  %v6760 = vsub.s32 %v6757, %v6759
  %v6761 = vrot.slane %v6739, %v6760
  %v6763 = vunpack.c.l.s4 1966171168
  %v6764 = vunpack.c.0.s8 %v6763
  %v6765 = vlaneseq
  %v6766 = vshrl.u32 %v6765, 7
  %v6767 = vsub.s32 %v6764, %v6766
  %v6768 = vrot.slane %v6740, %v6767
  %v6769 = vcombine.high %v6747, %v6747
  %v6770 = vcombine.high %v6754, %v6754
  %v6771 = vcombine.high %v6761, %v6761
  %v6772 = vcombine.high %v6768, %v6768
  %v6773 = vlaneseq
  %v6774 = vshrl.u32 %v6773, 7
  %v6775 = vsub.s32 0, %v6774
  %v6776 = vrot.slane %v6012, %v6775
  %v6777 = vlaneseq
  %v6778 = vshrl.u32 %v6777, 7
  %v6779 = vsub.s32 0, %v6778
  %v6780 = vrot.slane %v6026, %v6779
  %v6781 = vlaneseq
  %v6782 = vshrl.u32 %v6781, 7
  %v6783 = vsub.s32 0, %v6782
  %v6784 = vrot.slane %v6034, %v6783
  %v6785 = vlaneseq
  %v6786 = vshrl.u32 %v6785, 7
  %v6787 = vsub.s32 0, %v6786
  %v6788 = vrot.slane %v6036, %v6787
  %v6789 = vlaneseq
  %v6790 = vshrl.u32 %v6789, 7
  %v6791 = vsub.s32 0, %v6790
  %v6792 = vrot.slane %v6019, %v6791
  %v6793 = vlaneseq
  %v6794 = vshrl.u32 %v6793, 7
  %v6795 = vsub.s32 0, %v6794
  %v6796 = vrot.slane %v6033, %v6795
  %v6797 = vlaneseq
  %v6798 = vshrl.u32 %v6797, 7
  %v6799 = vsub.s32 0, %v6798
  %v6800 = vrot.slane %v6035, %v6799
  %v6801 = vlaneseq
  %v6802 = vshrl.u32 %v6801, 7
  %v6803 = vsub.s32 0, %v6802
  %v6804 = vrot.slane %v6037, %v6803
  %v6805 = vlaneseq
  %v6806 = vshrl.u32 %v6805, 7
  %v6807 = vsub.s32 0, %v6806
  %v6808 = vrot.slane %v6061, %v6807
  %v6809 = vlaneseq
  %v6810 = vshrl.u32 %v6809, 7
  %v6811 = vsub.s32 0, %v6810
  %v6812 = vrot.slane %v6075, %v6811
  %v6813 = vlaneseq
  %v6814 = vshrl.u32 %v6813, 7
  %v6815 = vsub.s32 0, %v6814
  %v6816 = vrot.slane %v6083, %v6815
  %v6817 = vlaneseq
  %v6818 = vshrl.u32 %v6817, 7
  %v6819 = vsub.s32 0, %v6818
  %v6820 = vrot.slane %v6085, %v6819
  %v6821 = vlaneseq
  %v6822 = vshrl.u32 %v6821, 7
  %v6823 = vsub.s32 0, %v6822
  %v6824 = vrot.slane %v6068, %v6823
  %v6825 = vlaneseq
  %v6826 = vshrl.u32 %v6825, 7
  %v6827 = vsub.s32 0, %v6826
  %v6828 = vrot.slane %v6082, %v6827
  %v6829 = vlaneseq
  %v6830 = vshrl.u32 %v6829, 7
  %v6831 = vsub.s32 0, %v6830
  %v6832 = vrot.slane %v6084, %v6831
  %v6833 = vlaneseq
  %v6834 = vshrl.u32 %v6833, 7
  %v6835 = vsub.s32 0, %v6834
  %v6836 = vrot.slane %v6086, %v6835
  %v6837 = vlaneseq
  %v6838 = vshrl.u32 %v6837, 7
  %v6839 = vsub.s32 0, %v6838
  %v6840 = vrot.slane %v6110, %v6839
  %v6841 = vlaneseq
  %v6842 = vshrl.u32 %v6841, 7
  %v6843 = vsub.s32 0, %v6842
  %v6844 = vrot.slane %v6124, %v6843
  %v6845 = vlaneseq
  %v6846 = vshrl.u32 %v6845, 7
  %v6847 = vsub.s32 0, %v6846
  %v6848 = vrot.slane %v6132, %v6847
  %v6849 = vlaneseq
  %v6850 = vshrl.u32 %v6849, 7
  %v6851 = vsub.s32 0, %v6850
  %v6852 = vrot.slane %v6134, %v6851
  %v6853 = vlaneseq
  %v6854 = vshrl.u32 %v6853, 7
  %v6855 = vsub.s32 0, %v6854
  %v6856 = vrot.slane %v6117, %v6855
  %v6857 = vlaneseq
  %v6858 = vshrl.u32 %v6857, 7
  %v6859 = vsub.s32 0, %v6858
  %v6860 = vrot.slane %v6131, %v6859
  %v6861 = vlaneseq
  %v6862 = vshrl.u32 %v6861, 7
  %v6863 = vsub.s32 0, %v6862
  %v6864 = vrot.slane %v6133, %v6863
  %v6865 = vlaneseq
  %v6866 = vshrl.u32 %v6865, 7
  %v6867 = vsub.s32 0, %v6866
  %v6868 = vrot.slane %v6135, %v6867
  %v6869 = vlaneseq
  %v6870 = vshrl.u32 %v6869, 7
  %v6871 = vsub.s32 0, %v6870
  %v6872 = vrot.slane %v6159, %v6871
  %v6873 = vlaneseq
  %v6874 = vshrl.u32 %v6873, 7
  %v6875 = vsub.s32 0, %v6874
  %v6876 = vrot.slane %v6173, %v6875
  %v6877 = vlaneseq
  %v6878 = vshrl.u32 %v6877, 7
  %v6879 = vsub.s32 0, %v6878
  %v6880 = vrot.slane %v6181, %v6879
  %v6881 = vlaneseq
  %v6882 = vshrl.u32 %v6881, 7
  %v6883 = vsub.s32 0, %v6882
  %v6884 = vrot.slane %v6183, %v6883
  %v6885 = vlaneseq
  %v6886 = vshrl.u32 %v6885, 7
  %v6887 = vsub.s32 0, %v6886
  %v6888 = vrot.slane %v6166, %v6887
  %v6889 = vlaneseq
  %v6890 = vshrl.u32 %v6889, 7
  %v6891 = vsub.s32 0, %v6890
  %v6892 = vrot.slane %v6180, %v6891
  %v6893 = vlaneseq
  %v6894 = vshrl.u32 %v6893, 7
  %v6895 = vsub.s32 0, %v6894
  %v6896 = vrot.slane %v6182, %v6895
  %v6897 = vlaneseq
  %v6898 = vshrl.u32 %v6897, 7
  %v6899 = vsub.s32 0, %v6898
  %v6900 = vrot.slane %v6184, %v6899
  %v6901 = vlaneseq
  %v6902 = vshrl.u32 %v6901, 7
  %v6903 = vsub.s32 0, %v6902
  %v6904 = vrot.slane %v6208, %v6903
  %v6905 = vlaneseq
  %v6906 = vshrl.u32 %v6905, 7
  %v6907 = vsub.s32 0, %v6906
  %v6908 = vrot.slane %v6222, %v6907
  %v6909 = vlaneseq
  %v6910 = vshrl.u32 %v6909, 7
  %v6911 = vsub.s32 0, %v6910
  %v6912 = vrot.slane %v6230, %v6911
  %v6913 = vlaneseq
  %v6914 = vshrl.u32 %v6913, 7
  %v6915 = vsub.s32 0, %v6914
  %v6916 = vrot.slane %v6232, %v6915
  %v6917 = vlaneseq
  %v6918 = vshrl.u32 %v6917, 7
  %v6919 = vsub.s32 0, %v6918
  %v6920 = vrot.slane %v6215, %v6919
  %v6921 = vlaneseq
  %v6922 = vshrl.u32 %v6921, 7
  %v6923 = vsub.s32 0, %v6922
  %v6924 = vrot.slane %v6229, %v6923
  %v6925 = vlaneseq
  %v6926 = vshrl.u32 %v6925, 7
  %v6927 = vsub.s32 0, %v6926
  %v6928 = vrot.slane %v6231, %v6927
  %v6929 = vlaneseq
  %v6930 = vshrl.u32 %v6929, 7
  %v6931 = vsub.s32 0, %v6930
  %v6932 = vrot.slane %v6233, %v6931
  %v6933 = vlaneseq
  %v6934 = vshrl.u32 %v6933, 7
  %v6935 = vsub.s32 0, %v6934
  %v6936 = vrot.slane %v6257, %v6935
  %v6937 = vlaneseq
  %v6938 = vshrl.u32 %v6937, 7
  %v6939 = vsub.s32 0, %v6938
  %v6940 = vrot.slane %v6271, %v6939
  %v6941 = vlaneseq
  %v6942 = vshrl.u32 %v6941, 7
  %v6943 = vsub.s32 0, %v6942
  %v6944 = vrot.slane %v6279, %v6943
  %v6945 = vlaneseq
  %v6946 = vshrl.u32 %v6945, 7
  %v6947 = vsub.s32 0, %v6946
  %v6948 = vrot.slane %v6281, %v6947
  %v6949 = vlaneseq
  %v6950 = vshrl.u32 %v6949, 7
  %v6951 = vsub.s32 0, %v6950
  %v6952 = vrot.slane %v6264, %v6951
  %v6953 = vlaneseq
  %v6954 = vshrl.u32 %v6953, 7
  %v6955 = vsub.s32 0, %v6954
  %v6956 = vrot.slane %v6278, %v6955
  %v6957 = vlaneseq
  %v6958 = vshrl.u32 %v6957, 7
  %v6959 = vsub.s32 0, %v6958
  %v6960 = vrot.slane %v6280, %v6959
  %v6961 = vlaneseq
  %v6962 = vshrl.u32 %v6961, 7
  %v6963 = vsub.s32 0, %v6962
  %v6964 = vrot.slane %v6282, %v6963
  %v6965 = vlaneseq
  %v6966 = vshrl.u32 %v6965, 7
  %v6967 = vsub.s32 0, %v6966
  %v6968 = vrot.slane %v6306, %v6967
  %v6969 = vlaneseq
  %v6970 = vshrl.u32 %v6969, 7
  %v6971 = vsub.s32 0, %v6970
  %v6972 = vrot.slane %v6320, %v6971
  %v6973 = vlaneseq
  %v6974 = vshrl.u32 %v6973, 7
  %v6975 = vsub.s32 0, %v6974
  %v6976 = vrot.slane %v6328, %v6975
  %v6977 = vlaneseq
  %v6978 = vshrl.u32 %v6977, 7
  %v6979 = vsub.s32 0, %v6978
  %v6980 = vrot.slane %v6330, %v6979
  %v6981 = vlaneseq
  %v6982 = vshrl.u32 %v6981, 7
  %v6983 = vsub.s32 0, %v6982
  %v6984 = vrot.slane %v6313, %v6983
  %v6985 = vlaneseq
  %v6986 = vshrl.u32 %v6985, 7
  %v6987 = vsub.s32 0, %v6986
  %v6988 = vrot.slane %v6327, %v6987
  %v6989 = vlaneseq
  %v6990 = vshrl.u32 %v6989, 7
  %v6991 = vsub.s32 0, %v6990
  %v6992 = vrot.slane %v6329, %v6991
  %v6993 = vlaneseq
  %v6994 = vshrl.u32 %v6993, 7
  %v6995 = vsub.s32 0, %v6994
  %v6996 = vrot.slane %v6331, %v6995
  %v6997 = vlaneseq
  %v6998 = vshrl.u32 %v6997, 7
  %v6999 = vsub.s32 0, %v6998
  %v7000 = vrot.slane %v6355, %v6999
  %v7001 = vlaneseq
  %v7002 = vshrl.u32 %v7001, 7
  %v7003 = vsub.s32 0, %v7002
  %v7004 = vrot.slane %v6369, %v7003
  %v7005 = vlaneseq
  %v7006 = vshrl.u32 %v7005, 7
  %v7007 = vsub.s32 0, %v7006
  %v7008 = vrot.slane %v6377, %v7007
  %v7009 = vlaneseq
  %v7010 = vshrl.u32 %v7009, 7
  %v7011 = vsub.s32 0, %v7010
  %v7012 = vrot.slane %v6379, %v7011
  %v7013 = vlaneseq
  %v7014 = vshrl.u32 %v7013, 7
  %v7015 = vsub.s32 0, %v7014
  %v7016 = vrot.slane %v6362, %v7015
  %v7017 = vlaneseq
  %v7018 = vshrl.u32 %v7017, 7
  %v7019 = vsub.s32 0, %v7018
  %v7020 = vrot.slane %v6376, %v7019
  %v7021 = vlaneseq
  %v7022 = vshrl.u32 %v7021, 7
  %v7023 = vsub.s32 0, %v7022
  %v7024 = vrot.slane %v6378, %v7023
  %v7025 = vlaneseq
  %v7026 = vshrl.u32 %v7025, 7
  %v7027 = vsub.s32 0, %v7026
  %v7028 = vrot.slane %v6380, %v7027
  %v7029 = vlaneseq
  %v7030 = vshrl.u32 %v7029, 7
  %v7031 = vsub.s32 0, %v7030
  %v7032 = vrot.slane %v6404, %v7031
  %v7033 = vlaneseq
  %v7034 = vshrl.u32 %v7033, 7
  %v7035 = vsub.s32 0, %v7034
  %v7036 = vrot.slane %v6418, %v7035
  %v7037 = vlaneseq
  %v7038 = vshrl.u32 %v7037, 7
  %v7039 = vsub.s32 0, %v7038
  %v7040 = vrot.slane %v6426, %v7039
  %v7041 = vlaneseq
  %v7042 = vshrl.u32 %v7041, 7
  %v7043 = vsub.s32 0, %v7042
  %v7044 = vrot.slane %v6428, %v7043
  %v7045 = vlaneseq
  %v7046 = vshrl.u32 %v7045, 7
  %v7047 = vsub.s32 0, %v7046
  %v7048 = vrot.slane %v6411, %v7047
  %v7049 = vlaneseq
  %v7050 = vshrl.u32 %v7049, 7
  %v7051 = vsub.s32 0, %v7050
  %v7052 = vrot.slane %v6425, %v7051
  %v7053 = vlaneseq
  %v7054 = vshrl.u32 %v7053, 7
  %v7055 = vsub.s32 0, %v7054
  %v7056 = vrot.slane %v6427, %v7055
  %v7057 = vlaneseq
  %v7058 = vshrl.u32 %v7057, 7
  %v7059 = vsub.s32 0, %v7058
  %v7060 = vrot.slane %v6429, %v7059
  %v7061 = vlaneseq
  %v7062 = vshrl.u32 %v7061, 7
  %v7063 = vsub.s32 0, %v7062
  %v7064 = vrot.slane %v6453, %v7063
  %v7065 = vlaneseq
  %v7066 = vshrl.u32 %v7065, 7
  %v7067 = vsub.s32 0, %v7066
  %v7068 = vrot.slane %v6467, %v7067
  %v7069 = vlaneseq
  %v7070 = vshrl.u32 %v7069, 7
  %v7071 = vsub.s32 0, %v7070
  %v7072 = vrot.slane %v6475, %v7071
  %v7073 = vlaneseq
  %v7074 = vshrl.u32 %v7073, 7
  %v7075 = vsub.s32 0, %v7074
  %v7076 = vrot.slane %v6477, %v7075
  %v7077 = vlaneseq
  %v7078 = vshrl.u32 %v7077, 7
  %v7079 = vsub.s32 0, %v7078
  %v7080 = vrot.slane %v6460, %v7079
  %v7081 = vlaneseq
  %v7082 = vshrl.u32 %v7081, 7
  %v7083 = vsub.s32 0, %v7082
  %v7084 = vrot.slane %v6474, %v7083
  %v7085 = vlaneseq
  %v7086 = vshrl.u32 %v7085, 7
  %v7087 = vsub.s32 0, %v7086
  %v7088 = vrot.slane %v6476, %v7087
  %v7089 = vlaneseq
  %v7090 = vshrl.u32 %v7089, 7
  %v7091 = vsub.s32 0, %v7090
  %v7092 = vrot.slane %v6478, %v7091
  %v7093 = vlaneseq
  %v7094 = vshrl.u32 %v7093, 7
  %v7095 = vsub.s32 0, %v7094
  %v7096 = vrot.slane %v6502, %v7095
  %v7097 = vlaneseq
  %v7098 = vshrl.u32 %v7097, 7
  %v7099 = vsub.s32 0, %v7098
  %v7100 = vrot.slane %v6516, %v7099
  %v7101 = vlaneseq
  %v7102 = vshrl.u32 %v7101, 7
  %v7103 = vsub.s32 0, %v7102
  %v7104 = vrot.slane %v6524, %v7103
  %v7105 = vlaneseq
  %v7106 = vshrl.u32 %v7105, 7
  %v7107 = vsub.s32 0, %v7106
  %v7108 = vrot.slane %v6526, %v7107
  %v7109 = vlaneseq
  %v7110 = vshrl.u32 %v7109, 7
  %v7111 = vsub.s32 0, %v7110
  %v7112 = vrot.slane %v6509, %v7111
  %v7113 = vlaneseq
  %v7114 = vshrl.u32 %v7113, 7
  %v7115 = vsub.s32 0, %v7114
  %v7116 = vrot.slane %v6523, %v7115
  %v7117 = vlaneseq
  %v7118 = vshrl.u32 %v7117, 7
  %v7119 = vsub.s32 0, %v7118
  %v7120 = vrot.slane %v6525, %v7119
  %v7121 = vlaneseq
  %v7122 = vshrl.u32 %v7121, 7
  %v7123 = vsub.s32 0, %v7122
  %v7124 = vrot.slane %v6527, %v7123
  %v7125 = vlaneseq
  %v7126 = vshrl.u32 %v7125, 7
  %v7127 = vsub.s32 0, %v7126
  %v7128 = vrot.slane %v6551, %v7127
  %v7129 = vlaneseq
  %v7130 = vshrl.u32 %v7129, 7
  %v7131 = vsub.s32 0, %v7130
  %v7132 = vrot.slane %v6565, %v7131
  %v7133 = vlaneseq
  %v7134 = vshrl.u32 %v7133, 7
  %v7135 = vsub.s32 0, %v7134
  %v7136 = vrot.slane %v6573, %v7135
  %v7137 = vlaneseq
  %v7138 = vshrl.u32 %v7137, 7
  %v7139 = vsub.s32 0, %v7138
  %v7140 = vrot.slane %v6575, %v7139
  %v7141 = vlaneseq
  %v7142 = vshrl.u32 %v7141, 7
  %v7143 = vsub.s32 0, %v7142
  %v7144 = vrot.slane %v6558, %v7143
  %v7145 = vlaneseq
  %v7146 = vshrl.u32 %v7145, 7
  %v7147 = vsub.s32 0, %v7146
  %v7148 = vrot.slane %v6572, %v7147
  %v7149 = vlaneseq
  %v7150 = vshrl.u32 %v7149, 7
  %v7151 = vsub.s32 0, %v7150
  %v7152 = vrot.slane %v6574, %v7151
  %v7153 = vlaneseq
  %v7154 = vshrl.u32 %v7153, 7
  %v7155 = vsub.s32 0, %v7154
  %v7156 = vrot.slane %v6576, %v7155
  %v7157 = vlaneseq
  %v7158 = vshrl.u32 %v7157, 7
  %v7159 = vsub.s32 0, %v7158
  %v7160 = vrot.slane %v6600, %v7159
  %v7161 = vlaneseq
  %v7162 = vshrl.u32 %v7161, 7
  %v7163 = vsub.s32 0, %v7162
  %v7164 = vrot.slane %v6614, %v7163
  %v7165 = vlaneseq
  %v7166 = vshrl.u32 %v7165, 7
  %v7167 = vsub.s32 0, %v7166
  %v7168 = vrot.slane %v6622, %v7167
  %v7169 = vlaneseq
  %v7170 = vshrl.u32 %v7169, 7
  %v7171 = vsub.s32 0, %v7170
  %v7172 = vrot.slane %v6624, %v7171
  %v7173 = vlaneseq
  %v7174 = vshrl.u32 %v7173, 7
  %v7175 = vsub.s32 0, %v7174
  %v7176 = vrot.slane %v6607, %v7175
  %v7177 = vlaneseq
  %v7178 = vshrl.u32 %v7177, 7
  %v7179 = vsub.s32 0, %v7178
  %v7180 = vrot.slane %v6621, %v7179
  %v7181 = vlaneseq
  %v7182 = vshrl.u32 %v7181, 7
  %v7183 = vsub.s32 0, %v7182
  %v7184 = vrot.slane %v6623, %v7183
  %v7185 = vlaneseq
  %v7186 = vshrl.u32 %v7185, 7
  %v7187 = vsub.s32 0, %v7186
  %v7188 = vrot.slane %v6625, %v7187
  %v7189 = vlaneseq
  %v7190 = vshrl.u32 %v7189, 7
  %v7191 = vsub.s32 0, %v7190
  %v7192 = vrot.slane %v6649, %v7191
  %v7193 = vlaneseq
  %v7194 = vshrl.u32 %v7193, 7
  %v7195 = vsub.s32 0, %v7194
  %v7196 = vrot.slane %v6663, %v7195
  %v7197 = vlaneseq
  %v7198 = vshrl.u32 %v7197, 7
  %v7199 = vsub.s32 0, %v7198
  %v7200 = vrot.slane %v6671, %v7199
  %v7201 = vlaneseq
  %v7202 = vshrl.u32 %v7201, 7
  %v7203 = vsub.s32 0, %v7202
  %v7204 = vrot.slane %v6673, %v7203
  %v7205 = vlaneseq
  %v7206 = vshrl.u32 %v7205, 7
  %v7207 = vsub.s32 0, %v7206
  %v7208 = vrot.slane %v6656, %v7207
  %v7209 = vlaneseq
  %v7210 = vshrl.u32 %v7209, 7
  %v7211 = vsub.s32 0, %v7210
  %v7212 = vrot.slane %v6670, %v7211
  %v7213 = vlaneseq
  %v7214 = vshrl.u32 %v7213, 7
  %v7215 = vsub.s32 0, %v7214
  %v7216 = vrot.slane %v6672, %v7215
  %v7217 = vlaneseq
  %v7218 = vshrl.u32 %v7217, 7
  %v7219 = vsub.s32 0, %v7218
  %v7220 = vrot.slane %v6674, %v7219
  %v7221 = vlaneseq
  %v7222 = vshrl.u32 %v7221, 7
  %v7223 = vsub.s32 0, %v7222
  %v7224 = vrot.slane %v6698, %v7223
  %v7225 = vlaneseq
  %v7226 = vshrl.u32 %v7225, 7
  %v7227 = vsub.s32 0, %v7226
  %v7228 = vrot.slane %v6712, %v7227
  %v7229 = vlaneseq
  %v7230 = vshrl.u32 %v7229, 7
  %v7231 = vsub.s32 0, %v7230
  %v7232 = vrot.slane %v6720, %v7231
  %v7233 = vlaneseq
  %v7234 = vshrl.u32 %v7233, 7
  %v7235 = vsub.s32 0, %v7234
  %v7236 = vrot.slane %v6722, %v7235
  %v7237 = vlaneseq
  %v7238 = vshrl.u32 %v7237, 7
  %v7239 = vsub.s32 0, %v7238
  %v7240 = vrot.slane %v6705, %v7239
  %v7241 = vlaneseq
  %v7242 = vshrl.u32 %v7241, 7
  %v7243 = vsub.s32 0, %v7242
  %v7244 = vrot.slane %v6719, %v7243
  %v7245 = vlaneseq
  %v7246 = vshrl.u32 %v7245, 7
  %v7247 = vsub.s32 0, %v7246
  %v7248 = vrot.slane %v6721, %v7247
  %v7249 = vlaneseq
  %v7250 = vshrl.u32 %v7249, 7
  %v7251 = vsub.s32 0, %v7250
  %v7252 = vrot.slane %v6723, %v7251
  %v7253 = vlaneseq
  %v7254 = vshrl.u32 %v7253, 7
  %v7255 = vsub.s32 0, %v7254
  %v7256 = vrot.slane %v6747, %v7255
  %v7257 = vlaneseq
  %v7258 = vshrl.u32 %v7257, 7
  %v7259 = vsub.s32 0, %v7258
  %v7260 = vrot.slane %v6761, %v7259
  %v7261 = vlaneseq
  %v7262 = vshrl.u32 %v7261, 7
  %v7263 = vsub.s32 0, %v7262
  %v7264 = vrot.slane %v6769, %v7263
  %v7265 = vlaneseq
  %v7266 = vshrl.u32 %v7265, 7
  %v7267 = vsub.s32 0, %v7266
  %v7268 = vrot.slane %v6771, %v7267
  %v7269 = vlaneseq
  %v7270 = vshrl.u32 %v7269, 7
  %v7271 = vsub.s32 0, %v7270
  %v7272 = vrot.slane %v6754, %v7271
  %v7273 = vlaneseq
  %v7274 = vshrl.u32 %v7273, 7
  %v7275 = vsub.s32 0, %v7274
  %v7276 = vrot.slane %v6768, %v7275
  %v7277 = vlaneseq
  %v7278 = vshrl.u32 %v7277, 7
  %v7279 = vsub.s32 0, %v7278
  %v7280 = vrot.slane %v6770, %v7279
  %v7281 = vlaneseq
  %v7282 = vshrl.u32 %v7281, 7
  %v7283 = vsub.s32 0, %v7282
  %v7284 = vrot.slane %v6772, %v7283
  %v7413 = vsel %vm1859, %v5084, %v6776
  %v7414 = vsel %vm1859, %v5098, %v6780
  %v7415 = vsel %vm1859, %v5106, %v6784
  %v7416 = vsel %vm1859, %v5108, %v6788
  %v7417 = vsel %vm1859, %v5091, %v6792
  %v7418 = vsel %vm1859, %v5105, %v6796
  %v7419 = vsel %vm1859, %v5107, %v6800
  %v7420 = vsel %vm1859, %v5109, %v6804
  %v7421 = vsel %vm1859, %v5133, %v6808
  %v7422 = vsel %vm1859, %v5147, %v6812
  %v7423 = vsel %vm1859, %v5155, %v6816
  %v7424 = vsel %vm1859, %v5157, %v6820
  %v7425 = vsel %vm1859, %v5140, %v6824
  %v7426 = vsel %vm1859, %v5154, %v6828
  %v7427 = vsel %vm1859, %v5156, %v6832
  %v7428 = vsel %vm1859, %v5158, %v6836
  %v7429 = vsel %vm1859, %v5182, %v6840
  %v7430 = vsel %vm1859, %v5196, %v6844
  %v7431 = vsel %vm1859, %v5204, %v6848
  %v7432 = vsel %vm1859, %v5206, %v6852
  %v7433 = vsel %vm1859, %v5189, %v6856
  %v7434 = vsel %vm1859, %v5203, %v6860
  %v7435 = vsel %vm1859, %v5205, %v6864
  %v7436 = vsel %vm1859, %v5207, %v6868
  %v7437 = vsel %vm1859, %v5231, %v6872
  %v7438 = vsel %vm1859, %v5245, %v6876
  %v7439 = vsel %vm1859, %v5253, %v6880
  %v7440 = vsel %vm1859, %v5255, %v6884
  %v7441 = vsel %vm1859, %v5238, %v6888
  %v7442 = vsel %vm1859, %v5252, %v6892
  %v7443 = vsel %vm1859, %v5254, %v6896
  %v7444 = vsel %vm1859, %v5256, %v6900
  %v7445 = vsel %vm1859, %v5280, %v6904
  %v7446 = vsel %vm1859, %v5294, %v6908
  %v7447 = vsel %vm1859, %v5302, %v6912
  %v7448 = vsel %vm1859, %v5304, %v6916
  %v7449 = vsel %vm1859, %v5287, %v6920
  %v7450 = vsel %vm1859, %v5301, %v6924
  %v7451 = vsel %vm1859, %v5303, %v6928
  %v7452 = vsel %vm1859, %v5305, %v6932
  %v7453 = vsel %vm1859, %v5329, %v6936
  %v7454 = vsel %vm1859, %v5343, %v6940
  %v7455 = vsel %vm1859, %v5351, %v6944
  %v7456 = vsel %vm1859, %v5353, %v6948
  %v7457 = vsel %vm1859, %v5336, %v6952
  %v7458 = vsel %vm1859, %v5350, %v6956
  %v7459 = vsel %vm1859, %v5352, %v6960
  %v7460 = vsel %vm1859, %v5354, %v6964
  %v7461 = vsel %vm1859, %v5378, %v6968
  %v7462 = vsel %vm1859, %v5392, %v6972
  %v7463 = vsel %vm1859, %v5400, %v6976
  %v7464 = vsel %vm1859, %v5402, %v6980
  %v7465 = vsel %vm1859, %v5385, %v6984
  %v7466 = vsel %vm1859, %v5399, %v6988
  %v7467 = vsel %vm1859, %v5401, %v6992
  %v7468 = vsel %vm1859, %v5403, %v6996
  %v7469 = vsel %vm1859, %v5427, %v7000
  %v7470 = vsel %vm1859, %v5441, %v7004
  %v7471 = vsel %vm1859, %v5449, %v7008
  %v7472 = vsel %vm1859, %v5451, %v7012
  %v7473 = vsel %vm1859, %v5434, %v7016
  %v7474 = vsel %vm1859, %v5448, %v7020
  %v7475 = vsel %vm1859, %v5450, %v7024
  %v7476 = vsel %vm1859, %v5452, %v7028
  %v7477 = vsel %vm1859, %v5476, %v7032
  %v7478 = vsel %vm1859, %v5490, %v7036
  %v7479 = vsel %vm1859, %v5498, %v7040
  %v7480 = vsel %vm1859, %v5500, %v7044
  %v7481 = vsel %vm1859, %v5483, %v7048
  %v7482 = vsel %vm1859, %v5497, %v7052
  %v7483 = vsel %vm1859, %v5499, %v7056
  %v7484 = vsel %vm1859, %v5501, %v7060
  %v7485 = vsel %vm1859, %v5525, %v7064
  %v7486 = vsel %vm1859, %v5539, %v7068
  %v7487 = vsel %vm1859, %v5547, %v7072
  %v7488 = vsel %vm1859, %v5549, %v7076
  %v7489 = vsel %vm1859, %v5532, %v7080
  %v7490 = vsel %vm1859, %v5546, %v7084
  %v7491 = vsel %vm1859, %v5548, %v7088
  %v7492 = vsel %vm1859, %v5550, %v7092
  %v7493 = vsel %vm1859, %v5574, %v7096
  %v7494 = vsel %vm1859, %v5588, %v7100
  %v7495 = vsel %vm1859, %v5596, %v7104
  %v7496 = vsel %vm1859, %v5598, %v7108
  %v7497 = vsel %vm1859, %v5581, %v7112
  %v7498 = vsel %vm1859, %v5595, %v7116
  %v7499 = vsel %vm1859, %v5597, %v7120
  %v7500 = vsel %vm1859, %v5599, %v7124
  %v7501 = vsel %vm1859, %v5623, %v7128
  %v7502 = vsel %vm1859, %v5637, %v7132
  %v7503 = vsel %vm1859, %v5645, %v7136
  %v7504 = vsel %vm1859, %v5647, %v7140
  %v7505 = vsel %vm1859, %v5630, %v7144
  %v7506 = vsel %vm1859, %v5644, %v7148
  %v7507 = vsel %vm1859, %v5646, %v7152
  %v7508 = vsel %vm1859, %v5648, %v7156
  %v7509 = vsel %vm1859, %v5672, %v7160
  %v7510 = vsel %vm1859, %v5686, %v7164
  %v7511 = vsel %vm1859, %v5694, %v7168
  %v7512 = vsel %vm1859, %v5696, %v7172
  %v7513 = vsel %vm1859, %v5679, %v7176
  %v7514 = vsel %vm1859, %v5693, %v7180
  %v7515 = vsel %vm1859, %v5695, %v7184
  %v7516 = vsel %vm1859, %v5697, %v7188
  %v7517 = vsel %vm1859, %v5721, %v7192
  %v7518 = vsel %vm1859, %v5735, %v7196
  %v7519 = vsel %vm1859, %v5743, %v7200
  %v7520 = vsel %vm1859, %v5745, %v7204
  %v7521 = vsel %vm1859, %v5728, %v7208
  %v7522 = vsel %vm1859, %v5742, %v7212
  %v7523 = vsel %vm1859, %v5744, %v7216
  %v7524 = vsel %vm1859, %v5746, %v7220
  %v7525 = vsel %vm1859, %v5770, %v7224
  %v7526 = vsel %vm1859, %v5784, %v7228
  %v7527 = vsel %vm1859, %v5792, %v7232
  %v7528 = vsel %vm1859, %v5794, %v7236
  %v7529 = vsel %vm1859, %v5777, %v7240
  %v7530 = vsel %vm1859, %v5791, %v7244
  %v7531 = vsel %vm1859, %v5793, %v7248
  %v7532 = vsel %vm1859, %v5795, %v7252
  %v7533 = vsel %vm1859, %v5819, %v7256
  %v7534 = vsel %vm1859, %v5833, %v7260
  %v7535 = vsel %vm1859, %v5841, %v7264
  %v7536 = vsel %vm1859, %v5843, %v7268
  %v7537 = vsel %vm1859, %v5826, %v7272
  %v7538 = vsel %vm1859, %v5840, %v7276
  %v7539 = vsel %vm1859, %v5842, %v7280
  %v7540 = vsel %vm1859, %v5844, %v7284
  %v7557 = vcombine.high %v4965, %v4965
  %v7559 = vunpack.c.l.s4 1966171168
  %v7560 = vunpack.c.0.s8 %v7559
  %v7561 = vlaneseq
  %v7562 = vshrl.u32 %v7561, 7
  %v7563 = vsub.s32 %v7560, %v7562
  %v7564 = vrot.slane %v4965, %v7563
  %v7566 = vunpack.c.l.s4 1966171168
  %v7567 = vunpack.c.0.s8 %v7566
  %v7568 = vlaneseq
  %v7569 = vshrl.u32 %v7568, 7
  %v7570 = vsub.s32 %v7567, %v7569
  %v7571 = vrot.slane %v7557, %v7570
  %v7572 = vcombine.high %v7564, %v7564
  %v7573 = vcombine.high %v7571, %v7571
  %v7575 = vunpack.c.l.s4 1966171168
  %v7576 = vunpack.c.0.s8 %v7575
  %v7577 = vlaneseq
  %v7578 = vshrl.u32 %v7577, 7
  %v7579 = vsub.s32 %v7576, %v7578
  %v7580 = vrot.slane %v7564, %v7579
  %v7582 = vunpack.c.l.s4 1966171168
  %v7583 = vunpack.c.0.s8 %v7582
  %v7584 = vlaneseq
  %v7585 = vshrl.u32 %v7584, 7
  %v7586 = vsub.s32 %v7583, %v7585
  %v7587 = vrot.slane %v7571, %v7586
  %v7589 = vunpack.c.l.s4 1966171168
  %v7590 = vunpack.c.0.s8 %v7589
  %v7591 = vlaneseq
  %v7592 = vshrl.u32 %v7591, 7
  %v7593 = vsub.s32 %v7590, %v7592
  %v7594 = vrot.slane %v7572, %v7593
  %v7596 = vunpack.c.l.s4 1966171168
  %v7597 = vunpack.c.0.s8 %v7596
  %v7598 = vlaneseq
  %v7599 = vshrl.u32 %v7598, 7
  %v7600 = vsub.s32 %v7597, %v7599
  %v7601 = vrot.slane %v7573, %v7600
  %v7602 = vcombine.high %v7580, %v7580
  %v7603 = vcombine.high %v7587, %v7587
  %v7604 = vcombine.high %v7594, %v7594
  %v7605 = vcombine.high %v7601, %v7601
  %v7606 = vcombine.high %v4966, %v4966
  %v7608 = vunpack.c.l.s4 1966171168
  %v7609 = vunpack.c.0.s8 %v7608
  %v7610 = vlaneseq
  %v7611 = vshrl.u32 %v7610, 7
  %v7612 = vsub.s32 %v7609, %v7611
  %v7613 = vrot.slane %v4966, %v7612
  %v7615 = vunpack.c.l.s4 1966171168
  %v7616 = vunpack.c.0.s8 %v7615
  %v7617 = vlaneseq
  %v7618 = vshrl.u32 %v7617, 7
  %v7619 = vsub.s32 %v7616, %v7618
  %v7620 = vrot.slane %v7606, %v7619
  %v7621 = vcombine.high %v7613, %v7613
  %v7622 = vcombine.high %v7620, %v7620
  %v7624 = vunpack.c.l.s4 1966171168
  %v7625 = vunpack.c.0.s8 %v7624
  %v7626 = vlaneseq
  %v7627 = vshrl.u32 %v7626, 7
  %v7628 = vsub.s32 %v7625, %v7627
  %v7629 = vrot.slane %v7613, %v7628
  %v7631 = vunpack.c.l.s4 1966171168
  %v7632 = vunpack.c.0.s8 %v7631
  %v7633 = vlaneseq
  %v7634 = vshrl.u32 %v7633, 7
  %v7635 = vsub.s32 %v7632, %v7634
  %v7636 = vrot.slane %v7620, %v7635
  %v7638 = vunpack.c.l.s4 1966171168
  %v7639 = vunpack.c.0.s8 %v7638
  %v7640 = vlaneseq
  %v7641 = vshrl.u32 %v7640, 7
  %v7642 = vsub.s32 %v7639, %v7641
  %v7643 = vrot.slane %v7621, %v7642
  %v7645 = vunpack.c.l.s4 1966171168
  %v7646 = vunpack.c.0.s8 %v7645
  %v7647 = vlaneseq
  %v7648 = vshrl.u32 %v7647, 7
  %v7649 = vsub.s32 %v7646, %v7648
  %v7650 = vrot.slane %v7622, %v7649
  %v7651 = vcombine.high %v7629, %v7629
  %v7652 = vcombine.high %v7636, %v7636
  %v7653 = vcombine.high %v7643, %v7643
  %v7654 = vcombine.high %v7650, %v7650
  %v7655 = vcombine.high %v4967, %v4967
  %v7657 = vunpack.c.l.s4 1966171168
  %v7658 = vunpack.c.0.s8 %v7657
  %v7659 = vlaneseq
  %v7660 = vshrl.u32 %v7659, 7
  %v7661 = vsub.s32 %v7658, %v7660
  %v7662 = vrot.slane %v4967, %v7661
  %v7664 = vunpack.c.l.s4 1966171168
  %v7665 = vunpack.c.0.s8 %v7664
  %v7666 = vlaneseq
  %v7667 = vshrl.u32 %v7666, 7
  %v7668 = vsub.s32 %v7665, %v7667
  %v7669 = vrot.slane %v7655, %v7668
  %v7670 = vcombine.high %v7662, %v7662
  %v7671 = vcombine.high %v7669, %v7669
  %v7673 = vunpack.c.l.s4 1966171168
  %v7674 = vunpack.c.0.s8 %v7673
  %v7675 = vlaneseq
  %v7676 = vshrl.u32 %v7675, 7
  %v7677 = vsub.s32 %v7674, %v7676
  %v7678 = vrot.slane %v7662, %v7677
  %v7680 = vunpack.c.l.s4 1966171168
  %v7681 = vunpack.c.0.s8 %v7680
  %v7682 = vlaneseq
  %v7683 = vshrl.u32 %v7682, 7
  %v7684 = vsub.s32 %v7681, %v7683
  %v7685 = vrot.slane %v7669, %v7684
  %v7687 = vunpack.c.l.s4 1966171168
  %v7688 = vunpack.c.0.s8 %v7687
  %v7689 = vlaneseq
  %v7690 = vshrl.u32 %v7689, 7
  %v7691 = vsub.s32 %v7688, %v7690
  %v7692 = vrot.slane %v7670, %v7691
  %v7694 = vunpack.c.l.s4 1966171168
  %v7695 = vunpack.c.0.s8 %v7694
  %v7696 = vlaneseq
  %v7697 = vshrl.u32 %v7696, 7
  %v7698 = vsub.s32 %v7695, %v7697
  %v7699 = vrot.slane %v7671, %v7698
  %v7700 = vcombine.high %v7678, %v7678
  %v7701 = vcombine.high %v7685, %v7685
  %v7702 = vcombine.high %v7692, %v7692
  %v7703 = vcombine.high %v7699, %v7699
  %v7704 = vcombine.high %v4968, %v4968
  %v7706 = vunpack.c.l.s4 1966171168
  %v7707 = vunpack.c.0.s8 %v7706
  %v7708 = vlaneseq
  %v7709 = vshrl.u32 %v7708, 7
  %v7710 = vsub.s32 %v7707, %v7709
  %v7711 = vrot.slane %v4968, %v7710
  %v7713 = vunpack.c.l.s4 1966171168
  %v7714 = vunpack.c.0.s8 %v7713
  %v7715 = vlaneseq
  %v7716 = vshrl.u32 %v7715, 7
  %v7717 = vsub.s32 %v7714, %v7716
  %v7718 = vrot.slane %v7704, %v7717
  %v7719 = vcombine.high %v7711, %v7711
  %v7720 = vcombine.high %v7718, %v7718
  %v7722 = vunpack.c.l.s4 1966171168
  %v7723 = vunpack.c.0.s8 %v7722
  %v7724 = vlaneseq
  %v7725 = vshrl.u32 %v7724, 7
  %v7726 = vsub.s32 %v7723, %v7725
  %v7727 = vrot.slane %v7711, %v7726
  %v7729 = vunpack.c.l.s4 1966171168
  %v7730 = vunpack.c.0.s8 %v7729
  %v7731 = vlaneseq
  %v7732 = vshrl.u32 %v7731, 7
  %v7733 = vsub.s32 %v7730, %v7732
  %v7734 = vrot.slane %v7718, %v7733
  %v7736 = vunpack.c.l.s4 1966171168
  %v7737 = vunpack.c.0.s8 %v7736
  %v7738 = vlaneseq
  %v7739 = vshrl.u32 %v7738, 7
  %v7740 = vsub.s32 %v7737, %v7739
  %v7741 = vrot.slane %v7719, %v7740
  %v7743 = vunpack.c.l.s4 1966171168
  %v7744 = vunpack.c.0.s8 %v7743
  %v7745 = vlaneseq
  %v7746 = vshrl.u32 %v7745, 7
  %v7747 = vsub.s32 %v7744, %v7746
  %v7748 = vrot.slane %v7720, %v7747
  %v7749 = vcombine.high %v7727, %v7727
  %v7750 = vcombine.high %v7734, %v7734
  %v7751 = vcombine.high %v7741, %v7741
  %v7752 = vcombine.high %v7748, %v7748
  %v7753 = vcombine.high %v4969, %v4969
  %v7755 = vunpack.c.l.s4 1966171168
  %v7756 = vunpack.c.0.s8 %v7755
  %v7757 = vlaneseq
  %v7758 = vshrl.u32 %v7757, 7
  %v7759 = vsub.s32 %v7756, %v7758
  %v7760 = vrot.slane %v4969, %v7759
  %v7762 = vunpack.c.l.s4 1966171168
  %v7763 = vunpack.c.0.s8 %v7762
  %v7764 = vlaneseq
  %v7765 = vshrl.u32 %v7764, 7
  %v7766 = vsub.s32 %v7763, %v7765
  %v7767 = vrot.slane %v7753, %v7766
  %v7768 = vcombine.high %v7760, %v7760
  %v7769 = vcombine.high %v7767, %v7767
  %v7771 = vunpack.c.l.s4 1966171168
  %v7772 = vunpack.c.0.s8 %v7771
  %v7773 = vlaneseq
  %v7774 = vshrl.u32 %v7773, 7
  %v7775 = vsub.s32 %v7772, %v7774
  %v7776 = vrot.slane %v7760, %v7775
  %v7778 = vunpack.c.l.s4 1966171168
  %v7779 = vunpack.c.0.s8 %v7778
  %v7780 = vlaneseq
  %v7781 = vshrl.u32 %v7780, 7
  %v7782 = vsub.s32 %v7779, %v7781
  %v7783 = vrot.slane %v7767, %v7782
  %v7785 = vunpack.c.l.s4 1966171168
  %v7786 = vunpack.c.0.s8 %v7785
  %v7787 = vlaneseq
  %v7788 = vshrl.u32 %v7787, 7
  %v7789 = vsub.s32 %v7786, %v7788
  %v7790 = vrot.slane %v7768, %v7789
  %v7792 = vunpack.c.l.s4 1966171168
  %v7793 = vunpack.c.0.s8 %v7792
  %v7794 = vlaneseq
  %v7795 = vshrl.u32 %v7794, 7
  %v7796 = vsub.s32 %v7793, %v7795
  %v7797 = vrot.slane %v7769, %v7796
  %v7798 = vcombine.high %v7776, %v7776
  %v7799 = vcombine.high %v7783, %v7783
  %v7800 = vcombine.high %v7790, %v7790
  %v7801 = vcombine.high %v7797, %v7797
  %v7802 = vcombine.high %v4970, %v4970
  %v7804 = vunpack.c.l.s4 1966171168
  %v7805 = vunpack.c.0.s8 %v7804
  %v7806 = vlaneseq
  %v7807 = vshrl.u32 %v7806, 7
  %v7808 = vsub.s32 %v7805, %v7807
  %v7809 = vrot.slane %v4970, %v7808
  %v7811 = vunpack.c.l.s4 1966171168
  %v7812 = vunpack.c.0.s8 %v7811
  %v7813 = vlaneseq
  %v7814 = vshrl.u32 %v7813, 7
  %v7815 = vsub.s32 %v7812, %v7814
  %v7816 = vrot.slane %v7802, %v7815
  %v7817 = vcombine.high %v7809, %v7809
  %v7818 = vcombine.high %v7816, %v7816
  %v7820 = vunpack.c.l.s4 1966171168
  %v7821 = vunpack.c.0.s8 %v7820
  %v7822 = vlaneseq
  %v7823 = vshrl.u32 %v7822, 7
  %v7824 = vsub.s32 %v7821, %v7823
  %v7825 = vrot.slane %v7809, %v7824
  %v7827 = vunpack.c.l.s4 1966171168
  %v7828 = vunpack.c.0.s8 %v7827
  %v7829 = vlaneseq
  %v7830 = vshrl.u32 %v7829, 7
  %v7831 = vsub.s32 %v7828, %v7830
  %v7832 = vrot.slane %v7816, %v7831
  %v7834 = vunpack.c.l.s4 1966171168
  %v7835 = vunpack.c.0.s8 %v7834
  %v7836 = vlaneseq
  %v7837 = vshrl.u32 %v7836, 7
  %v7838 = vsub.s32 %v7835, %v7837
  %v7839 = vrot.slane %v7817, %v7838
  %v7841 = vunpack.c.l.s4 1966171168
  %v7842 = vunpack.c.0.s8 %v7841
  %v7843 = vlaneseq
  %v7844 = vshrl.u32 %v7843, 7
  %v7845 = vsub.s32 %v7842, %v7844
  %v7846 = vrot.slane %v7818, %v7845
  %v7847 = vcombine.high %v7825, %v7825
  %v7848 = vcombine.high %v7832, %v7832
  %v7849 = vcombine.high %v7839, %v7839
  %v7850 = vcombine.high %v7846, %v7846
  %v7851 = vcombine.high %v4971, %v4971
  %v7853 = vunpack.c.l.s4 1966171168
  %v7854 = vunpack.c.0.s8 %v7853
  %v7855 = vlaneseq
  %v7856 = vshrl.u32 %v7855, 7
  %v7857 = vsub.s32 %v7854, %v7856
  %v7858 = vrot.slane %v4971, %v7857
  %v7860 = vunpack.c.l.s4 1966171168
  %v7861 = vunpack.c.0.s8 %v7860
  %v7862 = vlaneseq
  %v7863 = vshrl.u32 %v7862, 7
  %v7864 = vsub.s32 %v7861, %v7863
  %v7865 = vrot.slane %v7851, %v7864
  %v7866 = vcombine.high %v7858, %v7858
  %v7867 = vcombine.high %v7865, %v7865
  %v7869 = vunpack.c.l.s4 1966171168
  %v7870 = vunpack.c.0.s8 %v7869
  %v7871 = vlaneseq
  %v7872 = vshrl.u32 %v7871, 7
  %v7873 = vsub.s32 %v7870, %v7872
  %v7874 = vrot.slane %v7858, %v7873
  %v7876 = vunpack.c.l.s4 1966171168
  %v7877 = vunpack.c.0.s8 %v7876
  %v7878 = vlaneseq
  %v7879 = vshrl.u32 %v7878, 7
  %v7880 = vsub.s32 %v7877, %v7879
  %v7881 = vrot.slane %v7865, %v7880
  %v7883 = vunpack.c.l.s4 1966171168
  %v7884 = vunpack.c.0.s8 %v7883
  %v7885 = vlaneseq
  %v7886 = vshrl.u32 %v7885, 7
  %v7887 = vsub.s32 %v7884, %v7886
  %v7888 = vrot.slane %v7866, %v7887
  %v7890 = vunpack.c.l.s4 1966171168
  %v7891 = vunpack.c.0.s8 %v7890
  %v7892 = vlaneseq
  %v7893 = vshrl.u32 %v7892, 7
  %v7894 = vsub.s32 %v7891, %v7893
  %v7895 = vrot.slane %v7867, %v7894
  %v7896 = vcombine.high %v7874, %v7874
  %v7897 = vcombine.high %v7881, %v7881
  %v7898 = vcombine.high %v7888, %v7888
  %v7899 = vcombine.high %v7895, %v7895
  %v7900 = vcombine.high %v4972, %v4972
  %v7902 = vunpack.c.l.s4 1966171168
  %v7903 = vunpack.c.0.s8 %v7902
  %v7904 = vlaneseq
  %v7905 = vshrl.u32 %v7904, 7
  %v7906 = vsub.s32 %v7903, %v7905
  %v7907 = vrot.slane %v4972, %v7906
  %v7909 = vunpack.c.l.s4 1966171168
  %v7910 = vunpack.c.0.s8 %v7909
  %v7911 = vlaneseq
  %v7912 = vshrl.u32 %v7911, 7
  %v7913 = vsub.s32 %v7910, %v7912
  %v7914 = vrot.slane %v7900, %v7913
  %v7915 = vcombine.high %v7907, %v7907
  %v7916 = vcombine.high %v7914, %v7914
  %v7918 = vunpack.c.l.s4 1966171168
  %v7919 = vunpack.c.0.s8 %v7918
  %v7920 = vlaneseq
  %v7921 = vshrl.u32 %v7920, 7
  %v7922 = vsub.s32 %v7919, %v7921
  %v7923 = vrot.slane %v7907, %v7922
  %v7925 = vunpack.c.l.s4 1966171168
  %v7926 = vunpack.c.0.s8 %v7925
  %v7927 = vlaneseq
  %v7928 = vshrl.u32 %v7927, 7
  %v7929 = vsub.s32 %v7926, %v7928
  %v7930 = vrot.slane %v7914, %v7929
  %v7932 = vunpack.c.l.s4 1966171168
  %v7933 = vunpack.c.0.s8 %v7932
  %v7934 = vlaneseq
  %v7935 = vshrl.u32 %v7934, 7
  %v7936 = vsub.s32 %v7933, %v7935
  %v7937 = vrot.slane %v7915, %v7936
  %v7939 = vunpack.c.l.s4 1966171168
  %v7940 = vunpack.c.0.s8 %v7939
  %v7941 = vlaneseq
  %v7942 = vshrl.u32 %v7941, 7
  %v7943 = vsub.s32 %v7940, %v7942
  %v7944 = vrot.slane %v7916, %v7943
  %v7945 = vcombine.high %v7923, %v7923
  %v7946 = vcombine.high %v7930, %v7930
  %v7947 = vcombine.high %v7937, %v7937
  %v7948 = vcombine.high %v7944, %v7944
  %v7949 = vcombine.high %v4973, %v4973
  %v7951 = vunpack.c.l.s4 1966171168
  %v7952 = vunpack.c.0.s8 %v7951
  %v7953 = vlaneseq
  %v7954 = vshrl.u32 %v7953, 7
  %v7955 = vsub.s32 %v7952, %v7954
  %v7956 = vrot.slane %v4973, %v7955
  %v7958 = vunpack.c.l.s4 1966171168
  %v7959 = vunpack.c.0.s8 %v7958
  %v7960 = vlaneseq
  %v7961 = vshrl.u32 %v7960, 7
  %v7962 = vsub.s32 %v7959, %v7961
  %v7963 = vrot.slane %v7949, %v7962
  %v7964 = vcombine.high %v7956, %v7956
  %v7965 = vcombine.high %v7963, %v7963
  %v7967 = vunpack.c.l.s4 1966171168
  %v7968 = vunpack.c.0.s8 %v7967
  %v7969 = vlaneseq
  %v7970 = vshrl.u32 %v7969, 7
  %v7971 = vsub.s32 %v7968, %v7970
  %v7972 = vrot.slane %v7956, %v7971
  %v7974 = vunpack.c.l.s4 1966171168
  %v7975 = vunpack.c.0.s8 %v7974
  %v7976 = vlaneseq
  %v7977 = vshrl.u32 %v7976, 7
  %v7978 = vsub.s32 %v7975, %v7977
  %v7979 = vrot.slane %v7963, %v7978
  %v7981 = vunpack.c.l.s4 1966171168
  %v7982 = vunpack.c.0.s8 %v7981
  %v7983 = vlaneseq
  %v7984 = vshrl.u32 %v7983, 7
  %v7985 = vsub.s32 %v7982, %v7984
  %v7986 = vrot.slane %v7964, %v7985
  %v7988 = vunpack.c.l.s4 1966171168
  %v7989 = vunpack.c.0.s8 %v7988
  %v7990 = vlaneseq
  %v7991 = vshrl.u32 %v7990, 7
  %v7992 = vsub.s32 %v7989, %v7991
  %v7993 = vrot.slane %v7965, %v7992
  %v7994 = vcombine.high %v7972, %v7972
  %v7995 = vcombine.high %v7979, %v7979
  %v7996 = vcombine.high %v7986, %v7986
  %v7997 = vcombine.high %v7993, %v7993
  %v7998 = vcombine.high %v4974, %v4974
  %v8000 = vunpack.c.l.s4 1966171168
  %v8001 = vunpack.c.0.s8 %v8000
  %v8002 = vlaneseq
  %v8003 = vshrl.u32 %v8002, 7
  %v8004 = vsub.s32 %v8001, %v8003
  %v8005 = vrot.slane %v4974, %v8004
  %v8007 = vunpack.c.l.s4 1966171168
  %v8008 = vunpack.c.0.s8 %v8007
  %v8009 = vlaneseq
  %v8010 = vshrl.u32 %v8009, 7
  %v8011 = vsub.s32 %v8008, %v8010
  %v8012 = vrot.slane %v7998, %v8011
  %v8013 = vcombine.high %v8005, %v8005
  %v8014 = vcombine.high %v8012, %v8012
  %v8016 = vunpack.c.l.s4 1966171168
  %v8017 = vunpack.c.0.s8 %v8016
  %v8018 = vlaneseq
  %v8019 = vshrl.u32 %v8018, 7
  %v8020 = vsub.s32 %v8017, %v8019
  %v8021 = vrot.slane %v8005, %v8020
  %v8023 = vunpack.c.l.s4 1966171168
  %v8024 = vunpack.c.0.s8 %v8023
  %v8025 = vlaneseq
  %v8026 = vshrl.u32 %v8025, 7
  %v8027 = vsub.s32 %v8024, %v8026
  %v8028 = vrot.slane %v8012, %v8027
  %v8030 = vunpack.c.l.s4 1966171168
  %v8031 = vunpack.c.0.s8 %v8030
  %v8032 = vlaneseq
  %v8033 = vshrl.u32 %v8032, 7
  %v8034 = vsub.s32 %v8031, %v8033
  %v8035 = vrot.slane %v8013, %v8034
  %v8037 = vunpack.c.l.s4 1966171168
  %v8038 = vunpack.c.0.s8 %v8037
  %v8039 = vlaneseq
  %v8040 = vshrl.u32 %v8039, 7
  %v8041 = vsub.s32 %v8038, %v8040
  %v8042 = vrot.slane %v8014, %v8041
  %v8043 = vcombine.high %v8021, %v8021
  %v8044 = vcombine.high %v8028, %v8028
  %v8045 = vcombine.high %v8035, %v8035
  %v8046 = vcombine.high %v8042, %v8042
  %v8047 = vcombine.high %v4975, %v4975
  %v8049 = vunpack.c.l.s4 1966171168
  %v8050 = vunpack.c.0.s8 %v8049
  %v8051 = vlaneseq
  %v8052 = vshrl.u32 %v8051, 7
  %v8053 = vsub.s32 %v8050, %v8052
  %v8054 = vrot.slane %v4975, %v8053
  %v8056 = vunpack.c.l.s4 1966171168
  %v8057 = vunpack.c.0.s8 %v8056
  %v8058 = vlaneseq
  %v8059 = vshrl.u32 %v8058, 7
  %v8060 = vsub.s32 %v8057, %v8059
  %v8061 = vrot.slane %v8047, %v8060
  %v8062 = vcombine.high %v8054, %v8054
  %v8063 = vcombine.high %v8061, %v8061
  %v8065 = vunpack.c.l.s4 1966171168
  %v8066 = vunpack.c.0.s8 %v8065
  %v8067 = vlaneseq
  %v8068 = vshrl.u32 %v8067, 7
  %v8069 = vsub.s32 %v8066, %v8068
  %v8070 = vrot.slane %v8054, %v8069
  %v8072 = vunpack.c.l.s4 1966171168
  %v8073 = vunpack.c.0.s8 %v8072
  %v8074 = vlaneseq
  %v8075 = vshrl.u32 %v8074, 7
  %v8076 = vsub.s32 %v8073, %v8075
  %v8077 = vrot.slane %v8061, %v8076
  %v8079 = vunpack.c.l.s4 1966171168
  %v8080 = vunpack.c.0.s8 %v8079
  %v8081 = vlaneseq
  %v8082 = vshrl.u32 %v8081, 7
  %v8083 = vsub.s32 %v8080, %v8082
  %v8084 = vrot.slane %v8062, %v8083
  %v8086 = vunpack.c.l.s4 1966171168
  %v8087 = vunpack.c.0.s8 %v8086
  %v8088 = vlaneseq
  %v8089 = vshrl.u32 %v8088, 7
  %v8090 = vsub.s32 %v8087, %v8089
  %v8091 = vrot.slane %v8063, %v8090
  %v8092 = vcombine.high %v8070, %v8070
  %v8093 = vcombine.high %v8077, %v8077
  %v8094 = vcombine.high %v8084, %v8084
  %v8095 = vcombine.high %v8091, %v8091
  %v8096 = vcombine.high %v4976, %v4976
  %v8098 = vunpack.c.l.s4 1966171168
  %v8099 = vunpack.c.0.s8 %v8098
  %v8100 = vlaneseq
  %v8101 = vshrl.u32 %v8100, 7
  %v8102 = vsub.s32 %v8099, %v8101
  %v8103 = vrot.slane %v4976, %v8102
  %v8105 = vunpack.c.l.s4 1966171168
  %v8106 = vunpack.c.0.s8 %v8105
  %v8107 = vlaneseq
  %v8108 = vshrl.u32 %v8107, 7
  %v8109 = vsub.s32 %v8106, %v8108
  %v8110 = vrot.slane %v8096, %v8109
  %v8111 = vcombine.high %v8103, %v8103
  %v8112 = vcombine.high %v8110, %v8110
  %v8114 = vunpack.c.l.s4 1966171168
  %v8115 = vunpack.c.0.s8 %v8114
  %v8116 = vlaneseq
  %v8117 = vshrl.u32 %v8116, 7
  %v8118 = vsub.s32 %v8115, %v8117
  %v8119 = vrot.slane %v8103, %v8118
  %v8121 = vunpack.c.l.s4 1966171168
  %v8122 = vunpack.c.0.s8 %v8121
  %v8123 = vlaneseq
  %v8124 = vshrl.u32 %v8123, 7
  %v8125 = vsub.s32 %v8122, %v8124
  %v8126 = vrot.slane %v8110, %v8125
  %v8128 = vunpack.c.l.s4 1966171168
  %v8129 = vunpack.c.0.s8 %v8128
  %v8130 = vlaneseq
  %v8131 = vshrl.u32 %v8130, 7
  %v8132 = vsub.s32 %v8129, %v8131
  %v8133 = vrot.slane %v8111, %v8132
  %v8135 = vunpack.c.l.s4 1966171168
  %v8136 = vunpack.c.0.s8 %v8135
  %v8137 = vlaneseq
  %v8138 = vshrl.u32 %v8137, 7
  %v8139 = vsub.s32 %v8136, %v8138
  %v8140 = vrot.slane %v8112, %v8139
  %v8141 = vcombine.high %v8119, %v8119
  %v8142 = vcombine.high %v8126, %v8126
  %v8143 = vcombine.high %v8133, %v8133
  %v8144 = vcombine.high %v8140, %v8140
  %v8145 = vcombine.high %v4977, %v4977
  %v8147 = vunpack.c.l.s4 1966171168
  %v8148 = vunpack.c.0.s8 %v8147
  %v8149 = vlaneseq
  %v8150 = vshrl.u32 %v8149, 7
  %v8151 = vsub.s32 %v8148, %v8150
  %v8152 = vrot.slane %v4977, %v8151
  %v8154 = vunpack.c.l.s4 1966171168
  %v8155 = vunpack.c.0.s8 %v8154
  %v8156 = vlaneseq
  %v8157 = vshrl.u32 %v8156, 7
  %v8158 = vsub.s32 %v8155, %v8157
  %v8159 = vrot.slane %v8145, %v8158
  %v8160 = vcombine.high %v8152, %v8152
  %v8161 = vcombine.high %v8159, %v8159
  %v8163 = vunpack.c.l.s4 1966171168
  %v8164 = vunpack.c.0.s8 %v8163
  %v8165 = vlaneseq
  %v8166 = vshrl.u32 %v8165, 7
  %v8167 = vsub.s32 %v8164, %v8166
  %v8168 = vrot.slane %v8152, %v8167
  %v8170 = vunpack.c.l.s4 1966171168
  %v8171 = vunpack.c.0.s8 %v8170
  %v8172 = vlaneseq
  %v8173 = vshrl.u32 %v8172, 7
  %v8174 = vsub.s32 %v8171, %v8173
  %v8175 = vrot.slane %v8159, %v8174
  %v8177 = vunpack.c.l.s4 1966171168
  %v8178 = vunpack.c.0.s8 %v8177
  %v8179 = vlaneseq
  %v8180 = vshrl.u32 %v8179, 7
  %v8181 = vsub.s32 %v8178, %v8180
  %v8182 = vrot.slane %v8160, %v8181
  %v8184 = vunpack.c.l.s4 1966171168
  %v8185 = vunpack.c.0.s8 %v8184
  %v8186 = vlaneseq
  %v8187 = vshrl.u32 %v8186, 7
  %v8188 = vsub.s32 %v8185, %v8187
  %v8189 = vrot.slane %v8161, %v8188
  %v8190 = vcombine.high %v8168, %v8168
  %v8191 = vcombine.high %v8175, %v8175
  %v8192 = vcombine.high %v8182, %v8182
  %v8193 = vcombine.high %v8189, %v8189
  %v8194 = vcombine.high %v4978, %v4978
  %v8196 = vunpack.c.l.s4 1966171168
  %v8197 = vunpack.c.0.s8 %v8196
  %v8198 = vlaneseq
  %v8199 = vshrl.u32 %v8198, 7
  %v8200 = vsub.s32 %v8197, %v8199
  %v8201 = vrot.slane %v4978, %v8200
  %v8203 = vunpack.c.l.s4 1966171168
  %v8204 = vunpack.c.0.s8 %v8203
  %v8205 = vlaneseq
  %v8206 = vshrl.u32 %v8205, 7
  %v8207 = vsub.s32 %v8204, %v8206
  %v8208 = vrot.slane %v8194, %v8207
  %v8209 = vcombine.high %v8201, %v8201
  %v8210 = vcombine.high %v8208, %v8208
  %v8212 = vunpack.c.l.s4 1966171168
  %v8213 = vunpack.c.0.s8 %v8212
  %v8214 = vlaneseq
  %v8215 = vshrl.u32 %v8214, 7
  %v8216 = vsub.s32 %v8213, %v8215
  %v8217 = vrot.slane %v8201, %v8216
  %v8219 = vunpack.c.l.s4 1966171168
  %v8220 = vunpack.c.0.s8 %v8219
  %v8221 = vlaneseq
  %v8222 = vshrl.u32 %v8221, 7
  %v8223 = vsub.s32 %v8220, %v8222
  %v8224 = vrot.slane %v8208, %v8223
  %v8226 = vunpack.c.l.s4 1966171168
  %v8227 = vunpack.c.0.s8 %v8226
  %v8228 = vlaneseq
  %v8229 = vshrl.u32 %v8228, 7
  %v8230 = vsub.s32 %v8227, %v8229
  %v8231 = vrot.slane %v8209, %v8230
  %v8233 = vunpack.c.l.s4 1966171168
  %v8234 = vunpack.c.0.s8 %v8233
  %v8235 = vlaneseq
  %v8236 = vshrl.u32 %v8235, 7
  %v8237 = vsub.s32 %v8234, %v8236
  %v8238 = vrot.slane %v8210, %v8237
  %v8239 = vcombine.high %v8217, %v8217
  %v8240 = vcombine.high %v8224, %v8224
  %v8241 = vcombine.high %v8231, %v8231
  %v8242 = vcombine.high %v8238, %v8238
  %v8243 = vcombine.high %v4979, %v4979
  %v8245 = vunpack.c.l.s4 1966171168
  %v8246 = vunpack.c.0.s8 %v8245
  %v8247 = vlaneseq
  %v8248 = vshrl.u32 %v8247, 7
  %v8249 = vsub.s32 %v8246, %v8248
  %v8250 = vrot.slane %v4979, %v8249
  %v8252 = vunpack.c.l.s4 1966171168
  %v8253 = vunpack.c.0.s8 %v8252
  %v8254 = vlaneseq
  %v8255 = vshrl.u32 %v8254, 7
  %v8256 = vsub.s32 %v8253, %v8255
  %v8257 = vrot.slane %v8243, %v8256
  %v8258 = vcombine.high %v8250, %v8250
  %v8259 = vcombine.high %v8257, %v8257
  %v8261 = vunpack.c.l.s4 1966171168
  %v8262 = vunpack.c.0.s8 %v8261
  %v8263 = vlaneseq
  %v8264 = vshrl.u32 %v8263, 7
  %v8265 = vsub.s32 %v8262, %v8264
  %v8266 = vrot.slane %v8250, %v8265
  %v8268 = vunpack.c.l.s4 1966171168
  %v8269 = vunpack.c.0.s8 %v8268
  %v8270 = vlaneseq
  %v8271 = vshrl.u32 %v8270, 7
  %v8272 = vsub.s32 %v8269, %v8271
  %v8273 = vrot.slane %v8257, %v8272
  %v8275 = vunpack.c.l.s4 1966171168
  %v8276 = vunpack.c.0.s8 %v8275
  %v8277 = vlaneseq
  %v8278 = vshrl.u32 %v8277, 7
  %v8279 = vsub.s32 %v8276, %v8278
  %v8280 = vrot.slane %v8258, %v8279
  %v8282 = vunpack.c.l.s4 1966171168
  %v8283 = vunpack.c.0.s8 %v8282
  %v8284 = vlaneseq
  %v8285 = vshrl.u32 %v8284, 7
  %v8286 = vsub.s32 %v8283, %v8285
  %v8287 = vrot.slane %v8259, %v8286
  %v8288 = vcombine.high %v8266, %v8266
  %v8289 = vcombine.high %v8273, %v8273
  %v8290 = vcombine.high %v8280, %v8280
  %v8291 = vcombine.high %v8287, %v8287
  %v8292 = vcombine.high %v4980, %v4980
  %v8294 = vunpack.c.l.s4 1966171168
  %v8295 = vunpack.c.0.s8 %v8294
  %v8296 = vlaneseq
  %v8297 = vshrl.u32 %v8296, 7
  %v8298 = vsub.s32 %v8295, %v8297
  %v8299 = vrot.slane %v4980, %v8298
  %v8301 = vunpack.c.l.s4 1966171168
  %v8302 = vunpack.c.0.s8 %v8301
  %v8303 = vlaneseq
  %v8304 = vshrl.u32 %v8303, 7
  %v8305 = vsub.s32 %v8302, %v8304
  %v8306 = vrot.slane %v8292, %v8305
  %v8307 = vcombine.high %v8299, %v8299
  %v8308 = vcombine.high %v8306, %v8306
  %v8310 = vunpack.c.l.s4 1966171168
  %v8311 = vunpack.c.0.s8 %v8310
  %v8312 = vlaneseq
  %v8313 = vshrl.u32 %v8312, 7
  %v8314 = vsub.s32 %v8311, %v8313
  %v8315 = vrot.slane %v8299, %v8314
  %v8317 = vunpack.c.l.s4 1966171168
  %v8318 = vunpack.c.0.s8 %v8317
  %v8319 = vlaneseq
  %v8320 = vshrl.u32 %v8319, 7
  %v8321 = vsub.s32 %v8318, %v8320
  %v8322 = vrot.slane %v8306, %v8321
  %v8324 = vunpack.c.l.s4 1966171168
  %v8325 = vunpack.c.0.s8 %v8324
  %v8326 = vlaneseq
  %v8327 = vshrl.u32 %v8326, 7
  %v8328 = vsub.s32 %v8325, %v8327
  %v8329 = vrot.slane %v8307, %v8328
  %v8331 = vunpack.c.l.s4 1966171168
  %v8332 = vunpack.c.0.s8 %v8331
  %v8333 = vlaneseq
  %v8334 = vshrl.u32 %v8333, 7
  %v8335 = vsub.s32 %v8332, %v8334
  %v8336 = vrot.slane %v8308, %v8335
  %v8337 = vcombine.high %v8315, %v8315
  %v8338 = vcombine.high %v8322, %v8322
  %v8339 = vcombine.high %v8329, %v8329
  %v8340 = vcombine.high %v8336, %v8336
  %v8485 = vcombine.high %v5029, %v5029
  %v8487 = vunpack.c.l.s4 1966171168
  %v8488 = vunpack.c.0.s8 %v8487
  %v8489 = vlaneseq
  %v8490 = vshrl.u32 %v8489, 7
  %v8491 = vsub.s32 %v8488, %v8490
  %v8492 = vrot.slane %v5029, %v8491
  %v8494 = vunpack.c.l.s4 1966171168
  %v8495 = vunpack.c.0.s8 %v8494
  %v8496 = vlaneseq
  %v8497 = vshrl.u32 %v8496, 7
  %v8498 = vsub.s32 %v8495, %v8497
  %v8499 = vrot.slane %v8485, %v8498
  %v8500 = vcombine.high %v8492, %v8492
  %v8501 = vcombine.high %v8499, %v8499
  %v8503 = vunpack.c.l.s4 1966171168
  %v8504 = vunpack.c.0.s8 %v8503
  %v8505 = vlaneseq
  %v8506 = vshrl.u32 %v8505, 7
  %v8507 = vsub.s32 %v8504, %v8506
  %v8508 = vrot.slane %v8492, %v8507
  %v8510 = vunpack.c.l.s4 1966171168
  %v8511 = vunpack.c.0.s8 %v8510
  %v8512 = vlaneseq
  %v8513 = vshrl.u32 %v8512, 7
  %v8514 = vsub.s32 %v8511, %v8513
  %v8515 = vrot.slane %v8499, %v8514
  %v8517 = vunpack.c.l.s4 1966171168
  %v8518 = vunpack.c.0.s8 %v8517
  %v8519 = vlaneseq
  %v8520 = vshrl.u32 %v8519, 7
  %v8521 = vsub.s32 %v8518, %v8520
  %v8522 = vrot.slane %v8500, %v8521
  %v8524 = vunpack.c.l.s4 1966171168
  %v8525 = vunpack.c.0.s8 %v8524
  %v8526 = vlaneseq
  %v8527 = vshrl.u32 %v8526, 7
  %v8528 = vsub.s32 %v8525, %v8527
  %v8529 = vrot.slane %v8501, %v8528
  %v8530 = vcombine.high %v8508, %v8508
  %v8531 = vcombine.high %v8515, %v8515
  %v8532 = vcombine.high %v8522, %v8522
  %v8533 = vcombine.high %v8529, %v8529
  %v8534 = vcombine.high %v5030, %v5030
  %v8536 = vunpack.c.l.s4 1966171168
  %v8537 = vunpack.c.0.s8 %v8536
  %v8538 = vlaneseq
  %v8539 = vshrl.u32 %v8538, 7
  %v8540 = vsub.s32 %v8537, %v8539
  %v8541 = vrot.slane %v5030, %v8540
  %v8543 = vunpack.c.l.s4 1966171168
  %v8544 = vunpack.c.0.s8 %v8543
  %v8545 = vlaneseq
  %v8546 = vshrl.u32 %v8545, 7
  %v8547 = vsub.s32 %v8544, %v8546
  %v8548 = vrot.slane %v8534, %v8547
  %v8549 = vcombine.high %v8541, %v8541
  %v8550 = vcombine.high %v8548, %v8548
  %v8552 = vunpack.c.l.s4 1966171168
  %v8553 = vunpack.c.0.s8 %v8552
  %v8554 = vlaneseq
  %v8555 = vshrl.u32 %v8554, 7
  %v8556 = vsub.s32 %v8553, %v8555
  %v8557 = vrot.slane %v8541, %v8556
  %v8559 = vunpack.c.l.s4 1966171168
  %v8560 = vunpack.c.0.s8 %v8559
  %v8561 = vlaneseq
  %v8562 = vshrl.u32 %v8561, 7
  %v8563 = vsub.s32 %v8560, %v8562
  %v8564 = vrot.slane %v8548, %v8563
  %v8566 = vunpack.c.l.s4 1966171168
  %v8567 = vunpack.c.0.s8 %v8566
  %v8568 = vlaneseq
  %v8569 = vshrl.u32 %v8568, 7
  %v8570 = vsub.s32 %v8567, %v8569
  %v8571 = vrot.slane %v8549, %v8570
  %v8573 = vunpack.c.l.s4 1966171168
  %v8574 = vunpack.c.0.s8 %v8573
  %v8575 = vlaneseq
  %v8576 = vshrl.u32 %v8575, 7
  %v8577 = vsub.s32 %v8574, %v8576
  %v8578 = vrot.slane %v8550, %v8577
  %v8579 = vcombine.high %v8557, %v8557
  %v8580 = vcombine.high %v8564, %v8564
  %v8581 = vcombine.high %v8571, %v8571
  %v8582 = vcombine.high %v8578, %v8578
  %v8583 = vcombine.high %v5031, %v5031
  %v8585 = vunpack.c.l.s4 1966171168
  %v8586 = vunpack.c.0.s8 %v8585
  %v8587 = vlaneseq
  %v8588 = vshrl.u32 %v8587, 7
  %v8589 = vsub.s32 %v8586, %v8588
  %v8590 = vrot.slane %v5031, %v8589
  %v8592 = vunpack.c.l.s4 1966171168
  %v8593 = vunpack.c.0.s8 %v8592
  %v8594 = vlaneseq
  %v8595 = vshrl.u32 %v8594, 7
  %v8596 = vsub.s32 %v8593, %v8595
  %v8597 = vrot.slane %v8583, %v8596
  %v8598 = vcombine.high %v8590, %v8590
  %v8599 = vcombine.high %v8597, %v8597
  %v8601 = vunpack.c.l.s4 1966171168
  %v8602 = vunpack.c.0.s8 %v8601
  %v8603 = vlaneseq
  %v8604 = vshrl.u32 %v8603, 7
  %v8605 = vsub.s32 %v8602, %v8604
  %v8606 = vrot.slane %v8590, %v8605
  %v8608 = vunpack.c.l.s4 1966171168
  %v8609 = vunpack.c.0.s8 %v8608
  %v8610 = vlaneseq
  %v8611 = vshrl.u32 %v8610, 7
  %v8612 = vsub.s32 %v8609, %v8611
  %v8613 = vrot.slane %v8597, %v8612
  %v8615 = vunpack.c.l.s4 1966171168
  %v8616 = vunpack.c.0.s8 %v8615
  %v8617 = vlaneseq
  %v8618 = vshrl.u32 %v8617, 7
  %v8619 = vsub.s32 %v8616, %v8618
  %v8620 = vrot.slane %v8598, %v8619
  %v8622 = vunpack.c.l.s4 1966171168
  %v8623 = vunpack.c.0.s8 %v8622
  %v8624 = vlaneseq
  %v8625 = vshrl.u32 %v8624, 7
  %v8626 = vsub.s32 %v8623, %v8625
  %v8627 = vrot.slane %v8599, %v8626
  %v8628 = vcombine.high %v8606, %v8606
  %v8629 = vcombine.high %v8613, %v8613
  %v8630 = vcombine.high %v8620, %v8620
  %v8631 = vcombine.high %v8627, %v8627
  %v8632 = vcombine.high %v5032, %v5032
  %v8634 = vunpack.c.l.s4 1966171168
  %v8635 = vunpack.c.0.s8 %v8634
  %v8636 = vlaneseq
  %v8637 = vshrl.u32 %v8636, 7
  %v8638 = vsub.s32 %v8635, %v8637
  %v8639 = vrot.slane %v5032, %v8638
  %v8641 = vunpack.c.l.s4 1966171168
  %v8642 = vunpack.c.0.s8 %v8641
  %v8643 = vlaneseq
  %v8644 = vshrl.u32 %v8643, 7
  %v8645 = vsub.s32 %v8642, %v8644
  %v8646 = vrot.slane %v8632, %v8645
  %v8647 = vcombine.high %v8639, %v8639
  %v8648 = vcombine.high %v8646, %v8646
  %v8650 = vunpack.c.l.s4 1966171168
  %v8651 = vunpack.c.0.s8 %v8650
  %v8652 = vlaneseq
  %v8653 = vshrl.u32 %v8652, 7
  %v8654 = vsub.s32 %v8651, %v8653
  %v8655 = vrot.slane %v8639, %v8654
  %v8657 = vunpack.c.l.s4 1966171168
  %v8658 = vunpack.c.0.s8 %v8657
  %v8659 = vlaneseq
  %v8660 = vshrl.u32 %v8659, 7
  %v8661 = vsub.s32 %v8658, %v8660
  %v8662 = vrot.slane %v8646, %v8661
  %v8664 = vunpack.c.l.s4 1966171168
  %v8665 = vunpack.c.0.s8 %v8664
  %v8666 = vlaneseq
  %v8667 = vshrl.u32 %v8666, 7
  %v8668 = vsub.s32 %v8665, %v8667
  %v8669 = vrot.slane %v8647, %v8668
  %v8671 = vunpack.c.l.s4 1966171168
  %v8672 = vunpack.c.0.s8 %v8671
  %v8673 = vlaneseq
  %v8674 = vshrl.u32 %v8673, 7
  %v8675 = vsub.s32 %v8672, %v8674
  %v8676 = vrot.slane %v8648, %v8675
  %v8677 = vcombine.high %v8655, %v8655
  %v8678 = vcombine.high %v8662, %v8662
  %v8679 = vcombine.high %v8669, %v8669
  %v8680 = vcombine.high %v8676, %v8676
  %v8681 = vcombine.high %v5033, %v5033
  %v8683 = vunpack.c.l.s4 1966171168
  %v8684 = vunpack.c.0.s8 %v8683
  %v8685 = vlaneseq
  %v8686 = vshrl.u32 %v8685, 7
  %v8687 = vsub.s32 %v8684, %v8686
  %v8688 = vrot.slane %v5033, %v8687
  %v8690 = vunpack.c.l.s4 1966171168
  %v8691 = vunpack.c.0.s8 %v8690
  %v8692 = vlaneseq
  %v8693 = vshrl.u32 %v8692, 7
  %v8694 = vsub.s32 %v8691, %v8693
  %v8695 = vrot.slane %v8681, %v8694
  %v8696 = vcombine.high %v8688, %v8688
  %v8697 = vcombine.high %v8695, %v8695
  %v8699 = vunpack.c.l.s4 1966171168
  %v8700 = vunpack.c.0.s8 %v8699
  %v8701 = vlaneseq
  %v8702 = vshrl.u32 %v8701, 7
  %v8703 = vsub.s32 %v8700, %v8702
  %v8704 = vrot.slane %v8688, %v8703
  %v8706 = vunpack.c.l.s4 1966171168
  %v8707 = vunpack.c.0.s8 %v8706
  %v8708 = vlaneseq
  %v8709 = vshrl.u32 %v8708, 7
  %v8710 = vsub.s32 %v8707, %v8709
  %v8711 = vrot.slane %v8695, %v8710
  %v8713 = vunpack.c.l.s4 1966171168
  %v8714 = vunpack.c.0.s8 %v8713
  %v8715 = vlaneseq
  %v8716 = vshrl.u32 %v8715, 7
  %v8717 = vsub.s32 %v8714, %v8716
  %v8718 = vrot.slane %v8696, %v8717
  %v8720 = vunpack.c.l.s4 1966171168
  %v8721 = vunpack.c.0.s8 %v8720
  %v8722 = vlaneseq
  %v8723 = vshrl.u32 %v8722, 7
  %v8724 = vsub.s32 %v8721, %v8723
  %v8725 = vrot.slane %v8697, %v8724
  %v8726 = vcombine.high %v8704, %v8704
  %v8727 = vcombine.high %v8711, %v8711
  %v8728 = vcombine.high %v8718, %v8718
  %v8729 = vcombine.high %v8725, %v8725
  %v8730 = vcombine.high %v5034, %v5034
  %v8732 = vunpack.c.l.s4 1966171168
  %v8733 = vunpack.c.0.s8 %v8732
  %v8734 = vlaneseq
  %v8735 = vshrl.u32 %v8734, 7
  %v8736 = vsub.s32 %v8733, %v8735
  %v8737 = vrot.slane %v5034, %v8736
  %v8739 = vunpack.c.l.s4 1966171168
  %v8740 = vunpack.c.0.s8 %v8739
  %v8741 = vlaneseq
  %v8742 = vshrl.u32 %v8741, 7
  %v8743 = vsub.s32 %v8740, %v8742
  %v8744 = vrot.slane %v8730, %v8743
  %v8745 = vcombine.high %v8737, %v8737
  %v8746 = vcombine.high %v8744, %v8744
  %v8748 = vunpack.c.l.s4 1966171168
  %v8749 = vunpack.c.0.s8 %v8748
  %v8750 = vlaneseq
  %v8751 = vshrl.u32 %v8750, 7
  %v8752 = vsub.s32 %v8749, %v8751
  %v8753 = vrot.slane %v8737, %v8752
  %v8755 = vunpack.c.l.s4 1966171168
  %v8756 = vunpack.c.0.s8 %v8755
  %v8757 = vlaneseq
  %v8758 = vshrl.u32 %v8757, 7
  %v8759 = vsub.s32 %v8756, %v8758
  %v8760 = vrot.slane %v8744, %v8759
  %v8762 = vunpack.c.l.s4 1966171168
  %v8763 = vunpack.c.0.s8 %v8762
  %v8764 = vlaneseq
  %v8765 = vshrl.u32 %v8764, 7
  %v8766 = vsub.s32 %v8763, %v8765
  %v8767 = vrot.slane %v8745, %v8766
  %v8769 = vunpack.c.l.s4 1966171168
  %v8770 = vunpack.c.0.s8 %v8769
  %v8771 = vlaneseq
  %v8772 = vshrl.u32 %v8771, 7
  %v8773 = vsub.s32 %v8770, %v8772
  %v8774 = vrot.slane %v8746, %v8773
  %v8775 = vcombine.high %v8753, %v8753
  %v8776 = vcombine.high %v8760, %v8760
  %v8777 = vcombine.high %v8767, %v8767
  %v8778 = vcombine.high %v8774, %v8774
  %v8779 = vcombine.high %v5035, %v5035
  %v8781 = vunpack.c.l.s4 1966171168
  %v8782 = vunpack.c.0.s8 %v8781
  %v8783 = vlaneseq
  %v8784 = vshrl.u32 %v8783, 7
  %v8785 = vsub.s32 %v8782, %v8784
  %v8786 = vrot.slane %v5035, %v8785
  %v8788 = vunpack.c.l.s4 1966171168
  %v8789 = vunpack.c.0.s8 %v8788
  %v8790 = vlaneseq
  %v8791 = vshrl.u32 %v8790, 7
  %v8792 = vsub.s32 %v8789, %v8791
  %v8793 = vrot.slane %v8779, %v8792
  %v8794 = vcombine.high %v8786, %v8786
  %v8795 = vcombine.high %v8793, %v8793
  %v8797 = vunpack.c.l.s4 1966171168
  %v8798 = vunpack.c.0.s8 %v8797
  %v8799 = vlaneseq
  %v8800 = vshrl.u32 %v8799, 7
  %v8801 = vsub.s32 %v8798, %v8800
  %v8802 = vrot.slane %v8786, %v8801
  %v8804 = vunpack.c.l.s4 1966171168
  %v8805 = vunpack.c.0.s8 %v8804
  %v8806 = vlaneseq
  %v8807 = vshrl.u32 %v8806, 7
  %v8808 = vsub.s32 %v8805, %v8807
  %v8809 = vrot.slane %v8793, %v8808
  %v8811 = vunpack.c.l.s4 1966171168
  %v8812 = vunpack.c.0.s8 %v8811
  %v8813 = vlaneseq
  %v8814 = vshrl.u32 %v8813, 7
  %v8815 = vsub.s32 %v8812, %v8814
  %v8816 = vrot.slane %v8794, %v8815
  %v8818 = vunpack.c.l.s4 1966171168
  %v8819 = vunpack.c.0.s8 %v8818
  %v8820 = vlaneseq
  %v8821 = vshrl.u32 %v8820, 7
  %v8822 = vsub.s32 %v8819, %v8821
  %v8823 = vrot.slane %v8795, %v8822
  %v8824 = vcombine.high %v8802, %v8802
  %v8825 = vcombine.high %v8809, %v8809
  %v8826 = vcombine.high %v8816, %v8816
  %v8827 = vcombine.high %v8823, %v8823
  %v8828 = vcombine.high %v5036, %v5036
  %v8830 = vunpack.c.l.s4 1966171168
  %v8831 = vunpack.c.0.s8 %v8830
  %v8832 = vlaneseq
  %v8833 = vshrl.u32 %v8832, 7
  %v8834 = vsub.s32 %v8831, %v8833
  %v8835 = vrot.slane %v5036, %v8834
  %v8837 = vunpack.c.l.s4 1966171168
  %v8838 = vunpack.c.0.s8 %v8837
  %v8839 = vlaneseq
  %v8840 = vshrl.u32 %v8839, 7
  %v8841 = vsub.s32 %v8838, %v8840
  %v8842 = vrot.slane %v8828, %v8841
  %v8843 = vcombine.high %v8835, %v8835
  %v8844 = vcombine.high %v8842, %v8842
  %v8846 = vunpack.c.l.s4 1966171168
  %v8847 = vunpack.c.0.s8 %v8846
  %v8848 = vlaneseq
  %v8849 = vshrl.u32 %v8848, 7
  %v8850 = vsub.s32 %v8847, %v8849
  %v8851 = vrot.slane %v8835, %v8850
  %v8853 = vunpack.c.l.s4 1966171168
  %v8854 = vunpack.c.0.s8 %v8853
  %v8855 = vlaneseq
  %v8856 = vshrl.u32 %v8855, 7
  %v8857 = vsub.s32 %v8854, %v8856
  %v8858 = vrot.slane %v8842, %v8857
  %v8860 = vunpack.c.l.s4 1966171168
  %v8861 = vunpack.c.0.s8 %v8860
  %v8862 = vlaneseq
  %v8863 = vshrl.u32 %v8862, 7
  %v8864 = vsub.s32 %v8861, %v8863
  %v8865 = vrot.slane %v8843, %v8864
  %v8867 = vunpack.c.l.s4 1966171168
  %v8868 = vunpack.c.0.s8 %v8867
  %v8869 = vlaneseq
  %v8870 = vshrl.u32 %v8869, 7
  %v8871 = vsub.s32 %v8868, %v8870
  %v8872 = vrot.slane %v8844, %v8871
  %v8873 = vcombine.high %v8851, %v8851
  %v8874 = vcombine.high %v8858, %v8858
  %v8875 = vcombine.high %v8865, %v8865
  %v8876 = vcombine.high %v8872, %v8872
  %v8877 = vcombine.high %v5037, %v5037
  %v8879 = vunpack.c.l.s4 1966171168
  %v8880 = vunpack.c.0.s8 %v8879
  %v8881 = vlaneseq
  %v8882 = vshrl.u32 %v8881, 7
  %v8883 = vsub.s32 %v8880, %v8882
  %v8884 = vrot.slane %v5037, %v8883
  %v8886 = vunpack.c.l.s4 1966171168
  %v8887 = vunpack.c.0.s8 %v8886
  %v8888 = vlaneseq
  %v8889 = vshrl.u32 %v8888, 7
  %v8890 = vsub.s32 %v8887, %v8889
  %v8891 = vrot.slane %v8877, %v8890
  %v8892 = vcombine.high %v8884, %v8884
  %v8893 = vcombine.high %v8891, %v8891
  %v8895 = vunpack.c.l.s4 1966171168
  %v8896 = vunpack.c.0.s8 %v8895
  %v8897 = vlaneseq
  %v8898 = vshrl.u32 %v8897, 7
  %v8899 = vsub.s32 %v8896, %v8898
  %v8900 = vrot.slane %v8884, %v8899
  %v8902 = vunpack.c.l.s4 1966171168
  %v8903 = vunpack.c.0.s8 %v8902
  %v8904 = vlaneseq
  %v8905 = vshrl.u32 %v8904, 7
  %v8906 = vsub.s32 %v8903, %v8905
  %v8907 = vrot.slane %v8891, %v8906
  %v8909 = vunpack.c.l.s4 1966171168
  %v8910 = vunpack.c.0.s8 %v8909
  %v8911 = vlaneseq
  %v8912 = vshrl.u32 %v8911, 7
  %v8913 = vsub.s32 %v8910, %v8912
  %v8914 = vrot.slane %v8892, %v8913
  %v8916 = vunpack.c.l.s4 1966171168
  %v8917 = vunpack.c.0.s8 %v8916
  %v8918 = vlaneseq
  %v8919 = vshrl.u32 %v8918, 7
  %v8920 = vsub.s32 %v8917, %v8919
  %v8921 = vrot.slane %v8893, %v8920
  %v8922 = vcombine.high %v8900, %v8900
  %v8923 = vcombine.high %v8907, %v8907
  %v8924 = vcombine.high %v8914, %v8914
  %v8925 = vcombine.high %v8921, %v8921
  %v8926 = vcombine.high %v5038, %v5038
  %v8928 = vunpack.c.l.s4 1966171168
  %v8929 = vunpack.c.0.s8 %v8928
  %v8930 = vlaneseq
  %v8931 = vshrl.u32 %v8930, 7
  %v8932 = vsub.s32 %v8929, %v8931
  %v8933 = vrot.slane %v5038, %v8932
  %v8935 = vunpack.c.l.s4 1966171168
  %v8936 = vunpack.c.0.s8 %v8935
  %v8937 = vlaneseq
  %v8938 = vshrl.u32 %v8937, 7
  %v8939 = vsub.s32 %v8936, %v8938
  %v8940 = vrot.slane %v8926, %v8939
  %v8941 = vcombine.high %v8933, %v8933
  %v8942 = vcombine.high %v8940, %v8940
  %v8944 = vunpack.c.l.s4 1966171168
  %v8945 = vunpack.c.0.s8 %v8944
  %v8946 = vlaneseq
  %v8947 = vshrl.u32 %v8946, 7
  %v8948 = vsub.s32 %v8945, %v8947
  %v8949 = vrot.slane %v8933, %v8948
  %v8951 = vunpack.c.l.s4 1966171168
  %v8952 = vunpack.c.0.s8 %v8951
  %v8953 = vlaneseq
  %v8954 = vshrl.u32 %v8953, 7
  %v8955 = vsub.s32 %v8952, %v8954
  %v8956 = vrot.slane %v8940, %v8955
  %v8958 = vunpack.c.l.s4 1966171168
  %v8959 = vunpack.c.0.s8 %v8958
  %v8960 = vlaneseq
  %v8961 = vshrl.u32 %v8960, 7
  %v8962 = vsub.s32 %v8959, %v8961
  %v8963 = vrot.slane %v8941, %v8962
  %v8965 = vunpack.c.l.s4 1966171168
  %v8966 = vunpack.c.0.s8 %v8965
  %v8967 = vlaneseq
  %v8968 = vshrl.u32 %v8967, 7
  %v8969 = vsub.s32 %v8966, %v8968
  %v8970 = vrot.slane %v8942, %v8969
  %v8971 = vcombine.high %v8949, %v8949
  %v8972 = vcombine.high %v8956, %v8956
  %v8973 = vcombine.high %v8963, %v8963
  %v8974 = vcombine.high %v8970, %v8970
  %v8975 = vcombine.high %v5039, %v5039
  %v8977 = vunpack.c.l.s4 1966171168
  %v8978 = vunpack.c.0.s8 %v8977
  %v8979 = vlaneseq
  %v8980 = vshrl.u32 %v8979, 7
  %v8981 = vsub.s32 %v8978, %v8980
  %v8982 = vrot.slane %v5039, %v8981
  %v8984 = vunpack.c.l.s4 1966171168
  %v8985 = vunpack.c.0.s8 %v8984
  %v8986 = vlaneseq
  %v8987 = vshrl.u32 %v8986, 7
  %v8988 = vsub.s32 %v8985, %v8987
  %v8989 = vrot.slane %v8975, %v8988
  %v8990 = vcombine.high %v8982, %v8982
  %v8991 = vcombine.high %v8989, %v8989
  %v8993 = vunpack.c.l.s4 1966171168
  %v8994 = vunpack.c.0.s8 %v8993
  %v8995 = vlaneseq
  %v8996 = vshrl.u32 %v8995, 7
  %v8997 = vsub.s32 %v8994, %v8996
  %v8998 = vrot.slane %v8982, %v8997
  %v9000 = vunpack.c.l.s4 1966171168
  %v9001 = vunpack.c.0.s8 %v9000
  %v9002 = vlaneseq
  %v9003 = vshrl.u32 %v9002, 7
  %v9004 = vsub.s32 %v9001, %v9003
  %v9005 = vrot.slane %v8989, %v9004
  %v9007 = vunpack.c.l.s4 1966171168
  %v9008 = vunpack.c.0.s8 %v9007
  %v9009 = vlaneseq
  %v9010 = vshrl.u32 %v9009, 7
  %v9011 = vsub.s32 %v9008, %v9010
  %v9012 = vrot.slane %v8990, %v9011
  %v9014 = vunpack.c.l.s4 1966171168
  %v9015 = vunpack.c.0.s8 %v9014
  %v9016 = vlaneseq
  %v9017 = vshrl.u32 %v9016, 7
  %v9018 = vsub.s32 %v9015, %v9017
  %v9019 = vrot.slane %v8991, %v9018
  %v9020 = vcombine.high %v8998, %v8998
  %v9021 = vcombine.high %v9005, %v9005
  %v9022 = vcombine.high %v9012, %v9012
  %v9023 = vcombine.high %v9019, %v9019
  %v9024 = vcombine.high %v5040, %v5040
  %v9026 = vunpack.c.l.s4 1966171168
  %v9027 = vunpack.c.0.s8 %v9026
  %v9028 = vlaneseq
  %v9029 = vshrl.u32 %v9028, 7
  %v9030 = vsub.s32 %v9027, %v9029
  %v9031 = vrot.slane %v5040, %v9030
  %v9033 = vunpack.c.l.s4 1966171168
  %v9034 = vunpack.c.0.s8 %v9033
  %v9035 = vlaneseq
  %v9036 = vshrl.u32 %v9035, 7
  %v9037 = vsub.s32 %v9034, %v9036
  %v9038 = vrot.slane %v9024, %v9037
  %v9039 = vcombine.high %v9031, %v9031
  %v9040 = vcombine.high %v9038, %v9038
  %v9042 = vunpack.c.l.s4 1966171168
  %v9043 = vunpack.c.0.s8 %v9042
  %v9044 = vlaneseq
  %v9045 = vshrl.u32 %v9044, 7
  %v9046 = vsub.s32 %v9043, %v9045
  %v9047 = vrot.slane %v9031, %v9046
  %v9049 = vunpack.c.l.s4 1966171168
  %v9050 = vunpack.c.0.s8 %v9049
  %v9051 = vlaneseq
  %v9052 = vshrl.u32 %v9051, 7
  %v9053 = vsub.s32 %v9050, %v9052
  %v9054 = vrot.slane %v9038, %v9053
  %v9056 = vunpack.c.l.s4 1966171168
  %v9057 = vunpack.c.0.s8 %v9056
  %v9058 = vlaneseq
  %v9059 = vshrl.u32 %v9058, 7
  %v9060 = vsub.s32 %v9057, %v9059
  %v9061 = vrot.slane %v9039, %v9060
  %v9063 = vunpack.c.l.s4 1966171168
  %v9064 = vunpack.c.0.s8 %v9063
  %v9065 = vlaneseq
  %v9066 = vshrl.u32 %v9065, 7
  %v9067 = vsub.s32 %v9064, %v9066
  %v9068 = vrot.slane %v9040, %v9067
  %v9069 = vcombine.high %v9047, %v9047
  %v9070 = vcombine.high %v9054, %v9054
  %v9071 = vcombine.high %v9061, %v9061
  %v9072 = vcombine.high %v9068, %v9068
  %v9073 = vcombine.high %v5041, %v5041
  %v9075 = vunpack.c.l.s4 1966171168
  %v9076 = vunpack.c.0.s8 %v9075
  %v9077 = vlaneseq
  %v9078 = vshrl.u32 %v9077, 7
  %v9079 = vsub.s32 %v9076, %v9078
  %v9080 = vrot.slane %v5041, %v9079
  %v9082 = vunpack.c.l.s4 1966171168
  %v9083 = vunpack.c.0.s8 %v9082
  %v9084 = vlaneseq
  %v9085 = vshrl.u32 %v9084, 7
  %v9086 = vsub.s32 %v9083, %v9085
  %v9087 = vrot.slane %v9073, %v9086
  %v9088 = vcombine.high %v9080, %v9080
  %v9089 = vcombine.high %v9087, %v9087
  %v9091 = vunpack.c.l.s4 1966171168
  %v9092 = vunpack.c.0.s8 %v9091
  %v9093 = vlaneseq
  %v9094 = vshrl.u32 %v9093, 7
  %v9095 = vsub.s32 %v9092, %v9094
  %v9096 = vrot.slane %v9080, %v9095
  %v9098 = vunpack.c.l.s4 1966171168
  %v9099 = vunpack.c.0.s8 %v9098
  %v9100 = vlaneseq
  %v9101 = vshrl.u32 %v9100, 7
  %v9102 = vsub.s32 %v9099, %v9101
  %v9103 = vrot.slane %v9087, %v9102
  %v9105 = vunpack.c.l.s4 1966171168
  %v9106 = vunpack.c.0.s8 %v9105
  %v9107 = vlaneseq
  %v9108 = vshrl.u32 %v9107, 7
  %v9109 = vsub.s32 %v9106, %v9108
  %v9110 = vrot.slane %v9088, %v9109
  %v9112 = vunpack.c.l.s4 1966171168
  %v9113 = vunpack.c.0.s8 %v9112
  %v9114 = vlaneseq
  %v9115 = vshrl.u32 %v9114, 7
  %v9116 = vsub.s32 %v9113, %v9115
  %v9117 = vrot.slane %v9089, %v9116
  %v9118 = vcombine.high %v9096, %v9096
  %v9119 = vcombine.high %v9103, %v9103
  %v9120 = vcombine.high %v9110, %v9110
  %v9121 = vcombine.high %v9117, %v9117
  %v9122 = vcombine.high %v5042, %v5042
  %v9124 = vunpack.c.l.s4 1966171168
  %v9125 = vunpack.c.0.s8 %v9124
  %v9126 = vlaneseq
  %v9127 = vshrl.u32 %v9126, 7
  %v9128 = vsub.s32 %v9125, %v9127
  %v9129 = vrot.slane %v5042, %v9128
  %v9131 = vunpack.c.l.s4 1966171168
  %v9132 = vunpack.c.0.s8 %v9131
  %v9133 = vlaneseq
  %v9134 = vshrl.u32 %v9133, 7
  %v9135 = vsub.s32 %v9132, %v9134
  %v9136 = vrot.slane %v9122, %v9135
  %v9137 = vcombine.high %v9129, %v9129
  %v9138 = vcombine.high %v9136, %v9136
  %v9140 = vunpack.c.l.s4 1966171168
  %v9141 = vunpack.c.0.s8 %v9140
  %v9142 = vlaneseq
  %v9143 = vshrl.u32 %v9142, 7
  %v9144 = vsub.s32 %v9141, %v9143
  %v9145 = vrot.slane %v9129, %v9144
  %v9147 = vunpack.c.l.s4 1966171168
  %v9148 = vunpack.c.0.s8 %v9147
  %v9149 = vlaneseq
  %v9150 = vshrl.u32 %v9149, 7
  %v9151 = vsub.s32 %v9148, %v9150
  %v9152 = vrot.slane %v9136, %v9151
  %v9154 = vunpack.c.l.s4 1966171168
  %v9155 = vunpack.c.0.s8 %v9154
  %v9156 = vlaneseq
  %v9157 = vshrl.u32 %v9156, 7
  %v9158 = vsub.s32 %v9155, %v9157
  %v9159 = vrot.slane %v9137, %v9158
  %v9161 = vunpack.c.l.s4 1966171168
  %v9162 = vunpack.c.0.s8 %v9161
  %v9163 = vlaneseq
  %v9164 = vshrl.u32 %v9163, 7
  %v9165 = vsub.s32 %v9162, %v9164
  %v9166 = vrot.slane %v9138, %v9165
  %v9167 = vcombine.high %v9145, %v9145
  %v9168 = vcombine.high %v9152, %v9152
  %v9169 = vcombine.high %v9159, %v9159
  %v9170 = vcombine.high %v9166, %v9166
  %v9171 = vcombine.high %v5043, %v5043
  %v9173 = vunpack.c.l.s4 1966171168
  %v9174 = vunpack.c.0.s8 %v9173
  %v9175 = vlaneseq
  %v9176 = vshrl.u32 %v9175, 7
  %v9177 = vsub.s32 %v9174, %v9176
  %v9178 = vrot.slane %v5043, %v9177
  %v9180 = vunpack.c.l.s4 1966171168
  %v9181 = vunpack.c.0.s8 %v9180
  %v9182 = vlaneseq
  %v9183 = vshrl.u32 %v9182, 7
  %v9184 = vsub.s32 %v9181, %v9183
  %v9185 = vrot.slane %v9171, %v9184
  %v9186 = vcombine.high %v9178, %v9178
  %v9187 = vcombine.high %v9185, %v9185
  %v9189 = vunpack.c.l.s4 1966171168
  %v9190 = vunpack.c.0.s8 %v9189
  %v9191 = vlaneseq
  %v9192 = vshrl.u32 %v9191, 7
  %v9193 = vsub.s32 %v9190, %v9192
  %v9194 = vrot.slane %v9178, %v9193
  %v9196 = vunpack.c.l.s4 1966171168
  %v9197 = vunpack.c.0.s8 %v9196
  %v9198 = vlaneseq
  %v9199 = vshrl.u32 %v9198, 7
  %v9200 = vsub.s32 %v9197, %v9199
  %v9201 = vrot.slane %v9185, %v9200
  %v9203 = vunpack.c.l.s4 1966171168
  %v9204 = vunpack.c.0.s8 %v9203
  %v9205 = vlaneseq
  %v9206 = vshrl.u32 %v9205, 7
  %v9207 = vsub.s32 %v9204, %v9206
  %v9208 = vrot.slane %v9186, %v9207
  %v9210 = vunpack.c.l.s4 1966171168
  %v9211 = vunpack.c.0.s8 %v9210
  %v9212 = vlaneseq
  %v9213 = vshrl.u32 %v9212, 7
  %v9214 = vsub.s32 %v9211, %v9213
  %v9215 = vrot.slane %v9187, %v9214
  %v9216 = vcombine.high %v9194, %v9194
  %v9217 = vcombine.high %v9201, %v9201
  %v9218 = vcombine.high %v9208, %v9208
  %v9219 = vcombine.high %v9215, %v9215
  %v9220 = vcombine.high %v5044, %v5044
  %v9222 = vunpack.c.l.s4 1966171168
  %v9223 = vunpack.c.0.s8 %v9222
  %v9224 = vlaneseq
  %v9225 = vshrl.u32 %v9224, 7
  %v9226 = vsub.s32 %v9223, %v9225
  %v9227 = vrot.slane %v5044, %v9226
  %v9229 = vunpack.c.l.s4 1966171168
  %v9230 = vunpack.c.0.s8 %v9229
  %v9231 = vlaneseq
  %v9232 = vshrl.u32 %v9231, 7
  %v9233 = vsub.s32 %v9230, %v9232
  %v9234 = vrot.slane %v9220, %v9233
  %v9235 = vcombine.high %v9227, %v9227
  %v9236 = vcombine.high %v9234, %v9234
  %v9238 = vunpack.c.l.s4 1966171168
  %v9239 = vunpack.c.0.s8 %v9238
  %v9240 = vlaneseq
  %v9241 = vshrl.u32 %v9240, 7
  %v9242 = vsub.s32 %v9239, %v9241
  %v9243 = vrot.slane %v9227, %v9242
  %v9245 = vunpack.c.l.s4 1966171168
  %v9246 = vunpack.c.0.s8 %v9245
  %v9247 = vlaneseq
  %v9248 = vshrl.u32 %v9247, 7
  %v9249 = vsub.s32 %v9246, %v9248
  %v9250 = vrot.slane %v9234, %v9249
  %v9252 = vunpack.c.l.s4 1966171168
  %v9253 = vunpack.c.0.s8 %v9252
  %v9254 = vlaneseq
  %v9255 = vshrl.u32 %v9254, 7
  %v9256 = vsub.s32 %v9253, %v9255
  %v9257 = vrot.slane %v9235, %v9256
  %v9259 = vunpack.c.l.s4 1966171168
  %v9260 = vunpack.c.0.s8 %v9259
  %v9261 = vlaneseq
  %v9262 = vshrl.u32 %v9261, 7
  %v9263 = vsub.s32 %v9260, %v9262
  %v9264 = vrot.slane %v9236, %v9263
  %v9265 = vcombine.high %v9243, %v9243
  %v9266 = vcombine.high %v9250, %v9250
  %v9267 = vcombine.high %v9257, %v9257
  %v9268 = vcombine.high %v9264, %v9264
  %v9269 = vlaneseq
  %v9270 = vshrl.u32 %v9269, 7
  %v9271 = vsub.s32 0, %v9270
  %v9272 = vrot.slane %v8508, %v9271
  %v9273 = vlaneseq
  %v9274 = vshrl.u32 %v9273, 7
  %v9275 = vsub.s32 0, %v9274
  %v9276 = vrot.slane %v8522, %v9275
  %v9277 = vlaneseq
  %v9278 = vshrl.u32 %v9277, 7
  %v9279 = vsub.s32 0, %v9278
  %v9280 = vrot.slane %v8530, %v9279
  %v9281 = vlaneseq
  %v9282 = vshrl.u32 %v9281, 7
  %v9283 = vsub.s32 0, %v9282
  %v9284 = vrot.slane %v8532, %v9283
  %v9285 = vlaneseq
  %v9286 = vshrl.u32 %v9285, 7
  %v9287 = vsub.s32 0, %v9286
  %v9288 = vrot.slane %v8515, %v9287
  %v9289 = vlaneseq
  %v9290 = vshrl.u32 %v9289, 7
  %v9291 = vsub.s32 0, %v9290
  %v9292 = vrot.slane %v8529, %v9291
  %v9293 = vlaneseq
  %v9294 = vshrl.u32 %v9293, 7
  %v9295 = vsub.s32 0, %v9294
  %v9296 = vrot.slane %v8531, %v9295
  %v9297 = vlaneseq
  %v9298 = vshrl.u32 %v9297, 7
  %v9299 = vsub.s32 0, %v9298
  %v9300 = vrot.slane %v8533, %v9299
  %v9301 = vlaneseq
  %v9302 = vshrl.u32 %v9301, 7
  %v9303 = vsub.s32 0, %v9302
  %v9304 = vrot.slane %v8557, %v9303
  %v9305 = vlaneseq
  %v9306 = vshrl.u32 %v9305, 7
  %v9307 = vsub.s32 0, %v9306
  %v9308 = vrot.slane %v8571, %v9307
  %v9309 = vlaneseq
  %v9310 = vshrl.u32 %v9309, 7
  %v9311 = vsub.s32 0, %v9310
  %v9312 = vrot.slane %v8579, %v9311
  %v9313 = vlaneseq
  %v9314 = vshrl.u32 %v9313, 7
  %v9315 = vsub.s32 0, %v9314
  %v9316 = vrot.slane %v8581, %v9315
  %v9317 = vlaneseq
  %v9318 = vshrl.u32 %v9317, 7
  %v9319 = vsub.s32 0, %v9318
  %v9320 = vrot.slane %v8564, %v9319
  %v9321 = vlaneseq
  %v9322 = vshrl.u32 %v9321, 7
  %v9323 = vsub.s32 0, %v9322
  %v9324 = vrot.slane %v8578, %v9323
  %v9325 = vlaneseq
  %v9326 = vshrl.u32 %v9325, 7
  %v9327 = vsub.s32 0, %v9326
  %v9328 = vrot.slane %v8580, %v9327
  %v9329 = vlaneseq
  %v9330 = vshrl.u32 %v9329, 7
  %v9331 = vsub.s32 0, %v9330
  %v9332 = vrot.slane %v8582, %v9331
  %v9333 = vlaneseq
  %v9334 = vshrl.u32 %v9333, 7
  %v9335 = vsub.s32 0, %v9334
  %v9336 = vrot.slane %v8606, %v9335
  %v9337 = vlaneseq
  %v9338 = vshrl.u32 %v9337, 7
  %v9339 = vsub.s32 0, %v9338
  %v9340 = vrot.slane %v8620, %v9339
  %v9341 = vlaneseq
  %v9342 = vshrl.u32 %v9341, 7
  %v9343 = vsub.s32 0, %v9342
  %v9344 = vrot.slane %v8628, %v9343
  %v9345 = vlaneseq
  %v9346 = vshrl.u32 %v9345, 7
  %v9347 = vsub.s32 0, %v9346
  %v9348 = vrot.slane %v8630, %v9347
  %v9349 = vlaneseq
  %v9350 = vshrl.u32 %v9349, 7
  %v9351 = vsub.s32 0, %v9350
  %v9352 = vrot.slane %v8613, %v9351
  %v9353 = vlaneseq
  %v9354 = vshrl.u32 %v9353, 7
  %v9355 = vsub.s32 0, %v9354
  %v9356 = vrot.slane %v8627, %v9355
  %v9357 = vlaneseq
  %v9358 = vshrl.u32 %v9357, 7
  %v9359 = vsub.s32 0, %v9358
  %v9360 = vrot.slane %v8629, %v9359
  %v9361 = vlaneseq
  %v9362 = vshrl.u32 %v9361, 7
  %v9363 = vsub.s32 0, %v9362
  %v9364 = vrot.slane %v8631, %v9363
  %v9365 = vlaneseq
  %v9366 = vshrl.u32 %v9365, 7
  %v9367 = vsub.s32 0, %v9366
  %v9368 = vrot.slane %v8655, %v9367
  %v9369 = vlaneseq
  %v9370 = vshrl.u32 %v9369, 7
  %v9371 = vsub.s32 0, %v9370
  %v9372 = vrot.slane %v8669, %v9371
  %v9373 = vlaneseq
  %v9374 = vshrl.u32 %v9373, 7
  %v9375 = vsub.s32 0, %v9374
  %v9376 = vrot.slane %v8677, %v9375
  %v9377 = vlaneseq
  %v9378 = vshrl.u32 %v9377, 7
  %v9379 = vsub.s32 0, %v9378
  %v9380 = vrot.slane %v8679, %v9379
  %v9381 = vlaneseq
  %v9382 = vshrl.u32 %v9381, 7
  %v9383 = vsub.s32 0, %v9382
  %v9384 = vrot.slane %v8662, %v9383
  %v9385 = vlaneseq
  %v9386 = vshrl.u32 %v9385, 7
  %v9387 = vsub.s32 0, %v9386
  %v9388 = vrot.slane %v8676, %v9387
  %v9389 = vlaneseq
  %v9390 = vshrl.u32 %v9389, 7
  %v9391 = vsub.s32 0, %v9390
  %v9392 = vrot.slane %v8678, %v9391
  %v9393 = vlaneseq
  %v9394 = vshrl.u32 %v9393, 7
  %v9395 = vsub.s32 0, %v9394
  %v9396 = vrot.slane %v8680, %v9395
  %v9397 = vlaneseq
  %v9398 = vshrl.u32 %v9397, 7
  %v9399 = vsub.s32 0, %v9398
  %v9400 = vrot.slane %v8704, %v9399
  %v9401 = vlaneseq
  %v9402 = vshrl.u32 %v9401, 7
  %v9403 = vsub.s32 0, %v9402
  %v9404 = vrot.slane %v8718, %v9403
  %v9405 = vlaneseq
  %v9406 = vshrl.u32 %v9405, 7
  %v9407 = vsub.s32 0, %v9406
  %v9408 = vrot.slane %v8726, %v9407
  %v9409 = vlaneseq
  %v9410 = vshrl.u32 %v9409, 7
  %v9411 = vsub.s32 0, %v9410
  %v9412 = vrot.slane %v8728, %v9411
  %v9413 = vlaneseq
  %v9414 = vshrl.u32 %v9413, 7
  %v9415 = vsub.s32 0, %v9414
  %v9416 = vrot.slane %v8711, %v9415
  %v9417 = vlaneseq
  %v9418 = vshrl.u32 %v9417, 7
  %v9419 = vsub.s32 0, %v9418
  %v9420 = vrot.slane %v8725, %v9419
  %v9421 = vlaneseq
  %v9422 = vshrl.u32 %v9421, 7
  %v9423 = vsub.s32 0, %v9422
  %v9424 = vrot.slane %v8727, %v9423
  %v9425 = vlaneseq
  %v9426 = vshrl.u32 %v9425, 7
  %v9427 = vsub.s32 0, %v9426
  %v9428 = vrot.slane %v8729, %v9427
  %v9429 = vlaneseq
  %v9430 = vshrl.u32 %v9429, 7
  %v9431 = vsub.s32 0, %v9430
  %v9432 = vrot.slane %v8753, %v9431
  %v9433 = vlaneseq
  %v9434 = vshrl.u32 %v9433, 7
  %v9435 = vsub.s32 0, %v9434
  %v9436 = vrot.slane %v8767, %v9435
  %v9437 = vlaneseq
  %v9438 = vshrl.u32 %v9437, 7
  %v9439 = vsub.s32 0, %v9438
  %v9440 = vrot.slane %v8775, %v9439
  %v9441 = vlaneseq
  %v9442 = vshrl.u32 %v9441, 7
  %v9443 = vsub.s32 0, %v9442
  %v9444 = vrot.slane %v8777, %v9443
  %v9445 = vlaneseq
  %v9446 = vshrl.u32 %v9445, 7
  %v9447 = vsub.s32 0, %v9446
  %v9448 = vrot.slane %v8760, %v9447
  %v9449 = vlaneseq
  %v9450 = vshrl.u32 %v9449, 7
  %v9451 = vsub.s32 0, %v9450
  %v9452 = vrot.slane %v8774, %v9451
  %v9453 = vlaneseq
  %v9454 = vshrl.u32 %v9453, 7
  %v9455 = vsub.s32 0, %v9454
  %v9456 = vrot.slane %v8776, %v9455
  %v9457 = vlaneseq
  %v9458 = vshrl.u32 %v9457, 7
  %v9459 = vsub.s32 0, %v9458
  %v9460 = vrot.slane %v8778, %v9459
  %v9461 = vlaneseq
  %v9462 = vshrl.u32 %v9461, 7
  %v9463 = vsub.s32 0, %v9462
  %v9464 = vrot.slane %v8802, %v9463
  %v9465 = vlaneseq
  %v9466 = vshrl.u32 %v9465, 7
  %v9467 = vsub.s32 0, %v9466
  %v9468 = vrot.slane %v8816, %v9467
  %v9469 = vlaneseq
  %v9470 = vshrl.u32 %v9469, 7
  %v9471 = vsub.s32 0, %v9470
  %v9472 = vrot.slane %v8824, %v9471
  %v9473 = vlaneseq
  %v9474 = vshrl.u32 %v9473, 7
  %v9475 = vsub.s32 0, %v9474
  %v9476 = vrot.slane %v8826, %v9475
  %v9477 = vlaneseq
  %v9478 = vshrl.u32 %v9477, 7
  %v9479 = vsub.s32 0, %v9478
  %v9480 = vrot.slane %v8809, %v9479
  %v9481 = vlaneseq
  %v9482 = vshrl.u32 %v9481, 7
  %v9483 = vsub.s32 0, %v9482
  %v9484 = vrot.slane %v8823, %v9483
  %v9485 = vlaneseq
  %v9486 = vshrl.u32 %v9485, 7
  %v9487 = vsub.s32 0, %v9486
  %v9488 = vrot.slane %v8825, %v9487
  %v9489 = vlaneseq
  %v9490 = vshrl.u32 %v9489, 7
  %v9491 = vsub.s32 0, %v9490
  %v9492 = vrot.slane %v8827, %v9491
  %v9493 = vlaneseq
  %v9494 = vshrl.u32 %v9493, 7
  %v9495 = vsub.s32 0, %v9494
  %v9496 = vrot.slane %v8851, %v9495
  %v9497 = vlaneseq
  %v9498 = vshrl.u32 %v9497, 7
  %v9499 = vsub.s32 0, %v9498
  %v9500 = vrot.slane %v8865, %v9499
  %v9501 = vlaneseq
  %v9502 = vshrl.u32 %v9501, 7
  %v9503 = vsub.s32 0, %v9502
  %v9504 = vrot.slane %v8873, %v9503
  %v9505 = vlaneseq
  %v9506 = vshrl.u32 %v9505, 7
  %v9507 = vsub.s32 0, %v9506
  %v9508 = vrot.slane %v8875, %v9507
  %v9509 = vlaneseq
  %v9510 = vshrl.u32 %v9509, 7
  %v9511 = vsub.s32 0, %v9510
  %v9512 = vrot.slane %v8858, %v9511
  %v9513 = vlaneseq
  %v9514 = vshrl.u32 %v9513, 7
  %v9515 = vsub.s32 0, %v9514
  %v9516 = vrot.slane %v8872, %v9515
  %v9517 = vlaneseq
  %v9518 = vshrl.u32 %v9517, 7
  %v9519 = vsub.s32 0, %v9518
  %v9520 = vrot.slane %v8874, %v9519
  %v9521 = vlaneseq
  %v9522 = vshrl.u32 %v9521, 7
  %v9523 = vsub.s32 0, %v9522
  %v9524 = vrot.slane %v8876, %v9523
  %v9525 = vlaneseq
  %v9526 = vshrl.u32 %v9525, 7
  %v9527 = vsub.s32 0, %v9526
  %v9528 = vrot.slane %v8900, %v9527
  %v9529 = vlaneseq
  %v9530 = vshrl.u32 %v9529, 7
  %v9531 = vsub.s32 0, %v9530
  %v9532 = vrot.slane %v8914, %v9531
  %v9533 = vlaneseq
  %v9534 = vshrl.u32 %v9533, 7
  %v9535 = vsub.s32 0, %v9534
  %v9536 = vrot.slane %v8922, %v9535
  %v9537 = vlaneseq
  %v9538 = vshrl.u32 %v9537, 7
  %v9539 = vsub.s32 0, %v9538
  %v9540 = vrot.slane %v8924, %v9539
  %v9541 = vlaneseq
  %v9542 = vshrl.u32 %v9541, 7
  %v9543 = vsub.s32 0, %v9542
  %v9544 = vrot.slane %v8907, %v9543
  %v9545 = vlaneseq
  %v9546 = vshrl.u32 %v9545, 7
  %v9547 = vsub.s32 0, %v9546
  %v9548 = vrot.slane %v8921, %v9547
  %v9549 = vlaneseq
  %v9550 = vshrl.u32 %v9549, 7
  %v9551 = vsub.s32 0, %v9550
  %v9552 = vrot.slane %v8923, %v9551
  %v9553 = vlaneseq
  %v9554 = vshrl.u32 %v9553, 7
  %v9555 = vsub.s32 0, %v9554
  %v9556 = vrot.slane %v8925, %v9555
  %v9557 = vlaneseq
  %v9558 = vshrl.u32 %v9557, 7
  %v9559 = vsub.s32 0, %v9558
  %v9560 = vrot.slane %v8949, %v9559
  %v9561 = vlaneseq
  %v9562 = vshrl.u32 %v9561, 7
  %v9563 = vsub.s32 0, %v9562
  %v9564 = vrot.slane %v8963, %v9563
  %v9565 = vlaneseq
  %v9566 = vshrl.u32 %v9565, 7
  %v9567 = vsub.s32 0, %v9566
  %v9568 = vrot.slane %v8971, %v9567
  %v9569 = vlaneseq
  %v9570 = vshrl.u32 %v9569, 7
  %v9571 = vsub.s32 0, %v9570
  %v9572 = vrot.slane %v8973, %v9571
  %v9573 = vlaneseq
  %v9574 = vshrl.u32 %v9573, 7
  %v9575 = vsub.s32 0, %v9574
  %v9576 = vrot.slane %v8956, %v9575
  %v9577 = vlaneseq
  %v9578 = vshrl.u32 %v9577, 7
  %v9579 = vsub.s32 0, %v9578
  %v9580 = vrot.slane %v8970, %v9579
  %v9581 = vlaneseq
  %v9582 = vshrl.u32 %v9581, 7
  %v9583 = vsub.s32 0, %v9582
  %v9584 = vrot.slane %v8972, %v9583
  %v9585 = vlaneseq
  %v9586 = vshrl.u32 %v9585, 7
  %v9587 = vsub.s32 0, %v9586
  %v9588 = vrot.slane %v8974, %v9587
  %v9589 = vlaneseq
  %v9590 = vshrl.u32 %v9589, 7
  %v9591 = vsub.s32 0, %v9590
  %v9592 = vrot.slane %v8998, %v9591
  %v9593 = vlaneseq
  %v9594 = vshrl.u32 %v9593, 7
  %v9595 = vsub.s32 0, %v9594
  %v9596 = vrot.slane %v9012, %v9595
  %v9597 = vlaneseq
  %v9598 = vshrl.u32 %v9597, 7
  %v9599 = vsub.s32 0, %v9598
  %v9600 = vrot.slane %v9020, %v9599
  %v9601 = vlaneseq
  %v9602 = vshrl.u32 %v9601, 7
  %v9603 = vsub.s32 0, %v9602
  %v9604 = vrot.slane %v9022, %v9603
  %v9605 = vlaneseq
  %v9606 = vshrl.u32 %v9605, 7
  %v9607 = vsub.s32 0, %v9606
  %v9608 = vrot.slane %v9005, %v9607
  %v9609 = vlaneseq
  %v9610 = vshrl.u32 %v9609, 7
  %v9611 = vsub.s32 0, %v9610
  %v9612 = vrot.slane %v9019, %v9611
  %v9613 = vlaneseq
  %v9614 = vshrl.u32 %v9613, 7
  %v9615 = vsub.s32 0, %v9614
  %v9616 = vrot.slane %v9021, %v9615
  %v9617 = vlaneseq
  %v9618 = vshrl.u32 %v9617, 7
  %v9619 = vsub.s32 0, %v9618
  %v9620 = vrot.slane %v9023, %v9619
  %v9621 = vlaneseq
  %v9622 = vshrl.u32 %v9621, 7
  %v9623 = vsub.s32 0, %v9622
  %v9624 = vrot.slane %v9047, %v9623
  %v9625 = vlaneseq
  %v9626 = vshrl.u32 %v9625, 7
  %v9627 = vsub.s32 0, %v9626
  %v9628 = vrot.slane %v9061, %v9627
  %v9629 = vlaneseq
  %v9630 = vshrl.u32 %v9629, 7
  %v9631 = vsub.s32 0, %v9630
  %v9632 = vrot.slane %v9069, %v9631
  %v9633 = vlaneseq
  %v9634 = vshrl.u32 %v9633, 7
  %v9635 = vsub.s32 0, %v9634
  %v9636 = vrot.slane %v9071, %v9635
  %v9637 = vlaneseq
  %v9638 = vshrl.u32 %v9637, 7
  %v9639 = vsub.s32 0, %v9638
  %v9640 = vrot.slane %v9054, %v9639
  %v9641 = vlaneseq
  %v9642 = vshrl.u32 %v9641, 7
  %v9643 = vsub.s32 0, %v9642
  %v9644 = vrot.slane %v9068, %v9643
  %v9645 = vlaneseq
  %v9646 = vshrl.u32 %v9645, 7
  %v9647 = vsub.s32 0, %v9646
  %v9648 = vrot.slane %v9070, %v9647
  %v9649 = vlaneseq
  %v9650 = vshrl.u32 %v9649, 7
  %v9651 = vsub.s32 0, %v9650
  %v9652 = vrot.slane %v9072, %v9651
  %v9653 = vlaneseq
  %v9654 = vshrl.u32 %v9653, 7
  %v9655 = vsub.s32 0, %v9654
  %v9656 = vrot.slane %v9096, %v9655
  %v9657 = vlaneseq
  %v9658 = vshrl.u32 %v9657, 7
  %v9659 = vsub.s32 0, %v9658
  %v9660 = vrot.slane %v9110, %v9659
  %v9661 = vlaneseq
  %v9662 = vshrl.u32 %v9661, 7
  %v9663 = vsub.s32 0, %v9662
  %v9664 = vrot.slane %v9118, %v9663
  %v9665 = vlaneseq
  %v9666 = vshrl.u32 %v9665, 7
  %v9667 = vsub.s32 0, %v9666
  %v9668 = vrot.slane %v9120, %v9667
  %v9669 = vlaneseq
  %v9670 = vshrl.u32 %v9669, 7
  %v9671 = vsub.s32 0, %v9670
  %v9672 = vrot.slane %v9103, %v9671
  %v9673 = vlaneseq
  %v9674 = vshrl.u32 %v9673, 7
  %v9675 = vsub.s32 0, %v9674
  %v9676 = vrot.slane %v9117, %v9675
  %v9677 = vlaneseq
  %v9678 = vshrl.u32 %v9677, 7
  %v9679 = vsub.s32 0, %v9678
  %v9680 = vrot.slane %v9119, %v9679
  %v9681 = vlaneseq
  %v9682 = vshrl.u32 %v9681, 7
  %v9683 = vsub.s32 0, %v9682
  %v9684 = vrot.slane %v9121, %v9683
  %v9685 = vlaneseq
  %v9686 = vshrl.u32 %v9685, 7
  %v9687 = vsub.s32 0, %v9686
  %v9688 = vrot.slane %v9145, %v9687
  %v9689 = vlaneseq
  %v9690 = vshrl.u32 %v9689, 7
  %v9691 = vsub.s32 0, %v9690
  %v9692 = vrot.slane %v9159, %v9691
  %v9693 = vlaneseq
  %v9694 = vshrl.u32 %v9693, 7
  %v9695 = vsub.s32 0, %v9694
  %v9696 = vrot.slane %v9167, %v9695
  %v9697 = vlaneseq
  %v9698 = vshrl.u32 %v9697, 7
  %v9699 = vsub.s32 0, %v9698
  %v9700 = vrot.slane %v9169, %v9699
  %v9701 = vlaneseq
  %v9702 = vshrl.u32 %v9701, 7
  %v9703 = vsub.s32 0, %v9702
  %v9704 = vrot.slane %v9152, %v9703
  %v9705 = vlaneseq
  %v9706 = vshrl.u32 %v9705, 7
  %v9707 = vsub.s32 0, %v9706
  %v9708 = vrot.slane %v9166, %v9707
  %v9709 = vlaneseq
  %v9710 = vshrl.u32 %v9709, 7
  %v9711 = vsub.s32 0, %v9710
  %v9712 = vrot.slane %v9168, %v9711
  %v9713 = vlaneseq
  %v9714 = vshrl.u32 %v9713, 7
  %v9715 = vsub.s32 0, %v9714
  %v9716 = vrot.slane %v9170, %v9715
  %v9717 = vlaneseq
  %v9718 = vshrl.u32 %v9717, 7
  %v9719 = vsub.s32 0, %v9718
  %v9720 = vrot.slane %v9194, %v9719
  %v9721 = vlaneseq
  %v9722 = vshrl.u32 %v9721, 7
  %v9723 = vsub.s32 0, %v9722
  %v9724 = vrot.slane %v9208, %v9723
  %v9725 = vlaneseq
  %v9726 = vshrl.u32 %v9725, 7
  %v9727 = vsub.s32 0, %v9726
  %v9728 = vrot.slane %v9216, %v9727
  %v9729 = vlaneseq
  %v9730 = vshrl.u32 %v9729, 7
  %v9731 = vsub.s32 0, %v9730
  %v9732 = vrot.slane %v9218, %v9731
  %v9733 = vlaneseq
  %v9734 = vshrl.u32 %v9733, 7
  %v9735 = vsub.s32 0, %v9734
  %v9736 = vrot.slane %v9201, %v9735
  %v9737 = vlaneseq
  %v9738 = vshrl.u32 %v9737, 7
  %v9739 = vsub.s32 0, %v9738
  %v9740 = vrot.slane %v9215, %v9739
  %v9741 = vlaneseq
  %v9742 = vshrl.u32 %v9741, 7
  %v9743 = vsub.s32 0, %v9742
  %v9744 = vrot.slane %v9217, %v9743
  %v9745 = vlaneseq
  %v9746 = vshrl.u32 %v9745, 7
  %v9747 = vsub.s32 0, %v9746
  %v9748 = vrot.slane %v9219, %v9747
  %v9749 = vlaneseq
  %v9750 = vshrl.u32 %v9749, 7
  %v9751 = vsub.s32 0, %v9750
  %v9752 = vrot.slane %v9243, %v9751
  %v9753 = vlaneseq
  %v9754 = vshrl.u32 %v9753, 7
  %v9755 = vsub.s32 0, %v9754
  %v9756 = vrot.slane %v9257, %v9755
  %v9757 = vlaneseq
  %v9758 = vshrl.u32 %v9757, 7
  %v9759 = vsub.s32 0, %v9758
  %v9760 = vrot.slane %v9265, %v9759
  %v9761 = vlaneseq
  %v9762 = vshrl.u32 %v9761, 7
  %v9763 = vsub.s32 0, %v9762
  %v9764 = vrot.slane %v9267, %v9763
  %v9765 = vlaneseq
  %v9766 = vshrl.u32 %v9765, 7
  %v9767 = vsub.s32 0, %v9766
  %v9768 = vrot.slane %v9250, %v9767
  %v9769 = vlaneseq
  %v9770 = vshrl.u32 %v9769, 7
  %v9771 = vsub.s32 0, %v9770
  %v9772 = vrot.slane %v9264, %v9771
  %v9773 = vlaneseq
  %v9774 = vshrl.u32 %v9773, 7
  %v9775 = vsub.s32 0, %v9774
  %v9776 = vrot.slane %v9266, %v9775
  %v9777 = vlaneseq
  %v9778 = vshrl.u32 %v9777, 7
  %v9779 = vsub.s32 0, %v9778
  %v9780 = vrot.slane %v9268, %v9779
  %v9909 = vsel %vm1859, %v7580, %v9272
  %v9910 = vsel %vm1859, %v7594, %v9276
  %v9911 = vsel %vm1859, %v7602, %v9280
  %v9912 = vsel %vm1859, %v7604, %v9284
  %v9913 = vsel %vm1859, %v7587, %v9288
  %v9914 = vsel %vm1859, %v7601, %v9292
  %v9915 = vsel %vm1859, %v7603, %v9296
  %v9916 = vsel %vm1859, %v7605, %v9300
  %v9917 = vsel %vm1859, %v7629, %v9304
  %v9918 = vsel %vm1859, %v7643, %v9308
  %v9919 = vsel %vm1859, %v7651, %v9312
  %v9920 = vsel %vm1859, %v7653, %v9316
  %v9921 = vsel %vm1859, %v7636, %v9320
  %v9922 = vsel %vm1859, %v7650, %v9324
  %v9923 = vsel %vm1859, %v7652, %v9328
  %v9924 = vsel %vm1859, %v7654, %v9332
  %v9925 = vsel %vm1859, %v7678, %v9336
  %v9926 = vsel %vm1859, %v7692, %v9340
  %v9927 = vsel %vm1859, %v7700, %v9344
  %v9928 = vsel %vm1859, %v7702, %v9348
  %v9929 = vsel %vm1859, %v7685, %v9352
  %v9930 = vsel %vm1859, %v7699, %v9356
  %v9931 = vsel %vm1859, %v7701, %v9360
  %v9932 = vsel %vm1859, %v7703, %v9364
  %v9933 = vsel %vm1859, %v7727, %v9368
  %v9934 = vsel %vm1859, %v7741, %v9372
  %v9935 = vsel %vm1859, %v7749, %v9376
  %v9936 = vsel %vm1859, %v7751, %v9380
  %v9937 = vsel %vm1859, %v7734, %v9384
  %v9938 = vsel %vm1859, %v7748, %v9388
  %v9939 = vsel %vm1859, %v7750, %v9392
  %v9940 = vsel %vm1859, %v7752, %v9396
  %v9941 = vsel %vm1859, %v7776, %v9400
  %v9942 = vsel %vm1859, %v7790, %v9404
  %v9943 = vsel %vm1859, %v7798, %v9408
  %v9944 = vsel %vm1859, %v7800, %v9412
  %v9945 = vsel %vm1859, %v7783, %v9416
  %v9946 = vsel %vm1859, %v7797, %v9420
  %v9947 = vsel %vm1859, %v7799, %v9424
  %v9948 = vsel %vm1859, %v7801, %v9428
  %v9949 = vsel %vm1859, %v7825, %v9432
  %v9950 = vsel %vm1859, %v7839, %v9436
  %v9951 = vsel %vm1859, %v7847, %v9440
  %v9952 = vsel %vm1859, %v7849, %v9444
  %v9953 = vsel %vm1859, %v7832, %v9448
  %v9954 = vsel %vm1859, %v7846, %v9452
  %v9955 = vsel %vm1859, %v7848, %v9456
  %v9956 = vsel %vm1859, %v7850, %v9460
  %v9957 = vsel %vm1859, %v7874, %v9464
  %v9958 = vsel %vm1859, %v7888, %v9468
  %v9959 = vsel %vm1859, %v7896, %v9472
  %v9960 = vsel %vm1859, %v7898, %v9476
  %v9961 = vsel %vm1859, %v7881, %v9480
  %v9962 = vsel %vm1859, %v7895, %v9484
  %v9963 = vsel %vm1859, %v7897, %v9488
  %v9964 = vsel %vm1859, %v7899, %v9492
  %v9965 = vsel %vm1859, %v7923, %v9496
  %v9966 = vsel %vm1859, %v7937, %v9500
  %v9967 = vsel %vm1859, %v7945, %v9504
  %v9968 = vsel %vm1859, %v7947, %v9508
  %v9969 = vsel %vm1859, %v7930, %v9512
  %v9970 = vsel %vm1859, %v7944, %v9516
  %v9971 = vsel %vm1859, %v7946, %v9520
  %v9972 = vsel %vm1859, %v7948, %v9524
  %v9973 = vsel %vm1859, %v7972, %v9528
  %v9974 = vsel %vm1859, %v7986, %v9532
  %v9975 = vsel %vm1859, %v7994, %v9536
  %v9976 = vsel %vm1859, %v7996, %v9540
  %v9977 = vsel %vm1859, %v7979, %v9544
  %v9978 = vsel %vm1859, %v7993, %v9548
  %v9979 = vsel %vm1859, %v7995, %v9552
  %v9980 = vsel %vm1859, %v7997, %v9556
  %v9981 = vsel %vm1859, %v8021, %v9560
  %v9982 = vsel %vm1859, %v8035, %v9564
  %v9983 = vsel %vm1859, %v8043, %v9568
  %v9984 = vsel %vm1859, %v8045, %v9572
  %v9985 = vsel %vm1859, %v8028, %v9576
  %v9986 = vsel %vm1859, %v8042, %v9580
  %v9987 = vsel %vm1859, %v8044, %v9584
  %v9988 = vsel %vm1859, %v8046, %v9588
  %v9989 = vsel %vm1859, %v8070, %v9592
  %v9990 = vsel %vm1859, %v8084, %v9596
  %v9991 = vsel %vm1859, %v8092, %v9600
  %v9992 = vsel %vm1859, %v8094, %v9604
  %v9993 = vsel %vm1859, %v8077, %v9608
  %v9994 = vsel %vm1859, %v8091, %v9612
  %v9995 = vsel %vm1859, %v8093, %v9616
  %v9996 = vsel %vm1859, %v8095, %v9620
  %v9997 = vsel %vm1859, %v8119, %v9624
  %v9998 = vsel %vm1859, %v8133, %v9628
  %v9999 = vsel %vm1859, %v8141, %v9632
  %v10000 = vsel %vm1859, %v8143, %v9636
  %v10001 = vsel %vm1859, %v8126, %v9640
  %v10002 = vsel %vm1859, %v8140, %v9644
  %v10003 = vsel %vm1859, %v8142, %v9648
  %v10004 = vsel %vm1859, %v8144, %v9652
  %v10005 = vsel %vm1859, %v8168, %v9656
  %v10006 = vsel %vm1859, %v8182, %v9660
  %v10007 = vsel %vm1859, %v8190, %v9664
  %v10008 = vsel %vm1859, %v8192, %v9668
  %v10009 = vsel %vm1859, %v8175, %v9672
  %v10010 = vsel %vm1859, %v8189, %v9676
  %v10011 = vsel %vm1859, %v8191, %v9680
  %v10012 = vsel %vm1859, %v8193, %v9684
  %v10013 = vsel %vm1859, %v8217, %v9688
  %v10014 = vsel %vm1859, %v8231, %v9692
  %v10015 = vsel %vm1859, %v8239, %v9696
  %v10016 = vsel %vm1859, %v8241, %v9700
  %v10017 = vsel %vm1859, %v8224, %v9704
  %v10018 = vsel %vm1859, %v8238, %v9708
  %v10019 = vsel %vm1859, %v8240, %v9712
  %v10020 = vsel %vm1859, %v8242, %v9716
  %v10021 = vsel %vm1859, %v8266, %v9720
  %v10022 = vsel %vm1859, %v8280, %v9724
  %v10023 = vsel %vm1859, %v8288, %v9728
  %v10024 = vsel %vm1859, %v8290, %v9732
  %v10025 = vsel %vm1859, %v8273, %v9736
  %v10026 = vsel %vm1859, %v8287, %v9740
  %v10027 = vsel %vm1859, %v8289, %v9744
  %v10028 = vsel %vm1859, %v8291, %v9748
  %v10029 = vsel %vm1859, %v8315, %v9752
  %v10030 = vsel %vm1859, %v8329, %v9756
  %v10031 = vsel %vm1859, %v8337, %v9760
  %v10032 = vsel %vm1859, %v8339, %v9764
  %v10033 = vsel %vm1859, %v8322, %v9768
  %v10034 = vsel %vm1859, %v8336, %v9772
  %v10035 = vsel %vm1859, %v8338, %v9776
  %v10036 = vsel %vm1859, %v8340, %v9780
  %v10293 = vcombine.low %v7413, %v7414
  %v10294 = vcombine.low %v7415, %v7416
  %v10296 = vunpack.c.l.s4 1983009808
  %v10297 = vunpack.c.0.s8 %v10296
  %v10298 = vlaneseq
  %v10299 = vshrl.u32 %v10298, 7
  %v10300 = vsub.s32 %v10297, %v10299
  %v10301 = vrot.slane %v10293, %v10300
  %v10303 = vunpack.c.l.s4 1983009808
  %v10304 = vunpack.c.0.s8 %v10303
  %v10305 = vlaneseq
  %v10306 = vshrl.u32 %v10305, 7
  %v10307 = vsub.s32 %v10304, %v10306
  %v10308 = vrot.slane %v10294, %v10307
  %v10309 = vcombine.low %v10301, %v10308
  %v10310 = vcombine.low %v7417, %v7418
  %v10311 = vcombine.low %v7419, %v7420
  %v10313 = vunpack.c.l.s4 1983009808
  %v10314 = vunpack.c.0.s8 %v10313
  %v10315 = vlaneseq
  %v10316 = vshrl.u32 %v10315, 7
  %v10317 = vsub.s32 %v10314, %v10316
  %v10318 = vrot.slane %v10310, %v10317
  %v10320 = vunpack.c.l.s4 1983009808
  %v10321 = vunpack.c.0.s8 %v10320
  %v10322 = vlaneseq
  %v10323 = vshrl.u32 %v10322, 7
  %v10324 = vsub.s32 %v10321, %v10323
  %v10325 = vrot.slane %v10311, %v10324
  %v10326 = vcombine.low %v10318, %v10325
  %v10327 = vcombine.low %v9909, %v9910
  %v10328 = vcombine.low %v9911, %v9912
  %v10330 = vunpack.c.l.s4 1983009808
  %v10331 = vunpack.c.0.s8 %v10330
  %v10332 = vlaneseq
  %v10333 = vshrl.u32 %v10332, 7
  %v10334 = vsub.s32 %v10331, %v10333
  %v10335 = vrot.slane %v10327, %v10334
  %v10337 = vunpack.c.l.s4 1983009808
  %v10338 = vunpack.c.0.s8 %v10337
  %v10339 = vlaneseq
  %v10340 = vshrl.u32 %v10339, 7
  %v10341 = vsub.s32 %v10338, %v10340
  %v10342 = vrot.slane %v10328, %v10341
  %v10343 = vcombine.low %v10335, %v10342
  %v10344 = vcombine.low %v9913, %v9914
  %v10345 = vcombine.low %v9915, %v9916
  %v10347 = vunpack.c.l.s4 1983009808
  %v10348 = vunpack.c.0.s8 %v10347
  %v10349 = vlaneseq
  %v10350 = vshrl.u32 %v10349, 7
  %v10351 = vsub.s32 %v10348, %v10350
  %v10352 = vrot.slane %v10344, %v10351
  %v10354 = vunpack.c.l.s4 1983009808
  %v10355 = vunpack.c.0.s8 %v10354
  %v10356 = vlaneseq
  %v10357 = vshrl.u32 %v10356, 7
  %v10358 = vsub.s32 %v10355, %v10357
  %v10359 = vrot.slane %v10345, %v10358
  %v10360 = vcombine.low %v10352, %v10359
  %v10361 = vcombine.low %v7421, %v7422
  %v10362 = vcombine.low %v7423, %v7424
  %v10364 = vunpack.c.l.s4 1983009808
  %v10365 = vunpack.c.0.s8 %v10364
  %v10366 = vlaneseq
  %v10367 = vshrl.u32 %v10366, 7
  %v10368 = vsub.s32 %v10365, %v10367
  %v10369 = vrot.slane %v10361, %v10368
  %v10371 = vunpack.c.l.s4 1983009808
  %v10372 = vunpack.c.0.s8 %v10371
  %v10373 = vlaneseq
  %v10374 = vshrl.u32 %v10373, 7
  %v10375 = vsub.s32 %v10372, %v10374
  %v10376 = vrot.slane %v10362, %v10375
  %v10377 = vcombine.low %v10369, %v10376
  %v10378 = vcombine.low %v7425, %v7426
  %v10379 = vcombine.low %v7427, %v7428
  %v10381 = vunpack.c.l.s4 1983009808
  %v10382 = vunpack.c.0.s8 %v10381
  %v10383 = vlaneseq
  %v10384 = vshrl.u32 %v10383, 7
  %v10385 = vsub.s32 %v10382, %v10384
  %v10386 = vrot.slane %v10378, %v10385
  %v10388 = vunpack.c.l.s4 1983009808
  %v10389 = vunpack.c.0.s8 %v10388
  %v10390 = vlaneseq
  %v10391 = vshrl.u32 %v10390, 7
  %v10392 = vsub.s32 %v10389, %v10391
  %v10393 = vrot.slane %v10379, %v10392
  %v10394 = vcombine.low %v10386, %v10393
  %v10395 = vcombine.low %v9917, %v9918
  %v10396 = vcombine.low %v9919, %v9920
  %v10398 = vunpack.c.l.s4 1983009808
  %v10399 = vunpack.c.0.s8 %v10398
  %v10400 = vlaneseq
  %v10401 = vshrl.u32 %v10400, 7
  %v10402 = vsub.s32 %v10399, %v10401
  %v10403 = vrot.slane %v10395, %v10402
  %v10405 = vunpack.c.l.s4 1983009808
  %v10406 = vunpack.c.0.s8 %v10405
  %v10407 = vlaneseq
  %v10408 = vshrl.u32 %v10407, 7
  %v10409 = vsub.s32 %v10406, %v10408
  %v10410 = vrot.slane %v10396, %v10409
  %v10411 = vcombine.low %v10403, %v10410
  %v10412 = vcombine.low %v9921, %v9922
  %v10413 = vcombine.low %v9923, %v9924
  %v10415 = vunpack.c.l.s4 1983009808
  %v10416 = vunpack.c.0.s8 %v10415
  %v10417 = vlaneseq
  %v10418 = vshrl.u32 %v10417, 7
  %v10419 = vsub.s32 %v10416, %v10418
  %v10420 = vrot.slane %v10412, %v10419
  %v10422 = vunpack.c.l.s4 1983009808
  %v10423 = vunpack.c.0.s8 %v10422
  %v10424 = vlaneseq
  %v10425 = vshrl.u32 %v10424, 7
  %v10426 = vsub.s32 %v10423, %v10425
  %v10427 = vrot.slane %v10413, %v10426
  %v10428 = vcombine.low %v10420, %v10427
  %v10429 = vcombine.low %v7429, %v7430
  %v10430 = vcombine.low %v7431, %v7432
  %v10432 = vunpack.c.l.s4 1983009808
  %v10433 = vunpack.c.0.s8 %v10432
  %v10434 = vlaneseq
  %v10435 = vshrl.u32 %v10434, 7
  %v10436 = vsub.s32 %v10433, %v10435
  %v10437 = vrot.slane %v10429, %v10436
  %v10439 = vunpack.c.l.s4 1983009808
  %v10440 = vunpack.c.0.s8 %v10439
  %v10441 = vlaneseq
  %v10442 = vshrl.u32 %v10441, 7
  %v10443 = vsub.s32 %v10440, %v10442
  %v10444 = vrot.slane %v10430, %v10443
  %v10445 = vcombine.low %v10437, %v10444
  %v10446 = vcombine.low %v7433, %v7434
  %v10447 = vcombine.low %v7435, %v7436
  %v10449 = vunpack.c.l.s4 1983009808
  %v10450 = vunpack.c.0.s8 %v10449
  %v10451 = vlaneseq
  %v10452 = vshrl.u32 %v10451, 7
  %v10453 = vsub.s32 %v10450, %v10452
  %v10454 = vrot.slane %v10446, %v10453
  %v10456 = vunpack.c.l.s4 1983009808
  %v10457 = vunpack.c.0.s8 %v10456
  %v10458 = vlaneseq
  %v10459 = vshrl.u32 %v10458, 7
  %v10460 = vsub.s32 %v10457, %v10459
  %v10461 = vrot.slane %v10447, %v10460
  %v10462 = vcombine.low %v10454, %v10461
  %v10463 = vcombine.low %v9925, %v9926
  %v10464 = vcombine.low %v9927, %v9928
  %v10466 = vunpack.c.l.s4 1983009808
  %v10467 = vunpack.c.0.s8 %v10466
  %v10468 = vlaneseq
  %v10469 = vshrl.u32 %v10468, 7
  %v10470 = vsub.s32 %v10467, %v10469
  %v10471 = vrot.slane %v10463, %v10470
  %v10473 = vunpack.c.l.s4 1983009808
  %v10474 = vunpack.c.0.s8 %v10473
  %v10475 = vlaneseq
  %v10476 = vshrl.u32 %v10475, 7
  %v10477 = vsub.s32 %v10474, %v10476
  %v10478 = vrot.slane %v10464, %v10477
  %v10479 = vcombine.low %v10471, %v10478
  %v10480 = vcombine.low %v9929, %v9930
  %v10481 = vcombine.low %v9931, %v9932
  %v10483 = vunpack.c.l.s4 1983009808
  %v10484 = vunpack.c.0.s8 %v10483
  %v10485 = vlaneseq
  %v10486 = vshrl.u32 %v10485, 7
  %v10487 = vsub.s32 %v10484, %v10486
  %v10488 = vrot.slane %v10480, %v10487
  %v10490 = vunpack.c.l.s4 1983009808
  %v10491 = vunpack.c.0.s8 %v10490
  %v10492 = vlaneseq
  %v10493 = vshrl.u32 %v10492, 7
  %v10494 = vsub.s32 %v10491, %v10493
  %v10495 = vrot.slane %v10481, %v10494
  %v10496 = vcombine.low %v10488, %v10495
  %v10497 = vcombine.low %v7437, %v7438
  %v10498 = vcombine.low %v7439, %v7440
  %v10500 = vunpack.c.l.s4 1983009808
  %v10501 = vunpack.c.0.s8 %v10500
  %v10502 = vlaneseq
  %v10503 = vshrl.u32 %v10502, 7
  %v10504 = vsub.s32 %v10501, %v10503
  %v10505 = vrot.slane %v10497, %v10504
  %v10507 = vunpack.c.l.s4 1983009808
  %v10508 = vunpack.c.0.s8 %v10507
  %v10509 = vlaneseq
  %v10510 = vshrl.u32 %v10509, 7
  %v10511 = vsub.s32 %v10508, %v10510
  %v10512 = vrot.slane %v10498, %v10511
  %v10513 = vcombine.low %v10505, %v10512
  %v10514 = vcombine.low %v7441, %v7442
  %v10515 = vcombine.low %v7443, %v7444
  %v10517 = vunpack.c.l.s4 1983009808
  %v10518 = vunpack.c.0.s8 %v10517
  %v10519 = vlaneseq
  %v10520 = vshrl.u32 %v10519, 7
  %v10521 = vsub.s32 %v10518, %v10520
  %v10522 = vrot.slane %v10514, %v10521
  %v10524 = vunpack.c.l.s4 1983009808
  %v10525 = vunpack.c.0.s8 %v10524
  %v10526 = vlaneseq
  %v10527 = vshrl.u32 %v10526, 7
  %v10528 = vsub.s32 %v10525, %v10527
  %v10529 = vrot.slane %v10515, %v10528
  %v10530 = vcombine.low %v10522, %v10529
  %v10531 = vcombine.low %v9933, %v9934
  %v10532 = vcombine.low %v9935, %v9936
  %v10534 = vunpack.c.l.s4 1983009808
  %v10535 = vunpack.c.0.s8 %v10534
  %v10536 = vlaneseq
  %v10537 = vshrl.u32 %v10536, 7
  %v10538 = vsub.s32 %v10535, %v10537
  %v10539 = vrot.slane %v10531, %v10538
  %v10541 = vunpack.c.l.s4 1983009808
  %v10542 = vunpack.c.0.s8 %v10541
  %v10543 = vlaneseq
  %v10544 = vshrl.u32 %v10543, 7
  %v10545 = vsub.s32 %v10542, %v10544
  %v10546 = vrot.slane %v10532, %v10545
  %v10547 = vcombine.low %v10539, %v10546
  %v10548 = vcombine.low %v9937, %v9938
  %v10549 = vcombine.low %v9939, %v9940
  %v10551 = vunpack.c.l.s4 1983009808
  %v10552 = vunpack.c.0.s8 %v10551
  %v10553 = vlaneseq
  %v10554 = vshrl.u32 %v10553, 7
  %v10555 = vsub.s32 %v10552, %v10554
  %v10556 = vrot.slane %v10548, %v10555
  %v10558 = vunpack.c.l.s4 1983009808
  %v10559 = vunpack.c.0.s8 %v10558
  %v10560 = vlaneseq
  %v10561 = vshrl.u32 %v10560, 7
  %v10562 = vsub.s32 %v10559, %v10561
  %v10563 = vrot.slane %v10549, %v10562
  %v10564 = vcombine.low %v10556, %v10563
  %v10565 = vcombine.low %v7445, %v7446
  %v10566 = vcombine.low %v7447, %v7448
  %v10568 = vunpack.c.l.s4 1983009808
  %v10569 = vunpack.c.0.s8 %v10568
  %v10570 = vlaneseq
  %v10571 = vshrl.u32 %v10570, 7
  %v10572 = vsub.s32 %v10569, %v10571
  %v10573 = vrot.slane %v10565, %v10572
  %v10575 = vunpack.c.l.s4 1983009808
  %v10576 = vunpack.c.0.s8 %v10575
  %v10577 = vlaneseq
  %v10578 = vshrl.u32 %v10577, 7
  %v10579 = vsub.s32 %v10576, %v10578
  %v10580 = vrot.slane %v10566, %v10579
  %v10581 = vcombine.low %v10573, %v10580
  %v10582 = vcombine.low %v7449, %v7450
  %v10583 = vcombine.low %v7451, %v7452
  %v10585 = vunpack.c.l.s4 1983009808
  %v10586 = vunpack.c.0.s8 %v10585
  %v10587 = vlaneseq
  %v10588 = vshrl.u32 %v10587, 7
  %v10589 = vsub.s32 %v10586, %v10588
  %v10590 = vrot.slane %v10582, %v10589
  %v10592 = vunpack.c.l.s4 1983009808
  %v10593 = vunpack.c.0.s8 %v10592
  %v10594 = vlaneseq
  %v10595 = vshrl.u32 %v10594, 7
  %v10596 = vsub.s32 %v10593, %v10595
  %v10597 = vrot.slane %v10583, %v10596
  %v10598 = vcombine.low %v10590, %v10597
  %v10599 = vcombine.low %v9941, %v9942
  %v10600 = vcombine.low %v9943, %v9944
  %v10602 = vunpack.c.l.s4 1983009808
  %v10603 = vunpack.c.0.s8 %v10602
  %v10604 = vlaneseq
  %v10605 = vshrl.u32 %v10604, 7
  %v10606 = vsub.s32 %v10603, %v10605
  %v10607 = vrot.slane %v10599, %v10606
  %v10609 = vunpack.c.l.s4 1983009808
  %v10610 = vunpack.c.0.s8 %v10609
  %v10611 = vlaneseq
  %v10612 = vshrl.u32 %v10611, 7
  %v10613 = vsub.s32 %v10610, %v10612
  %v10614 = vrot.slane %v10600, %v10613
  %v10615 = vcombine.low %v10607, %v10614
  %v10616 = vcombine.low %v9945, %v9946
  %v10617 = vcombine.low %v9947, %v9948
  %v10619 = vunpack.c.l.s4 1983009808
  %v10620 = vunpack.c.0.s8 %v10619
  %v10621 = vlaneseq
  %v10622 = vshrl.u32 %v10621, 7
  %v10623 = vsub.s32 %v10620, %v10622
  %v10624 = vrot.slane %v10616, %v10623
  %v10626 = vunpack.c.l.s4 1983009808
  %v10627 = vunpack.c.0.s8 %v10626
  %v10628 = vlaneseq
  %v10629 = vshrl.u32 %v10628, 7
  %v10630 = vsub.s32 %v10627, %v10629
  %v10631 = vrot.slane %v10617, %v10630
  %v10632 = vcombine.low %v10624, %v10631
  %v10633 = vcombine.low %v7453, %v7454
  %v10634 = vcombine.low %v7455, %v7456
  %v10636 = vunpack.c.l.s4 1983009808
  %v10637 = vunpack.c.0.s8 %v10636
  %v10638 = vlaneseq
  %v10639 = vshrl.u32 %v10638, 7
  %v10640 = vsub.s32 %v10637, %v10639
  %v10641 = vrot.slane %v10633, %v10640
  %v10643 = vunpack.c.l.s4 1983009808
  %v10644 = vunpack.c.0.s8 %v10643
  %v10645 = vlaneseq
  %v10646 = vshrl.u32 %v10645, 7
  %v10647 = vsub.s32 %v10644, %v10646
  %v10648 = vrot.slane %v10634, %v10647
  %v10649 = vcombine.low %v10641, %v10648
  %v10650 = vcombine.low %v7457, %v7458
  %v10651 = vcombine.low %v7459, %v7460
  %v10653 = vunpack.c.l.s4 1983009808
  %v10654 = vunpack.c.0.s8 %v10653
  %v10655 = vlaneseq
  %v10656 = vshrl.u32 %v10655, 7
  %v10657 = vsub.s32 %v10654, %v10656
  %v10658 = vrot.slane %v10650, %v10657
  %v10660 = vunpack.c.l.s4 1983009808
  %v10661 = vunpack.c.0.s8 %v10660
  %v10662 = vlaneseq
  %v10663 = vshrl.u32 %v10662, 7
  %v10664 = vsub.s32 %v10661, %v10663
  %v10665 = vrot.slane %v10651, %v10664
  %v10666 = vcombine.low %v10658, %v10665
  %v10667 = vcombine.low %v9949, %v9950
  %v10668 = vcombine.low %v9951, %v9952
  %v10670 = vunpack.c.l.s4 1983009808
  %v10671 = vunpack.c.0.s8 %v10670
  %v10672 = vlaneseq
  %v10673 = vshrl.u32 %v10672, 7
  %v10674 = vsub.s32 %v10671, %v10673
  %v10675 = vrot.slane %v10667, %v10674
  %v10677 = vunpack.c.l.s4 1983009808
  %v10678 = vunpack.c.0.s8 %v10677
  %v10679 = vlaneseq
  %v10680 = vshrl.u32 %v10679, 7
  %v10681 = vsub.s32 %v10678, %v10680
  %v10682 = vrot.slane %v10668, %v10681
  %v10683 = vcombine.low %v10675, %v10682
  %v10684 = vcombine.low %v9953, %v9954
  %v10685 = vcombine.low %v9955, %v9956
  %v10687 = vunpack.c.l.s4 1983009808
  %v10688 = vunpack.c.0.s8 %v10687
  %v10689 = vlaneseq
  %v10690 = vshrl.u32 %v10689, 7
  %v10691 = vsub.s32 %v10688, %v10690
  %v10692 = vrot.slane %v10684, %v10691
  %v10694 = vunpack.c.l.s4 1983009808
  %v10695 = vunpack.c.0.s8 %v10694
  %v10696 = vlaneseq
  %v10697 = vshrl.u32 %v10696, 7
  %v10698 = vsub.s32 %v10695, %v10697
  %v10699 = vrot.slane %v10685, %v10698
  %v10700 = vcombine.low %v10692, %v10699
  %v10701 = vcombine.low %v7461, %v7462
  %v10702 = vcombine.low %v7463, %v7464
  %v10704 = vunpack.c.l.s4 1983009808
  %v10705 = vunpack.c.0.s8 %v10704
  %v10706 = vlaneseq
  %v10707 = vshrl.u32 %v10706, 7
  %v10708 = vsub.s32 %v10705, %v10707
  %v10709 = vrot.slane %v10701, %v10708
  %v10711 = vunpack.c.l.s4 1983009808
  %v10712 = vunpack.c.0.s8 %v10711
  %v10713 = vlaneseq
  %v10714 = vshrl.u32 %v10713, 7
  %v10715 = vsub.s32 %v10712, %v10714
  %v10716 = vrot.slane %v10702, %v10715
  %v10717 = vcombine.low %v10709, %v10716
  %v10718 = vcombine.low %v7465, %v7466
  %v10719 = vcombine.low %v7467, %v7468
  %v10721 = vunpack.c.l.s4 1983009808
  %v10722 = vunpack.c.0.s8 %v10721
  %v10723 = vlaneseq
  %v10724 = vshrl.u32 %v10723, 7
  %v10725 = vsub.s32 %v10722, %v10724
  %v10726 = vrot.slane %v10718, %v10725
  %v10728 = vunpack.c.l.s4 1983009808
  %v10729 = vunpack.c.0.s8 %v10728
  %v10730 = vlaneseq
  %v10731 = vshrl.u32 %v10730, 7
  %v10732 = vsub.s32 %v10729, %v10731
  %v10733 = vrot.slane %v10719, %v10732
  %v10734 = vcombine.low %v10726, %v10733
  %v10735 = vcombine.low %v9957, %v9958
  %v10736 = vcombine.low %v9959, %v9960
  %v10738 = vunpack.c.l.s4 1983009808
  %v10739 = vunpack.c.0.s8 %v10738
  %v10740 = vlaneseq
  %v10741 = vshrl.u32 %v10740, 7
  %v10742 = vsub.s32 %v10739, %v10741
  %v10743 = vrot.slane %v10735, %v10742
  %v10745 = vunpack.c.l.s4 1983009808
  %v10746 = vunpack.c.0.s8 %v10745
  %v10747 = vlaneseq
  %v10748 = vshrl.u32 %v10747, 7
  %v10749 = vsub.s32 %v10746, %v10748
  %v10750 = vrot.slane %v10736, %v10749
  %v10751 = vcombine.low %v10743, %v10750
  %v10752 = vcombine.low %v9961, %v9962
  %v10753 = vcombine.low %v9963, %v9964
  %v10755 = vunpack.c.l.s4 1983009808
  %v10756 = vunpack.c.0.s8 %v10755
  %v10757 = vlaneseq
  %v10758 = vshrl.u32 %v10757, 7
  %v10759 = vsub.s32 %v10756, %v10758
  %v10760 = vrot.slane %v10752, %v10759
  %v10762 = vunpack.c.l.s4 1983009808
  %v10763 = vunpack.c.0.s8 %v10762
  %v10764 = vlaneseq
  %v10765 = vshrl.u32 %v10764, 7
  %v10766 = vsub.s32 %v10763, %v10765
  %v10767 = vrot.slane %v10753, %v10766
  %v10768 = vcombine.low %v10760, %v10767
  %v10769 = vcombine.low %v7469, %v7470
  %v10770 = vcombine.low %v7471, %v7472
  %v10772 = vunpack.c.l.s4 1983009808
  %v10773 = vunpack.c.0.s8 %v10772
  %v10774 = vlaneseq
  %v10775 = vshrl.u32 %v10774, 7
  %v10776 = vsub.s32 %v10773, %v10775
  %v10777 = vrot.slane %v10769, %v10776
  %v10779 = vunpack.c.l.s4 1983009808
  %v10780 = vunpack.c.0.s8 %v10779
  %v10781 = vlaneseq
  %v10782 = vshrl.u32 %v10781, 7
  %v10783 = vsub.s32 %v10780, %v10782
  %v10784 = vrot.slane %v10770, %v10783
  %v10785 = vcombine.low %v10777, %v10784
  %v10786 = vcombine.low %v7473, %v7474
  %v10787 = vcombine.low %v7475, %v7476
  %v10789 = vunpack.c.l.s4 1983009808
  %v10790 = vunpack.c.0.s8 %v10789
  %v10791 = vlaneseq
  %v10792 = vshrl.u32 %v10791, 7
  %v10793 = vsub.s32 %v10790, %v10792
  %v10794 = vrot.slane %v10786, %v10793
  %v10796 = vunpack.c.l.s4 1983009808
  %v10797 = vunpack.c.0.s8 %v10796
  %v10798 = vlaneseq
  %v10799 = vshrl.u32 %v10798, 7
  %v10800 = vsub.s32 %v10797, %v10799
  %v10801 = vrot.slane %v10787, %v10800
  %v10802 = vcombine.low %v10794, %v10801
  %v10803 = vcombine.low %v9965, %v9966
  %v10804 = vcombine.low %v9967, %v9968
  %v10806 = vunpack.c.l.s4 1983009808
  %v10807 = vunpack.c.0.s8 %v10806
  %v10808 = vlaneseq
  %v10809 = vshrl.u32 %v10808, 7
  %v10810 = vsub.s32 %v10807, %v10809
  %v10811 = vrot.slane %v10803, %v10810
  %v10813 = vunpack.c.l.s4 1983009808
  %v10814 = vunpack.c.0.s8 %v10813
  %v10815 = vlaneseq
  %v10816 = vshrl.u32 %v10815, 7
  %v10817 = vsub.s32 %v10814, %v10816
  %v10818 = vrot.slane %v10804, %v10817
  %v10819 = vcombine.low %v10811, %v10818
  %v10820 = vcombine.low %v9969, %v9970
  %v10821 = vcombine.low %v9971, %v9972
  %v10823 = vunpack.c.l.s4 1983009808
  %v10824 = vunpack.c.0.s8 %v10823
  %v10825 = vlaneseq
  %v10826 = vshrl.u32 %v10825, 7
  %v10827 = vsub.s32 %v10824, %v10826
  %v10828 = vrot.slane %v10820, %v10827
  %v10830 = vunpack.c.l.s4 1983009808
  %v10831 = vunpack.c.0.s8 %v10830
  %v10832 = vlaneseq
  %v10833 = vshrl.u32 %v10832, 7
  %v10834 = vsub.s32 %v10831, %v10833
  %v10835 = vrot.slane %v10821, %v10834
  %v10836 = vcombine.low %v10828, %v10835
  %v10837 = vcombine.low %v7477, %v7478
  %v10838 = vcombine.low %v7479, %v7480
  %v10840 = vunpack.c.l.s4 1983009808
  %v10841 = vunpack.c.0.s8 %v10840
  %v10842 = vlaneseq
  %v10843 = vshrl.u32 %v10842, 7
  %v10844 = vsub.s32 %v10841, %v10843
  %v10845 = vrot.slane %v10837, %v10844
  %v10847 = vunpack.c.l.s4 1983009808
  %v10848 = vunpack.c.0.s8 %v10847
  %v10849 = vlaneseq
  %v10850 = vshrl.u32 %v10849, 7
  %v10851 = vsub.s32 %v10848, %v10850
  %v10852 = vrot.slane %v10838, %v10851
  %v10853 = vcombine.low %v10845, %v10852
  %v10854 = vcombine.low %v7481, %v7482
  %v10855 = vcombine.low %v7483, %v7484
  %v10857 = vunpack.c.l.s4 1983009808
  %v10858 = vunpack.c.0.s8 %v10857
  %v10859 = vlaneseq
  %v10860 = vshrl.u32 %v10859, 7
  %v10861 = vsub.s32 %v10858, %v10860
  %v10862 = vrot.slane %v10854, %v10861
  %v10864 = vunpack.c.l.s4 1983009808
  %v10865 = vunpack.c.0.s8 %v10864
  %v10866 = vlaneseq
  %v10867 = vshrl.u32 %v10866, 7
  %v10868 = vsub.s32 %v10865, %v10867
  %v10869 = vrot.slane %v10855, %v10868
  %v10870 = vcombine.low %v10862, %v10869
  %v10871 = vcombine.low %v9973, %v9974
  %v10872 = vcombine.low %v9975, %v9976
  %v10874 = vunpack.c.l.s4 1983009808
  %v10875 = vunpack.c.0.s8 %v10874
  %v10876 = vlaneseq
  %v10877 = vshrl.u32 %v10876, 7
  %v10878 = vsub.s32 %v10875, %v10877
  %v10879 = vrot.slane %v10871, %v10878
  %v10881 = vunpack.c.l.s4 1983009808
  %v10882 = vunpack.c.0.s8 %v10881
  %v10883 = vlaneseq
  %v10884 = vshrl.u32 %v10883, 7
  %v10885 = vsub.s32 %v10882, %v10884
  %v10886 = vrot.slane %v10872, %v10885
  %v10887 = vcombine.low %v10879, %v10886
  %v10888 = vcombine.low %v9977, %v9978
  %v10889 = vcombine.low %v9979, %v9980
  %v10891 = vunpack.c.l.s4 1983009808
  %v10892 = vunpack.c.0.s8 %v10891
  %v10893 = vlaneseq
  %v10894 = vshrl.u32 %v10893, 7
  %v10895 = vsub.s32 %v10892, %v10894
  %v10896 = vrot.slane %v10888, %v10895
  %v10898 = vunpack.c.l.s4 1983009808
  %v10899 = vunpack.c.0.s8 %v10898
  %v10900 = vlaneseq
  %v10901 = vshrl.u32 %v10900, 7
  %v10902 = vsub.s32 %v10899, %v10901
  %v10903 = vrot.slane %v10889, %v10902
  %v10904 = vcombine.low %v10896, %v10903
  %v10905 = vcombine.low %v7485, %v7486
  %v10906 = vcombine.low %v7487, %v7488
  %v10908 = vunpack.c.l.s4 1983009808
  %v10909 = vunpack.c.0.s8 %v10908
  %v10910 = vlaneseq
  %v10911 = vshrl.u32 %v10910, 7
  %v10912 = vsub.s32 %v10909, %v10911
  %v10913 = vrot.slane %v10905, %v10912
  %v10915 = vunpack.c.l.s4 1983009808
  %v10916 = vunpack.c.0.s8 %v10915
  %v10917 = vlaneseq
  %v10918 = vshrl.u32 %v10917, 7
  %v10919 = vsub.s32 %v10916, %v10918
  %v10920 = vrot.slane %v10906, %v10919
  %v10921 = vcombine.low %v10913, %v10920
  %v10922 = vcombine.low %v7489, %v7490
  %v10923 = vcombine.low %v7491, %v7492
  %v10925 = vunpack.c.l.s4 1983009808
  %v10926 = vunpack.c.0.s8 %v10925
  %v10927 = vlaneseq
  %v10928 = vshrl.u32 %v10927, 7
  %v10929 = vsub.s32 %v10926, %v10928
  %v10930 = vrot.slane %v10922, %v10929
  %v10932 = vunpack.c.l.s4 1983009808
  %v10933 = vunpack.c.0.s8 %v10932
  %v10934 = vlaneseq
  %v10935 = vshrl.u32 %v10934, 7
  %v10936 = vsub.s32 %v10933, %v10935
  %v10937 = vrot.slane %v10923, %v10936
  %v10938 = vcombine.low %v10930, %v10937
  %v10939 = vcombine.low %v9981, %v9982
  %v10940 = vcombine.low %v9983, %v9984
  %v10942 = vunpack.c.l.s4 1983009808
  %v10943 = vunpack.c.0.s8 %v10942
  %v10944 = vlaneseq
  %v10945 = vshrl.u32 %v10944, 7
  %v10946 = vsub.s32 %v10943, %v10945
  %v10947 = vrot.slane %v10939, %v10946
  %v10949 = vunpack.c.l.s4 1983009808
  %v10950 = vunpack.c.0.s8 %v10949
  %v10951 = vlaneseq
  %v10952 = vshrl.u32 %v10951, 7
  %v10953 = vsub.s32 %v10950, %v10952
  %v10954 = vrot.slane %v10940, %v10953
  %v10955 = vcombine.low %v10947, %v10954
  %v10956 = vcombine.low %v9985, %v9986
  %v10957 = vcombine.low %v9987, %v9988
  %v10959 = vunpack.c.l.s4 1983009808
  %v10960 = vunpack.c.0.s8 %v10959
  %v10961 = vlaneseq
  %v10962 = vshrl.u32 %v10961, 7
  %v10963 = vsub.s32 %v10960, %v10962
  %v10964 = vrot.slane %v10956, %v10963
  %v10966 = vunpack.c.l.s4 1983009808
  %v10967 = vunpack.c.0.s8 %v10966
  %v10968 = vlaneseq
  %v10969 = vshrl.u32 %v10968, 7
  %v10970 = vsub.s32 %v10967, %v10969
  %v10971 = vrot.slane %v10957, %v10970
  %v10972 = vcombine.low %v10964, %v10971
  %v10973 = vcombine.low %v7493, %v7494
  %v10974 = vcombine.low %v7495, %v7496
  %v10976 = vunpack.c.l.s4 1983009808
  %v10977 = vunpack.c.0.s8 %v10976
  %v10978 = vlaneseq
  %v10979 = vshrl.u32 %v10978, 7
  %v10980 = vsub.s32 %v10977, %v10979
  %v10981 = vrot.slane %v10973, %v10980
  %v10983 = vunpack.c.l.s4 1983009808
  %v10984 = vunpack.c.0.s8 %v10983
  %v10985 = vlaneseq
  %v10986 = vshrl.u32 %v10985, 7
  %v10987 = vsub.s32 %v10984, %v10986
  %v10988 = vrot.slane %v10974, %v10987
  %v10989 = vcombine.low %v10981, %v10988
  %v10990 = vcombine.low %v7497, %v7498
  %v10991 = vcombine.low %v7499, %v7500
  %v10993 = vunpack.c.l.s4 1983009808
  %v10994 = vunpack.c.0.s8 %v10993
  %v10995 = vlaneseq
  %v10996 = vshrl.u32 %v10995, 7
  %v10997 = vsub.s32 %v10994, %v10996
  %v10998 = vrot.slane %v10990, %v10997
  %v11000 = vunpack.c.l.s4 1983009808
  %v11001 = vunpack.c.0.s8 %v11000
  %v11002 = vlaneseq
  %v11003 = vshrl.u32 %v11002, 7
  %v11004 = vsub.s32 %v11001, %v11003
  %v11005 = vrot.slane %v10991, %v11004
  %v11006 = vcombine.low %v10998, %v11005
  %v11007 = vcombine.low %v9989, %v9990
  %v11008 = vcombine.low %v9991, %v9992
  %v11010 = vunpack.c.l.s4 1983009808
  %v11011 = vunpack.c.0.s8 %v11010
  %v11012 = vlaneseq
  %v11013 = vshrl.u32 %v11012, 7
  %v11014 = vsub.s32 %v11011, %v11013
  %v11015 = vrot.slane %v11007, %v11014
  %v11017 = vunpack.c.l.s4 1983009808
  %v11018 = vunpack.c.0.s8 %v11017
  %v11019 = vlaneseq
  %v11020 = vshrl.u32 %v11019, 7
  %v11021 = vsub.s32 %v11018, %v11020
  %v11022 = vrot.slane %v11008, %v11021
  %v11023 = vcombine.low %v11015, %v11022
  %v11024 = vcombine.low %v9993, %v9994
  %v11025 = vcombine.low %v9995, %v9996
  %v11027 = vunpack.c.l.s4 1983009808
  %v11028 = vunpack.c.0.s8 %v11027
  %v11029 = vlaneseq
  %v11030 = vshrl.u32 %v11029, 7
  %v11031 = vsub.s32 %v11028, %v11030
  %v11032 = vrot.slane %v11024, %v11031
  %v11034 = vunpack.c.l.s4 1983009808
  %v11035 = vunpack.c.0.s8 %v11034
  %v11036 = vlaneseq
  %v11037 = vshrl.u32 %v11036, 7
  %v11038 = vsub.s32 %v11035, %v11037
  %v11039 = vrot.slane %v11025, %v11038
  %v11040 = vcombine.low %v11032, %v11039
  %v11041 = vcombine.low %v7501, %v7502
  %v11042 = vcombine.low %v7503, %v7504
  %v11044 = vunpack.c.l.s4 1983009808
  %v11045 = vunpack.c.0.s8 %v11044
  %v11046 = vlaneseq
  %v11047 = vshrl.u32 %v11046, 7
  %v11048 = vsub.s32 %v11045, %v11047
  %v11049 = vrot.slane %v11041, %v11048
  %v11051 = vunpack.c.l.s4 1983009808
  %v11052 = vunpack.c.0.s8 %v11051
  %v11053 = vlaneseq
  %v11054 = vshrl.u32 %v11053, 7
  %v11055 = vsub.s32 %v11052, %v11054
  %v11056 = vrot.slane %v11042, %v11055
  %v11057 = vcombine.low %v11049, %v11056
  %v11058 = vcombine.low %v7505, %v7506
  %v11059 = vcombine.low %v7507, %v7508
  %v11061 = vunpack.c.l.s4 1983009808
  %v11062 = vunpack.c.0.s8 %v11061
  %v11063 = vlaneseq
  %v11064 = vshrl.u32 %v11063, 7
  %v11065 = vsub.s32 %v11062, %v11064
  %v11066 = vrot.slane %v11058, %v11065
  %v11068 = vunpack.c.l.s4 1983009808
  %v11069 = vunpack.c.0.s8 %v11068
  %v11070 = vlaneseq
  %v11071 = vshrl.u32 %v11070, 7
  %v11072 = vsub.s32 %v11069, %v11071
  %v11073 = vrot.slane %v11059, %v11072
  %v11074 = vcombine.low %v11066, %v11073
  %v11075 = vcombine.low %v9997, %v9998
  %v11076 = vcombine.low %v9999, %v10000
  %v11078 = vunpack.c.l.s4 1983009808
  %v11079 = vunpack.c.0.s8 %v11078
  %v11080 = vlaneseq
  %v11081 = vshrl.u32 %v11080, 7
  %v11082 = vsub.s32 %v11079, %v11081
  %v11083 = vrot.slane %v11075, %v11082
  %v11085 = vunpack.c.l.s4 1983009808
  %v11086 = vunpack.c.0.s8 %v11085
  %v11087 = vlaneseq
  %v11088 = vshrl.u32 %v11087, 7
  %v11089 = vsub.s32 %v11086, %v11088
  %v11090 = vrot.slane %v11076, %v11089
  %v11091 = vcombine.low %v11083, %v11090
  %v11092 = vcombine.low %v10001, %v10002
  %v11093 = vcombine.low %v10003, %v10004
  %v11095 = vunpack.c.l.s4 1983009808
  %v11096 = vunpack.c.0.s8 %v11095
  %v11097 = vlaneseq
  %v11098 = vshrl.u32 %v11097, 7
  %v11099 = vsub.s32 %v11096, %v11098
  %v11100 = vrot.slane %v11092, %v11099
  %v11102 = vunpack.c.l.s4 1983009808
  %v11103 = vunpack.c.0.s8 %v11102
  %v11104 = vlaneseq
  %v11105 = vshrl.u32 %v11104, 7
  %v11106 = vsub.s32 %v11103, %v11105
  %v11107 = vrot.slane %v11093, %v11106
  %v11108 = vcombine.low %v11100, %v11107
  %v11109 = vcombine.low %v7509, %v7510
  %v11110 = vcombine.low %v7511, %v7512
  %v11112 = vunpack.c.l.s4 1983009808
  %v11113 = vunpack.c.0.s8 %v11112
  %v11114 = vlaneseq
  %v11115 = vshrl.u32 %v11114, 7
  %v11116 = vsub.s32 %v11113, %v11115
  %v11117 = vrot.slane %v11109, %v11116
  %v11119 = vunpack.c.l.s4 1983009808
  %v11120 = vunpack.c.0.s8 %v11119
  %v11121 = vlaneseq
  %v11122 = vshrl.u32 %v11121, 7
  %v11123 = vsub.s32 %v11120, %v11122
  %v11124 = vrot.slane %v11110, %v11123
  %v11125 = vcombine.low %v11117, %v11124
  %v11126 = vcombine.low %v7513, %v7514
  %v11127 = vcombine.low %v7515, %v7516
  %v11129 = vunpack.c.l.s4 1983009808
  %v11130 = vunpack.c.0.s8 %v11129
  %v11131 = vlaneseq
  %v11132 = vshrl.u32 %v11131, 7
  %v11133 = vsub.s32 %v11130, %v11132
  %v11134 = vrot.slane %v11126, %v11133
  %v11136 = vunpack.c.l.s4 1983009808
  %v11137 = vunpack.c.0.s8 %v11136
  %v11138 = vlaneseq
  %v11139 = vshrl.u32 %v11138, 7
  %v11140 = vsub.s32 %v11137, %v11139
  %v11141 = vrot.slane %v11127, %v11140
  %v11142 = vcombine.low %v11134, %v11141
  %v11143 = vcombine.low %v10005, %v10006
  %v11144 = vcombine.low %v10007, %v10008
  %v11146 = vunpack.c.l.s4 1983009808
  %v11147 = vunpack.c.0.s8 %v11146
  %v11148 = vlaneseq
  %v11149 = vshrl.u32 %v11148, 7
  %v11150 = vsub.s32 %v11147, %v11149
  %v11151 = vrot.slane %v11143, %v11150
  %v11153 = vunpack.c.l.s4 1983009808
  %v11154 = vunpack.c.0.s8 %v11153
  %v11155 = vlaneseq
  %v11156 = vshrl.u32 %v11155, 7
  %v11157 = vsub.s32 %v11154, %v11156
  %v11158 = vrot.slane %v11144, %v11157
  %v11159 = vcombine.low %v11151, %v11158
  %v11160 = vcombine.low %v10009, %v10010
  %v11161 = vcombine.low %v10011, %v10012
  %v11163 = vunpack.c.l.s4 1983009808
  %v11164 = vunpack.c.0.s8 %v11163
  %v11165 = vlaneseq
  %v11166 = vshrl.u32 %v11165, 7
  %v11167 = vsub.s32 %v11164, %v11166
  %v11168 = vrot.slane %v11160, %v11167
  %v11170 = vunpack.c.l.s4 1983009808
  %v11171 = vunpack.c.0.s8 %v11170
  %v11172 = vlaneseq
  %v11173 = vshrl.u32 %v11172, 7
  %v11174 = vsub.s32 %v11171, %v11173
  %v11175 = vrot.slane %v11161, %v11174
  %v11176 = vcombine.low %v11168, %v11175
  %v11177 = vcombine.low %v7517, %v7518
  %v11178 = vcombine.low %v7519, %v7520
  %v11180 = vunpack.c.l.s4 1983009808
  %v11181 = vunpack.c.0.s8 %v11180
  %v11182 = vlaneseq
  %v11183 = vshrl.u32 %v11182, 7
  %v11184 = vsub.s32 %v11181, %v11183
  %v11185 = vrot.slane %v11177, %v11184
  %v11187 = vunpack.c.l.s4 1983009808
  %v11188 = vunpack.c.0.s8 %v11187
  %v11189 = vlaneseq
  %v11190 = vshrl.u32 %v11189, 7
  %v11191 = vsub.s32 %v11188, %v11190
  %v11192 = vrot.slane %v11178, %v11191
  %v11193 = vcombine.low %v11185, %v11192
  %v11194 = vcombine.low %v7521, %v7522
  %v11195 = vcombine.low %v7523, %v7524
  %v11197 = vunpack.c.l.s4 1983009808
  %v11198 = vunpack.c.0.s8 %v11197
  %v11199 = vlaneseq
  %v11200 = vshrl.u32 %v11199, 7
  %v11201 = vsub.s32 %v11198, %v11200
  %v11202 = vrot.slane %v11194, %v11201
  %v11204 = vunpack.c.l.s4 1983009808
  %v11205 = vunpack.c.0.s8 %v11204
  %v11206 = vlaneseq
  %v11207 = vshrl.u32 %v11206, 7
  %v11208 = vsub.s32 %v11205, %v11207
  %v11209 = vrot.slane %v11195, %v11208
  %v11210 = vcombine.low %v11202, %v11209
  %v11211 = vcombine.low %v10013, %v10014
  %v11212 = vcombine.low %v10015, %v10016
  %v11214 = vunpack.c.l.s4 1983009808
  %v11215 = vunpack.c.0.s8 %v11214
  %v11216 = vlaneseq
  %v11217 = vshrl.u32 %v11216, 7
  %v11218 = vsub.s32 %v11215, %v11217
  %v11219 = vrot.slane %v11211, %v11218
  %v11221 = vunpack.c.l.s4 1983009808
  %v11222 = vunpack.c.0.s8 %v11221
  %v11223 = vlaneseq
  %v11224 = vshrl.u32 %v11223, 7
  %v11225 = vsub.s32 %v11222, %v11224
  %v11226 = vrot.slane %v11212, %v11225
  %v11227 = vcombine.low %v11219, %v11226
  %v11228 = vcombine.low %v10017, %v10018
  %v11229 = vcombine.low %v10019, %v10020
  %v11231 = vunpack.c.l.s4 1983009808
  %v11232 = vunpack.c.0.s8 %v11231
  %v11233 = vlaneseq
  %v11234 = vshrl.u32 %v11233, 7
  %v11235 = vsub.s32 %v11232, %v11234
  %v11236 = vrot.slane %v11228, %v11235
  %v11238 = vunpack.c.l.s4 1983009808
  %v11239 = vunpack.c.0.s8 %v11238
  %v11240 = vlaneseq
  %v11241 = vshrl.u32 %v11240, 7
  %v11242 = vsub.s32 %v11239, %v11241
  %v11243 = vrot.slane %v11229, %v11242
  %v11244 = vcombine.low %v11236, %v11243
  %v11245 = vcombine.low %v7525, %v7526
  %v11246 = vcombine.low %v7527, %v7528
  %v11248 = vunpack.c.l.s4 1983009808
  %v11249 = vunpack.c.0.s8 %v11248
  %v11250 = vlaneseq
  %v11251 = vshrl.u32 %v11250, 7
  %v11252 = vsub.s32 %v11249, %v11251
  %v11253 = vrot.slane %v11245, %v11252
  %v11255 = vunpack.c.l.s4 1983009808
  %v11256 = vunpack.c.0.s8 %v11255
  %v11257 = vlaneseq
  %v11258 = vshrl.u32 %v11257, 7
  %v11259 = vsub.s32 %v11256, %v11258
  %v11260 = vrot.slane %v11246, %v11259
  %v11261 = vcombine.low %v11253, %v11260
  %v11262 = vcombine.low %v7529, %v7530
  %v11263 = vcombine.low %v7531, %v7532
  %v11265 = vunpack.c.l.s4 1983009808
  %v11266 = vunpack.c.0.s8 %v11265
  %v11267 = vlaneseq
  %v11268 = vshrl.u32 %v11267, 7
  %v11269 = vsub.s32 %v11266, %v11268
  %v11270 = vrot.slane %v11262, %v11269
  %v11272 = vunpack.c.l.s4 1983009808
  %v11273 = vunpack.c.0.s8 %v11272
  %v11274 = vlaneseq
  %v11275 = vshrl.u32 %v11274, 7
  %v11276 = vsub.s32 %v11273, %v11275
  %v11277 = vrot.slane %v11263, %v11276
  %v11278 = vcombine.low %v11270, %v11277
  %v11279 = vcombine.low %v10021, %v10022
  %v11280 = vcombine.low %v10023, %v10024
  %v11282 = vunpack.c.l.s4 1983009808
  %v11283 = vunpack.c.0.s8 %v11282
  %v11284 = vlaneseq
  %v11285 = vshrl.u32 %v11284, 7
  %v11286 = vsub.s32 %v11283, %v11285
  %v11287 = vrot.slane %v11279, %v11286
  %v11289 = vunpack.c.l.s4 1983009808
  %v11290 = vunpack.c.0.s8 %v11289
  %v11291 = vlaneseq
  %v11292 = vshrl.u32 %v11291, 7
  %v11293 = vsub.s32 %v11290, %v11292
  %v11294 = vrot.slane %v11280, %v11293
  %v11295 = vcombine.low %v11287, %v11294
  %v11296 = vcombine.low %v10025, %v10026
  %v11297 = vcombine.low %v10027, %v10028
  %v11299 = vunpack.c.l.s4 1983009808
  %v11300 = vunpack.c.0.s8 %v11299
  %v11301 = vlaneseq
  %v11302 = vshrl.u32 %v11301, 7
  %v11303 = vsub.s32 %v11300, %v11302
  %v11304 = vrot.slane %v11296, %v11303
  %v11306 = vunpack.c.l.s4 1983009808
  %v11307 = vunpack.c.0.s8 %v11306
  %v11308 = vlaneseq
  %v11309 = vshrl.u32 %v11308, 7
  %v11310 = vsub.s32 %v11307, %v11309
  %v11311 = vrot.slane %v11297, %v11310
  %v11312 = vcombine.low %v11304, %v11311
  %v11313 = vcombine.low %v7533, %v7534
  %v11314 = vcombine.low %v7535, %v7536
  %v11316 = vunpack.c.l.s4 1983009808
  %v11317 = vunpack.c.0.s8 %v11316
  %v11318 = vlaneseq
  %v11319 = vshrl.u32 %v11318, 7
  %v11320 = vsub.s32 %v11317, %v11319
  %v11321 = vrot.slane %v11313, %v11320
  %v11323 = vunpack.c.l.s4 1983009808
  %v11324 = vunpack.c.0.s8 %v11323
  %v11325 = vlaneseq
  %v11326 = vshrl.u32 %v11325, 7
  %v11327 = vsub.s32 %v11324, %v11326
  %v11328 = vrot.slane %v11314, %v11327
  %v11329 = vcombine.low %v11321, %v11328
  %v11330 = vcombine.low %v7537, %v7538
  %v11331 = vcombine.low %v7539, %v7540
  %v11333 = vunpack.c.l.s4 1983009808
  %v11334 = vunpack.c.0.s8 %v11333
  %v11335 = vlaneseq
  %v11336 = vshrl.u32 %v11335, 7
  %v11337 = vsub.s32 %v11334, %v11336
  %v11338 = vrot.slane %v11330, %v11337
  %v11340 = vunpack.c.l.s4 1983009808
  %v11341 = vunpack.c.0.s8 %v11340
  %v11342 = vlaneseq
  %v11343 = vshrl.u32 %v11342, 7
  %v11344 = vsub.s32 %v11341, %v11343
  %v11345 = vrot.slane %v11331, %v11344
  %v11346 = vcombine.low %v11338, %v11345
  %v11347 = vcombine.low %v10029, %v10030
  %v11348 = vcombine.low %v10031, %v10032
  %v11350 = vunpack.c.l.s4 1983009808
  %v11351 = vunpack.c.0.s8 %v11350
  %v11352 = vlaneseq
  %v11353 = vshrl.u32 %v11352, 7
  %v11354 = vsub.s32 %v11351, %v11353
  %v11355 = vrot.slane %v11347, %v11354
  %v11357 = vunpack.c.l.s4 1983009808
  %v11358 = vunpack.c.0.s8 %v11357
  %v11359 = vlaneseq
  %v11360 = vshrl.u32 %v11359, 7
  %v11361 = vsub.s32 %v11358, %v11360
  %v11362 = vrot.slane %v11348, %v11361
  %v11363 = vcombine.low %v11355, %v11362
  %v11364 = vcombine.low %v10033, %v10034
  %v11365 = vcombine.low %v10035, %v10036
  %v11367 = vunpack.c.l.s4 1983009808
  %v11368 = vunpack.c.0.s8 %v11367
  %v11369 = vlaneseq
  %v11370 = vshrl.u32 %v11369, 7
  %v11371 = vsub.s32 %v11368, %v11370
  %v11372 = vrot.slane %v11364, %v11371
  %v11374 = vunpack.c.l.s4 1983009808
  %v11375 = vunpack.c.0.s8 %v11374
  %v11376 = vlaneseq
  %v11377 = vshrl.u32 %v11376, 7
  %v11378 = vsub.s32 %v11375, %v11377
  %v11379 = vrot.slane %v11365, %v11378
  %v11380 = vcombine.low %v11372, %v11379
  %v11445 = vpack.c.bf16 %v10326, %v10309
  %v11446 = vpack.c.bf16 %v10360, %v10343
  %v11447 = vpack.c.bf16 %v10394, %v10377
  %v11448 = vpack.c.bf16 %v10428, %v10411
  %v11449 = vpack.c.bf16 %v10462, %v10445
  %v11450 = vpack.c.bf16 %v10496, %v10479
  %v11451 = vpack.c.bf16 %v10530, %v10513
  %v11452 = vpack.c.bf16 %v10564, %v10547
  %v11453 = vpack.c.bf16 %v10598, %v10581
  %v11454 = vpack.c.bf16 %v10632, %v10615
  %v11455 = vpack.c.bf16 %v10666, %v10649
  %v11456 = vpack.c.bf16 %v10700, %v10683
  %v11457 = vpack.c.bf16 %v10734, %v10717
  %v11458 = vpack.c.bf16 %v10768, %v10751
  %v11459 = vpack.c.bf16 %v10802, %v10785
  %v11460 = vpack.c.bf16 %v10836, %v10819
  %v11461 = vpack.c.bf16 %v10870, %v10853
  %v11462 = vpack.c.bf16 %v10904, %v10887
  %v11463 = vpack.c.bf16 %v10938, %v10921
  %v11464 = vpack.c.bf16 %v10972, %v10955
  %v11465 = vpack.c.bf16 %v11006, %v10989
  %v11466 = vpack.c.bf16 %v11040, %v11023
  %v11467 = vpack.c.bf16 %v11074, %v11057
  %v11468 = vpack.c.bf16 %v11108, %v11091
  %v11469 = vpack.c.bf16 %v11142, %v11125
  %v11470 = vpack.c.bf16 %v11176, %v11159
  %v11471 = vpack.c.bf16 %v11210, %v11193
  %v11472 = vpack.c.bf16 %v11244, %v11227
  %v11473 = vpack.c.bf16 %v11278, %v11261
  %v11474 = vpack.c.bf16 %v11312, %v11295
  %v11475 = vpack.c.bf16 %v11346, %v11329
  %v11476 = vpack.c.bf16 %v11380, %v11363
  %v11477 = vld [vmem:[%s7] sm:$0xf]
  %v11478 = vld [vmem:[%s8] sm:$0xff]
  %11480 = vset.pattern.permute.xlu0 0
  %11481 = vperm.xlu0 %11480, %v11478
  %v11482 = vpop.permute.xlu0 %11481
  %v11485 = vsel %vm4399, %v11477, 0
  %v11488 = vsel %vm4399, %v11445, 0
  %v11491 = vsel %vm4399, %v11446, 0
  %v11494 = vsel %vm4399, %v11447, 0
  %v11497 = vsel %vm4399, %v11448, 0
  %v11500 = vsel %vm4399, %v11449, 0
  %v11503 = vsel %vm4399, %v11450, 0
  %v11506 = vsel %vm4399, %v11451, 0
  %v11509 = vsel %vm4399, %v11452, 0
  %v11512 = vsel %vm4399, %v11453, 0
  %v11515 = vsel %vm4399, %v11454, 0
  %v11518 = vsel %vm4399, %v11455, 0
  %v11521 = vsel %vm4399, %v11456, 0
  %v11524 = vsel %vm4399, %v11457, 0
  %v11527 = vsel %vm4399, %v11458, 0
  %v11530 = vsel %vm4399, %v11459, 0
  %v11533 = vsel %vm4399, %v11460, 0
  %v11536 = vsel %vm4399, %v11461, 0
  %v11539 = vsel %vm4399, %v11462, 0
  %v11542 = vsel %vm4399, %v11463, 0
  %v11545 = vsel %vm4399, %v11464, 0
  %v11548 = vsel %vm4399, %v11465, 0
  %v11551 = vsel %vm4399, %v11466, 0
  %v11554 = vsel %vm4399, %v11467, 0
  %v11557 = vsel %vm4399, %v11468, 0
  %v11560 = vsel %vm4399, %v11469, 0
  %v11563 = vsel %vm4399, %v11470, 0
  %v11566 = vsel %vm4399, %v11471, 0
  %v11569 = vsel %vm4399, %v11472, 0
  %v11572 = vsel %vm4399, %v11473, 0
  %v11575 = vsel %vm4399, %v11474, 0
  %v11578 = vsel %vm4399, %v11475, 0
  %v11581 = vsel %vm4399, %v11476, 0
  %11583 = vmatprep.subr.bf16.mxu0 0
  %11584 = vmatpush1.bf16.xpose.msra.mxu0 %v11488
  %11585 = vmatprep.subr.bf16.mxu0 0
  %11586 = vmatpush1.bf16.xpose.msra.mxu0 %v11491
  %11587 = vmatprep.subr.bf16.mxu0 0
  %11588 = vmatpush1.bf16.xpose.msra.mxu0 %v11494
  %11589 = vmatprep.subr.bf16.mxu0 0
  %11590 = vmatpush1.bf16.xpose.msra.mxu0 %v11497
  %11591 = vmatprep.subr.bf16.mxu0 0
  %11592 = vmatpush1.bf16.xpose.msra.mxu0 %v11500
  %11593 = vmatprep.subr.bf16.mxu0 0
  %11594 = vmatpush1.bf16.xpose.msra.mxu0 %v11503
  %11595 = vmatprep.subr.bf16.mxu0 0
  %11596 = vmatpush1.bf16.xpose.msra.mxu0 %v11506
  %11597 = vmatprep.subr.bf16.mxu0 0
  %11598 = vmatpush1.bf16.xpose.msra.mxu0 %v11509
  %11599 = vmatprep.subr.bf16.mxu0 0
  %11600 = vmatpush1.bf16.xpose.msra.mxu0 %v11512
  %11601 = vmatprep.subr.bf16.mxu0 0
  %11602 = vmatpush1.bf16.xpose.msra.mxu0 %v11515
  %11603 = vmatprep.subr.bf16.mxu0 0
  %11604 = vmatpush1.bf16.xpose.msra.mxu0 %v11518
  %11605 = vmatprep.subr.bf16.mxu0 0
  %11606 = vmatpush1.bf16.xpose.msra.mxu0 %v11521
  %11607 = vmatprep.subr.bf16.mxu0 0
  %11608 = vmatpush1.bf16.xpose.msra.mxu0 %v11524
  %11609 = vmatprep.subr.bf16.mxu0 0
  %11610 = vmatpush1.bf16.xpose.msra.mxu0 %v11527
  %11611 = vmatprep.subr.bf16.mxu0 0
  %11612 = vmatpush1.bf16.xpose.msra.mxu0 %v11530
  %11613 = vmatprep.subr.bf16.mxu0 0
  %11614 = vmatpush1.bf16.xpose.msra.mxu0 %v11533
  %11615 = vmatprep.mubr.bf16.mxu0 0
  %11616 = vmatmul.mubr.bf16.gmra.mrb[0].mxu0 %v11485
  %v11617 = vpop.f32.mrb[0].mxu0
  %v11618 = vadd.f32 %v11482, %v11617
  %v11619 = vpop.f32.mrb[0].mxu0
  %v11620 = vadd.f32 %v11482, %v11619
  %v11621 = vpop.f32.mrb[0].mxu0
  %v11622 = vpop.f32.mrb[0].mxu0
  %11623 = vdwg.mxu0
  %11624 = vmatprep.subr.bf16.mxu0 0
  %11625 = vmatpush1.bf16.xpose.msra.mxu0 %v11536
  %11626 = vmatprep.subr.bf16.mxu0 0
  %11627 = vmatpush1.bf16.xpose.msra.mxu0 %v11539
  %11628 = vmatprep.subr.bf16.mxu0 0
  %11629 = vmatpush1.bf16.xpose.msra.mxu0 %v11542
  %11630 = vmatprep.subr.bf16.mxu0 0
  %11631 = vmatpush1.bf16.xpose.msra.mxu0 %v11545
  %11632 = vmatprep.subr.bf16.mxu0 0
  %11633 = vmatpush1.bf16.xpose.msra.mxu0 %v11548
  %11634 = vmatprep.subr.bf16.mxu0 0
  %11635 = vmatpush1.bf16.xpose.msra.mxu0 %v11551
  %11636 = vmatprep.subr.bf16.mxu0 0
  %11637 = vmatpush1.bf16.xpose.msra.mxu0 %v11554
  %11638 = vmatprep.subr.bf16.mxu0 0
  %11639 = vmatpush1.bf16.xpose.msra.mxu0 %v11557
  %11640 = vmatprep.subr.bf16.mxu0 0
  %11641 = vmatpush1.bf16.xpose.msra.mxu0 %v11560
  %11642 = vmatprep.subr.bf16.mxu0 0
  %11643 = vmatpush1.bf16.xpose.msra.mxu0 %v11563
  %11644 = vmatprep.subr.bf16.mxu0 0
  %11645 = vmatpush1.bf16.xpose.msra.mxu0 %v11566
  %11646 = vmatprep.subr.bf16.mxu0 0
  %11647 = vmatpush1.bf16.xpose.msra.mxu0 %v11569
  %11648 = vmatprep.subr.bf16.mxu0 0
  %11649 = vmatpush1.bf16.xpose.msra.mxu0 %v11572
  %11650 = vmatprep.subr.bf16.mxu0 0
  %11651 = vmatpush1.bf16.xpose.msra.mxu0 %v11575
  %11652 = vmatprep.subr.bf16.mxu0 0
  %11653 = vmatpush1.bf16.xpose.msra.mxu0 %v11578
  %11654 = vmatprep.subr.bf16.mxu0 0
  %11655 = vmatpush1.bf16.xpose.msra.mxu0 %v11581
  %11656 = vmatprep.mubr.bf16.mxu0 0
  %11657 = vmatmul.mubr.bf16.gmra.mrb[0].mxu0 %v11485
  %v11658 = vpop.f32.mrb[0].mxu0
  %v11659 = vadd.f32 %v11482, %v11658
  %v11660 = vpop.f32.mrb[0].mxu0
  %v11661 = vadd.f32 %v11482, %v11660
  %v11662 = vpop.f32.mrb[0].mxu0
  %v11663 = vpop.f32.mrb[0].mxu0
  %11664 = vdwg.mxu0
  %v11665 = vtanh.pop %v11618
  %v11666 = vtanh.pop %v11620
  %v11667 = vtanh.pop %v11659
  %v11668 = vtanh.pop %v11661
  %11669 = vst [vmem:[%s9] sm:$0xff] %v11665
  %11670 = vst [vmem:[%s9 + $0x8] sm:$0xff] %v11666
  %11671 = vst [vmem:[%s9 + $0x10] sm:$0xff] %v11667
  %11672 = vst [vmem:[%s9 + $0x18] sm:$0xff] %v11668
  // Predicated region
  $region38: #{_lambda_.3} parent=0 // pred_check
    _
  $region39: #{_lambda_.3} parent=0 // pred_check_branch
    %11674 = sbr.rel (0) target = $region41
  $region40: #{_lambda_.3} parent=0 // pred_region
    _
  $region41: #{_lambda_.3} parent=0 // pred_fallthru
    _
  // Predicated region
  $region42: #{_lambda_.3} parent=0 // pred_check
    _
  $region43: #{_lambda_.3} parent=0 // pred_check_branch
    %11676 = sbr.rel (0) target = $region45
  $region44: #{_lambda_.3} parent=0 // pred_region
    _
  $region45: #{_lambda_.3} parent=0 // pred_fallthru
    _

</llo_original>
